<compile_context>
chip_gen: v7x
topology: tpu7x:2x2x1
jax: 0.10.0
libtpu: 0.0.40
codegen_flags: <defaults>
</compile_context>

<pallas_src>
import functools

import numpy as np
import jax
import jax.numpy as jnp
from jax.experimental import pallas as pl
from jax.experimental.pallas import tpu as pltpu

IN_CHANNELS = 256
MID_CHANNELS = 128
BN_EPS = 1e-5


# ----------------------------------------------------------------------------
# Host-side helpers: bilinear resize matrices (cached), layout, VMEM sizing
# ----------------------------------------------------------------------------
def _interp_matrix_np(in_size, out_size, align_corners):
    """(out_size, in_size) 1-D bilinear interpolation matrix, PyTorch semantics."""
    i = np.arange(out_size, dtype=np.float64)
    if align_corners:
        if out_size == 1:
            src = np.zeros(out_size)
        else:
            src = i * (in_size - 1) / (out_size - 1)
    else:
        src = np.maximum((i + 0.5) * (in_size / out_size) - 0.5, 0.0)
    i0 = np.clip(np.floor(src).astype(np.int64), 0, in_size - 1)
    i1 = np.minimum(i0 + 1, in_size - 1)
    w1 = src - i0
    w0 = 1.0 - w1
    m = np.zeros((out_size, in_size), dtype=np.float64)
    m[np.arange(out_size), i0] += w0
    m[np.arange(out_size), i1] += w1
    return m


@functools.lru_cache(maxsize=None)
def _kron_resize_matrix_np(hin, win, hout, wout, align_corners):
    """Pixel-axis resize matrix (hout*wout, hin*win): out_flat = M @ in_flat."""
    ah = _interp_matrix_np(hin, hout, align_corners)
    aw = _interp_matrix_np(win, wout, align_corners)
    return np.kron(ah, aw).astype(np.float32)


@functools.lru_cache(maxsize=None)
def _pag_resize_matrix(hw1, hws):
    """Row-stacked bilinear resize s1 -> each x scale (align_corners=False), bf16."""
    mats = [_kron_resize_matrix_np(hw1[0], hw1[1], h, w, False) for (h, w) in hws]
    return jnp.asarray(np.concatenate(mats, axis=0), dtype=jnp.bfloat16)


@functools.lru_cache(maxsize=None)
def _up2x_matrix(h, w):
    """2x bilinear upsample (align_corners=True) as a pixel-axis matrix, bf16."""
    return jnp.asarray(_kron_resize_matrix_np(h, w, 2 * h, 2 * w, True),
                       dtype=jnp.bfloat16)


def _nchw_to_bpc(x):
    """(B, C, H, W) -> (B, H*W, C): channels on the lane axis. Done once per input."""
    b, c, h, w = x.shape
    return jnp.transpose(x, (0, 2, 3, 1)).reshape(b, h * w, c)


def _bpc_to_nchw(x, h, w):
    b, p, c = x.shape
    return jnp.transpose(x.reshape(b, h, w, c), (0, 3, 1, 2))


def _vmem_limit(in_bytes, out_bytes, work_bytes):
    """Raise the scoped VMEM limit only when the per-step footprint needs it."""
    needed = 2 * (in_bytes + out_bytes) + work_bytes   # x2: double-buffered blocks
    default_scoped = 32 << 20                          # v6e/v7x scoped default
    try:
        cap = pltpu.get_tpu_info().vmem_capacity_bytes
    except Exception:  # pragma: no cover - conservative fallback (v7x physical)
        cap = 64 << 20
    if needed <= default_scoped:
        return None
    return int(min(needed * 5 // 4, cap * 7 // 8))


# ----------------------------------------------------------------------------
# The single fused kernel: 4x PagFM + 3x (2x-upsample + add)
# ----------------------------------------------------------------------------
def _cascade_kernel(s1_ref, s2_ref, s3_ref, s4_ref, s5_ref,
                    m_all_ref, m23_ref, m34_ref, m45_ref,
                    wx_ref, bx_ref, wy_ref, by_ref, o_ref):
    f32, bf16 = jnp.float32, jnp.bfloat16

    # ---- all four PagFM(x_i, s1) in one shot (shared weights / shared s1) ----
    # Stack every scale's pixels on the row axis; C=256 stays on lanes.
    x_all = jnp.concatenate(
        [s2_ref[0], s3_ref[0], s4_ref[0], s5_ref[0]], axis=0)           # (Pt, C)

    # Bilinear resize of s1 to every x size in ONE MXU matmul
    # (row-stacked kron matrices, align_corners=False).
    y_up = jnp.dot(m_all_ref[...], s1_ref[0].astype(bf16),
                   preferred_element_type=f32)                           # (Pt, C)

    # y-branch 1x1 conv + folded BN applied AFTER the resize: bilinear rows sum
    # to 1 and conv1x1/BN are channel-linear, so
    #   resize(BN(conv1x1(s1))) == resize(s1) @ Wy_fold + by_fold   (exact).
    y_q = jnp.dot(y_up.astype(bf16), wy_ref[...],
                  preferred_element_type=f32) + by_ref[...]              # (Pt, Cm)
    x_k = jnp.dot(x_all.astype(bf16), wx_ref[...],
                  preferred_element_type=f32) + bx_ref[...]              # (Pt, Cm)

    sim = jax.nn.sigmoid(jnp.sum(x_k * y_q, axis=-1, keepdims=True))     # (Pt, 1)
    p_all = (1.0 - sim) * x_all + sim * y_up                             # (Pt, C)

    # ---- cascade: fused 2x bilinear upsample (align_corners=True) + add -----
    p2, p3, p4 = s2_ref.shape[1], s3_ref.shape[1], s4_ref.shape[1]
    s2p = p_all[:p2]
    s3p = p_all[p2:p2 + p3]
    s4p = p_all[p2 + p3:p2 + p3 + p4]
    s5p = p_all[p2 + p3 + p4:]

    s3c = jnp.dot(m23_ref[...], s2p.astype(bf16), preferred_element_type=f32) + s3p
    s4c = jnp.dot(m34_ref[...], s3c.astype(bf16), preferred_element_type=f32) + s4p
    s5c = jnp.dot(m45_ref[...], s4c.astype(bf16), preferred_element_type=f32) + s5p
    o_ref[0] = s5c


# ----------------------------------------------------------------------------
# Wrapper
# ----------------------------------------------------------------------------
def cascade_forward(s1, s2, s3, s4, s5, params):
    b, c = s1.shape[:2]
    hw1, hw2, hw3, hw4, hw5 = (tuple(t.shape[2:]) for t in (s1, s2, s3, s4, s5))

    # The cascade residual adds require upsample(x2) sizes to match.
    assert hw3 == (2 * hw2[0], 2 * hw2[1]), (hw2, hw3)
    assert hw4 == (2 * hw3[0], 2 * hw3[1]), (hw3, hw4)
    assert hw5 == (2 * hw4[0], 2 * hw4[1]), (hw4, hw5)

    # Single NCHW -> (B, H*W, C) conversion per input.
    s1f, s2f, s3f, s4f, s5f = (_nchw_to_bpc(t) for t in (s1, s2, s3, s4, s5))
    p1, p2, p3, p4, p5 = (h * w for (h, w) in (hw1, hw2, hw3, hw4, hw5))
    pt = p2 + p3 + p4 + p5
    cm = params["wx"].shape[1]

    m_all = _pag_resize_matrix(hw1, (hw2, hw3, hw4, hw5))   # (pt, p1)  bf16
    m23 = _up2x_matrix(*hw2)                                # (p3, p2)  bf16
    m34 = _up2x_matrix(*hw3)                                # (p4, p3)  bf16
    m45 = _up2x_matrix(*hw4)                                # (p5, p4)  bf16

    wx = params["wx"]
    bx = params["bx"].reshape(1, cm)
    wy = params["wy"]
    by = params["by"].reshape(1, cm)

    # Size the scoped VMEM budget from the per-grid-step footprint (not HBM cap).
    in_bytes = ((p1 + pt) * c * 4                          # activations (f32)
                + pt * p1 * 2                              # M_all (bf16)
                + (p3 * p2 + p4 * p3 + p5 * p4) * 2        # chain matrices (bf16)
                + 2 * c * cm * 2 + 2 * cm * 4)             # weights + biases
    out_bytes = p5 * c * 4
    work_bytes = 5 * pt * c * 4 + 2 * pt * cm * 4 + 3 * p5 * c * 4
    vlim = _vmem_limit(in_bytes, out_bytes, work_bytes)

    cp_kwargs = dict(dimension_semantics=("parallel",))
    if vlim is not None:
        cp_kwargs["vmem_limit_bytes"] = vlim

    out = pl.pallas_call(
        _cascade_kernel,
        out_shape=jax.ShapeDtypeStruct((b, p5, c), jnp.float32),
        grid=(b,),
        in_specs=[
            pl.BlockSpec((1, p1, c), lambda i: (i, 0, 0)),   # s1
            pl.BlockSpec((1, p2, c), lambda i: (i, 0, 0)),   # s2
            pl.BlockSpec((1, p3, c), lambda i: (i, 0, 0)),   # s3
            pl.BlockSpec((1, p4, c), lambda i: (i, 0, 0)),   # s4
            pl.BlockSpec((1, p5, c), lambda i: (i, 0, 0)),   # s5
            pl.BlockSpec((pt, p1), lambda i: (0, 0)),        # M_all
            pl.BlockSpec((p3, p2), lambda i: (0, 0)),        # M 2x (s2->s3)
            pl.BlockSpec((p4, p3), lambda i: (0, 0)),        # M 2x (s3->s4)
            pl.BlockSpec((p5, p4), lambda i: (0, 0)),        # M 2x (s4->s5)
            pl.BlockSpec((c, cm), lambda i: (0, 0)),         # wx (folded BN)
            pl.BlockSpec((1, cm), lambda i: (0, 0)),         # bx
            pl.BlockSpec((c, cm), lambda i: (0, 0)),         # wy (folded BN)
            pl.BlockSpec((1, cm), lambda i: (0, 0)),         # by
        ],
        out_specs=pl.BlockSpec((1, p5, c), lambda i: (i, 0, 0)),
        compiler_params=pltpu.CompilerParams(**cp_kwargs),
    )(s1f, s2f, s3f, s4f, s5f, m_all, m23, m34, m45, wx, bx, wy, by)

    return _bpc_to_nchw(out, *hw5)


# ----------------------------------------------------------------------------
# Deterministic parameters: 1x1 conv weights with eval-mode BN folded in.
# ----------------------------------------------------------------------------
def make_params(key, cin=IN_CHANNELS, cmid=MID_CHANNELS):
    ks = jax.random.split(key, 10)

    def fold(wkey, gkey, bkey, mkey, vkey):
        w = jax.random.normal(wkey, (cin, cmid), jnp.float32) * (1.0 / np.sqrt(cin))
        gamma = 1.0 + 0.1 * jax.random.normal(gkey, (cmid,), jnp.float32)
        beta = 0.1 * jax.random.normal(bkey, (cmid,), jnp.float32)
        mean = 0.1 * jax.random.normal(mkey, (cmid,), jnp.float32)
        var = jnp.abs(1.0 + 0.1 * jax.random.normal(vkey, (cmid,), jnp.float32))
        scale = gamma / jnp.sqrt(var + BN_EPS)
        # bf16 matmul operands (f32 MXU accumulation in-kernel); f32 bias.
        return (w * scale[None, :]).astype(jnp.bfloat16), beta - mean * scale

    wx, bx = fold(*ks[0:5])
    wy, by = fold(*ks[5:10])
    return {"wx": wx, "bx": bx, "wy": wy, "by": by}


if __name__ == "__main__":
    key = jax.random.PRNGKey(0)
    k1, k2, k3, k4, k5, kp = jax.random.split(key, 6)

    B, C = 2, IN_CHANNELS
    s1 = jax.random.normal(k1, (B, C, 8, 8), jnp.float32)
    s2 = jax.random.normal(k2, (B, C, 4, 4), jnp.float32)
    s3 = jax.random.normal(k3, (B, C, 8, 8), jnp.float32)
    s4 = jax.random.normal(k4, (B, C, 16, 16), jnp.float32)
    s5 = jax.random.normal(k5, (B, C, 32, 32), jnp.float32)

    params = make_params(kp)

    out = cascade_forward(s1, s2, s3, s4, s5, params)
    jax.block_until_ready(out)
    assert out.shape == (B, C, 32, 32), out.shape
    assert bool(jnp.all(jnp.isfinite(out)))
    print("KERNEL_OK")
</pallas_src>

<mosaic_0001>
module attributes {stable_mosaic.version = 11 : i64} {
  func.func @_cascade_kernel(%arg0: i32, %arg1: memref<1x64x256xf32, #tpu.memory_space<vmem>>, %arg2: memref<1x16x256xf32, #tpu.memory_space<vmem>>, %arg3: memref<1x64x256xf32, #tpu.memory_space<vmem>>, %arg4: memref<1x256x256xf32, #tpu.memory_space<vmem>>, %arg5: memref<1x1024x256xf32, #tpu.memory_space<vmem>>, %arg6: memref<1360x64xbf16, #tpu.memory_space<vmem>>, %arg7: memref<64x16xbf16, #tpu.memory_space<vmem>>, %arg8: memref<256x64xbf16, #tpu.memory_space<vmem>>, %arg9: memref<1024x256xbf16, #tpu.memory_space<vmem>>, %arg10: memref<256x128xbf16, #tpu.memory_space<vmem>>, %arg11: memref<1x128xf32, #tpu.memory_space<vmem>>, %arg12: memref<256x128xbf16, #tpu.memory_space<vmem>>, %arg13: memref<1x128xf32, #tpu.memory_space<vmem>>, %arg14: memref<1x1024x256xf32, #tpu.memory_space<vmem>>) attributes {dimension_semantics = [#tpu.dimension_semantics<parallel>], iteration_bounds = array<i64: 2>, scalar_prefetch = 0 : i64, scratch_operands = 0 : i64, tpu.core_type = #tpu.core_type<tc>, window_params = [{transform_indices = @transform_0, window_bounds = array<i64: 1, 64, 256>}, {transform_indices = @transform_1, window_bounds = array<i64: 1, 16, 256>}, {transform_indices = @transform_2, window_bounds = array<i64: 1, 64, 256>}, {transform_indices = @transform_3, window_bounds = array<i64: 1, 256, 256>}, {transform_indices = @transform_4, window_bounds = array<i64: 1, 1024, 256>}, {pipeline_mode = #tpu.pipeline_mode<synchronous>, transform_indices = @transform_5, window_bounds = array<i64: 1360, 64>}, {pipeline_mode = #tpu.pipeline_mode<synchronous>, transform_indices = @transform_6, window_bounds = array<i64: 64, 16>}, {pipeline_mode = #tpu.pipeline_mode<synchronous>, transform_indices = @transform_7, window_bounds = array<i64: 256, 64>}, {pipeline_mode = #tpu.pipeline_mode<synchronous>, transform_indices = @transform_8, window_bounds = array<i64: 1024, 256>}, {pipeline_mode = #tpu.pipeline_mode<synchronous>, transform_indices = @transform_9, window_bounds = array<i64: 256, 128>}, {pipeline_mode = #tpu.pipeline_mode<synchronous>, transform_indices = @transform_10, window_bounds = array<i64: 1, 128>}, {pipeline_mode = #tpu.pipeline_mode<synchronous>, transform_indices = @transform_11, window_bounds = array<i64: 256, 128>}, {pipeline_mode = #tpu.pipeline_mode<synchronous>, transform_indices = @transform_12, window_bounds = array<i64: 1, 128>}, {transform_indices = @transform_13, window_bounds = array<i64: 1, 1024, 256>}]} {
    %c0 = arith.constant 0 : index
    %c0_0 = arith.constant 0 : index
    %c0_1 = arith.constant 0 : index
    %0 = vector.load %arg2[%c0, %c0_0, %c0_1] : memref<1x16x256xf32, #tpu.memory_space<vmem>>, vector<1x16x256xf32>
    %1 = vector.shape_cast %0 : vector<1x16x256xf32> to vector<16x256xf32>
    %c0_2 = arith.constant 0 : index
    %c0_3 = arith.constant 0 : index
    %c0_4 = arith.constant 0 : index
    %2 = vector.load %arg3[%c0_2, %c0_3, %c0_4] : memref<1x64x256xf32, #tpu.memory_space<vmem>>, vector<1x64x256xf32>
    %3 = vector.shape_cast %2 : vector<1x64x256xf32> to vector<64x256xf32>
    %c0_5 = arith.constant 0 : index
    %c0_6 = arith.constant 0 : index
    %c0_7 = arith.constant 0 : index
    %4 = vector.load %arg4[%c0_5, %c0_6, %c0_7] : memref<1x256x256xf32, #tpu.memory_space<vmem>>, vector<1x256x256xf32>
    %5 = vector.shape_cast %4 : vector<1x256x256xf32> to vector<256x256xf32>
    %c0_8 = arith.constant 0 : index
    %c0_9 = arith.constant 0 : index
    %c0_10 = arith.constant 0 : index
    %6 = vector.load %arg5[%c0_8, %c0_9, %c0_10] : memref<1x1024x256xf32, #tpu.memory_space<vmem>>, vector<1x1024x256xf32>
    %7 = vector.shape_cast %6 : vector<1x1024x256xf32> to vector<1024x256xf32>
    %8 = tpu.concatenate %1, %3, %5, %7 in 0 : vector<16x256xf32>, vector<64x256xf32>, vector<256x256xf32>, vector<1024x256xf32> -> vector<1360x256xf32>
    %c0_11 = arith.constant 0 : index
    %c0_12 = arith.constant 0 : index
    %9 = vector.load %arg6[%c0_11, %c0_12] : memref<1360x64xbf16, #tpu.memory_space<vmem>>, vector<1360x64xbf16>
    %c0_13 = arith.constant 0 : index
    %c0_14 = arith.constant 0 : index
    %c0_15 = arith.constant 0 : index
    %10 = vector.load %arg1[%c0_13, %c0_14, %c0_15] : memref<1x64x256xf32, #tpu.memory_space<vmem>>, vector<1x64x256xf32>
    %11 = vector.shape_cast %10 : vector<1x64x256xf32> to vector<64x256xf32>
    %12 = arith.truncf %11 : vector<64x256xf32> to vector<64x256xbf16>
    %cst = arith.constant dense<0.000000e+00> : vector<1360x256xf32>
    %13 = tpu.matmul %9, %12, %cst {dimension_numbers = #tpu.dot_dimension_numbers<[1], [0], [0], [1], [0, 0, 1, 1], [], []>} : vector<1360x64xbf16>, vector<64x256xbf16>, vector<1360x256xf32> -> vector<1360x256xf32>
    %14 = arith.truncf %13 : vector<1360x256xf32> to vector<1360x256xbf16>
    %c0_16 = arith.constant 0 : index
    %c0_17 = arith.constant 0 : index
    %15 = vector.load %arg12[%c0_16, %c0_17] : memref<256x128xbf16, #tpu.memory_space<vmem>>, vector<256x128xbf16>
    %cst_18 = arith.constant dense<0.000000e+00> : vector<1360x128xf32>
    %16 = tpu.matmul %14, %15, %cst_18 {dimension_numbers = #tpu.dot_dimension_numbers<[1], [0], [0], [1], [0, 0, 1, 1], [], []>} : vector<1360x256xbf16>, vector<256x128xbf16>, vector<1360x128xf32> -> vector<1360x128xf32>
    %c0_19 = arith.constant 0 : index
    %c0_20 = arith.constant 0 : index
    %17 = vector.load %arg13[%c0_19, %c0_20] : memref<1x128xf32, #tpu.memory_space<vmem>>, vector<1x128xf32>
    %18 = vector.broadcast %17 : vector<1x128xf32> to vector<1360x128xf32>
    %19 = arith.addf %16, %18 : vector<1360x128xf32>
    %20 = arith.truncf %8 : vector<1360x256xf32> to vector<1360x256xbf16>
    %c0_21 = arith.constant 0 : index
    %c0_22 = arith.constant 0 : index
    %21 = vector.load %arg10[%c0_21, %c0_22] : memref<256x128xbf16, #tpu.memory_space<vmem>>, vector<256x128xbf16>
    %cst_23 = arith.constant dense<0.000000e+00> : vector<1360x128xf32>
    %22 = tpu.matmul %20, %21, %cst_23 {dimension_numbers = #tpu.dot_dimension_numbers<[1], [0], [0], [1], [0, 0, 1, 1], [], []>} : vector<1360x256xbf16>, vector<256x128xbf16>, vector<1360x128xf32> -> vector<1360x128xf32>
    %c0_24 = arith.constant 0 : index
    %c0_25 = arith.constant 0 : index
    %23 = vector.load %arg11[%c0_24, %c0_25] : memref<1x128xf32, #tpu.memory_space<vmem>>, vector<1x128xf32>
    %24 = vector.broadcast %23 : vector<1x128xf32> to vector<1360x128xf32>
    %25 = arith.addf %22, %24 : vector<1360x128xf32>
    %26 = arith.mulf %25, %19 : vector<1360x128xf32>
    %cst_26 = arith.constant dense<0.000000e+00> : vector<1360xf32>
    %27 = vector.multi_reduction <add>, %26, %cst_26 [1] : vector<1360x128xf32> to vector<1360xf32>
    %28 = vector.shape_cast %27 : vector<1360xf32> to vector<1360x1xf32>
    %29 = arith.negf %28 : vector<1360x1xf32>
    %30 = math.exp %29 : vector<1360x1xf32>
    %cst_27 = arith.constant 1.000000e+00 : f32
    %31 = vector.broadcast %cst_27 : f32 to vector<1360x1xf32>
    %32 = arith.addf %31, %30 : vector<1360x1xf32>
    %33 = arith.divf %31, %32 : vector<1360x1xf32>
    %cst_28 = arith.constant 1.000000e+00 : f32
    %34 = vector.broadcast %cst_28 : f32 to vector<1360x1xf32>
    %35 = arith.subf %34, %33 : vector<1360x1xf32>
    %36 = vector.broadcast %35 : vector<1360x1xf32> to vector<1360x256xf32>
    %37 = arith.mulf %36, %8 : vector<1360x256xf32>
    %38 = vector.broadcast %33 : vector<1360x1xf32> to vector<1360x256xf32>
    %39 = arith.mulf %38, %13 : vector<1360x256xf32>
    %40 = arith.addf %37, %39 : vector<1360x256xf32>
    %41 = vector.extract_strided_slice %40 {offsets = [0, 0], sizes = [16, 256], strides = [1, 1]} : vector<1360x256xf32> to vector<16x256xf32>
    %42 = vector.extract_strided_slice %40 {offsets = [16, 0], sizes = [64, 256], strides = [1, 1]} : vector<1360x256xf32> to vector<64x256xf32>
    %43 = vector.extract_strided_slice %40 {offsets = [80, 0], sizes = [256, 256], strides = [1, 1]} : vector<1360x256xf32> to vector<256x256xf32>
    %44 = vector.extract_strided_slice %40 {offsets = [336, 0], sizes = [1024, 256], strides = [1, 1]} : vector<1360x256xf32> to vector<1024x256xf32>
    %c0_29 = arith.constant 0 : index
    %c0_30 = arith.constant 0 : index
    %45 = vector.load %arg7[%c0_29, %c0_30] : memref<64x16xbf16, #tpu.memory_space<vmem>>, vector<64x16xbf16>
    %46 = arith.truncf %41 : vector<16x256xf32> to vector<16x256xbf16>
    %cst_31 = arith.constant dense<0.000000e+00> : vector<64x256xf32>
    %47 = tpu.matmul %45, %46, %cst_31 {dimension_numbers = #tpu.dot_dimension_numbers<[1], [0], [0], [1], [0, 0, 1, 1], [], []>} : vector<64x16xbf16>, vector<16x256xbf16>, vector<64x256xf32> -> vector<64x256xf32>
    %48 = arith.addf %47, %42 : vector<64x256xf32>
    %c0_32 = arith.constant 0 : index
    %c0_33 = arith.constant 0 : index
    %49 = vector.load %arg8[%c0_32, %c0_33] : memref<256x64xbf16, #tpu.memory_space<vmem>>, vector<256x64xbf16>
    %50 = arith.truncf %48 : vector<64x256xf32> to vector<64x256xbf16>
    %cst_34 = arith.constant dense<0.000000e+00> : vector<256x256xf32>
    %51 = tpu.matmul %49, %50, %cst_34 {dimension_numbers = #tpu.dot_dimension_numbers<[1], [0], [0], [1], [0, 0, 1, 1], [], []>} : vector<256x64xbf16>, vector<64x256xbf16>, vector<256x256xf32> -> vector<256x256xf32>
    %52 = arith.addf %51, %43 : vector<256x256xf32>
    %c0_35 = arith.constant 0 : index
    %c0_36 = arith.constant 0 : index
    %53 = vector.load %arg9[%c0_35, %c0_36] : memref<1024x256xbf16, #tpu.memory_space<vmem>>, vector<1024x256xbf16>
    %54 = arith.truncf %52 : vector<256x256xf32> to vector<256x256xbf16>
    %cst_37 = arith.constant dense<0.000000e+00> : vector<1024x256xf32>
    %55 = tpu.matmul %53, %54, %cst_37 {dimension_numbers = #tpu.dot_dimension_numbers<[1], [0], [0], [1], [0, 0, 1, 1], [], []>} : vector<1024x256xbf16>, vector<256x256xbf16>, vector<1024x256xf32> -> vector<1024x256xf32>
    %56 = arith.addf %55, %44 : vector<1024x256xf32>
    %c0_38 = arith.constant 0 : index
    %c0_39 = arith.constant 0 : index
    %c0_40 = arith.constant 0 : index
    %57 = vector.load %arg14[%c0_38, %c0_39, %c0_40] : memref<1x1024x256xf32, #tpu.memory_space<vmem>>, vector<1x1024x256xf32>
    %58 = vector.shape_cast %57 : vector<1x1024x256xf32> to vector<1024x256xf32>
    %59 = vector.shape_cast %56 : vector<1024x256xf32> to vector<1x1024x256xf32>
    tpu.vector_store %arg14[%c0_38, %c0_39, %c0_40], %59 {strides = array<i32>} : memref<1x1024x256xf32, #tpu.memory_space<vmem>>, vector<1x1024x256xf32>,
    return
  }
  func.func @transform_0(%arg0: i32) -> (i32, i32, i32) {
    %c0_i32 = arith.constant 0 : i32
    %c0_i32_0 = arith.constant 0 : i32
    %c0_i32_1 = arith.constant 0 : i32
    return %arg0, %c0_i32, %c0_i32_0 : i32, i32, i32
  }
  func.func @transform_1(%arg0: i32) -> (i32, i32, i32) {
    %c0_i32 = arith.constant 0 : i32
    %c0_i32_0 = arith.constant 0 : i32
    %c0_i32_1 = arith.constant 0 : i32
    return %arg0, %c0_i32, %c0_i32_0 : i32, i32, i32
  }
  func.func @transform_2(%arg0: i32) -> (i32, i32, i32) {
    %c0_i32 = arith.constant 0 : i32
    %c0_i32_0 = arith.constant 0 : i32
    %c0_i32_1 = arith.constant 0 : i32
    return %arg0, %c0_i32, %c0_i32_0 : i32, i32, i32
  }
  func.func @transform_3(%arg0: i32) -> (i32, i32, i32) {
    %c0_i32 = arith.constant 0 : i32
    %c0_i32_0 = arith.constant 0 : i32
    %c0_i32_1 = arith.constant 0 : i32
    return %arg0, %c0_i32, %c0_i32_0 : i32, i32, i32
  }
  func.func @transform_4(%arg0: i32) -> (i32, i32, i32) {
    %c0_i32 = arith.constant 0 : i32
    %c0_i32_0 = arith.constant 0 : i32
    %c0_i32_1 = arith.constant 0 : i32
    return %arg0, %c0_i32, %c0_i32_0 : i32, i32, i32
  }
  func.func @transform_5(%arg0: i32) -> (i32, i32) {
    %c0_i32 = arith.constant 0 : i32
    %c0_i32_0 = arith.constant 0 : i32
    %c0_i32_1 = arith.constant 0 : i32
    return %c0_i32, %c0_i32_0 : i32, i32
  }
  func.func @transform_6(%arg0: i32) -> (i32, i32) {
    %c0_i32 = arith.constant 0 : i32
    %c0_i32_0 = arith.constant 0 : i32
    %c0_i32_1 = arith.constant 0 : i32
    return %c0_i32, %c0_i32_0 : i32, i32
  }
  func.func @transform_7(%arg0: i32) -> (i32, i32) {
    %c0_i32 = arith.constant 0 : i32
    %c0_i32_0 = arith.constant 0 : i32
    %c0_i32_1 = arith.constant 0 : i32
    return %c0_i32, %c0_i32_0 : i32, i32
  }
  func.func @transform_8(%arg0: i32) -> (i32, i32) {
    %c0_i32 = arith.constant 0 : i32
    %c0_i32_0 = arith.constant 0 : i32
    %c0_i32_1 = arith.constant 0 : i32
    return %c0_i32, %c0_i32_0 : i32, i32
  }
  func.func @transform_9(%arg0: i32) -> (i32, i32) {
    %c0_i32 = arith.constant 0 : i32
    %c0_i32_0 = arith.constant 0 : i32
    %c0_i32_1 = arith.constant 0 : i32
    return %c0_i32, %c0_i32_0 : i32, i32
  }
  func.func @transform_10(%arg0: i32) -> (i32, i32) {
    %c0_i32 = arith.constant 0 : i32
    %c0_i32_0 = arith.constant 0 : i32
    %c0_i32_1 = arith.constant 0 : i32
    return %c0_i32, %c0_i32_0 : i32, i32
  }
  func.func @transform_11(%arg0: i32) -> (i32, i32) {
    %c0_i32 = arith.constant 0 : i32
    %c0_i32_0 = arith.constant 0 : i32
    %c0_i32_1 = arith.constant 0 : i32
    return %c0_i32, %c0_i32_0 : i32, i32
  }
  func.func @transform_12(%arg0: i32) -> (i32, i32) {
    %c0_i32 = arith.constant 0 : i32
    %c0_i32_0 = arith.constant 0 : i32
    %c0_i32_1 = arith.constant 0 : i32
    return %c0_i32, %c0_i32_0 : i32, i32
  }
  func.func @transform_13(%arg0: i32) -> (i32, i32, i32) {
    %c0_i32 = arith.constant 0 : i32
    %c0_i32_0 = arith.constant 0 : i32
    %c0_i32_1 = arith.constant 0 : i32
    return %arg0, %c0_i32, %c0_i32_0 : i32, i32, i32
  }
}

</mosaic_0001>

<llo_original>
// kernel: tpu_custom_call.1
$region0: #{tpu_custom_call.1}
  #allocation0 [shape = 'u32[]', space=smem, size = 0x4, offset = 0x4, fixed_abs, tag = 'smem constant byte address 0x4 - core index']
  #allocation1 [shape = 'u32[144,128]{1,0:T(1,128)}', space=vmem, size = 0x12000, scoped, tag = 'internal scratch']
  %s0 = inlined_call_operand.hbm [shape: f32[2,64,256], index: 0, kind: input, shape index: {}]
  %s1 = inlined_call_operand.hbm [shape: f32[2,16,256], index: 1, kind: input, shape index: {}]
  %s2 = inlined_call_operand.hbm [shape: f32[2,64,256], index: 2, kind: input, shape index: {}]
  %s3 = inlined_call_operand.hbm [shape: f32[2,256,256], index: 3, kind: input, shape index: {}]
  %s4 = inlined_call_operand.hbm [shape: f32[2,1024,256], index: 4, kind: input, shape index: {}]
  %s5 = inlined_call_operand.vmem [shape: bf16[1360,64], index: 5, kind: input, shape index: {}]
  %s6 = inlined_call_operand.vmem [shape: bf16[64,16], index: 6, kind: input, shape index: {}]
  %s7 = inlined_call_operand.vmem [shape: bf16[256,64], index: 7, kind: input, shape index: {}]
  %s8 = inlined_call_operand.hbm [shape: bf16[1024,256], index: 8, kind: input, shape index: {}]
  %s9 = inlined_call_operand.hbm [shape: bf16[256,128], index: 9, kind: input, shape index: {}]
  %s10 = inlined_call_operand.hbm [shape: f32[1,128], index: 10, kind: input, shape index: {}]
  %s11 = inlined_call_operand.hbm [shape: bf16[256,128], index: 11, kind: input, shape index: {}]
  %s12 = inlined_call_operand.hbm [shape: f32[1,128], index: 12, kind: input, shape index: {}]
  %s13 = inlined_call_operand.hbm [shape: f32[2,1024,256], index: 13, kind: output, shape index: {}]
  %s14 = sld [smem:[#allocation0]]
  $region125: #{tpu_custom_call.1} parent=0
    _
  %s16 = ssub.s32 1, %s14
  %s17 = scalar_select 0, %s16, %s14
  $region1: #{tpu_custom_call.1} parent=0
    #allocation2 [shape = 'u8[131072]{0}', space=vmem, size = 0x20000, scoped, tag = 'input window, operand 0']
    #allocation3 [shape = 's32[2]{0}', space=sflag, size = 0x8, scoped, tag = 'scoped memory for tpu_custom_call.1']
    #allocation4 [shape = 's32[2]{0}', space=sflag, size = 0x8, scoped, tag = 'scoped memory for tpu_custom_call.1']
    #allocation5 [shape = 'u8[32768]{0}', space=vmem, size = 0x8000, scoped, tag = 'input window, operand 1']
    #allocation6 [shape = 's32[2]{0}', space=sflag, size = 0x8, scoped, tag = 'scoped memory for tpu_custom_call.1']
    #allocation7 [shape = 'u8[131072]{0}', space=vmem, size = 0x20000, scoped, tag = 'input window, operand 2']
    #allocation8 [shape = 'u8[524288]{0}', space=vmem, size = 0x80000, scoped, tag = 'input window, operand 3']
    #allocation9 [shape = 's32[2]{0}', space=sflag, size = 0x8, scoped, tag = 'scoped memory for tpu_custom_call.1']
    #allocation10 [shape = 'u8[2097152]{0}', space=vmem, size = 0x200000, scoped, tag = 'input window, operand 4']
    #allocation11 [shape = 'u8[524288]{0}', space=vmem, size = 0x80000, scoped, tag = 'input window, operand 8, single buffered']
    #allocation12 [shape = 's32[1]{0}', space=sflag, size = 0x4, scoped, tag = 'scoped memory for tpu_custom_call.1']
    #allocation13 [shape = 'u8[65536]{0}', space=vmem, size = 0x10000, scoped, tag = 'input window, operand 9, single buffered']
    #allocation14 [shape = 'u8[512]{0}', space=vmem, size = 0x400, scoped, tag = 'input window, operand 10, single buffered']
    #allocation15 [shape = 's32[1]{0}', space=sflag, size = 0x4, scoped, tag = 'scoped memory for tpu_custom_call.1']
    #allocation16 [shape = 'u8[65536]{0}', space=vmem, size = 0x10000, scoped, tag = 'input window, operand 11, single buffered']
    #allocation17 [shape = 'u8[512]{0}', space=vmem, size = 0x400, scoped, tag = 'input window, operand 12, single buffered']
    #allocation18 [shape = 's32[1]{0}', space=sflag, size = 0x4, scoped, tag = 'scoped memory for tpu_custom_call.1']
    #allocation19 [shape = 'u8[2097152]{0}', space=vmem, size = 0x200000, scoped, tag = 'output window, operand 0']
    %18 = vsyncpa [#allocation3], 0
    %s19 = scalar_lea.sflag [#allocation3], 1
    %20 = vsyncpa %s19, 0
    %21 = vsyncpa [#allocation6], 0
    %s22 = scalar_lea.sflag [#allocation6], 1
    %23 = vsyncpa %s22, 0
    %24 = vsyncpa [#allocation9], 0
    %s25 = scalar_lea.sflag [#allocation9], 1
    %26 = vsyncpa %s25, 0
    %27 = vsyncpa [#allocation12], 0
    %28 = vsyncpa [#allocation15], 0
    %29 = vsyncpa [#allocation18], 0
    %30 = vsyncpa [#allocation4], 0
    %s31 = scalar_lea.sflag [#allocation4], 1
    %32 = vsyncpa %s31, 0
    loop: start=0, step=1, limit=4
    $region2: #{tpu_custom_call.1} parent=1 // loop_pre_header
      _
    $region3: #{tpu_custom_call.1} parent=1 // loop_header
      %s34 = sphi 0, %s38
      %p35 = scmp.ge.s32.totalorder %s34, 4
      %s44 = sphi 0, %s46
      %s47 = sphi 0, %s44
      %s48 = sphi 0, %s47
      %s64 = sphi 0, %s48
      %s70 = sphi 0, %s72
      %s73 = sphi 0, %s70
      %s74 = sphi 0, %s73
      %s90 = sphi 0, %s74
      %s96 = sphi 0, %s98
      %s99 = sphi 0, %s96
      %s100 = sphi 0, %s99
      %s116 = sphi 0, %s100
      %s122 = sphi 0, %s124
      %s125 = sphi 0, %s122
      %s126 = sphi 0, %s125
      %s142 = sphi 0, %s126
      %s148 = sphi 0, %s150
      %s151 = sphi 0, %s148
      %s152 = sphi 0, %s151
      %s168 = sphi 0, %s152
      %s172 = sphi 0, %s172
      %s174 = sphi 0, %s172
      %s175 = sphi 0, %s174
      %s189 = sphi 0, %s175
      %s193 = sphi 0, %s193
      %s195 = sphi 0, %s193
      %s196 = sphi 0, %s195
      %s210 = sphi 0, %s196
      %s214 = sphi 0, %s214
      %s216 = sphi 0, %s214
      %s217 = sphi 0, %s216
      %s231 = sphi 0, %s217
      %s235 = sphi 0, %s235
      %s237 = sphi 0, %s235
      %s238 = sphi 0, %s237
      %s252 = sphi 0, %s238
      %s256 = sphi 0, %s256
      %s258 = sphi 0, %s256
      %s259 = sphi 0, %s258
      %s273 = sphi 0, %s259
      %s277 = sphi 0, %s277
      %s279 = sphi 0, %s277
      %s280 = sphi 0, %s279
      %s294 = sphi 0, %s280
      %s298 = sphi 0, %s298
      %s300 = sphi 0, %s298
      %s301 = sphi 0, %s300
      %s315 = sphi 0, %s301
      %s319 = sphi 0, %s319
      %s321 = sphi 0, %s319
      %s322 = sphi 0, %s321
      %s336 = sphi 0, %s322
      %s342 = sphi 0, %s344
      %s345 = sphi 0, %s342
      %s346 = sphi 0, %s345
      %s362 = sphi 0, %s346
    $region4: #{tpu_custom_call.1} parent=1 // loop_header_branch
      %37 = sbr.rel (%p35) target = $region8
    $region5: #{tpu_custom_call.1} parent=1 // loop_body
      %s39 = ssub.s32 %s34, 1
      %s40 = ssub.s32 %s34, 2
      %s41 = sadd.s32 %s34, 1
      %s42 = ssub.s32 %s34, %s41
      %p43 = scmp.eq.s32.totalorder %s42, 0
      %s45 = sadd.s32 %s44, 1
      %s46 = scalar_select %p43, %s44, %s45
      %p49 = pneg %p43
      %p50 = scmp.eq.s32.totalorder %s34, 1
      %p51 = por %p49, %p50
      %p52 = scmp.ne.s32.totalorder %s44, %s47
      %p53 = scmp.eq.s32.totalorder %s34, 0
      %p54 = por %p52, %p53
      %p55 = scmp.ne.s32.totalorder %s44, %s47
      %p56 = scmp.eq.s32.totalorder %s39, 1
      %p57 = por %p55, %p56
      %p58 = scmp.ne.s32.totalorder %s47, %s48
      %p59 = scmp.eq.s32.totalorder %s39, 0
      %p60 = por %p58, %p59
      %p61 = scmp.ne.s32.totalorder %s47, %s48
      %p62 = scmp.eq.s32.totalorder %s40, 1
      %p63 = por %p61, %p62
      %p65 = scmp.ne.s32.totalorder %s48, %s64
      %p66 = scmp.eq.s32.totalorder %s40, 0
      %p67 = por %p65, %p66
      %s68 = ssub.s32 %s34, %s41
      %p69 = scmp.eq.s32.totalorder %s68, 0
      %s71 = sadd.s32 %s70, 1
      %s72 = scalar_select %p69, %s70, %s71
      %p75 = pneg %p69
      %p76 = scmp.eq.s32.totalorder %s34, 1
      %p77 = por %p75, %p76
      %p78 = scmp.ne.s32.totalorder %s70, %s73
      %p79 = scmp.eq.s32.totalorder %s34, 0
      %p80 = por %p78, %p79
      %p81 = scmp.ne.s32.totalorder %s70, %s73
      %p82 = scmp.eq.s32.totalorder %s39, 1
      %p83 = por %p81, %p82
      %p84 = scmp.ne.s32.totalorder %s73, %s74
      %p85 = scmp.eq.s32.totalorder %s39, 0
      %p86 = por %p84, %p85
      %p87 = scmp.ne.s32.totalorder %s73, %s74
      %p88 = scmp.eq.s32.totalorder %s40, 1
      %p89 = por %p87, %p88
      %p91 = scmp.ne.s32.totalorder %s74, %s90
      %p92 = scmp.eq.s32.totalorder %s40, 0
      %p93 = por %p91, %p92
      %s94 = ssub.s32 %s34, %s41
      %p95 = scmp.eq.s32.totalorder %s94, 0
      %s97 = sadd.s32 %s96, 1
      %s98 = scalar_select %p95, %s96, %s97
      %p101 = pneg %p95
      %p102 = scmp.eq.s32.totalorder %s34, 1
      %p103 = por %p101, %p102
      %p104 = scmp.ne.s32.totalorder %s96, %s99
      %p105 = scmp.eq.s32.totalorder %s34, 0
      %p106 = por %p104, %p105
      %p107 = scmp.ne.s32.totalorder %s96, %s99
      %p108 = scmp.eq.s32.totalorder %s39, 1
      %p109 = por %p107, %p108
      %p110 = scmp.ne.s32.totalorder %s99, %s100
      %p111 = scmp.eq.s32.totalorder %s39, 0
      %p112 = por %p110, %p111
      %p113 = scmp.ne.s32.totalorder %s99, %s100
      %p114 = scmp.eq.s32.totalorder %s40, 1
      %p115 = por %p113, %p114
      %p117 = scmp.ne.s32.totalorder %s100, %s116
      %p118 = scmp.eq.s32.totalorder %s40, 0
      %p119 = por %p117, %p118
      %s120 = ssub.s32 %s34, %s41
      %p121 = scmp.eq.s32.totalorder %s120, 0
      %s123 = sadd.s32 %s122, 1
      %s124 = scalar_select %p121, %s122, %s123
      %p127 = pneg %p121
      %p128 = scmp.eq.s32.totalorder %s34, 1
      %p129 = por %p127, %p128
      %p130 = scmp.ne.s32.totalorder %s122, %s125
      %p131 = scmp.eq.s32.totalorder %s34, 0
      %p132 = por %p130, %p131
      %p133 = scmp.ne.s32.totalorder %s122, %s125
      %p134 = scmp.eq.s32.totalorder %s39, 1
      %p135 = por %p133, %p134
      %p136 = scmp.ne.s32.totalorder %s125, %s126
      %p137 = scmp.eq.s32.totalorder %s39, 0
      %p138 = por %p136, %p137
      %p139 = scmp.ne.s32.totalorder %s125, %s126
      %p140 = scmp.eq.s32.totalorder %s40, 1
      %p141 = por %p139, %p140
      %p143 = scmp.ne.s32.totalorder %s126, %s142
      %p144 = scmp.eq.s32.totalorder %s40, 0
      %p145 = por %p143, %p144
      %s146 = ssub.s32 %s34, %s41
      %p147 = scmp.eq.s32.totalorder %s146, 0
      %s149 = sadd.s32 %s148, 1
      %s150 = scalar_select %p147, %s148, %s149
      %p153 = pneg %p147
      %p154 = scmp.eq.s32.totalorder %s34, 1
      %p155 = por %p153, %p154
      %p156 = scmp.ne.s32.totalorder %s148, %s151
      %p157 = scmp.eq.s32.totalorder %s34, 0
      %p158 = por %p156, %p157
      %p159 = scmp.ne.s32.totalorder %s148, %s151
      %p160 = scmp.eq.s32.totalorder %s39, 1
      %p161 = por %p159, %p160
      %p162 = scmp.ne.s32.totalorder %s151, %s152
      %p163 = scmp.eq.s32.totalorder %s39, 0
      %p164 = por %p162, %p163
      %p165 = scmp.ne.s32.totalorder %s151, %s152
      %p166 = scmp.eq.s32.totalorder %s40, 1
      %p167 = por %p165, %p166
      %p169 = scmp.ne.s32.totalorder %s152, %s168
      %p170 = scmp.eq.s32.totalorder %s40, 0
      %p171 = por %p169, %p170
      %s173 = sadd.s32 %s172, 1
      %p176 = scmp.eq.s32.totalorder %s34, 1
      %p177 = scmp.ne.s32.totalorder %s172, %s174
      %p178 = scmp.eq.s32.totalorder %s34, 0
      %p179 = por %p177, %p178
      %p180 = scmp.ne.s32.totalorder %s172, %s174
      %p181 = scmp.eq.s32.totalorder %s39, 1
      %p182 = por %p180, %p181
      %p183 = scmp.ne.s32.totalorder %s174, %s175
      %p184 = scmp.eq.s32.totalorder %s39, 0
      %p185 = por %p183, %p184
      %p186 = scmp.ne.s32.totalorder %s174, %s175
      %p187 = scmp.eq.s32.totalorder %s40, 1
      %p188 = por %p186, %p187
      %p190 = scmp.ne.s32.totalorder %s175, %s189
      %p191 = scmp.eq.s32.totalorder %s40, 0
      %p192 = por %p190, %p191
      %s194 = sadd.s32 %s193, 1
      %p197 = scmp.eq.s32.totalorder %s34, 1
      %p198 = scmp.ne.s32.totalorder %s193, %s195
      %p199 = scmp.eq.s32.totalorder %s34, 0
      %p200 = por %p198, %p199
      %p201 = scmp.ne.s32.totalorder %s193, %s195
      %p202 = scmp.eq.s32.totalorder %s39, 1
      %p203 = por %p201, %p202
      %p204 = scmp.ne.s32.totalorder %s195, %s196
      %p205 = scmp.eq.s32.totalorder %s39, 0
      %p206 = por %p204, %p205
      %p207 = scmp.ne.s32.totalorder %s195, %s196
      %p208 = scmp.eq.s32.totalorder %s40, 1
      %p209 = por %p207, %p208
      %p211 = scmp.ne.s32.totalorder %s196, %s210
      %p212 = scmp.eq.s32.totalorder %s40, 0
      %p213 = por %p211, %p212
      %s215 = sadd.s32 %s214, 1
      %p218 = scmp.eq.s32.totalorder %s34, 1
      %p219 = scmp.ne.s32.totalorder %s214, %s216
      %p220 = scmp.eq.s32.totalorder %s34, 0
      %p221 = por %p219, %p220
      %p222 = scmp.ne.s32.totalorder %s214, %s216
      %p223 = scmp.eq.s32.totalorder %s39, 1
      %p224 = por %p222, %p223
      %p225 = scmp.ne.s32.totalorder %s216, %s217
      %p226 = scmp.eq.s32.totalorder %s39, 0
      %p227 = por %p225, %p226
      %p228 = scmp.ne.s32.totalorder %s216, %s217
      %p229 = scmp.eq.s32.totalorder %s40, 1
      %p230 = por %p228, %p229
      %p232 = scmp.ne.s32.totalorder %s217, %s231
      %p233 = scmp.eq.s32.totalorder %s40, 0
      %p234 = por %p232, %p233
      %s236 = sadd.s32 %s235, 1
      %p239 = scmp.eq.s32.totalorder %s34, 1
      %p240 = scmp.ne.s32.totalorder %s235, %s237
      %p241 = scmp.eq.s32.totalorder %s34, 0
      %p242 = por %p240, %p241
      %p243 = scmp.ne.s32.totalorder %s235, %s237
      %p244 = scmp.eq.s32.totalorder %s39, 1
      %p245 = por %p243, %p244
      %p246 = scmp.ne.s32.totalorder %s237, %s238
      %p247 = scmp.eq.s32.totalorder %s39, 0
      %p248 = por %p246, %p247
      %p249 = scmp.ne.s32.totalorder %s237, %s238
      %p250 = scmp.eq.s32.totalorder %s40, 1
      %p251 = por %p249, %p250
      %p253 = scmp.ne.s32.totalorder %s238, %s252
      %p254 = scmp.eq.s32.totalorder %s40, 0
      %p255 = por %p253, %p254
      %s257 = sadd.s32 %s256, 1
      %p260 = scmp.eq.s32.totalorder %s34, 1
      %p261 = scmp.ne.s32.totalorder %s256, %s258
      %p262 = scmp.eq.s32.totalorder %s34, 0
      %p263 = por %p261, %p262
      %p264 = scmp.ne.s32.totalorder %s256, %s258
      %p265 = scmp.eq.s32.totalorder %s39, 1
      %p266 = por %p264, %p265
      %p267 = scmp.ne.s32.totalorder %s258, %s259
      %p268 = scmp.eq.s32.totalorder %s39, 0
      %p269 = por %p267, %p268
      %p270 = scmp.ne.s32.totalorder %s258, %s259
      %p271 = scmp.eq.s32.totalorder %s40, 1
      %p272 = por %p270, %p271
      %p274 = scmp.ne.s32.totalorder %s259, %s273
      %p275 = scmp.eq.s32.totalorder %s40, 0
      %p276 = por %p274, %p275
      %s278 = sadd.s32 %s277, 1
      %p281 = scmp.eq.s32.totalorder %s34, 1
      %p282 = scmp.ne.s32.totalorder %s277, %s279
      %p283 = scmp.eq.s32.totalorder %s34, 0
      %p284 = por %p282, %p283
      %p285 = scmp.ne.s32.totalorder %s277, %s279
      %p286 = scmp.eq.s32.totalorder %s39, 1
      %p287 = por %p285, %p286
      %p288 = scmp.ne.s32.totalorder %s279, %s280
      %p289 = scmp.eq.s32.totalorder %s39, 0
      %p290 = por %p288, %p289
      %p291 = scmp.ne.s32.totalorder %s279, %s280
      %p292 = scmp.eq.s32.totalorder %s40, 1
      %p293 = por %p291, %p292
      %p295 = scmp.ne.s32.totalorder %s280, %s294
      %p296 = scmp.eq.s32.totalorder %s40, 0
      %p297 = por %p295, %p296
      %s299 = sadd.s32 %s298, 1
      %p302 = scmp.eq.s32.totalorder %s34, 1
      %p303 = scmp.ne.s32.totalorder %s298, %s300
      %p304 = scmp.eq.s32.totalorder %s34, 0
      %p305 = por %p303, %p304
      %p306 = scmp.ne.s32.totalorder %s298, %s300
      %p307 = scmp.eq.s32.totalorder %s39, 1
      %p308 = por %p306, %p307
      %p309 = scmp.ne.s32.totalorder %s300, %s301
      %p310 = scmp.eq.s32.totalorder %s39, 0
      %p311 = por %p309, %p310
      %p312 = scmp.ne.s32.totalorder %s300, %s301
      %p313 = scmp.eq.s32.totalorder %s40, 1
      %p314 = por %p312, %p313
      %p316 = scmp.ne.s32.totalorder %s301, %s315
      %p317 = scmp.eq.s32.totalorder %s40, 0
      %p318 = por %p316, %p317
      %s320 = sadd.s32 %s319, 1
      %p323 = scmp.eq.s32.totalorder %s34, 1
      %p324 = scmp.ne.s32.totalorder %s319, %s321
      %p325 = scmp.eq.s32.totalorder %s34, 0
      %p326 = por %p324, %p325
      %p327 = scmp.ne.s32.totalorder %s319, %s321
      %p328 = scmp.eq.s32.totalorder %s39, 1
      %p329 = por %p327, %p328
      %p330 = scmp.ne.s32.totalorder %s321, %s322
      %p331 = scmp.eq.s32.totalorder %s39, 0
      %p332 = por %p330, %p331
      %p333 = scmp.ne.s32.totalorder %s321, %s322
      %p334 = scmp.eq.s32.totalorder %s40, 1
      %p335 = por %p333, %p334
      %p337 = scmp.ne.s32.totalorder %s322, %s336
      %p338 = scmp.eq.s32.totalorder %s40, 0
      %p339 = por %p337, %p338
      %s340 = ssub.s32 %s34, %s41
      %p341 = scmp.eq.s32.totalorder %s340, 0
      %s343 = sadd.s32 %s342, 1
      %s344 = scalar_select %p341, %s342, %s343
      %p347 = pneg %p341
      %p348 = scmp.eq.s32.totalorder %s34, 1
      %p349 = por %p347, %p348
      %p350 = scmp.ne.s32.totalorder %s342, %s345
      %p351 = scmp.eq.s32.totalorder %s34, 0
      %p352 = por %p350, %p351
      %p353 = scmp.ne.s32.totalorder %s342, %s345
      %p354 = scmp.eq.s32.totalorder %s39, 1
      %p355 = por %p353, %p354
      %p356 = scmp.ne.s32.totalorder %s345, %s346
      %p357 = scmp.eq.s32.totalorder %s39, 0
      %p358 = por %p356, %p357
      %p359 = scmp.ne.s32.totalorder %s345, %s346
      %p360 = scmp.eq.s32.totalorder %s40, 1
      %p361 = por %p359, %p360
      %p363 = scmp.ne.s32.totalorder %s346, %s362
      %p364 = scmp.eq.s32.totalorder %s40, 0
      %p365 = por %p363, %p364
      %p366 = scmp.le.s32.totalorder 1, %s34
      %p367 = scmp.lt.s32.totalorder %s34, 3
      %p368 = pnand %p366, %p367
      %p369 = pneg %p368
      // Predicated region
      $region9: #{tpu_custom_call.1} parent=5 // pred_check
        _
      $region10: #{tpu_custom_call.1} parent=5 // pred_check_branch
        %371 = sbr.rel (%p368) target = $region12
      $region11: #{tpu_custom_call.1} parent=5 // pred_region
        %s372 = ssub.s32 %s34, 1
        // Predicated region
        $region13: #{tpu_custom_call.1} parent=11 // pred_check
          %p373 = pneg %p185
        $region14: #{tpu_custom_call.1} parent=11 // pred_check_branch
          %375 = sbr.rel (%p373) target = $region16
        $region15: #{tpu_custom_call.1} parent=11 // pred_region
          _
        $region16: #{tpu_custom_call.1} parent=11 // pred_fallthru
          _
        // Predicated region
        $region17: #{tpu_custom_call.1} parent=11 // pred_check
          %p376 = pneg %p206
        $region18: #{tpu_custom_call.1} parent=11 // pred_check_branch
          %378 = sbr.rel (%p376) target = $region20
        $region19: #{tpu_custom_call.1} parent=11 // pred_region
          _
        $region20: #{tpu_custom_call.1} parent=11 // pred_fallthru
          _
        // Predicated region
        $region21: #{tpu_custom_call.1} parent=11 // pred_check
          %p379 = pneg %p227
        $region22: #{tpu_custom_call.1} parent=11 // pred_check_branch
          %381 = sbr.rel (%p379) target = $region24
        $region23: #{tpu_custom_call.1} parent=11 // pred_region
          _
        $region24: #{tpu_custom_call.1} parent=11 // pred_fallthru
          _
        // Predicated region
        $region25: #{tpu_custom_call.1} parent=11 // pred_check
          %p382 = pneg %p248
        $region26: #{tpu_custom_call.1} parent=11 // pred_check_branch
          %384 = sbr.rel (%p382) target = $region28
        $region27: #{tpu_custom_call.1} parent=11 // pred_region
          %s386 = ssub.s32 16384, 16384
          %387 = vsyncadd [#allocation12], %s386
          %s388 = sshll.u32 [#allocation11], 4
          %s389 = int_to_ptr.vmem [resolvable:$true] %s388
          %394 = dma.hbm_to_vmem [thread:$0]  %s8, 16384, %s389, [#allocation12], 128, 128, 8
        $region28: #{tpu_custom_call.1} parent=11 // pred_fallthru
          _
        // Predicated region
        $region29: #{tpu_custom_call.1} parent=11 // pred_check
          %p395 = pneg %p269
        $region30: #{tpu_custom_call.1} parent=11 // pred_check_branch
          %397 = sbr.rel (%p395) target = $region32
        $region31: #{tpu_custom_call.1} parent=11 // pred_region
          %s399 = ssub.s32 2048, 2048
          %400 = vsyncadd [#allocation12], %s399
          %s401 = sshll.u32 [#allocation13], 4
          %s402 = int_to_ptr.vmem [resolvable:$true] %s401
          %407 = dma.hbm_to_vmem [thread:$0]  %s9, 2048, %s402, [#allocation12], 64, 64, 4
        $region32: #{tpu_custom_call.1} parent=11 // pred_fallthru
          _
        // Predicated region
        $region33: #{tpu_custom_call.1} parent=11 // pred_check
          %p408 = pneg %p290
        $region34: #{tpu_custom_call.1} parent=11 // pred_check_branch
          %410 = sbr.rel (%p408) target = $region36
        $region35: #{tpu_custom_call.1} parent=11 // pred_region
          %s412 = ssub.s32 16, 16
          %413 = vsyncadd [#allocation15], %s412
          %s415 = sshll.u32 [#allocation14], 4
          %s416 = int_to_ptr.vmem [resolvable:$true] %s415
          %418 = dma.hbm_to_vmem [thread:$0]  %s10, 16, %s416, [#allocation15]
        $region36: #{tpu_custom_call.1} parent=11 // pred_fallthru
          _
        // Predicated region
        $region37: #{tpu_custom_call.1} parent=11 // pred_check
          %p419 = pneg %p311
        $region38: #{tpu_custom_call.1} parent=11 // pred_check_branch
          %421 = sbr.rel (%p419) target = $region40
        $region39: #{tpu_custom_call.1} parent=11 // pred_region
          %s423 = ssub.s32 2048, 2048
          %424 = vsyncadd [#allocation15], %s423
          %s425 = sshll.u32 [#allocation16], 4
          %s426 = int_to_ptr.vmem [resolvable:$true] %s425
          %431 = dma.hbm_to_vmem [thread:$0]  %s11, 2048, %s426, [#allocation15], 64, 64, 4
        $region40: #{tpu_custom_call.1} parent=11 // pred_fallthru
          _
        // Predicated region
        $region41: #{tpu_custom_call.1} parent=11 // pred_check
          %p432 = pneg %p332
        $region42: #{tpu_custom_call.1} parent=11 // pred_check_branch
          %434 = sbr.rel (%p432) target = $region44
        $region43: #{tpu_custom_call.1} parent=11 // pred_region
          %s436 = ssub.s32 16, 16
          %437 = vsyncadd [#allocation18], %s436
          %s439 = sshll.u32 [#allocation17], 4
          %s440 = int_to_ptr.vmem [resolvable:$true] %s439
          %442 = dma.hbm_to_vmem [thread:$0]  %s12, 16, %s440, [#allocation18]
        $region44: #{tpu_custom_call.1} parent=11 // pred_fallthru
          _
      $region12: #{tpu_custom_call.1} parent=5 // pred_fallthru
        _
      %p443 = scmp.lt.s32.totalorder %s34, 2
      // Predicated region
      $region45: #{tpu_custom_call.1} parent=5 // pred_check
        %p444 = pneg %p443
      $region46: #{tpu_custom_call.1} parent=5 // pred_check_branch
        %446 = sbr.rel (%p444) target = $region48
      $region47: #{tpu_custom_call.1} parent=5 // pred_region
        // Predicated region
        $region49: #{tpu_custom_call.1} parent=47 // pred_check
          %p447 = pneg %p54
        $region50: #{tpu_custom_call.1} parent=47 // pred_check_branch
          %449 = sbr.rel (%p447) target = $region52
        $region51: #{tpu_custom_call.1} parent=47 // pred_region
          %s450 = sand.u32 %s44, 1
          %s451 = scalar_lea.sflag [#allocation3], %s450
          %s452 = sand.u32 %s44, 1
          %s453 = smul.addr %s452, 128
          %s454 = scalar_lea.vmem [#allocation2], %s453
          %s456 = ssub.s32 2048, 2048
          %457 = vsyncadd %s451, %s456
          %s458 = smul.addr %s34, 16
          %s459 = smul.addr %s458, 128
          %s460 = scalar_lea.hbm %s0, %s459
          %s461 = sshll.u32 %s454, 4
          %s462 = int_to_ptr.vmem [resolvable:$true] %s461
          %467 = dma.hbm_to_vmem [thread:$0]  %s460, 2048, %s462, %s451, 256, 256, 16
        $region52: #{tpu_custom_call.1} parent=47 // pred_fallthru
          _
        // Predicated region
        $region53: #{tpu_custom_call.1} parent=47 // pred_check
          %p468 = pneg %p80
        $region54: #{tpu_custom_call.1} parent=47 // pred_check_branch
          %470 = sbr.rel (%p468) target = $region56
        $region55: #{tpu_custom_call.1} parent=47 // pred_region
          %s471 = sand.u32 %s34, 1
          %s472 = scalar_lea.sflag [#allocation6], %s471
          %s473 = sand.u32 %s70, 1
          %s474 = smul.addr %s473, 32
          %s475 = scalar_lea.vmem [#allocation5], %s474
          %s477 = ssub.s32 512, 512
          %478 = vsyncadd %s472, %s477
          %s479 = smul.addr %s34, 4
          %s480 = smul.addr %s479, 128
          %s481 = scalar_lea.hbm %s1, %s480
          %s482 = sshll.u32 %s475, 4
          %s483 = int_to_ptr.vmem [resolvable:$true] %s482
          %488 = dma.hbm_to_vmem [thread:$0]  %s481, 512, %s483, %s472, 256, 256, 16
        $region56: #{tpu_custom_call.1} parent=47 // pred_fallthru
          _
        // Predicated region
        $region57: #{tpu_custom_call.1} parent=47 // pred_check
          %p489 = pneg %p106
        $region58: #{tpu_custom_call.1} parent=47 // pred_check_branch
          %491 = sbr.rel (%p489) target = $region60
        $region59: #{tpu_custom_call.1} parent=47 // pred_region
          %s492 = sand.u32 %s34, 1
          %s493 = scalar_lea.sflag [#allocation6], %s492
          %s494 = sand.u32 %s96, 1
          %s495 = smul.addr %s494, 128
          %s496 = scalar_lea.vmem [#allocation7], %s495
          %s498 = ssub.s32 2048, 2048
          %499 = vsyncadd %s493, %s498
          %s500 = smul.addr %s34, 16
          %s501 = smul.addr %s500, 128
          %s502 = scalar_lea.hbm %s2, %s501
          %s503 = sshll.u32 %s496, 4
          %s504 = int_to_ptr.vmem [resolvable:$true] %s503
          %509 = dma.hbm_to_vmem [thread:$0]  %s502, 2048, %s504, %s493, 256, 256, 16
        $region60: #{tpu_custom_call.1} parent=47 // pred_fallthru
          _
        // Predicated region
        $region61: #{tpu_custom_call.1} parent=47 // pred_check
          %p510 = pneg %p132
        $region62: #{tpu_custom_call.1} parent=47 // pred_check_branch
          %512 = sbr.rel (%p510) target = $region64
        $region63: #{tpu_custom_call.1} parent=47 // pred_region
          %s513 = sand.u32 %s34, 1
          %s514 = scalar_lea.sflag [#allocation9], %s513
          %s515 = sand.u32 %s122, 1
          %s516 = smul.addr %s515, 512
          %s517 = scalar_lea.vmem [#allocation8], %s516
          %s519 = ssub.s32 8192, 8192
          %520 = vsyncadd %s514, %s519
          %s521 = smul.addr %s34, 64
          %s522 = smul.addr %s521, 128
          %s523 = scalar_lea.hbm %s3, %s522
          %s524 = sshll.u32 %s517, 4
          %s525 = int_to_ptr.vmem [resolvable:$true] %s524
          %530 = dma.hbm_to_vmem [thread:$0]  %s523, 8192, %s525, %s514, 256, 256, 16
        $region64: #{tpu_custom_call.1} parent=47 // pred_fallthru
          _
        // Predicated region
        $region65: #{tpu_custom_call.1} parent=47 // pred_check
          %p531 = pneg %p158
        $region66: #{tpu_custom_call.1} parent=47 // pred_check_branch
          %533 = sbr.rel (%p531) target = $region68
        $region67: #{tpu_custom_call.1} parent=47 // pred_region
          %s534 = sand.u32 %s34, 1
          %s535 = scalar_lea.sflag [#allocation9], %s534
          %s536 = sand.u32 %s148, 1
          %s537 = smul.addr %s536, 2048
          %s538 = scalar_lea.vmem [#allocation10], %s537
          %s540 = ssub.s32 32768, 32768
          %541 = vsyncadd %s535, %s540
          %s542 = smul.addr %s34, 256
          %s543 = smul.addr %s542, 128
          %s544 = scalar_lea.hbm %s4, %s543
          %s545 = sshll.u32 %s538, 4
          %s546 = int_to_ptr.vmem [resolvable:$true] %s545
          %551 = dma.hbm_to_vmem [thread:$0]  %s544, 32768, %s546, %s535, 256, 256, 16
        $region68: #{tpu_custom_call.1} parent=47 // pred_fallthru
          _
      $region48: #{tpu_custom_call.1} parent=5 // pred_fallthru
        _
      %p552 = scmp.le.s32.totalorder 1, %s34
      %p553 = scmp.lt.s32.totalorder %s34, 3
      %p554 = pnand %p552, %p553
      %p555 = pneg %p554
      // Predicated region
      $region69: #{tpu_custom_call.1} parent=5 // pred_check
        _
      $region70: #{tpu_custom_call.1} parent=5 // pred_check_branch
        %557 = sbr.rel (%p554) target = $region72
      $region71: #{tpu_custom_call.1} parent=5 // pred_region
        %s558 = ssub.s32 %s34, 1
        %s559 = sand.u32 %s47, 1
        %s560 = scalar_lea.sflag [#allocation3], %s559
        %s561 = sand.u32 %s47, 1
        %s562 = smul.addr %s561, 128
        %s563 = scalar_lea.vmem [#allocation2], %s562
        // Predicated region
        $region73: #{tpu_custom_call.1} parent=71 // pred_check
          %p564 = pneg %p60
        $region74: #{tpu_custom_call.1} parent=71 // pred_check_branch
          %566 = sbr.rel (%p564) target = $region76
        $region75: #{tpu_custom_call.1} parent=71 // pred_region
          %567 = dma.done %s560, 2048
        $region76: #{tpu_custom_call.1} parent=71 // pred_fallthru
          _
        %s568 = sand.u32 %s39, 1
        %s569 = scalar_lea.sflag [#allocation6], %s568
        %s570 = sand.u32 %s73, 1
        %s571 = smul.addr %s570, 32
        %s572 = scalar_lea.vmem [#allocation5], %s571
        // Predicated region
        $region77: #{tpu_custom_call.1} parent=71 // pred_check
          %p573 = pneg %p86
        $region78: #{tpu_custom_call.1} parent=71 // pred_check_branch
          %575 = sbr.rel (%p573) target = $region80
        $region79: #{tpu_custom_call.1} parent=71 // pred_region
          %576 = dma.done %s569, 512
        $region80: #{tpu_custom_call.1} parent=71 // pred_fallthru
          _
        %s577 = sand.u32 %s39, 1
        %s578 = scalar_lea.sflag [#allocation6], %s577
        %s579 = sand.u32 %s99, 1
        %s580 = smul.addr %s579, 128
        %s581 = scalar_lea.vmem [#allocation7], %s580
        // Predicated region
        $region81: #{tpu_custom_call.1} parent=71 // pred_check
          %p582 = pneg %p112
        $region82: #{tpu_custom_call.1} parent=71 // pred_check_branch
          %584 = sbr.rel (%p582) target = $region84
        $region83: #{tpu_custom_call.1} parent=71 // pred_region
          %585 = dma.done %s578, 2048
        $region84: #{tpu_custom_call.1} parent=71 // pred_fallthru
          _
        %s586 = sand.u32 %s39, 1
        %s587 = scalar_lea.sflag [#allocation9], %s586
        %s588 = sand.u32 %s125, 1
        %s589 = smul.addr %s588, 512
        %s590 = scalar_lea.vmem [#allocation8], %s589
        // Predicated region
        $region85: #{tpu_custom_call.1} parent=71 // pred_check
          %p591 = pneg %p138
        $region86: #{tpu_custom_call.1} parent=71 // pred_check_branch
          %593 = sbr.rel (%p591) target = $region88
        $region87: #{tpu_custom_call.1} parent=71 // pred_region
          %594 = dma.done %s587, 8192
        $region88: #{tpu_custom_call.1} parent=71 // pred_fallthru
          _
        %s595 = sand.u32 %s39, 1
        %s596 = scalar_lea.sflag [#allocation9], %s595
        %s597 = sand.u32 %s151, 1
        %s598 = smul.addr %s597, 2048
        %s599 = scalar_lea.vmem [#allocation10], %s598
        // Predicated region
        $region89: #{tpu_custom_call.1} parent=71 // pred_check
          %p600 = pneg %p164
        $region90: #{tpu_custom_call.1} parent=71 // pred_check_branch
          %602 = sbr.rel (%p600) target = $region92
        $region91: #{tpu_custom_call.1} parent=71 // pred_region
          %603 = dma.done %s596, 32768
        $region92: #{tpu_custom_call.1} parent=71 // pred_fallthru
          _
        // Predicated region
        $region93: #{tpu_custom_call.1} parent=71 // pred_check
          %p604 = pneg %p248
        $region94: #{tpu_custom_call.1} parent=71 // pred_check_branch
          %606 = sbr.rel (%p604) target = $region96
        $region95: #{tpu_custom_call.1} parent=71 // pred_region
          %607 = dma.done [#allocation12], 16384
        $region96: #{tpu_custom_call.1} parent=71 // pred_fallthru
          _
        // Predicated region
        $region97: #{tpu_custom_call.1} parent=71 // pred_check
          %p608 = pneg %p269
        $region98: #{tpu_custom_call.1} parent=71 // pred_check_branch
          %610 = sbr.rel (%p608) target = $region100
        $region99: #{tpu_custom_call.1} parent=71 // pred_region
          %611 = dma.done [#allocation12], 2048
        $region100: #{tpu_custom_call.1} parent=71 // pred_fallthru
          _
        // Predicated region
        $region101: #{tpu_custom_call.1} parent=71 // pred_check
          %p612 = pneg %p290
        $region102: #{tpu_custom_call.1} parent=71 // pred_check_branch
          %614 = sbr.rel (%p612) target = $region104
        $region103: #{tpu_custom_call.1} parent=71 // pred_region
          %615 = dma.done [#allocation15], 16
        $region104: #{tpu_custom_call.1} parent=71 // pred_fallthru
          _
        // Predicated region
        $region105: #{tpu_custom_call.1} parent=71 // pred_check
          %p616 = pneg %p311
        $region106: #{tpu_custom_call.1} parent=71 // pred_check_branch
          %618 = sbr.rel (%p616) target = $region108
        $region107: #{tpu_custom_call.1} parent=71 // pred_region
          %619 = dma.done [#allocation15], 2048
        $region108: #{tpu_custom_call.1} parent=71 // pred_fallthru
          _
        // Predicated region
        $region109: #{tpu_custom_call.1} parent=71 // pred_check
          %p620 = pneg %p332
        $region110: #{tpu_custom_call.1} parent=71 // pred_check_branch
          %622 = sbr.rel (%p620) target = $region112
        $region111: #{tpu_custom_call.1} parent=71 // pred_region
          %623 = dma.done [#allocation18], 16
        $region112: #{tpu_custom_call.1} parent=71 // pred_fallthru
          _
        %s624 = sand.u32 %s47, 1
        %s625 = scalar_lea.sflag [#allocation3], %s624
        %s626 = sand.u32 %s47, 1
        %s627 = smul.addr %s626, 128
        %s628 = scalar_lea.vmem [#allocation2], %s627
        %p629 = pneg %p60
        %p630 = pneg %p57
        %s631 = sand.u32 %s39, 1
        %s632 = scalar_lea.sflag [#allocation6], %s631
        %s633 = sand.u32 %s73, 1
        %s634 = smul.addr %s633, 32
        %s635 = scalar_lea.vmem [#allocation5], %s634
        %p636 = pneg %p86
        %p637 = pneg %p83
        %s638 = sand.u32 %s39, 1
        %s639 = scalar_lea.sflag [#allocation6], %s638
        %s640 = sand.u32 %s99, 1
        %s641 = smul.addr %s640, 128
        %s642 = scalar_lea.vmem [#allocation7], %s641
        %p643 = pneg %p112
        %p644 = pneg %p109
        %s645 = sand.u32 %s39, 1
        %s646 = scalar_lea.sflag [#allocation9], %s645
        %s647 = sand.u32 %s125, 1
        %s648 = smul.addr %s647, 512
        %s649 = scalar_lea.vmem [#allocation8], %s648
        %p650 = pneg %p138
        %p651 = pneg %p135
        %s652 = sand.u32 %s39, 1
        %s653 = scalar_lea.sflag [#allocation9], %s652
        %s654 = sand.u32 %s151, 1
        %s655 = smul.addr %s654, 2048
        %s656 = scalar_lea.vmem [#allocation10], %s655
        %p657 = pneg %p164
        %p658 = pneg %p161
        %p659 = pneg %p185
        %p660 = pneg %p182
        %p661 = pneg %p206
        %p662 = pneg %p203
        %p663 = pneg %p227
        %p664 = pneg %p224
        %p665 = pneg %p248
        %p666 = pneg %p245
        %p667 = pneg %p269
        %p668 = pneg %p266
        %p669 = pneg %p290
        %p670 = pneg %p287
        %p671 = pneg %p311
        %p672 = pneg %p308
        %p673 = pneg %p332
        %p674 = pneg %p329
        %p675 = pneg %p358
        %p676 = pneg %p355
        %s677 = sand.u32 %s345, 1
        %s678 = scalar_lea.sflag [#allocation4], %s677
        %s679 = sand.u32 %s345, 1
        %s680 = smul.addr %s679, 2048
        %s681 = scalar_lea.vmem [#allocation19], %s680
        %v683 = vld [vmem:[%s572] sm:$0xff]
        %v684 = vld [vmem:[%s572 + $0x8] sm:$0xff]
        %v685 = vld [vmem:[%s572 + $0x10] sm:$0xff]
        %v686 = vld [vmem:[%s572 + $0x18] sm:$0xff]
        %v687 = vld [vmem:[%s581] sm:$0xff]
        %v688 = vld [vmem:[%s581 + $0x8] sm:$0xff]
        %v689 = vld [vmem:[%s581 + $0x10] sm:$0xff]
        %v690 = vld [vmem:[%s581 + $0x18] sm:$0xff]
        %v691 = vld [vmem:[%s581 + $0x20] sm:$0xff]
        %v692 = vld [vmem:[%s581 + $0x28] sm:$0xff]
        %v693 = vld [vmem:[%s581 + $0x30] sm:$0xff]
        %v694 = vld [vmem:[%s581 + $0x38] sm:$0xff]
        %v695 = vld [vmem:[%s581 + $0x40] sm:$0xff]
        %v696 = vld [vmem:[%s581 + $0x48] sm:$0xff]
        %v697 = vld [vmem:[%s581 + $0x50] sm:$0xff]
        %v698 = vld [vmem:[%s581 + $0x58] sm:$0xff]
        %v699 = vld [vmem:[%s581 + $0x60] sm:$0xff]
        %v700 = vld [vmem:[%s581 + $0x68] sm:$0xff]
        %v701 = vld [vmem:[%s581 + $0x70] sm:$0xff]
        %v702 = vld [vmem:[%s581 + $0x78] sm:$0xff]
        %v703 = vld [vmem:[%s590] sm:$0xff]
        %v704 = vld [vmem:[%s590 + $0x8] sm:$0xff]
        %v705 = vld [vmem:[%s590 + $0x10] sm:$0xff]
        %v706 = vld [vmem:[%s590 + $0x18] sm:$0xff]
        %v707 = vld [vmem:[%s590 + $0x20] sm:$0xff]
        %v708 = vld [vmem:[%s590 + $0x28] sm:$0xff]
        %v709 = vld [vmem:[%s590 + $0x30] sm:$0xff]
        %v710 = vld [vmem:[%s590 + $0x38] sm:$0xff]
        %v711 = vld [vmem:[%s590 + $0x40] sm:$0xff]
        %v712 = vld [vmem:[%s590 + $0x48] sm:$0xff]
        %v713 = vld [vmem:[%s590 + $0x50] sm:$0xff]
        %v714 = vld [vmem:[%s590 + $0x58] sm:$0xff]
        %v715 = vld [vmem:[%s590 + $0x60] sm:$0xff]
        %v716 = vld [vmem:[%s590 + $0x68] sm:$0xff]
        %v717 = vld [vmem:[%s590 + $0x70] sm:$0xff]
        %v718 = vld [vmem:[%s590 + $0x78] sm:$0xff]
        %v719 = vld [vmem:[%s590 + $0x80] sm:$0xff]
        %v720 = vld [vmem:[%s590 + $0x88] sm:$0xff]
        %v721 = vld [vmem:[%s590 + $0x90] sm:$0xff]
        %v722 = vld [vmem:[%s590 + $0x98] sm:$0xff]
        %v723 = vld [vmem:[%s590 + $0xa0] sm:$0xff]
        %v724 = vld [vmem:[%s590 + $0xa8] sm:$0xff]
        %v725 = vld [vmem:[%s590 + $0xb0] sm:$0xff]
        %v726 = vld [vmem:[%s590 + $0xb8] sm:$0xff]
        %v727 = vld [vmem:[%s590 + $0xc0] sm:$0xff]
        %v728 = vld [vmem:[%s590 + $0xc8] sm:$0xff]
        %v729 = vld [vmem:[%s590 + $0xd0] sm:$0xff]
        %v730 = vld [vmem:[%s590 + $0xd8] sm:$0xff]
        %v731 = vld [vmem:[%s590 + $0xe0] sm:$0xff]
        %v732 = vld [vmem:[%s590 + $0xe8] sm:$0xff]
        %v733 = vld [vmem:[%s590 + $0xf0] sm:$0xff]
        %v734 = vld [vmem:[%s590 + $0xf8] sm:$0xff]
        %v735 = vld [vmem:[%s590 + $0x100] sm:$0xff]
        %v736 = vld [vmem:[%s590 + $0x108] sm:$0xff]
        %v737 = vld [vmem:[%s590 + $0x110] sm:$0xff]
        %v738 = vld [vmem:[%s590 + $0x118] sm:$0xff]
        %v739 = vld [vmem:[%s590 + $0x120] sm:$0xff]
        %v740 = vld [vmem:[%s590 + $0x128] sm:$0xff]
        %v741 = vld [vmem:[%s590 + $0x130] sm:$0xff]
        %v742 = vld [vmem:[%s590 + $0x138] sm:$0xff]
        %v743 = vld [vmem:[%s590 + $0x140] sm:$0xff]
        %v744 = vld [vmem:[%s590 + $0x148] sm:$0xff]
        %v745 = vld [vmem:[%s590 + $0x150] sm:$0xff]
        %v746 = vld [vmem:[%s590 + $0x158] sm:$0xff]
        %v747 = vld [vmem:[%s590 + $0x160] sm:$0xff]
        %v748 = vld [vmem:[%s590 + $0x168] sm:$0xff]
        %v749 = vld [vmem:[%s590 + $0x170] sm:$0xff]
        %v750 = vld [vmem:[%s590 + $0x178] sm:$0xff]
        %v751 = vld [vmem:[%s590 + $0x180] sm:$0xff]
        %v752 = vld [vmem:[%s590 + $0x188] sm:$0xff]
        %v753 = vld [vmem:[%s590 + $0x190] sm:$0xff]
        %v754 = vld [vmem:[%s590 + $0x198] sm:$0xff]
        %v755 = vld [vmem:[%s590 + $0x1a0] sm:$0xff]
        %v756 = vld [vmem:[%s590 + $0x1a8] sm:$0xff]
        %v757 = vld [vmem:[%s590 + $0x1b0] sm:$0xff]
        %v758 = vld [vmem:[%s590 + $0x1b8] sm:$0xff]
        %v759 = vld [vmem:[%s590 + $0x1c0] sm:$0xff]
        %v760 = vld [vmem:[%s590 + $0x1c8] sm:$0xff]
        %v761 = vld [vmem:[%s590 + $0x1d0] sm:$0xff]
        %v762 = vld [vmem:[%s590 + $0x1d8] sm:$0xff]
        %v763 = vld [vmem:[%s590 + $0x1e0] sm:$0xff]
        %v764 = vld [vmem:[%s590 + $0x1e8] sm:$0xff]
        %v765 = vld [vmem:[%s590 + $0x1f0] sm:$0xff]
        %v766 = vld [vmem:[%s590 + $0x1f8] sm:$0xff]
        %v767 = vld [vmem:[%s599] sm:$0xff]
        %v768 = vld [vmem:[%s599 + $0x8] sm:$0xff]
        %v769 = vld [vmem:[%s599 + $0x10] sm:$0xff]
        %v770 = vld [vmem:[%s599 + $0x18] sm:$0xff]
        %v771 = vld [vmem:[%s599 + $0x20] sm:$0xff]
        %v772 = vld [vmem:[%s599 + $0x28] sm:$0xff]
        %v773 = vld [vmem:[%s599 + $0x30] sm:$0xff]
        %v774 = vld [vmem:[%s599 + $0x38] sm:$0xff]
        %v775 = vld [vmem:[%s599 + $0x40] sm:$0xff]
        %v776 = vld [vmem:[%s599 + $0x48] sm:$0xff]
        %v777 = vld [vmem:[%s599 + $0x50] sm:$0xff]
        %v778 = vld [vmem:[%s599 + $0x58] sm:$0xff]
        %v779 = vld [vmem:[%s599 + $0x60] sm:$0xff]
        %v780 = vld [vmem:[%s599 + $0x68] sm:$0xff]
        %v781 = vld [vmem:[%s599 + $0x70] sm:$0xff]
        %v782 = vld [vmem:[%s599 + $0x78] sm:$0xff]
        %v783 = vld [vmem:[%s599 + $0x80] sm:$0xff]
        %v784 = vld [vmem:[%s599 + $0x88] sm:$0xff]
        %v785 = vld [vmem:[%s599 + $0x90] sm:$0xff]
        %v786 = vld [vmem:[%s599 + $0x98] sm:$0xff]
        %v787 = vld [vmem:[%s599 + $0xa0] sm:$0xff]
        %v788 = vld [vmem:[%s599 + $0xa8] sm:$0xff]
        %v789 = vld [vmem:[%s599 + $0xb0] sm:$0xff]
        %v790 = vld [vmem:[%s599 + $0xb8] sm:$0xff]
        %v791 = vld [vmem:[%s599 + $0xc0] sm:$0xff]
        %v792 = vld [vmem:[%s599 + $0xc8] sm:$0xff]
        %v793 = vld [vmem:[%s599 + $0xd0] sm:$0xff]
        %v794 = vld [vmem:[%s599 + $0xd8] sm:$0xff]
        %v795 = vld [vmem:[%s599 + $0xe0] sm:$0xff]
        %v796 = vld [vmem:[%s599 + $0xe8] sm:$0xff]
        %v797 = vld [vmem:[%s599 + $0xf0] sm:$0xff]
        %v798 = vld [vmem:[%s599 + $0xf8] sm:$0xff]
        %v799 = vld [vmem:[%s599 + $0x100] sm:$0xff]
        %v800 = vld [vmem:[%s599 + $0x108] sm:$0xff]
        %v801 = vld [vmem:[%s599 + $0x110] sm:$0xff]
        %v802 = vld [vmem:[%s599 + $0x118] sm:$0xff]
        %v803 = vld [vmem:[%s599 + $0x120] sm:$0xff]
        %v804 = vld [vmem:[%s599 + $0x128] sm:$0xff]
        %v805 = vld [vmem:[%s599 + $0x130] sm:$0xff]
        %v806 = vld [vmem:[%s599 + $0x138] sm:$0xff]
        %v807 = vld [vmem:[%s599 + $0x140] sm:$0xff]
        %v808 = vld [vmem:[%s599 + $0x148] sm:$0xff]
        %v809 = vld [vmem:[%s599 + $0x150] sm:$0xff]
        %v810 = vld [vmem:[%s599 + $0x158] sm:$0xff]
        %v811 = vld [vmem:[%s599 + $0x160] sm:$0xff]
        %v812 = vld [vmem:[%s599 + $0x168] sm:$0xff]
        %v813 = vld [vmem:[%s599 + $0x170] sm:$0xff]
        %v814 = vld [vmem:[%s599 + $0x178] sm:$0xff]
        %v815 = vld [vmem:[%s599 + $0x180] sm:$0xff]
        %v816 = vld [vmem:[%s599 + $0x188] sm:$0xff]
        %v817 = vld [vmem:[%s599 + $0x190] sm:$0xff]
        %v818 = vld [vmem:[%s599 + $0x198] sm:$0xff]
        %v819 = vld [vmem:[%s599 + $0x1a0] sm:$0xff]
        %v820 = vld [vmem:[%s599 + $0x1a8] sm:$0xff]
        %v821 = vld [vmem:[%s599 + $0x1b0] sm:$0xff]
        %v822 = vld [vmem:[%s599 + $0x1b8] sm:$0xff]
        %v823 = vld [vmem:[%s599 + $0x1c0] sm:$0xff]
        %v824 = vld [vmem:[%s599 + $0x1c8] sm:$0xff]
        %v825 = vld [vmem:[%s599 + $0x1d0] sm:$0xff]
        %v826 = vld [vmem:[%s599 + $0x1d8] sm:$0xff]
        %v827 = vld [vmem:[%s599 + $0x1e0] sm:$0xff]
        %v828 = vld [vmem:[%s599 + $0x1e8] sm:$0xff]
        %v829 = vld [vmem:[%s599 + $0x1f0] sm:$0xff]
        %v830 = vld [vmem:[%s599 + $0x1f8] sm:$0xff]
        %v831 = vld [vmem:[%s599 + $0x200] sm:$0xff]
        %v832 = vld [vmem:[%s599 + $0x208] sm:$0xff]
        %v833 = vld [vmem:[%s599 + $0x210] sm:$0xff]
        %v834 = vld [vmem:[%s599 + $0x218] sm:$0xff]
        %v835 = vld [vmem:[%s599 + $0x220] sm:$0xff]
        %v836 = vld [vmem:[%s599 + $0x228] sm:$0xff]
        %v837 = vld [vmem:[%s599 + $0x230] sm:$0xff]
        %v838 = vld [vmem:[%s599 + $0x238] sm:$0xff]
        %v839 = vld [vmem:[%s599 + $0x240] sm:$0xff]
        %v840 = vld [vmem:[%s599 + $0x248] sm:$0xff]
        %v841 = vld [vmem:[%s599 + $0x250] sm:$0xff]
        %v842 = vld [vmem:[%s599 + $0x258] sm:$0xff]
        %v843 = vld [vmem:[%s599 + $0x260] sm:$0xff]
        %v844 = vld [vmem:[%s599 + $0x268] sm:$0xff]
        %v845 = vld [vmem:[%s599 + $0x270] sm:$0xff]
        %v846 = vld [vmem:[%s599 + $0x278] sm:$0xff]
        %v847 = vld [vmem:[%s599 + $0x280] sm:$0xff]
        %v848 = vld [vmem:[%s599 + $0x288] sm:$0xff]
        %v849 = vld [vmem:[%s599 + $0x290] sm:$0xff]
        %v850 = vld [vmem:[%s599 + $0x298] sm:$0xff]
        %v851 = vld [vmem:[%s599 + $0x2a0] sm:$0xff]
        %v852 = vld [vmem:[%s599 + $0x2a8] sm:$0xff]
        %v853 = vld [vmem:[%s599 + $0x2b0] sm:$0xff]
        %v854 = vld [vmem:[%s599 + $0x2b8] sm:$0xff]
        %v855 = vld [vmem:[%s599 + $0x2c0] sm:$0xff]
        %v856 = vld [vmem:[%s599 + $0x2c8] sm:$0xff]
        %v857 = vld [vmem:[%s599 + $0x2d0] sm:$0xff]
        %v858 = vld [vmem:[%s599 + $0x2d8] sm:$0xff]
        %v859 = vld [vmem:[%s599 + $0x2e0] sm:$0xff]
        %v860 = vld [vmem:[%s599 + $0x2e8] sm:$0xff]
        %v861 = vld [vmem:[%s599 + $0x2f0] sm:$0xff]
        %v862 = vld [vmem:[%s599 + $0x2f8] sm:$0xff]
        %v863 = vld [vmem:[%s599 + $0x300] sm:$0xff]
        %v864 = vld [vmem:[%s599 + $0x308] sm:$0xff]
        %v865 = vld [vmem:[%s599 + $0x310] sm:$0xff]
        %v866 = vld [vmem:[%s599 + $0x318] sm:$0xff]
        %v867 = vld [vmem:[%s599 + $0x320] sm:$0xff]
        %v868 = vld [vmem:[%s599 + $0x328] sm:$0xff]
        %v869 = vld [vmem:[%s599 + $0x330] sm:$0xff]
        %v870 = vld [vmem:[%s599 + $0x338] sm:$0xff]
        %v871 = vld [vmem:[%s599 + $0x340] sm:$0xff]
        %v872 = vld [vmem:[%s599 + $0x348] sm:$0xff]
        %v873 = vld [vmem:[%s599 + $0x350] sm:$0xff]
        %v874 = vld [vmem:[%s599 + $0x358] sm:$0xff]
        %v875 = vld [vmem:[%s599 + $0x360] sm:$0xff]
        %v876 = vld [vmem:[%s599 + $0x368] sm:$0xff]
        %v877 = vld [vmem:[%s599 + $0x370] sm:$0xff]
        %v878 = vld [vmem:[%s599 + $0x378] sm:$0xff]
        %v879 = vld [vmem:[%s599 + $0x380] sm:$0xff]
        %v880 = vld [vmem:[%s599 + $0x388] sm:$0xff]
        %v881 = vld [vmem:[%s599 + $0x390] sm:$0xff]
        %v882 = vld [vmem:[%s599 + $0x398] sm:$0xff]
        %v883 = vld [vmem:[%s599 + $0x3a0] sm:$0xff]
        %v884 = vld [vmem:[%s599 + $0x3a8] sm:$0xff]
        %v885 = vld [vmem:[%s599 + $0x3b0] sm:$0xff]
        %v886 = vld [vmem:[%s599 + $0x3b8] sm:$0xff]
        %v887 = vld [vmem:[%s599 + $0x3c0] sm:$0xff]
        %v888 = vld [vmem:[%s599 + $0x3c8] sm:$0xff]
        %v889 = vld [vmem:[%s599 + $0x3d0] sm:$0xff]
        %v890 = vld [vmem:[%s599 + $0x3d8] sm:$0xff]
        %v891 = vld [vmem:[%s599 + $0x3e0] sm:$0xff]
        %v892 = vld [vmem:[%s599 + $0x3e8] sm:$0xff]
        %v893 = vld [vmem:[%s599 + $0x3f0] sm:$0xff]
        %v894 = vld [vmem:[%s599 + $0x3f8] sm:$0xff]
        %v895 = vld [vmem:[%s599 + $0x400] sm:$0xff]
        %v896 = vld [vmem:[%s599 + $0x408] sm:$0xff]
        %v897 = vld [vmem:[%s599 + $0x410] sm:$0xff]
        %v898 = vld [vmem:[%s599 + $0x418] sm:$0xff]
        %v899 = vld [vmem:[%s599 + $0x420] sm:$0xff]
        %v900 = vld [vmem:[%s599 + $0x428] sm:$0xff]
        %v901 = vld [vmem:[%s599 + $0x430] sm:$0xff]
        %v902 = vld [vmem:[%s599 + $0x438] sm:$0xff]
        %v903 = vld [vmem:[%s599 + $0x440] sm:$0xff]
        %v904 = vld [vmem:[%s599 + $0x448] sm:$0xff]
        %v905 = vld [vmem:[%s599 + $0x450] sm:$0xff]
        %v906 = vld [vmem:[%s599 + $0x458] sm:$0xff]
        %v907 = vld [vmem:[%s599 + $0x460] sm:$0xff]
        %v908 = vld [vmem:[%s599 + $0x468] sm:$0xff]
        %v909 = vld [vmem:[%s599 + $0x470] sm:$0xff]
        %v910 = vld [vmem:[%s599 + $0x478] sm:$0xff]
        %v911 = vld [vmem:[%s599 + $0x480] sm:$0xff]
        %v912 = vld [vmem:[%s599 + $0x488] sm:$0xff]
        %v913 = vld [vmem:[%s599 + $0x490] sm:$0xff]
        %v914 = vld [vmem:[%s599 + $0x498] sm:$0xff]
        %v915 = vld [vmem:[%s599 + $0x4a0] sm:$0xff]
        %v916 = vld [vmem:[%s599 + $0x4a8] sm:$0xff]
        %v917 = vld [vmem:[%s599 + $0x4b0] sm:$0xff]
        %v918 = vld [vmem:[%s599 + $0x4b8] sm:$0xff]
        %v919 = vld [vmem:[%s599 + $0x4c0] sm:$0xff]
        %v920 = vld [vmem:[%s599 + $0x4c8] sm:$0xff]
        %v921 = vld [vmem:[%s599 + $0x4d0] sm:$0xff]
        %v922 = vld [vmem:[%s599 + $0x4d8] sm:$0xff]
        %v923 = vld [vmem:[%s599 + $0x4e0] sm:$0xff]
        %v924 = vld [vmem:[%s599 + $0x4e8] sm:$0xff]
        %v925 = vld [vmem:[%s599 + $0x4f0] sm:$0xff]
        %v926 = vld [vmem:[%s599 + $0x4f8] sm:$0xff]
        %v927 = vld [vmem:[%s599 + $0x500] sm:$0xff]
        %v928 = vld [vmem:[%s599 + $0x508] sm:$0xff]
        %v929 = vld [vmem:[%s599 + $0x510] sm:$0xff]
        %v930 = vld [vmem:[%s599 + $0x518] sm:$0xff]
        %v931 = vld [vmem:[%s599 + $0x520] sm:$0xff]
        %v932 = vld [vmem:[%s599 + $0x528] sm:$0xff]
        %v933 = vld [vmem:[%s599 + $0x530] sm:$0xff]
        %v934 = vld [vmem:[%s599 + $0x538] sm:$0xff]
        %v935 = vld [vmem:[%s599 + $0x540] sm:$0xff]
        %v936 = vld [vmem:[%s599 + $0x548] sm:$0xff]
        %v937 = vld [vmem:[%s599 + $0x550] sm:$0xff]
        %v938 = vld [vmem:[%s599 + $0x558] sm:$0xff]
        %v939 = vld [vmem:[%s599 + $0x560] sm:$0xff]
        %v940 = vld [vmem:[%s599 + $0x568] sm:$0xff]
        %v941 = vld [vmem:[%s599 + $0x570] sm:$0xff]
        %v942 = vld [vmem:[%s599 + $0x578] sm:$0xff]
        %v943 = vld [vmem:[%s599 + $0x580] sm:$0xff]
        %v944 = vld [vmem:[%s599 + $0x588] sm:$0xff]
        %v945 = vld [vmem:[%s599 + $0x590] sm:$0xff]
        %v946 = vld [vmem:[%s599 + $0x598] sm:$0xff]
        %v947 = vld [vmem:[%s599 + $0x5a0] sm:$0xff]
        %v948 = vld [vmem:[%s599 + $0x5a8] sm:$0xff]
        %v949 = vld [vmem:[%s599 + $0x5b0] sm:$0xff]
        %v950 = vld [vmem:[%s599 + $0x5b8] sm:$0xff]
        %v951 = vld [vmem:[%s599 + $0x5c0] sm:$0xff]
        %v952 = vld [vmem:[%s599 + $0x5c8] sm:$0xff]
        %v953 = vld [vmem:[%s599 + $0x5d0] sm:$0xff]
        %v954 = vld [vmem:[%s599 + $0x5d8] sm:$0xff]
        %v955 = vld [vmem:[%s599 + $0x5e0] sm:$0xff]
        %v956 = vld [vmem:[%s599 + $0x5e8] sm:$0xff]
        %v957 = vld [vmem:[%s599 + $0x5f0] sm:$0xff]
        %v958 = vld [vmem:[%s599 + $0x5f8] sm:$0xff]
        %v959 = vld [vmem:[%s599 + $0x600] sm:$0xff]
        %v960 = vld [vmem:[%s599 + $0x608] sm:$0xff]
        %v961 = vld [vmem:[%s599 + $0x610] sm:$0xff]
        %v962 = vld [vmem:[%s599 + $0x618] sm:$0xff]
        %v963 = vld [vmem:[%s599 + $0x620] sm:$0xff]
        %v964 = vld [vmem:[%s599 + $0x628] sm:$0xff]
        %v965 = vld [vmem:[%s599 + $0x630] sm:$0xff]
        %v966 = vld [vmem:[%s599 + $0x638] sm:$0xff]
        %v967 = vld [vmem:[%s599 + $0x640] sm:$0xff]
        %v968 = vld [vmem:[%s599 + $0x648] sm:$0xff]
        %v969 = vld [vmem:[%s599 + $0x650] sm:$0xff]
        %v970 = vld [vmem:[%s599 + $0x658] sm:$0xff]
        %v971 = vld [vmem:[%s599 + $0x660] sm:$0xff]
        %v972 = vld [vmem:[%s599 + $0x668] sm:$0xff]
        %v973 = vld [vmem:[%s599 + $0x670] sm:$0xff]
        %v974 = vld [vmem:[%s599 + $0x678] sm:$0xff]
        %v975 = vld [vmem:[%s599 + $0x680] sm:$0xff]
        %v976 = vld [vmem:[%s599 + $0x688] sm:$0xff]
        %v977 = vld [vmem:[%s599 + $0x690] sm:$0xff]
        %v978 = vld [vmem:[%s599 + $0x698] sm:$0xff]
        %v979 = vld [vmem:[%s599 + $0x6a0] sm:$0xff]
        %v980 = vld [vmem:[%s599 + $0x6a8] sm:$0xff]
        %v981 = vld [vmem:[%s599 + $0x6b0] sm:$0xff]
        %v982 = vld [vmem:[%s599 + $0x6b8] sm:$0xff]
        %v983 = vld [vmem:[%s599 + $0x6c0] sm:$0xff]
        %v984 = vld [vmem:[%s599 + $0x6c8] sm:$0xff]
        %v985 = vld [vmem:[%s599 + $0x6d0] sm:$0xff]
        %v986 = vld [vmem:[%s599 + $0x6d8] sm:$0xff]
        %v987 = vld [vmem:[%s599 + $0x6e0] sm:$0xff]
        %v988 = vld [vmem:[%s599 + $0x6e8] sm:$0xff]
        %v989 = vld [vmem:[%s599 + $0x6f0] sm:$0xff]
        %v990 = vld [vmem:[%s599 + $0x6f8] sm:$0xff]
        %v991 = vld [vmem:[%s599 + $0x700] sm:$0xff]
        %v992 = vld [vmem:[%s599 + $0x708] sm:$0xff]
        %v993 = vld [vmem:[%s599 + $0x710] sm:$0xff]
        %v994 = vld [vmem:[%s599 + $0x718] sm:$0xff]
        %v995 = vld [vmem:[%s599 + $0x720] sm:$0xff]
        %v996 = vld [vmem:[%s599 + $0x728] sm:$0xff]
        %v997 = vld [vmem:[%s599 + $0x730] sm:$0xff]
        %v998 = vld [vmem:[%s599 + $0x738] sm:$0xff]
        %v999 = vld [vmem:[%s599 + $0x740] sm:$0xff]
        %v1000 = vld [vmem:[%s599 + $0x748] sm:$0xff]
        %v1001 = vld [vmem:[%s599 + $0x750] sm:$0xff]
        %v1002 = vld [vmem:[%s599 + $0x758] sm:$0xff]
        %v1003 = vld [vmem:[%s599 + $0x760] sm:$0xff]
        %v1004 = vld [vmem:[%s599 + $0x768] sm:$0xff]
        %v1005 = vld [vmem:[%s599 + $0x770] sm:$0xff]
        %v1006 = vld [vmem:[%s599 + $0x778] sm:$0xff]
        %v1007 = vld [vmem:[%s599 + $0x780] sm:$0xff]
        %v1008 = vld [vmem:[%s599 + $0x788] sm:$0xff]
        %v1009 = vld [vmem:[%s599 + $0x790] sm:$0xff]
        %v1010 = vld [vmem:[%s599 + $0x798] sm:$0xff]
        %v1011 = vld [vmem:[%s599 + $0x7a0] sm:$0xff]
        %v1012 = vld [vmem:[%s599 + $0x7a8] sm:$0xff]
        %v1013 = vld [vmem:[%s599 + $0x7b0] sm:$0xff]
        %v1014 = vld [vmem:[%s599 + $0x7b8] sm:$0xff]
        %v1015 = vld [vmem:[%s599 + $0x7c0] sm:$0xff]
        %v1016 = vld [vmem:[%s599 + $0x7c8] sm:$0xff]
        %v1017 = vld [vmem:[%s599 + $0x7d0] sm:$0xff]
        %v1018 = vld [vmem:[%s599 + $0x7d8] sm:$0xff]
        %v1019 = vld [vmem:[%s599 + $0x7e0] sm:$0xff]
        %v1020 = vld [vmem:[%s599 + $0x7e8] sm:$0xff]
        %v1021 = vld [vmem:[%s599 + $0x7f0] sm:$0xff]
        %v1022 = vld [vmem:[%s599 + $0x7f8] sm:$0xff]
        %v1023 = vld [vmem:[%s5] sm:$0xf]
        %v1024 = vld [vmem:[%s5 + $0x4] sm:$0xf]
        %v1025 = vld [vmem:[%s5 + $0x8] sm:$0xf]
        %v1026 = vld [vmem:[%s5 + $0xc] sm:$0xf]
        %v1027 = vld [vmem:[%s5 + $0x10] sm:$0xf]
        %v1028 = vld [vmem:[%s5 + $0x14] sm:$0xf]
        %v1029 = vld [vmem:[%s5 + $0x18] sm:$0xf]
        %v1030 = vld [vmem:[%s5 + $0x1c] sm:$0xf]
        %v1031 = vld [vmem:[%s5 + $0x20] sm:$0xf]
        %v1032 = vld [vmem:[%s5 + $0x24] sm:$0xf]
        %v1033 = vld [vmem:[%s5 + $0x28] sm:$0xf]
        %v1034 = vld [vmem:[%s5 + $0x2c] sm:$0xf]
        %v1035 = vld [vmem:[%s5 + $0x30] sm:$0xf]
        %v1036 = vld [vmem:[%s5 + $0x34] sm:$0xf]
        %v1037 = vld [vmem:[%s5 + $0x38] sm:$0xf]
        %v1038 = vld [vmem:[%s5 + $0x3c] sm:$0xf]
        %v1039 = vld [vmem:[%s5 + $0x40] sm:$0xf]
        %v1040 = vld [vmem:[%s5 + $0x44] sm:$0xf]
        %v1041 = vld [vmem:[%s5 + $0x48] sm:$0xf]
        %v1042 = vld [vmem:[%s5 + $0x4c] sm:$0xf]
        %v1043 = vld [vmem:[%s5 + $0x50] sm:$0xf]
        %v1044 = vld [vmem:[%s5 + $0x54] sm:$0xf]
        %v1045 = vld [vmem:[%s5 + $0x58] sm:$0xf]
        %v1046 = vld [vmem:[%s5 + $0x5c] sm:$0xf]
        %v1047 = vld [vmem:[%s5 + $0x60] sm:$0xf]
        %v1048 = vld [vmem:[%s5 + $0x64] sm:$0xf]
        %v1049 = vld [vmem:[%s5 + $0x68] sm:$0xf]
        %v1050 = vld [vmem:[%s5 + $0x6c] sm:$0xf]
        %v1051 = vld [vmem:[%s5 + $0x70] sm:$0xf]
        %v1052 = vld [vmem:[%s5 + $0x74] sm:$0xf]
        %v1053 = vld [vmem:[%s5 + $0x78] sm:$0xf]
        %v1054 = vld [vmem:[%s5 + $0x7c] sm:$0xf]
        %v1055 = vld [vmem:[%s5 + $0x80] sm:$0xf]
        %v1056 = vld [vmem:[%s5 + $0x84] sm:$0xf]
        %v1057 = vld [vmem:[%s5 + $0x88] sm:$0xf]
        %v1058 = vld [vmem:[%s5 + $0x8c] sm:$0xf]
        %v1059 = vld [vmem:[%s5 + $0x90] sm:$0xf]
        %v1060 = vld [vmem:[%s5 + $0x94] sm:$0xf]
        %v1061 = vld [vmem:[%s5 + $0x98] sm:$0xf]
        %v1062 = vld [vmem:[%s5 + $0x9c] sm:$0xf]
        %v1063 = vld [vmem:[%s5 + $0xa0] sm:$0xf]
        %v1064 = vld [vmem:[%s5 + $0xa4] sm:$0xf]
        %v1065 = vld [vmem:[%s5 + $0xa8] sm:$0xf]
        %v1066 = vld [vmem:[%s5 + $0xac] sm:$0xf]
        %v1067 = vld [vmem:[%s5 + $0xb0] sm:$0xf]
        %v1068 = vld [vmem:[%s5 + $0xb4] sm:$0xf]
        %v1069 = vld [vmem:[%s5 + $0xb8] sm:$0xf]
        %v1070 = vld [vmem:[%s5 + $0xbc] sm:$0xf]
        %v1071 = vld [vmem:[%s5 + $0xc0] sm:$0xf]
        %v1072 = vld [vmem:[%s5 + $0xc4] sm:$0xf]
        %v1073 = vld [vmem:[%s5 + $0xc8] sm:$0xf]
        %v1074 = vld [vmem:[%s5 + $0xcc] sm:$0xf]
        %v1075 = vld [vmem:[%s5 + $0xd0] sm:$0xf]
        %v1076 = vld [vmem:[%s5 + $0xd4] sm:$0xf]
        %v1077 = vld [vmem:[%s5 + $0xd8] sm:$0xf]
        %v1078 = vld [vmem:[%s5 + $0xdc] sm:$0xf]
        %v1079 = vld [vmem:[%s5 + $0xe0] sm:$0xf]
        %v1080 = vld [vmem:[%s5 + $0xe4] sm:$0xf]
        %v1081 = vld [vmem:[%s5 + $0xe8] sm:$0xf]
        %v1082 = vld [vmem:[%s5 + $0xec] sm:$0xf]
        %v1083 = vld [vmem:[%s5 + $0xf0] sm:$0xf]
        %v1084 = vld [vmem:[%s5 + $0xf4] sm:$0xf]
        %v1085 = vld [vmem:[%s5 + $0xf8] sm:$0xf]
        %v1086 = vld [vmem:[%s5 + $0xfc] sm:$0xf]
        %v1087 = vld [vmem:[%s5 + $0x100] sm:$0xf]
        %v1088 = vld [vmem:[%s5 + $0x104] sm:$0xf]
        %v1089 = vld [vmem:[%s5 + $0x108] sm:$0xf]
        %v1090 = vld [vmem:[%s5 + $0x10c] sm:$0xf]
        %v1091 = vld [vmem:[%s5 + $0x110] sm:$0xf]
        %v1092 = vld [vmem:[%s5 + $0x114] sm:$0xf]
        %v1093 = vld [vmem:[%s5 + $0x118] sm:$0xf]
        %v1094 = vld [vmem:[%s5 + $0x11c] sm:$0xf]
        %v1095 = vld [vmem:[%s5 + $0x120] sm:$0xf]
        %v1096 = vld [vmem:[%s5 + $0x124] sm:$0xf]
        %v1097 = vld [vmem:[%s5 + $0x128] sm:$0xf]
        %v1098 = vld [vmem:[%s5 + $0x12c] sm:$0xf]
        %v1099 = vld [vmem:[%s5 + $0x130] sm:$0xf]
        %v1100 = vld [vmem:[%s5 + $0x134] sm:$0xf]
        %v1101 = vld [vmem:[%s5 + $0x138] sm:$0xf]
        %v1102 = vld [vmem:[%s5 + $0x13c] sm:$0xf]
        %v1103 = vld [vmem:[%s5 + $0x140] sm:$0xf]
        %v1104 = vld [vmem:[%s5 + $0x144] sm:$0xf]
        %v1105 = vld [vmem:[%s5 + $0x148] sm:$0xf]
        %v1106 = vld [vmem:[%s5 + $0x14c] sm:$0xf]
        %v1107 = vld [vmem:[%s5 + $0x150] sm:$0xf]
        %v1108 = vld [vmem:[%s5 + $0x154] sm:$0xf]
        %v1109 = vld [vmem:[%s5 + $0x158] sm:$0xf]
        %v1110 = vld [vmem:[%s5 + $0x15c] sm:$0xf]
        %v1111 = vld [vmem:[%s5 + $0x160] sm:$0xf]
        %v1112 = vld [vmem:[%s5 + $0x164] sm:$0xf]
        %v1113 = vld [vmem:[%s5 + $0x168] sm:$0xf]
        %v1114 = vld [vmem:[%s5 + $0x16c] sm:$0xf]
        %v1115 = vld [vmem:[%s5 + $0x170] sm:$0xf]
        %v1116 = vld [vmem:[%s5 + $0x174] sm:$0xf]
        %v1117 = vld [vmem:[%s5 + $0x178] sm:$0xf]
        %v1118 = vld [vmem:[%s5 + $0x17c] sm:$0xf]
        %v1119 = vld [vmem:[%s5 + $0x180] sm:$0xf]
        %v1120 = vld [vmem:[%s5 + $0x184] sm:$0xf]
        %v1121 = vld [vmem:[%s5 + $0x188] sm:$0xf]
        %v1122 = vld [vmem:[%s5 + $0x18c] sm:$0xf]
        %v1123 = vld [vmem:[%s5 + $0x190] sm:$0xf]
        %v1124 = vld [vmem:[%s5 + $0x194] sm:$0xf]
        %v1125 = vld [vmem:[%s5 + $0x198] sm:$0xf]
        %v1126 = vld [vmem:[%s5 + $0x19c] sm:$0xf]
        %v1127 = vld [vmem:[%s5 + $0x1a0] sm:$0xf]
        %v1128 = vld [vmem:[%s5 + $0x1a4] sm:$0xf]
        %v1129 = vld [vmem:[%s5 + $0x1a8] sm:$0xf]
        %v1130 = vld [vmem:[%s5 + $0x1ac] sm:$0xf]
        %v1131 = vld [vmem:[%s5 + $0x1b0] sm:$0xf]
        %v1132 = vld [vmem:[%s5 + $0x1b4] sm:$0xf]
        %v1133 = vld [vmem:[%s5 + $0x1b8] sm:$0xf]
        %v1134 = vld [vmem:[%s5 + $0x1bc] sm:$0xf]
        %v1135 = vld [vmem:[%s5 + $0x1c0] sm:$0xf]
        %v1136 = vld [vmem:[%s5 + $0x1c4] sm:$0xf]
        %v1137 = vld [vmem:[%s5 + $0x1c8] sm:$0xf]
        %v1138 = vld [vmem:[%s5 + $0x1cc] sm:$0xf]
        %v1139 = vld [vmem:[%s5 + $0x1d0] sm:$0xf]
        %v1140 = vld [vmem:[%s5 + $0x1d4] sm:$0xf]
        %v1141 = vld [vmem:[%s5 + $0x1d8] sm:$0xf]
        %v1142 = vld [vmem:[%s5 + $0x1dc] sm:$0xf]
        %v1143 = vld [vmem:[%s5 + $0x1e0] sm:$0xf]
        %v1144 = vld [vmem:[%s5 + $0x1e4] sm:$0xf]
        %v1145 = vld [vmem:[%s5 + $0x1e8] sm:$0xf]
        %v1146 = vld [vmem:[%s5 + $0x1ec] sm:$0xf]
        %v1147 = vld [vmem:[%s5 + $0x1f0] sm:$0xf]
        %v1148 = vld [vmem:[%s5 + $0x1f4] sm:$0xf]
        %v1149 = vld [vmem:[%s5 + $0x1f8] sm:$0xf]
        %v1150 = vld [vmem:[%s5 + $0x1fc] sm:$0xf]
        %v1151 = vld [vmem:[%s5 + $0x200] sm:$0xf]
        %v1152 = vld [vmem:[%s5 + $0x204] sm:$0xf]
        %v1153 = vld [vmem:[%s5 + $0x208] sm:$0xf]
        %v1154 = vld [vmem:[%s5 + $0x20c] sm:$0xf]
        %v1155 = vld [vmem:[%s5 + $0x210] sm:$0xf]
        %v1156 = vld [vmem:[%s5 + $0x214] sm:$0xf]
        %v1157 = vld [vmem:[%s5 + $0x218] sm:$0xf]
        %v1158 = vld [vmem:[%s5 + $0x21c] sm:$0xf]
        %v1159 = vld [vmem:[%s5 + $0x220] sm:$0xf]
        %v1160 = vld [vmem:[%s5 + $0x224] sm:$0xf]
        %v1161 = vld [vmem:[%s5 + $0x228] sm:$0xf]
        %v1162 = vld [vmem:[%s5 + $0x22c] sm:$0xf]
        %v1163 = vld [vmem:[%s5 + $0x230] sm:$0xf]
        %v1164 = vld [vmem:[%s5 + $0x234] sm:$0xf]
        %v1165 = vld [vmem:[%s5 + $0x238] sm:$0xf]
        %v1166 = vld [vmem:[%s5 + $0x23c] sm:$0xf]
        %v1167 = vld [vmem:[%s5 + $0x240] sm:$0xf]
        %v1168 = vld [vmem:[%s5 + $0x244] sm:$0xf]
        %v1169 = vld [vmem:[%s5 + $0x248] sm:$0xf]
        %v1170 = vld [vmem:[%s5 + $0x24c] sm:$0xf]
        %v1171 = vld [vmem:[%s5 + $0x250] sm:$0xf]
        %v1172 = vld [vmem:[%s5 + $0x254] sm:$0xf]
        %v1173 = vld [vmem:[%s5 + $0x258] sm:$0xf]
        %v1174 = vld [vmem:[%s5 + $0x25c] sm:$0xf]
        %v1175 = vld [vmem:[%s5 + $0x260] sm:$0xf]
        %v1176 = vld [vmem:[%s5 + $0x264] sm:$0xf]
        %v1177 = vld [vmem:[%s5 + $0x268] sm:$0xf]
        %v1178 = vld [vmem:[%s5 + $0x26c] sm:$0xf]
        %v1179 = vld [vmem:[%s5 + $0x270] sm:$0xf]
        %v1180 = vld [vmem:[%s5 + $0x274] sm:$0xf]
        %v1181 = vld [vmem:[%s5 + $0x278] sm:$0xf]
        %v1182 = vld [vmem:[%s5 + $0x27c] sm:$0xf]
        %v1183 = vld [vmem:[%s5 + $0x280] sm:$0xf]
        %v1184 = vld [vmem:[%s5 + $0x284] sm:$0xf]
        %v1185 = vld [vmem:[%s5 + $0x288] sm:$0xf]
        %v1186 = vld [vmem:[%s5 + $0x28c] sm:$0xf]
        %v1187 = vld [vmem:[%s5 + $0x290] sm:$0xf]
        %v1188 = vld [vmem:[%s5 + $0x294] sm:$0xf]
        %v1189 = vld [vmem:[%s5 + $0x298] sm:$0xf]
        %v1190 = vld [vmem:[%s5 + $0x29c] sm:$0xf]
        %v1191 = vld [vmem:[%s5 + $0x2a0] sm:$0xf]
        %v1192 = vld [vmem:[%s5 + $0x2a4] sm:$0xf]
        %v1193 = vld [vmem:[%s563] sm:$0xff]
        %v1194 = vld [vmem:[%s563 + $0x8] sm:$0xff]
        %v1195 = vld [vmem:[%s563 + $0x10] sm:$0xff]
        %v1196 = vld [vmem:[%s563 + $0x18] sm:$0xff]
        %v1197 = vld [vmem:[%s563 + $0x20] sm:$0xff]
        %v1198 = vld [vmem:[%s563 + $0x28] sm:$0xff]
        %v1199 = vld [vmem:[%s563 + $0x30] sm:$0xff]
        %v1200 = vld [vmem:[%s563 + $0x38] sm:$0xff]
        %v1201 = vld [vmem:[%s563 + $0x40] sm:$0xff]
        %v1202 = vld [vmem:[%s563 + $0x48] sm:$0xff]
        %v1203 = vld [vmem:[%s563 + $0x50] sm:$0xff]
        %v1204 = vld [vmem:[%s563 + $0x58] sm:$0xff]
        %v1205 = vld [vmem:[%s563 + $0x60] sm:$0xff]
        %v1206 = vld [vmem:[%s563 + $0x68] sm:$0xff]
        %v1207 = vld [vmem:[%s563 + $0x70] sm:$0xff]
        %v1208 = vld [vmem:[%s563 + $0x78] sm:$0xff]
        %v1209 = vpack.c.bf16 %v1195, %v1193
        %v1210 = vpack.c.bf16 %v1196, %v1194
        %v1211 = vpack.c.bf16 %v1199, %v1197
        %v1212 = vpack.c.bf16 %v1200, %v1198
        %v1213 = vpack.c.bf16 %v1203, %v1201
        %v1214 = vpack.c.bf16 %v1204, %v1202
        %v1215 = vpack.c.bf16 %v1207, %v1205
        %v1216 = vpack.c.bf16 %v1208, %v1206
        %v1387 = vunpack.c.l.b16 %v1023
        %v1388 = vunpack.c.l.b16 %v1024
        %v1389 = vunpack.c.l.b16 %v1025
        %v1390 = vunpack.c.l.b16 %v1026
        %v1391 = vunpack.c.l.b16 %v1027
        %v1392 = vunpack.c.l.b16 %v1028
        %v1393 = vunpack.c.l.b16 %v1029
        %v1394 = vunpack.c.l.b16 %v1030
        %v1395 = vunpack.c.l.b16 %v1031
        %v1396 = vunpack.c.l.b16 %v1032
        %v1397 = vunpack.c.l.b16 %v1033
        %v1398 = vunpack.c.l.b16 %v1034
        %v1399 = vunpack.c.l.b16 %v1035
        %v1400 = vunpack.c.l.b16 %v1036
        %v1401 = vunpack.c.l.b16 %v1037
        %v1402 = vunpack.c.l.b16 %v1038
        %v1403 = vunpack.c.l.b16 %v1039
        %v1404 = vunpack.c.l.b16 %v1040
        %v1405 = vunpack.c.l.b16 %v1041
        %v1406 = vunpack.c.l.b16 %v1042
        %v1407 = vunpack.c.l.b16 %v1043
        %v1408 = vunpack.c.l.b16 %v1044
        %v1409 = vunpack.c.l.b16 %v1045
        %v1410 = vunpack.c.l.b16 %v1046
        %v1411 = vunpack.c.l.b16 %v1047
        %v1412 = vunpack.c.l.b16 %v1048
        %v1413 = vunpack.c.l.b16 %v1049
        %v1414 = vunpack.c.l.b16 %v1050
        %v1415 = vunpack.c.l.b16 %v1051
        %v1416 = vunpack.c.l.b16 %v1052
        %v1417 = vunpack.c.l.b16 %v1053
        %v1418 = vunpack.c.l.b16 %v1054
        %v1419 = vunpack.c.l.b16 %v1055
        %v1420 = vunpack.c.l.b16 %v1056
        %v1421 = vunpack.c.l.b16 %v1057
        %v1422 = vunpack.c.l.b16 %v1058
        %v1423 = vunpack.c.l.b16 %v1059
        %v1424 = vunpack.c.l.b16 %v1060
        %v1425 = vunpack.c.l.b16 %v1061
        %v1426 = vunpack.c.l.b16 %v1062
        %v1427 = vunpack.c.l.b16 %v1063
        %v1428 = vunpack.c.l.b16 %v1064
        %v1429 = vunpack.c.l.b16 %v1065
        %v1430 = vunpack.c.l.b16 %v1066
        %v1431 = vunpack.c.l.b16 %v1067
        %v1432 = vunpack.c.l.b16 %v1068
        %v1433 = vunpack.c.l.b16 %v1069
        %v1434 = vunpack.c.l.b16 %v1070
        %v1435 = vunpack.c.l.b16 %v1071
        %v1436 = vunpack.c.l.b16 %v1072
        %v1437 = vunpack.c.l.b16 %v1073
        %v1438 = vunpack.c.l.b16 %v1074
        %v1439 = vunpack.c.l.b16 %v1075
        %v1440 = vunpack.c.l.b16 %v1076
        %v1441 = vunpack.c.l.b16 %v1077
        %v1442 = vunpack.c.l.b16 %v1078
        %v1443 = vunpack.c.l.b16 %v1079
        %v1444 = vunpack.c.l.b16 %v1080
        %v1445 = vunpack.c.l.b16 %v1081
        %v1446 = vunpack.c.l.b16 %v1082
        %v1447 = vunpack.c.l.b16 %v1083
        %v1448 = vunpack.c.l.b16 %v1084
        %v1449 = vunpack.c.l.b16 %v1085
        %v1450 = vunpack.c.l.b16 %v1086
        %v1451 = vunpack.c.l.b16 %v1087
        %v1452 = vunpack.c.l.b16 %v1088
        %v1453 = vunpack.c.l.b16 %v1089
        %v1454 = vunpack.c.l.b16 %v1090
        %v1455 = vunpack.c.l.b16 %v1091
        %v1456 = vunpack.c.l.b16 %v1092
        %v1457 = vunpack.c.l.b16 %v1093
        %v1458 = vunpack.c.l.b16 %v1094
        %v1459 = vunpack.c.l.b16 %v1095
        %v1460 = vunpack.c.l.b16 %v1096
        %v1461 = vunpack.c.l.b16 %v1097
        %v1462 = vunpack.c.l.b16 %v1098
        %v1463 = vunpack.c.l.b16 %v1099
        %v1464 = vunpack.c.l.b16 %v1100
        %v1465 = vunpack.c.l.b16 %v1101
        %v1466 = vunpack.c.l.b16 %v1102
        %v1467 = vunpack.c.l.b16 %v1103
        %v1468 = vunpack.c.l.b16 %v1104
        %v1469 = vunpack.c.l.b16 %v1105
        %v1470 = vunpack.c.l.b16 %v1106
        %v1471 = vunpack.c.l.b16 %v1107
        %v1472 = vunpack.c.l.b16 %v1108
        %v1473 = vunpack.c.l.b16 %v1109
        %v1474 = vunpack.c.l.b16 %v1110
        %v1475 = vunpack.c.l.b16 %v1111
        %v1476 = vunpack.c.l.b16 %v1112
        %v1477 = vunpack.c.l.b16 %v1113
        %v1478 = vunpack.c.l.b16 %v1114
        %v1479 = vunpack.c.l.b16 %v1115
        %v1480 = vunpack.c.l.b16 %v1116
        %v1481 = vunpack.c.l.b16 %v1117
        %v1482 = vunpack.c.l.b16 %v1118
        %v1483 = vunpack.c.l.b16 %v1119
        %v1484 = vunpack.c.l.b16 %v1120
        %v1485 = vunpack.c.l.b16 %v1121
        %v1486 = vunpack.c.l.b16 %v1122
        %v1487 = vunpack.c.l.b16 %v1123
        %v1488 = vunpack.c.l.b16 %v1124
        %v1489 = vunpack.c.l.b16 %v1125
        %v1490 = vunpack.c.l.b16 %v1126
        %v1491 = vunpack.c.l.b16 %v1127
        %v1492 = vunpack.c.l.b16 %v1128
        %v1493 = vunpack.c.l.b16 %v1129
        %v1494 = vunpack.c.l.b16 %v1130
        %v1495 = vunpack.c.l.b16 %v1131
        %v1496 = vunpack.c.l.b16 %v1132
        %v1497 = vunpack.c.l.b16 %v1133
        %v1498 = vunpack.c.l.b16 %v1134
        %v1499 = vunpack.c.l.b16 %v1135
        %v1500 = vunpack.c.l.b16 %v1136
        %v1501 = vunpack.c.l.b16 %v1137
        %v1502 = vunpack.c.l.b16 %v1138
        %v1503 = vunpack.c.l.b16 %v1139
        %v1504 = vunpack.c.l.b16 %v1140
        %v1505 = vunpack.c.l.b16 %v1141
        %v1506 = vunpack.c.l.b16 %v1142
        %v1507 = vunpack.c.l.b16 %v1143
        %v1508 = vunpack.c.l.b16 %v1144
        %v1509 = vunpack.c.l.b16 %v1145
        %v1510 = vunpack.c.l.b16 %v1146
        %v1511 = vunpack.c.l.b16 %v1147
        %v1512 = vunpack.c.l.b16 %v1148
        %v1513 = vunpack.c.l.b16 %v1149
        %v1514 = vunpack.c.l.b16 %v1150
        %v1515 = vunpack.c.l.b16 %v1151
        %v1516 = vunpack.c.l.b16 %v1152
        %v1517 = vunpack.c.l.b16 %v1153
        %v1518 = vunpack.c.l.b16 %v1154
        %v1519 = vunpack.c.l.b16 %v1155
        %v1520 = vunpack.c.l.b16 %v1156
        %v1521 = vunpack.c.l.b16 %v1157
        %v1522 = vunpack.c.l.b16 %v1158
        %v1523 = vunpack.c.l.b16 %v1159
        %v1524 = vunpack.c.l.b16 %v1160
        %v1525 = vunpack.c.l.b16 %v1161
        %v1526 = vunpack.c.l.b16 %v1162
        %v1527 = vunpack.c.l.b16 %v1163
        %v1528 = vunpack.c.l.b16 %v1164
        %v1529 = vunpack.c.l.b16 %v1165
        %v1530 = vunpack.c.l.b16 %v1166
        %v1531 = vunpack.c.l.b16 %v1167
        %v1532 = vunpack.c.l.b16 %v1168
        %v1533 = vunpack.c.l.b16 %v1169
        %v1534 = vunpack.c.l.b16 %v1170
        %v1535 = vunpack.c.l.b16 %v1171
        %v1536 = vunpack.c.l.b16 %v1172
        %v1537 = vunpack.c.l.b16 %v1173
        %v1538 = vunpack.c.l.b16 %v1174
        %v1539 = vunpack.c.l.b16 %v1175
        %v1540 = vunpack.c.l.b16 %v1176
        %v1541 = vunpack.c.l.b16 %v1177
        %v1542 = vunpack.c.l.b16 %v1178
        %v1543 = vunpack.c.l.b16 %v1179
        %v1544 = vunpack.c.l.b16 %v1180
        %v1545 = vunpack.c.l.b16 %v1181
        %v1546 = vunpack.c.l.b16 %v1182
        %v1547 = vunpack.c.l.b16 %v1183
        %v1548 = vunpack.c.l.b16 %v1184
        %v1549 = vunpack.c.l.b16 %v1185
        %v1550 = vunpack.c.l.b16 %v1186
        %v1551 = vunpack.c.l.b16 %v1187
        %v1552 = vunpack.c.l.b16 %v1188
        %v1553 = vunpack.c.l.b16 %v1189
        %v1554 = vunpack.c.l.b16 %v1190
        %v1555 = vunpack.c.l.b16 %v1191
        %v1556 = vunpack.c.l.b16 %v1192
        %v1557 = vpack.c.b16 %v1388, %v1387
        %v1558 = vpack.c.b16 %v1390, %v1389
        %v1559 = vpack.c.b16 %v1392, %v1391
        %v1560 = vpack.c.b16 %v1394, %v1393
        %v1561 = vpack.c.b16 %v1396, %v1395
        %v1562 = vpack.c.b16 %v1398, %v1397
        %v1563 = vpack.c.b16 %v1400, %v1399
        %v1564 = vpack.c.b16 %v1402, %v1401
        %v1565 = vpack.c.b16 %v1404, %v1403
        %v1566 = vpack.c.b16 %v1406, %v1405
        %v1567 = vpack.c.b16 %v1408, %v1407
        %v1568 = vpack.c.b16 %v1410, %v1409
        %v1569 = vpack.c.b16 %v1412, %v1411
        %v1570 = vpack.c.b16 %v1414, %v1413
        %v1571 = vpack.c.b16 %v1416, %v1415
        %v1572 = vpack.c.b16 %v1418, %v1417
        %v1573 = vpack.c.b16 %v1420, %v1419
        %v1574 = vpack.c.b16 %v1422, %v1421
        %v1575 = vpack.c.b16 %v1424, %v1423
        %v1576 = vpack.c.b16 %v1426, %v1425
        %v1577 = vpack.c.b16 %v1428, %v1427
        %v1578 = vpack.c.b16 %v1430, %v1429
        %v1579 = vpack.c.b16 %v1432, %v1431
        %v1580 = vpack.c.b16 %v1434, %v1433
        %v1581 = vpack.c.b16 %v1436, %v1435
        %v1582 = vpack.c.b16 %v1438, %v1437
        %v1583 = vpack.c.b16 %v1440, %v1439
        %v1584 = vpack.c.b16 %v1442, %v1441
        %v1585 = vpack.c.b16 %v1444, %v1443
        %v1586 = vpack.c.b16 %v1446, %v1445
        %v1587 = vpack.c.b16 %v1448, %v1447
        %v1588 = vpack.c.b16 %v1450, %v1449
        %v1589 = vpack.c.b16 %v1452, %v1451
        %v1590 = vpack.c.b16 %v1454, %v1453
        %v1591 = vpack.c.b16 %v1456, %v1455
        %v1592 = vpack.c.b16 %v1458, %v1457
        %v1593 = vpack.c.b16 %v1460, %v1459
        %v1594 = vpack.c.b16 %v1462, %v1461
        %v1595 = vpack.c.b16 %v1464, %v1463
        %v1596 = vpack.c.b16 %v1466, %v1465
        %v1597 = vpack.c.b16 %v1468, %v1467
        %v1598 = vpack.c.b16 %v1470, %v1469
        %v1599 = vpack.c.b16 %v1472, %v1471
        %v1600 = vpack.c.b16 %v1474, %v1473
        %v1601 = vpack.c.b16 %v1476, %v1475
        %v1602 = vpack.c.b16 %v1478, %v1477
        %v1603 = vpack.c.b16 %v1480, %v1479
        %v1604 = vpack.c.b16 %v1482, %v1481
        %v1605 = vpack.c.b16 %v1484, %v1483
        %v1606 = vpack.c.b16 %v1486, %v1485
        %v1607 = vpack.c.b16 %v1488, %v1487
        %v1608 = vpack.c.b16 %v1490, %v1489
        %v1609 = vpack.c.b16 %v1492, %v1491
        %v1610 = vpack.c.b16 %v1494, %v1493
        %v1611 = vpack.c.b16 %v1496, %v1495
        %v1612 = vpack.c.b16 %v1498, %v1497
        %v1613 = vpack.c.b16 %v1500, %v1499
        %v1614 = vpack.c.b16 %v1502, %v1501
        %v1615 = vpack.c.b16 %v1504, %v1503
        %v1616 = vpack.c.b16 %v1506, %v1505
        %v1617 = vpack.c.b16 %v1508, %v1507
        %v1618 = vpack.c.b16 %v1510, %v1509
        %v1619 = vpack.c.b16 %v1512, %v1511
        %v1620 = vpack.c.b16 %v1514, %v1513
        %v1621 = vpack.c.b16 %v1516, %v1515
        %v1622 = vpack.c.b16 %v1518, %v1517
        %v1623 = vpack.c.b16 %v1520, %v1519
        %v1624 = vpack.c.b16 %v1522, %v1521
        %v1625 = vpack.c.b16 %v1524, %v1523
        %v1626 = vpack.c.b16 %v1526, %v1525
        %v1627 = vpack.c.b16 %v1528, %v1527
        %v1628 = vpack.c.b16 %v1530, %v1529
        %v1629 = vpack.c.b16 %v1532, %v1531
        %v1630 = vpack.c.b16 %v1534, %v1533
        %v1631 = vpack.c.b16 %v1536, %v1535
        %v1632 = vpack.c.b16 %v1538, %v1537
        %v1633 = vpack.c.b16 %v1540, %v1539
        %v1634 = vpack.c.b16 %v1542, %v1541
        %v1635 = vpack.c.b16 %v1544, %v1543
        %v1636 = vpack.c.b16 %v1546, %v1545
        %v1637 = vpack.c.b16 %v1548, %v1547
        %v1638 = vpack.c.b16 %v1550, %v1549
        %v1639 = vpack.c.b16 %v1552, %v1551
        %v1640 = vpack.c.b16 %v1554, %v1553
        %v1641 = vpack.c.b16 %v1556, %v1555
        %vm1642 = vcmask 523264
        %v1644 = vsel %vm1642, %v1557, 0
        %v1647 = vsel %vm1642, %v1558, 0
        %v1650 = vsel %vm1642, %v1559, 0
        %v1653 = vsel %vm1642, %v1560, 0
        %v1656 = vsel %vm1642, %v1561, 0
        %v1659 = vsel %vm1642, %v1562, 0
        %v1662 = vsel %vm1642, %v1563, 0
        %v1665 = vsel %vm1642, %v1564, 0
        %v1668 = vsel %vm1642, %v1565, 0
        %v1671 = vsel %vm1642, %v1566, 0
        %v1674 = vsel %vm1642, %v1567, 0
        %v1677 = vsel %vm1642, %v1568, 0
        %v1680 = vsel %vm1642, %v1569, 0
        %v1683 = vsel %vm1642, %v1570, 0
        %v1686 = vsel %vm1642, %v1571, 0
        %v1689 = vsel %vm1642, %v1572, 0
        %v1692 = vsel %vm1642, %v1573, 0
        %v1695 = vsel %vm1642, %v1574, 0
        %v1698 = vsel %vm1642, %v1575, 0
        %v1701 = vsel %vm1642, %v1576, 0
        %v1704 = vsel %vm1642, %v1577, 0
        %v1707 = vsel %vm1642, %v1578, 0
        %v1710 = vsel %vm1642, %v1579, 0
        %v1713 = vsel %vm1642, %v1580, 0
        %v1716 = vsel %vm1642, %v1581, 0
        %v1719 = vsel %vm1642, %v1582, 0
        %v1722 = vsel %vm1642, %v1583, 0
        %v1725 = vsel %vm1642, %v1584, 0
        %v1728 = vsel %vm1642, %v1585, 0
        %v1731 = vsel %vm1642, %v1586, 0
        %v1734 = vsel %vm1642, %v1587, 0
        %v1737 = vsel %vm1642, %v1588, 0
        %v1740 = vsel %vm1642, %v1589, 0
        %v1743 = vsel %vm1642, %v1590, 0
        %v1746 = vsel %vm1642, %v1591, 0
        %v1749 = vsel %vm1642, %v1592, 0
        %v1752 = vsel %vm1642, %v1593, 0
        %v1755 = vsel %vm1642, %v1594, 0
        %v1758 = vsel %vm1642, %v1595, 0
        %v1761 = vsel %vm1642, %v1596, 0
        %v1764 = vsel %vm1642, %v1597, 0
        %v1767 = vsel %vm1642, %v1598, 0
        %v1770 = vsel %vm1642, %v1599, 0
        %v1773 = vsel %vm1642, %v1600, 0
        %v1776 = vsel %vm1642, %v1601, 0
        %v1779 = vsel %vm1642, %v1602, 0
        %v1782 = vsel %vm1642, %v1603, 0
        %v1785 = vsel %vm1642, %v1604, 0
        %v1788 = vsel %vm1642, %v1605, 0
        %v1791 = vsel %vm1642, %v1606, 0
        %v1794 = vsel %vm1642, %v1607, 0
        %v1797 = vsel %vm1642, %v1608, 0
        %v1800 = vsel %vm1642, %v1609, 0
        %v1803 = vsel %vm1642, %v1610, 0
        %v1806 = vsel %vm1642, %v1611, 0
        %v1809 = vsel %vm1642, %v1612, 0
        %v1812 = vsel %vm1642, %v1613, 0
        %v1815 = vsel %vm1642, %v1614, 0
        %v1818 = vsel %vm1642, %v1615, 0
        %v1821 = vsel %vm1642, %v1616, 0
        %v1824 = vsel %vm1642, %v1617, 0
        %v1827 = vsel %vm1642, %v1618, 0
        %v1830 = vsel %vm1642, %v1619, 0
        %v1833 = vsel %vm1642, %v1620, 0
        %v1836 = vsel %vm1642, %v1621, 0
        %v1839 = vsel %vm1642, %v1622, 0
        %v1842 = vsel %vm1642, %v1623, 0
        %v1845 = vsel %vm1642, %v1624, 0
        %v1848 = vsel %vm1642, %v1625, 0
        %v1851 = vsel %vm1642, %v1626, 0
        %v1854 = vsel %vm1642, %v1627, 0
        %v1857 = vsel %vm1642, %v1628, 0
        %v1860 = vsel %vm1642, %v1629, 0
        %v1863 = vsel %vm1642, %v1630, 0
        %v1866 = vsel %vm1642, %v1631, 0
        %v1869 = vsel %vm1642, %v1632, 0
        %v1872 = vsel %vm1642, %v1633, 0
        %v1875 = vsel %vm1642, %v1634, 0
        %v1878 = vsel %vm1642, %v1635, 0
        %v1881 = vsel %vm1642, %v1636, 0
        %v1884 = vsel %vm1642, %v1637, 0
        %v1887 = vsel %vm1642, %v1638, 0
        %v1890 = vsel %vm1642, %v1639, 0
        %v1893 = vsel %vm1642, %v1640, 0
        %v1896 = vsel %vm1642, %v1641, 0
        %1898 = vmatprep.subr.bf16.mxu0 %v1210
        %1899 = vmatpush1.bf16.msra.mxu0 %v1209
        %1900 = vmatprep.subr.bf16.mxu0 %v1212
        %1901 = vmatpush1.bf16.msra.mxu0 %v1211
        %1902 = vmatprep.subr.bf16.mxu0 %v1214
        %1903 = vmatpush1.bf16.msra.mxu0 %v1213
        %1904 = vmatprep.subr.bf16.mxu0 %v1216
        %1905 = vmatpush1.bf16.msra.mxu0 %v1215
        %1906 = vmatprep.subr.bf16.mxu0 0
        %1907 = vmatpush1.bf16.msra.mxu0 0
        %1908 = vmatprep.subr.bf16.mxu0 0
        %1909 = vmatpush1.bf16.msra.mxu0 0
        %1910 = vmatprep.subr.bf16.mxu0 0
        %1911 = vmatpush1.bf16.msra.mxu0 0
        %1912 = vmatprep.subr.bf16.mxu0 0
        %1913 = vmatpush1.bf16.msra.mxu0 0
        %1914 = vmatprep.subr.bf16.mxu0 0
        %1915 = vmatpush1.bf16.msra.mxu0 0
        %1916 = vmatprep.subr.bf16.mxu0 0
        %1917 = vmatpush1.bf16.msra.mxu0 0
        %1918 = vmatprep.subr.bf16.mxu0 0
        %1919 = vmatpush1.bf16.msra.mxu0 0
        %1920 = vmatprep.subr.bf16.mxu0 0
        %1921 = vmatpush1.bf16.msra.mxu0 0
        %1922 = vmatprep.subr.bf16.mxu0 0
        %1923 = vmatpush1.bf16.msra.mxu0 0
        %1924 = vmatprep.subr.bf16.mxu0 0
        %1925 = vmatpush1.bf16.msra.mxu0 0
        %1926 = vmatprep.subr.bf16.mxu0 0
        %1927 = vmatpush1.bf16.msra.mxu0 0
        %1928 = vmatprep.subr.bf16.mxu0 0
        %1929 = vmatpush1.bf16.msra.mxu0 0
        %1930 = vmatprep.mubr.bf16.mxu0 0
        %1931 = vmatmul.mubr.bf16.gmra.mrb[0].mxu0 %v1644
        %v1932 = vpop.f32.mrb[0].mxu0
        %v1933 = vadd.f32 0.0, %v1932
        %v1934 = vpop.f32.mrb[0].mxu0
        %v1935 = vadd.f32 0.0, %v1934
        %v1936 = vpop.f32.mrb[0].mxu0
        %v1937 = vadd.f32 0.0, %v1936
        %v1938 = vpop.f32.mrb[0].mxu0
        %v1939 = vadd.f32 0.0, %v1938
        %1940 = vmatprep.mubr.bf16.mxu0 0
        %1941 = vmatmul.mubr.bf16.gmra.mrb[0].mxu0 %v1647
        %v1942 = vpop.f32.mrb[0].mxu0
        %v1943 = vadd.f32 0.0, %v1942
        %v1944 = vpop.f32.mrb[0].mxu0
        %v1945 = vadd.f32 0.0, %v1944
        %v1946 = vpop.f32.mrb[0].mxu0
        %v1947 = vadd.f32 0.0, %v1946
        %v1948 = vpop.f32.mrb[0].mxu0
        %v1949 = vadd.f32 0.0, %v1948
        %1950 = vmatprep.mubr.bf16.mxu0 0
        %1951 = vmatmul.mubr.bf16.gmra.mrb[0].mxu0 %v1650
        %v1952 = vpop.f32.mrb[0].mxu0
        %v1953 = vadd.f32 0.0, %v1952
        %v1954 = vpop.f32.mrb[0].mxu0
        %v1955 = vadd.f32 0.0, %v1954
        %v1956 = vpop.f32.mrb[0].mxu0
        %v1957 = vadd.f32 0.0, %v1956
        %v1958 = vpop.f32.mrb[0].mxu0
        %v1959 = vadd.f32 0.0, %v1958
        %1960 = vmatprep.mubr.bf16.mxu0 0
        %1961 = vmatmul.mubr.bf16.gmra.mrb[0].mxu0 %v1653
        %v1962 = vpop.f32.mrb[0].mxu0
        %v1963 = vadd.f32 0.0, %v1962
        %v1964 = vpop.f32.mrb[0].mxu0
        %v1965 = vadd.f32 0.0, %v1964
        %v1966 = vpop.f32.mrb[0].mxu0
        %v1967 = vadd.f32 0.0, %v1966
        %v1968 = vpop.f32.mrb[0].mxu0
        %v1969 = vadd.f32 0.0, %v1968
        %1970 = vmatprep.mubr.bf16.mxu0 0
        %1971 = vmatmul.mubr.bf16.gmra.mrb[0].mxu0 %v1656
        %v1972 = vpop.f32.mrb[0].mxu0
        %v1973 = vadd.f32 0.0, %v1972
        %v1974 = vpop.f32.mrb[0].mxu0
        %v1975 = vadd.f32 0.0, %v1974
        %v1976 = vpop.f32.mrb[0].mxu0
        %v1977 = vadd.f32 0.0, %v1976
        %v1978 = vpop.f32.mrb[0].mxu0
        %v1979 = vadd.f32 0.0, %v1978
        %1980 = vmatprep.mubr.bf16.mxu0 0
        %1981 = vmatmul.mubr.bf16.gmra.mrb[0].mxu0 %v1659
        %v1982 = vpop.f32.mrb[0].mxu0
        %v1983 = vadd.f32 0.0, %v1982
        %v1984 = vpop.f32.mrb[0].mxu0
        %v1985 = vadd.f32 0.0, %v1984
        %v1986 = vpop.f32.mrb[0].mxu0
        %v1987 = vadd.f32 0.0, %v1986
        %v1988 = vpop.f32.mrb[0].mxu0
        %v1989 = vadd.f32 0.0, %v1988
        %1990 = vmatprep.mubr.bf16.mxu0 0
        %1991 = vmatmul.mubr.bf16.gmra.mrb[0].mxu0 %v1662
        %v1992 = vpop.f32.mrb[0].mxu0
        %v1993 = vadd.f32 0.0, %v1992
        %v1994 = vpop.f32.mrb[0].mxu0
        %v1995 = vadd.f32 0.0, %v1994
        %v1996 = vpop.f32.mrb[0].mxu0
        %v1997 = vadd.f32 0.0, %v1996
        %v1998 = vpop.f32.mrb[0].mxu0
        %v1999 = vadd.f32 0.0, %v1998
        %2000 = vmatprep.mubr.bf16.mxu0 0
        %2001 = vmatmul.mubr.bf16.gmra.mrb[0].mxu0 %v1665
        %v2002 = vpop.f32.mrb[0].mxu0
        %v2003 = vadd.f32 0.0, %v2002
        %v2004 = vpop.f32.mrb[0].mxu0
        %v2005 = vadd.f32 0.0, %v2004
        %v2006 = vpop.f32.mrb[0].mxu0
        %v2007 = vadd.f32 0.0, %v2006
        %v2008 = vpop.f32.mrb[0].mxu0
        %v2009 = vadd.f32 0.0, %v2008
        %2010 = vmatprep.mubr.bf16.mxu0 0
        %2011 = vmatmul.mubr.bf16.gmra.mrb[0].mxu0 %v1668
        %v2012 = vpop.f32.mrb[0].mxu0
        %v2013 = vadd.f32 0.0, %v2012
        %v2014 = vpop.f32.mrb[0].mxu0
        %v2015 = vadd.f32 0.0, %v2014
        %v2016 = vpop.f32.mrb[0].mxu0
        %v2017 = vadd.f32 0.0, %v2016
        %v2018 = vpop.f32.mrb[0].mxu0
        %v2019 = vadd.f32 0.0, %v2018
        %2020 = vmatprep.mubr.bf16.mxu0 0
        %2021 = vmatmul.mubr.bf16.gmra.mrb[0].mxu0 %v1671
        %v2022 = vpop.f32.mrb[0].mxu0
        %v2023 = vadd.f32 0.0, %v2022
        %v2024 = vpop.f32.mrb[0].mxu0
        %v2025 = vadd.f32 0.0, %v2024
        %v2026 = vpop.f32.mrb[0].mxu0
        %v2027 = vadd.f32 0.0, %v2026
        %v2028 = vpop.f32.mrb[0].mxu0
        %v2029 = vadd.f32 0.0, %v2028
        %2030 = vmatprep.mubr.bf16.mxu0 0
        %2031 = vmatmul.mubr.bf16.gmra.mrb[0].mxu0 %v1674
        %v2032 = vpop.f32.mrb[0].mxu0
        %v2033 = vadd.f32 0.0, %v2032
        %v2034 = vpop.f32.mrb[0].mxu0
        %v2035 = vadd.f32 0.0, %v2034
        %v2036 = vpop.f32.mrb[0].mxu0
        %v2037 = vadd.f32 0.0, %v2036
        %v2038 = vpop.f32.mrb[0].mxu0
        %v2039 = vadd.f32 0.0, %v2038
        %2040 = vmatprep.mubr.bf16.mxu0 0
        %2041 = vmatmul.mubr.bf16.gmra.mrb[0].mxu0 %v1677
        %v2042 = vpop.f32.mrb[0].mxu0
        %v2043 = vadd.f32 0.0, %v2042
        %v2044 = vpop.f32.mrb[0].mxu0
        %v2045 = vadd.f32 0.0, %v2044
        %v2046 = vpop.f32.mrb[0].mxu0
        %v2047 = vadd.f32 0.0, %v2046
        %v2048 = vpop.f32.mrb[0].mxu0
        %v2049 = vadd.f32 0.0, %v2048
        %2050 = vmatprep.mubr.bf16.mxu0 0
        %2051 = vmatmul.mubr.bf16.gmra.mrb[0].mxu0 %v1680
        %v2052 = vpop.f32.mrb[0].mxu0
        %v2053 = vadd.f32 0.0, %v2052
        %v2054 = vpop.f32.mrb[0].mxu0
        %v2055 = vadd.f32 0.0, %v2054
        %v2056 = vpop.f32.mrb[0].mxu0
        %v2057 = vadd.f32 0.0, %v2056
        %v2058 = vpop.f32.mrb[0].mxu0
        %v2059 = vadd.f32 0.0, %v2058
        %2060 = vmatprep.mubr.bf16.mxu0 0
        %2061 = vmatmul.mubr.bf16.gmra.mrb[0].mxu0 %v1683
        %v2062 = vpop.f32.mrb[0].mxu0
        %v2063 = vadd.f32 0.0, %v2062
        %v2064 = vpop.f32.mrb[0].mxu0
        %v2065 = vadd.f32 0.0, %v2064
        %v2066 = vpop.f32.mrb[0].mxu0
        %v2067 = vadd.f32 0.0, %v2066
        %v2068 = vpop.f32.mrb[0].mxu0
        %v2069 = vadd.f32 0.0, %v2068
        %2070 = vmatprep.mubr.bf16.mxu0 0
        %2071 = vmatmul.mubr.bf16.gmra.mrb[0].mxu0 %v1686
        %v2072 = vpop.f32.mrb[0].mxu0
        %v2073 = vadd.f32 0.0, %v2072
        %v2074 = vpop.f32.mrb[0].mxu0
        %v2075 = vadd.f32 0.0, %v2074
        %v2076 = vpop.f32.mrb[0].mxu0
        %v2077 = vadd.f32 0.0, %v2076
        %v2078 = vpop.f32.mrb[0].mxu0
        %v2079 = vadd.f32 0.0, %v2078
        %2080 = vmatprep.mubr.bf16.mxu0 0
        %2081 = vmatmul.mubr.bf16.gmra.mrb[0].mxu0 %v1689
        %v2082 = vpop.f32.mrb[0].mxu0
        %v2083 = vadd.f32 0.0, %v2082
        %v2084 = vpop.f32.mrb[0].mxu0
        %v2085 = vadd.f32 0.0, %v2084
        %v2086 = vpop.f32.mrb[0].mxu0
        %v2087 = vadd.f32 0.0, %v2086
        %v2088 = vpop.f32.mrb[0].mxu0
        %v2089 = vadd.f32 0.0, %v2088
        %2090 = vmatprep.mubr.bf16.mxu0 0
        %2091 = vmatmul.mubr.bf16.gmra.mrb[0].mxu0 %v1692
        %v2092 = vpop.f32.mrb[0].mxu0
        %v2093 = vadd.f32 0.0, %v2092
        %v2094 = vpop.f32.mrb[0].mxu0
        %v2095 = vadd.f32 0.0, %v2094
        %v2096 = vpop.f32.mrb[0].mxu0
        %v2097 = vadd.f32 0.0, %v2096
        %v2098 = vpop.f32.mrb[0].mxu0
        %v2099 = vadd.f32 0.0, %v2098
        %2100 = vmatprep.mubr.bf16.mxu0 0
        %2101 = vmatmul.mubr.bf16.gmra.mrb[0].mxu0 %v1695
        %v2102 = vpop.f32.mrb[0].mxu0
        %v2103 = vadd.f32 0.0, %v2102
        %v2104 = vpop.f32.mrb[0].mxu0
        %v2105 = vadd.f32 0.0, %v2104
        %v2106 = vpop.f32.mrb[0].mxu0
        %v2107 = vadd.f32 0.0, %v2106
        %v2108 = vpop.f32.mrb[0].mxu0
        %v2109 = vadd.f32 0.0, %v2108
        %2110 = vmatprep.mubr.bf16.mxu0 0
        %2111 = vmatmul.mubr.bf16.gmra.mrb[0].mxu0 %v1698
        %v2112 = vpop.f32.mrb[0].mxu0
        %v2113 = vadd.f32 0.0, %v2112
        %v2114 = vpop.f32.mrb[0].mxu0
        %v2115 = vadd.f32 0.0, %v2114
        %v2116 = vpop.f32.mrb[0].mxu0
        %v2117 = vadd.f32 0.0, %v2116
        %v2118 = vpop.f32.mrb[0].mxu0
        %v2119 = vadd.f32 0.0, %v2118
        %2120 = vmatprep.mubr.bf16.mxu0 0
        %2121 = vmatmul.mubr.bf16.gmra.mrb[0].mxu0 %v1701
        %v2122 = vpop.f32.mrb[0].mxu0
        %v2123 = vadd.f32 0.0, %v2122
        %v2124 = vpop.f32.mrb[0].mxu0
        %v2125 = vadd.f32 0.0, %v2124
        %v2126 = vpop.f32.mrb[0].mxu0
        %v2127 = vadd.f32 0.0, %v2126
        %v2128 = vpop.f32.mrb[0].mxu0
        %v2129 = vadd.f32 0.0, %v2128
        %2130 = vmatprep.mubr.bf16.mxu0 0
        %2131 = vmatmul.mubr.bf16.gmra.mrb[0].mxu0 %v1704
        %v2132 = vpop.f32.mrb[0].mxu0
        %v2133 = vadd.f32 0.0, %v2132
        %v2134 = vpop.f32.mrb[0].mxu0
        %v2135 = vadd.f32 0.0, %v2134
        %v2136 = vpop.f32.mrb[0].mxu0
        %v2137 = vadd.f32 0.0, %v2136
        %v2138 = vpop.f32.mrb[0].mxu0
        %v2139 = vadd.f32 0.0, %v2138
        %2140 = vmatprep.mubr.bf16.mxu0 0
        %2141 = vmatmul.mubr.bf16.gmra.mrb[0].mxu0 %v1707
        %v2142 = vpop.f32.mrb[0].mxu0
        %v2143 = vadd.f32 0.0, %v2142
        %v2144 = vpop.f32.mrb[0].mxu0
        %v2145 = vadd.f32 0.0, %v2144
        %v2146 = vpop.f32.mrb[0].mxu0
        %v2147 = vadd.f32 0.0, %v2146
        %v2148 = vpop.f32.mrb[0].mxu0
        %v2149 = vadd.f32 0.0, %v2148
        %2150 = vmatprep.mubr.bf16.mxu0 0
        %2151 = vmatmul.mubr.bf16.gmra.mrb[0].mxu0 %v1710
        %v2152 = vpop.f32.mrb[0].mxu0
        %v2153 = vadd.f32 0.0, %v2152
        %v2154 = vpop.f32.mrb[0].mxu0
        %v2155 = vadd.f32 0.0, %v2154
        %v2156 = vpop.f32.mrb[0].mxu0
        %v2157 = vadd.f32 0.0, %v2156
        %v2158 = vpop.f32.mrb[0].mxu0
        %v2159 = vadd.f32 0.0, %v2158
        %2160 = vmatprep.mubr.bf16.mxu0 0
        %2161 = vmatmul.mubr.bf16.gmra.mrb[0].mxu0 %v1713
        %v2162 = vpop.f32.mrb[0].mxu0
        %v2163 = vadd.f32 0.0, %v2162
        %v2164 = vpop.f32.mrb[0].mxu0
        %v2165 = vadd.f32 0.0, %v2164
        %v2166 = vpop.f32.mrb[0].mxu0
        %v2167 = vadd.f32 0.0, %v2166
        %v2168 = vpop.f32.mrb[0].mxu0
        %v2169 = vadd.f32 0.0, %v2168
        %2170 = vmatprep.mubr.bf16.mxu0 0
        %2171 = vmatmul.mubr.bf16.gmra.mrb[0].mxu0 %v1716
        %v2172 = vpop.f32.mrb[0].mxu0
        %v2173 = vadd.f32 0.0, %v2172
        %v2174 = vpop.f32.mrb[0].mxu0
        %v2175 = vadd.f32 0.0, %v2174
        %v2176 = vpop.f32.mrb[0].mxu0
        %v2177 = vadd.f32 0.0, %v2176
        %v2178 = vpop.f32.mrb[0].mxu0
        %v2179 = vadd.f32 0.0, %v2178
        %2180 = vmatprep.mubr.bf16.mxu0 0
        %2181 = vmatmul.mubr.bf16.gmra.mrb[0].mxu0 %v1719
        %v2182 = vpop.f32.mrb[0].mxu0
        %v2183 = vadd.f32 0.0, %v2182
        %v2184 = vpop.f32.mrb[0].mxu0
        %v2185 = vadd.f32 0.0, %v2184
        %v2186 = vpop.f32.mrb[0].mxu0
        %v2187 = vadd.f32 0.0, %v2186
        %v2188 = vpop.f32.mrb[0].mxu0
        %v2189 = vadd.f32 0.0, %v2188
        %2190 = vmatprep.mubr.bf16.mxu0 0
        %2191 = vmatmul.mubr.bf16.gmra.mrb[0].mxu0 %v1722
        %v2192 = vpop.f32.mrb[0].mxu0
        %v2193 = vadd.f32 0.0, %v2192
        %v2194 = vpop.f32.mrb[0].mxu0
        %v2195 = vadd.f32 0.0, %v2194
        %v2196 = vpop.f32.mrb[0].mxu0
        %v2197 = vadd.f32 0.0, %v2196
        %v2198 = vpop.f32.mrb[0].mxu0
        %v2199 = vadd.f32 0.0, %v2198
        %2200 = vmatprep.mubr.bf16.mxu0 0
        %2201 = vmatmul.mubr.bf16.gmra.mrb[0].mxu0 %v1725
        %v2202 = vpop.f32.mrb[0].mxu0
        %v2203 = vadd.f32 0.0, %v2202
        %v2204 = vpop.f32.mrb[0].mxu0
        %v2205 = vadd.f32 0.0, %v2204
        %v2206 = vpop.f32.mrb[0].mxu0
        %v2207 = vadd.f32 0.0, %v2206
        %v2208 = vpop.f32.mrb[0].mxu0
        %v2209 = vadd.f32 0.0, %v2208
        %2210 = vmatprep.mubr.bf16.mxu0 0
        %2211 = vmatmul.mubr.bf16.gmra.mrb[0].mxu0 %v1728
        %v2212 = vpop.f32.mrb[0].mxu0
        %v2213 = vadd.f32 0.0, %v2212
        %v2214 = vpop.f32.mrb[0].mxu0
        %v2215 = vadd.f32 0.0, %v2214
        %v2216 = vpop.f32.mrb[0].mxu0
        %v2217 = vadd.f32 0.0, %v2216
        %v2218 = vpop.f32.mrb[0].mxu0
        %v2219 = vadd.f32 0.0, %v2218
        %2220 = vmatprep.mubr.bf16.mxu0 0
        %2221 = vmatmul.mubr.bf16.gmra.mrb[0].mxu0 %v1731
        %v2222 = vpop.f32.mrb[0].mxu0
        %v2223 = vadd.f32 0.0, %v2222
        %v2224 = vpop.f32.mrb[0].mxu0
        %v2225 = vadd.f32 0.0, %v2224
        %v2226 = vpop.f32.mrb[0].mxu0
        %v2227 = vadd.f32 0.0, %v2226
        %v2228 = vpop.f32.mrb[0].mxu0
        %v2229 = vadd.f32 0.0, %v2228
        %2230 = vmatprep.mubr.bf16.mxu0 0
        %2231 = vmatmul.mubr.bf16.gmra.mrb[0].mxu0 %v1734
        %v2232 = vpop.f32.mrb[0].mxu0
        %v2233 = vadd.f32 0.0, %v2232
        %v2234 = vpop.f32.mrb[0].mxu0
        %v2235 = vadd.f32 0.0, %v2234
        %v2236 = vpop.f32.mrb[0].mxu0
        %v2237 = vadd.f32 0.0, %v2236
        %v2238 = vpop.f32.mrb[0].mxu0
        %v2239 = vadd.f32 0.0, %v2238
        %2240 = vmatprep.mubr.bf16.mxu0 0
        %2241 = vmatmul.mubr.bf16.gmra.mrb[0].mxu0 %v1737
        %v2242 = vpop.f32.mrb[0].mxu0
        %v2243 = vadd.f32 0.0, %v2242
        %v2244 = vpop.f32.mrb[0].mxu0
        %v2245 = vadd.f32 0.0, %v2244
        %v2246 = vpop.f32.mrb[0].mxu0
        %v2247 = vadd.f32 0.0, %v2246
        %v2248 = vpop.f32.mrb[0].mxu0
        %v2249 = vadd.f32 0.0, %v2248
        %2250 = vmatprep.mubr.bf16.mxu0 0
        %2251 = vmatmul.mubr.bf16.gmra.mrb[0].mxu0 %v1740
        %v2252 = vpop.f32.mrb[0].mxu0
        %v2253 = vadd.f32 0.0, %v2252
        %v2254 = vpop.f32.mrb[0].mxu0
        %v2255 = vadd.f32 0.0, %v2254
        %v2256 = vpop.f32.mrb[0].mxu0
        %v2257 = vadd.f32 0.0, %v2256
        %v2258 = vpop.f32.mrb[0].mxu0
        %v2259 = vadd.f32 0.0, %v2258
        %2260 = vmatprep.mubr.bf16.mxu0 0
        %2261 = vmatmul.mubr.bf16.gmra.mrb[0].mxu0 %v1743
        %v2262 = vpop.f32.mrb[0].mxu0
        %v2263 = vadd.f32 0.0, %v2262
        %v2264 = vpop.f32.mrb[0].mxu0
        %v2265 = vadd.f32 0.0, %v2264
        %v2266 = vpop.f32.mrb[0].mxu0
        %v2267 = vadd.f32 0.0, %v2266
        %v2268 = vpop.f32.mrb[0].mxu0
        %v2269 = vadd.f32 0.0, %v2268
        %2270 = vmatprep.mubr.bf16.mxu0 0
        %2271 = vmatmul.mubr.bf16.gmra.mrb[0].mxu0 %v1746
        %v2272 = vpop.f32.mrb[0].mxu0
        %v2273 = vadd.f32 0.0, %v2272
        %v2274 = vpop.f32.mrb[0].mxu0
        %v2275 = vadd.f32 0.0, %v2274
        %v2276 = vpop.f32.mrb[0].mxu0
        %v2277 = vadd.f32 0.0, %v2276
        %v2278 = vpop.f32.mrb[0].mxu0
        %v2279 = vadd.f32 0.0, %v2278
        %2280 = vmatprep.mubr.bf16.mxu0 0
        %2281 = vmatmul.mubr.bf16.gmra.mrb[0].mxu0 %v1749
        %v2282 = vpop.f32.mrb[0].mxu0
        %v2283 = vadd.f32 0.0, %v2282
        %v2284 = vpop.f32.mrb[0].mxu0
        %v2285 = vadd.f32 0.0, %v2284
        %v2286 = vpop.f32.mrb[0].mxu0
        %v2287 = vadd.f32 0.0, %v2286
        %v2288 = vpop.f32.mrb[0].mxu0
        %v2289 = vadd.f32 0.0, %v2288
        %2290 = vmatprep.mubr.bf16.mxu0 0
        %2291 = vmatmul.mubr.bf16.gmra.mrb[0].mxu0 %v1752
        %v2292 = vpop.f32.mrb[0].mxu0
        %v2293 = vadd.f32 0.0, %v2292
        %v2294 = vpop.f32.mrb[0].mxu0
        %v2295 = vadd.f32 0.0, %v2294
        %v2296 = vpop.f32.mrb[0].mxu0
        %v2297 = vadd.f32 0.0, %v2296
        %v2298 = vpop.f32.mrb[0].mxu0
        %v2299 = vadd.f32 0.0, %v2298
        %2300 = vmatprep.mubr.bf16.mxu0 0
        %2301 = vmatmul.mubr.bf16.gmra.mrb[0].mxu0 %v1755
        %v2302 = vpop.f32.mrb[0].mxu0
        %v2303 = vadd.f32 0.0, %v2302
        %v2304 = vpop.f32.mrb[0].mxu0
        %v2305 = vadd.f32 0.0, %v2304
        %v2306 = vpop.f32.mrb[0].mxu0
        %v2307 = vadd.f32 0.0, %v2306
        %v2308 = vpop.f32.mrb[0].mxu0
        %v2309 = vadd.f32 0.0, %v2308
        %2310 = vmatprep.mubr.bf16.mxu0 0
        %2311 = vmatmul.mubr.bf16.gmra.mrb[0].mxu0 %v1758
        %v2312 = vpop.f32.mrb[0].mxu0
        %v2313 = vadd.f32 0.0, %v2312
        %v2314 = vpop.f32.mrb[0].mxu0
        %v2315 = vadd.f32 0.0, %v2314
        %v2316 = vpop.f32.mrb[0].mxu0
        %v2317 = vadd.f32 0.0, %v2316
        %v2318 = vpop.f32.mrb[0].mxu0
        %v2319 = vadd.f32 0.0, %v2318
        %2320 = vmatprep.mubr.bf16.mxu0 0
        %2321 = vmatmul.mubr.bf16.gmra.mrb[0].mxu0 %v1761
        %v2322 = vpop.f32.mrb[0].mxu0
        %v2323 = vadd.f32 0.0, %v2322
        %v2324 = vpop.f32.mrb[0].mxu0
        %v2325 = vadd.f32 0.0, %v2324
        %v2326 = vpop.f32.mrb[0].mxu0
        %v2327 = vadd.f32 0.0, %v2326
        %v2328 = vpop.f32.mrb[0].mxu0
        %v2329 = vadd.f32 0.0, %v2328
        %2330 = vmatprep.mubr.bf16.mxu0 0
        %2331 = vmatmul.mubr.bf16.gmra.mrb[0].mxu0 %v1764
        %v2332 = vpop.f32.mrb[0].mxu0
        %v2333 = vadd.f32 0.0, %v2332
        %v2334 = vpop.f32.mrb[0].mxu0
        %v2335 = vadd.f32 0.0, %v2334
        %v2336 = vpop.f32.mrb[0].mxu0
        %v2337 = vadd.f32 0.0, %v2336
        %v2338 = vpop.f32.mrb[0].mxu0
        %v2339 = vadd.f32 0.0, %v2338
        %2340 = vmatprep.mubr.bf16.mxu0 0
        %2341 = vmatmul.mubr.bf16.gmra.mrb[0].mxu0 %v1767
        %v2342 = vpop.f32.mrb[0].mxu0
        %v2343 = vadd.f32 0.0, %v2342
        %v2344 = vpop.f32.mrb[0].mxu0
        %v2345 = vadd.f32 0.0, %v2344
        %v2346 = vpop.f32.mrb[0].mxu0
        %v2347 = vadd.f32 0.0, %v2346
        %v2348 = vpop.f32.mrb[0].mxu0
        %v2349 = vadd.f32 0.0, %v2348
        %2350 = vmatprep.mubr.bf16.mxu0 0
        %2351 = vmatmul.mubr.bf16.gmra.mrb[0].mxu0 %v1770
        %v2352 = vpop.f32.mrb[0].mxu0
        %v2353 = vadd.f32 0.0, %v2352
        %v2354 = vpop.f32.mrb[0].mxu0
        %v2355 = vadd.f32 0.0, %v2354
        %v2356 = vpop.f32.mrb[0].mxu0
        %v2357 = vadd.f32 0.0, %v2356
        %v2358 = vpop.f32.mrb[0].mxu0
        %v2359 = vadd.f32 0.0, %v2358
        %2360 = vmatprep.mubr.bf16.mxu0 0
        %2361 = vmatmul.mubr.bf16.gmra.mrb[0].mxu0 %v1773
        %v2362 = vpop.f32.mrb[0].mxu0
        %v2363 = vadd.f32 0.0, %v2362
        %v2364 = vpop.f32.mrb[0].mxu0
        %v2365 = vadd.f32 0.0, %v2364
        %v2366 = vpop.f32.mrb[0].mxu0
        %v2367 = vadd.f32 0.0, %v2366
        %v2368 = vpop.f32.mrb[0].mxu0
        %v2369 = vadd.f32 0.0, %v2368
        %2370 = vmatprep.mubr.bf16.mxu0 0
        %2371 = vmatmul.mubr.bf16.gmra.mrb[0].mxu0 %v1776
        %v2372 = vpop.f32.mrb[0].mxu0
        %v2373 = vadd.f32 0.0, %v2372
        %v2374 = vpop.f32.mrb[0].mxu0
        %v2375 = vadd.f32 0.0, %v2374
        %v2376 = vpop.f32.mrb[0].mxu0
        %v2377 = vadd.f32 0.0, %v2376
        %v2378 = vpop.f32.mrb[0].mxu0
        %v2379 = vadd.f32 0.0, %v2378
        %2380 = vmatprep.mubr.bf16.mxu0 0
        %2381 = vmatmul.mubr.bf16.gmra.mrb[0].mxu0 %v1779
        %v2382 = vpop.f32.mrb[0].mxu0
        %v2383 = vadd.f32 0.0, %v2382
        %v2384 = vpop.f32.mrb[0].mxu0
        %v2385 = vadd.f32 0.0, %v2384
        %v2386 = vpop.f32.mrb[0].mxu0
        %v2387 = vadd.f32 0.0, %v2386
        %v2388 = vpop.f32.mrb[0].mxu0
        %v2389 = vadd.f32 0.0, %v2388
        %2390 = vmatprep.mubr.bf16.mxu0 0
        %2391 = vmatmul.mubr.bf16.gmra.mrb[0].mxu0 %v1782
        %v2392 = vpop.f32.mrb[0].mxu0
        %v2393 = vadd.f32 0.0, %v2392
        %v2394 = vpop.f32.mrb[0].mxu0
        %v2395 = vadd.f32 0.0, %v2394
        %v2396 = vpop.f32.mrb[0].mxu0
        %v2397 = vadd.f32 0.0, %v2396
        %v2398 = vpop.f32.mrb[0].mxu0
        %v2399 = vadd.f32 0.0, %v2398
        %2400 = vmatprep.mubr.bf16.mxu0 0
        %2401 = vmatmul.mubr.bf16.gmra.mrb[0].mxu0 %v1785
        %v2402 = vpop.f32.mrb[0].mxu0
        %v2403 = vadd.f32 0.0, %v2402
        %v2404 = vpop.f32.mrb[0].mxu0
        %v2405 = vadd.f32 0.0, %v2404
        %v2406 = vpop.f32.mrb[0].mxu0
        %v2407 = vadd.f32 0.0, %v2406
        %v2408 = vpop.f32.mrb[0].mxu0
        %v2409 = vadd.f32 0.0, %v2408
        %2410 = vmatprep.mubr.bf16.mxu0 0
        %2411 = vmatmul.mubr.bf16.gmra.mrb[0].mxu0 %v1788
        %v2412 = vpop.f32.mrb[0].mxu0
        %v2413 = vadd.f32 0.0, %v2412
        %v2414 = vpop.f32.mrb[0].mxu0
        %v2415 = vadd.f32 0.0, %v2414
        %v2416 = vpop.f32.mrb[0].mxu0
        %v2417 = vadd.f32 0.0, %v2416
        %v2418 = vpop.f32.mrb[0].mxu0
        %v2419 = vadd.f32 0.0, %v2418
        %2420 = vmatprep.mubr.bf16.mxu0 0
        %2421 = vmatmul.mubr.bf16.gmra.mrb[0].mxu0 %v1791
        %v2422 = vpop.f32.mrb[0].mxu0
        %v2423 = vadd.f32 0.0, %v2422
        %v2424 = vpop.f32.mrb[0].mxu0
        %v2425 = vadd.f32 0.0, %v2424
        %v2426 = vpop.f32.mrb[0].mxu0
        %v2427 = vadd.f32 0.0, %v2426
        %v2428 = vpop.f32.mrb[0].mxu0
        %v2429 = vadd.f32 0.0, %v2428
        %2430 = vmatprep.mubr.bf16.mxu0 0
        %2431 = vmatmul.mubr.bf16.gmra.mrb[0].mxu0 %v1794
        %v2432 = vpop.f32.mrb[0].mxu0
        %v2433 = vadd.f32 0.0, %v2432
        %v2434 = vpop.f32.mrb[0].mxu0
        %v2435 = vadd.f32 0.0, %v2434
        %v2436 = vpop.f32.mrb[0].mxu0
        %v2437 = vadd.f32 0.0, %v2436
        %v2438 = vpop.f32.mrb[0].mxu0
        %v2439 = vadd.f32 0.0, %v2438
        %2440 = vmatprep.mubr.bf16.mxu0 0
        %2441 = vmatmul.mubr.bf16.gmra.mrb[0].mxu0 %v1797
        %v2442 = vpop.f32.mrb[0].mxu0
        %v2443 = vadd.f32 0.0, %v2442
        %v2444 = vpop.f32.mrb[0].mxu0
        %v2445 = vadd.f32 0.0, %v2444
        %v2446 = vpop.f32.mrb[0].mxu0
        %v2447 = vadd.f32 0.0, %v2446
        %v2448 = vpop.f32.mrb[0].mxu0
        %v2449 = vadd.f32 0.0, %v2448
        %2450 = vmatprep.mubr.bf16.mxu0 0
        %2451 = vmatmul.mubr.bf16.gmra.mrb[0].mxu0 %v1800
        %v2452 = vpop.f32.mrb[0].mxu0
        %v2453 = vadd.f32 0.0, %v2452
        %v2454 = vpop.f32.mrb[0].mxu0
        %v2455 = vadd.f32 0.0, %v2454
        %v2456 = vpop.f32.mrb[0].mxu0
        %v2457 = vadd.f32 0.0, %v2456
        %v2458 = vpop.f32.mrb[0].mxu0
        %v2459 = vadd.f32 0.0, %v2458
        %2460 = vmatprep.mubr.bf16.mxu0 0
        %2461 = vmatmul.mubr.bf16.gmra.mrb[0].mxu0 %v1803
        %v2462 = vpop.f32.mrb[0].mxu0
        %v2463 = vadd.f32 0.0, %v2462
        %v2464 = vpop.f32.mrb[0].mxu0
        %v2465 = vadd.f32 0.0, %v2464
        %v2466 = vpop.f32.mrb[0].mxu0
        %v2467 = vadd.f32 0.0, %v2466
        %v2468 = vpop.f32.mrb[0].mxu0
        %v2469 = vadd.f32 0.0, %v2468
        %2470 = vmatprep.mubr.bf16.mxu0 0
        %2471 = vmatmul.mubr.bf16.gmra.mrb[0].mxu0 %v1806
        %v2472 = vpop.f32.mrb[0].mxu0
        %v2473 = vadd.f32 0.0, %v2472
        %v2474 = vpop.f32.mrb[0].mxu0
        %v2475 = vadd.f32 0.0, %v2474
        %v2476 = vpop.f32.mrb[0].mxu0
        %v2477 = vadd.f32 0.0, %v2476
        %v2478 = vpop.f32.mrb[0].mxu0
        %v2479 = vadd.f32 0.0, %v2478
        %2480 = vmatprep.mubr.bf16.mxu0 0
        %2481 = vmatmul.mubr.bf16.gmra.mrb[0].mxu0 %v1809
        %v2482 = vpop.f32.mrb[0].mxu0
        %v2483 = vadd.f32 0.0, %v2482
        %v2484 = vpop.f32.mrb[0].mxu0
        %v2485 = vadd.f32 0.0, %v2484
        %v2486 = vpop.f32.mrb[0].mxu0
        %v2487 = vadd.f32 0.0, %v2486
        %v2488 = vpop.f32.mrb[0].mxu0
        %v2489 = vadd.f32 0.0, %v2488
        %2490 = vmatprep.mubr.bf16.mxu0 0
        %2491 = vmatmul.mubr.bf16.gmra.mrb[0].mxu0 %v1812
        %v2492 = vpop.f32.mrb[0].mxu0
        %v2493 = vadd.f32 0.0, %v2492
        %v2494 = vpop.f32.mrb[0].mxu0
        %v2495 = vadd.f32 0.0, %v2494
        %v2496 = vpop.f32.mrb[0].mxu0
        %v2497 = vadd.f32 0.0, %v2496
        %v2498 = vpop.f32.mrb[0].mxu0
        %v2499 = vadd.f32 0.0, %v2498
        %2500 = vmatprep.mubr.bf16.mxu0 0
        %2501 = vmatmul.mubr.bf16.gmra.mrb[0].mxu0 %v1815
        %v2502 = vpop.f32.mrb[0].mxu0
        %v2503 = vadd.f32 0.0, %v2502
        %v2504 = vpop.f32.mrb[0].mxu0
        %v2505 = vadd.f32 0.0, %v2504
        %v2506 = vpop.f32.mrb[0].mxu0
        %v2507 = vadd.f32 0.0, %v2506
        %v2508 = vpop.f32.mrb[0].mxu0
        %v2509 = vadd.f32 0.0, %v2508
        %2510 = vmatprep.mubr.bf16.mxu0 0
        %2511 = vmatmul.mubr.bf16.gmra.mrb[0].mxu0 %v1818
        %v2512 = vpop.f32.mrb[0].mxu0
        %v2513 = vadd.f32 0.0, %v2512
        %v2514 = vpop.f32.mrb[0].mxu0
        %v2515 = vadd.f32 0.0, %v2514
        %v2516 = vpop.f32.mrb[0].mxu0
        %v2517 = vadd.f32 0.0, %v2516
        %v2518 = vpop.f32.mrb[0].mxu0
        %v2519 = vadd.f32 0.0, %v2518
        %2520 = vmatprep.mubr.bf16.mxu0 0
        %2521 = vmatmul.mubr.bf16.gmra.mrb[0].mxu0 %v1821
        %v2522 = vpop.f32.mrb[0].mxu0
        %v2523 = vadd.f32 0.0, %v2522
        %v2524 = vpop.f32.mrb[0].mxu0
        %v2525 = vadd.f32 0.0, %v2524
        %v2526 = vpop.f32.mrb[0].mxu0
        %v2527 = vadd.f32 0.0, %v2526
        %v2528 = vpop.f32.mrb[0].mxu0
        %v2529 = vadd.f32 0.0, %v2528
        %2530 = vmatprep.mubr.bf16.mxu0 0
        %2531 = vmatmul.mubr.bf16.gmra.mrb[0].mxu0 %v1824
        %v2532 = vpop.f32.mrb[0].mxu0
        %v2533 = vadd.f32 0.0, %v2532
        %v2534 = vpop.f32.mrb[0].mxu0
        %v2535 = vadd.f32 0.0, %v2534
        %v2536 = vpop.f32.mrb[0].mxu0
        %v2537 = vadd.f32 0.0, %v2536
        %v2538 = vpop.f32.mrb[0].mxu0
        %v2539 = vadd.f32 0.0, %v2538
        %2540 = vmatprep.mubr.bf16.mxu0 0
        %2541 = vmatmul.mubr.bf16.gmra.mrb[0].mxu0 %v1827
        %v2542 = vpop.f32.mrb[0].mxu0
        %v2543 = vadd.f32 0.0, %v2542
        %v2544 = vpop.f32.mrb[0].mxu0
        %v2545 = vadd.f32 0.0, %v2544
        %v2546 = vpop.f32.mrb[0].mxu0
        %v2547 = vadd.f32 0.0, %v2546
        %v2548 = vpop.f32.mrb[0].mxu0
        %v2549 = vadd.f32 0.0, %v2548
        %2550 = vmatprep.mubr.bf16.mxu0 0
        %2551 = vmatmul.mubr.bf16.gmra.mrb[0].mxu0 %v1830
        %v2552 = vpop.f32.mrb[0].mxu0
        %v2553 = vadd.f32 0.0, %v2552
        %v2554 = vpop.f32.mrb[0].mxu0
        %v2555 = vadd.f32 0.0, %v2554
        %v2556 = vpop.f32.mrb[0].mxu0
        %v2557 = vadd.f32 0.0, %v2556
        %v2558 = vpop.f32.mrb[0].mxu0
        %v2559 = vadd.f32 0.0, %v2558
        %2560 = vmatprep.mubr.bf16.mxu0 0
        %2561 = vmatmul.mubr.bf16.gmra.mrb[0].mxu0 %v1833
        %v2562 = vpop.f32.mrb[0].mxu0
        %v2563 = vadd.f32 0.0, %v2562
        %v2564 = vpop.f32.mrb[0].mxu0
        %v2565 = vadd.f32 0.0, %v2564
        %v2566 = vpop.f32.mrb[0].mxu0
        %v2567 = vadd.f32 0.0, %v2566
        %v2568 = vpop.f32.mrb[0].mxu0
        %v2569 = vadd.f32 0.0, %v2568
        %2570 = vmatprep.mubr.bf16.mxu0 0
        %2571 = vmatmul.mubr.bf16.gmra.mrb[0].mxu0 %v1836
        %v2572 = vpop.f32.mrb[0].mxu0
        %v2573 = vadd.f32 0.0, %v2572
        %v2574 = vpop.f32.mrb[0].mxu0
        %v2575 = vadd.f32 0.0, %v2574
        %v2576 = vpop.f32.mrb[0].mxu0
        %v2577 = vadd.f32 0.0, %v2576
        %v2578 = vpop.f32.mrb[0].mxu0
        %v2579 = vadd.f32 0.0, %v2578
        %2580 = vmatprep.mubr.bf16.mxu0 0
        %2581 = vmatmul.mubr.bf16.gmra.mrb[0].mxu0 %v1839
        %v2582 = vpop.f32.mrb[0].mxu0
        %v2583 = vadd.f32 0.0, %v2582
        %v2584 = vpop.f32.mrb[0].mxu0
        %v2585 = vadd.f32 0.0, %v2584
        %v2586 = vpop.f32.mrb[0].mxu0
        %v2587 = vadd.f32 0.0, %v2586
        %v2588 = vpop.f32.mrb[0].mxu0
        %v2589 = vadd.f32 0.0, %v2588
        %2590 = vmatprep.mubr.bf16.mxu0 0
        %2591 = vmatmul.mubr.bf16.gmra.mrb[0].mxu0 %v1842
        %v2592 = vpop.f32.mrb[0].mxu0
        %v2593 = vadd.f32 0.0, %v2592
        %v2594 = vpop.f32.mrb[0].mxu0
        %v2595 = vadd.f32 0.0, %v2594
        %v2596 = vpop.f32.mrb[0].mxu0
        %v2597 = vadd.f32 0.0, %v2596
        %v2598 = vpop.f32.mrb[0].mxu0
        %v2599 = vadd.f32 0.0, %v2598
        %2600 = vmatprep.mubr.bf16.mxu0 0
        %2601 = vmatmul.mubr.bf16.gmra.mrb[0].mxu0 %v1845
        %v2602 = vpop.f32.mrb[0].mxu0
        %v2603 = vadd.f32 0.0, %v2602
        %v2604 = vpop.f32.mrb[0].mxu0
        %v2605 = vadd.f32 0.0, %v2604
        %v2606 = vpop.f32.mrb[0].mxu0
        %v2607 = vadd.f32 0.0, %v2606
        %v2608 = vpop.f32.mrb[0].mxu0
        %v2609 = vadd.f32 0.0, %v2608
        %2610 = vmatprep.mubr.bf16.mxu0 0
        %2611 = vmatmul.mubr.bf16.gmra.mrb[0].mxu0 %v1848
        %v2612 = vpop.f32.mrb[0].mxu0
        %v2613 = vadd.f32 0.0, %v2612
        %v2614 = vpop.f32.mrb[0].mxu0
        %v2615 = vadd.f32 0.0, %v2614
        %v2616 = vpop.f32.mrb[0].mxu0
        %v2617 = vadd.f32 0.0, %v2616
        %v2618 = vpop.f32.mrb[0].mxu0
        %v2619 = vadd.f32 0.0, %v2618
        %2620 = vmatprep.mubr.bf16.mxu0 0
        %2621 = vmatmul.mubr.bf16.gmra.mrb[0].mxu0 %v1851
        %v2622 = vpop.f32.mrb[0].mxu0
        %v2623 = vadd.f32 0.0, %v2622
        %v2624 = vpop.f32.mrb[0].mxu0
        %v2625 = vadd.f32 0.0, %v2624
        %v2626 = vpop.f32.mrb[0].mxu0
        %v2627 = vadd.f32 0.0, %v2626
        %v2628 = vpop.f32.mrb[0].mxu0
        %v2629 = vadd.f32 0.0, %v2628
        %2630 = vmatprep.mubr.bf16.mxu0 0
        %2631 = vmatmul.mubr.bf16.gmra.mrb[0].mxu0 %v1854
        %v2632 = vpop.f32.mrb[0].mxu0
        %v2633 = vadd.f32 0.0, %v2632
        %v2634 = vpop.f32.mrb[0].mxu0
        %v2635 = vadd.f32 0.0, %v2634
        %v2636 = vpop.f32.mrb[0].mxu0
        %v2637 = vadd.f32 0.0, %v2636
        %v2638 = vpop.f32.mrb[0].mxu0
        %v2639 = vadd.f32 0.0, %v2638
        %2640 = vmatprep.mubr.bf16.mxu0 0
        %2641 = vmatmul.mubr.bf16.gmra.mrb[0].mxu0 %v1857
        %v2642 = vpop.f32.mrb[0].mxu0
        %v2643 = vadd.f32 0.0, %v2642
        %v2644 = vpop.f32.mrb[0].mxu0
        %v2645 = vadd.f32 0.0, %v2644
        %v2646 = vpop.f32.mrb[0].mxu0
        %v2647 = vadd.f32 0.0, %v2646
        %v2648 = vpop.f32.mrb[0].mxu0
        %v2649 = vadd.f32 0.0, %v2648
        %2650 = vmatprep.mubr.bf16.mxu0 0
        %2651 = vmatmul.mubr.bf16.gmra.mrb[0].mxu0 %v1860
        %v2652 = vpop.f32.mrb[0].mxu0
        %v2653 = vadd.f32 0.0, %v2652
        %v2654 = vpop.f32.mrb[0].mxu0
        %v2655 = vadd.f32 0.0, %v2654
        %v2656 = vpop.f32.mrb[0].mxu0
        %v2657 = vadd.f32 0.0, %v2656
        %v2658 = vpop.f32.mrb[0].mxu0
        %v2659 = vadd.f32 0.0, %v2658
        %2660 = vmatprep.mubr.bf16.mxu0 0
        %2661 = vmatmul.mubr.bf16.gmra.mrb[0].mxu0 %v1863
        %v2662 = vpop.f32.mrb[0].mxu0
        %v2663 = vadd.f32 0.0, %v2662
        %v2664 = vpop.f32.mrb[0].mxu0
        %v2665 = vadd.f32 0.0, %v2664
        %v2666 = vpop.f32.mrb[0].mxu0
        %v2667 = vadd.f32 0.0, %v2666
        %v2668 = vpop.f32.mrb[0].mxu0
        %v2669 = vadd.f32 0.0, %v2668
        %2670 = vmatprep.mubr.bf16.mxu0 0
        %2671 = vmatmul.mubr.bf16.gmra.mrb[0].mxu0 %v1866
        %v2672 = vpop.f32.mrb[0].mxu0
        %v2673 = vadd.f32 0.0, %v2672
        %v2674 = vpop.f32.mrb[0].mxu0
        %v2675 = vadd.f32 0.0, %v2674
        %v2676 = vpop.f32.mrb[0].mxu0
        %v2677 = vadd.f32 0.0, %v2676
        %v2678 = vpop.f32.mrb[0].mxu0
        %v2679 = vadd.f32 0.0, %v2678
        %2680 = vmatprep.mubr.bf16.mxu0 0
        %2681 = vmatmul.mubr.bf16.gmra.mrb[0].mxu0 %v1869
        %v2682 = vpop.f32.mrb[0].mxu0
        %v2683 = vadd.f32 0.0, %v2682
        %v2684 = vpop.f32.mrb[0].mxu0
        %v2685 = vadd.f32 0.0, %v2684
        %v2686 = vpop.f32.mrb[0].mxu0
        %v2687 = vadd.f32 0.0, %v2686
        %v2688 = vpop.f32.mrb[0].mxu0
        %v2689 = vadd.f32 0.0, %v2688
        %2690 = vmatprep.mubr.bf16.mxu0 0
        %2691 = vmatmul.mubr.bf16.gmra.mrb[0].mxu0 %v1872
        %v2692 = vpop.f32.mrb[0].mxu0
        %v2693 = vadd.f32 0.0, %v2692
        %v2694 = vpop.f32.mrb[0].mxu0
        %v2695 = vadd.f32 0.0, %v2694
        %v2696 = vpop.f32.mrb[0].mxu0
        %v2697 = vadd.f32 0.0, %v2696
        %v2698 = vpop.f32.mrb[0].mxu0
        %v2699 = vadd.f32 0.0, %v2698
        %2700 = vmatprep.mubr.bf16.mxu0 0
        %2701 = vmatmul.mubr.bf16.gmra.mrb[0].mxu0 %v1875
        %v2702 = vpop.f32.mrb[0].mxu0
        %v2703 = vadd.f32 0.0, %v2702
        %v2704 = vpop.f32.mrb[0].mxu0
        %v2705 = vadd.f32 0.0, %v2704
        %v2706 = vpop.f32.mrb[0].mxu0
        %v2707 = vadd.f32 0.0, %v2706
        %v2708 = vpop.f32.mrb[0].mxu0
        %v2709 = vadd.f32 0.0, %v2708
        %2710 = vmatprep.mubr.bf16.mxu0 0
        %2711 = vmatmul.mubr.bf16.gmra.mrb[0].mxu0 %v1878
        %v2712 = vpop.f32.mrb[0].mxu0
        %v2713 = vadd.f32 0.0, %v2712
        %v2714 = vpop.f32.mrb[0].mxu0
        %v2715 = vadd.f32 0.0, %v2714
        %v2716 = vpop.f32.mrb[0].mxu0
        %v2717 = vadd.f32 0.0, %v2716
        %v2718 = vpop.f32.mrb[0].mxu0
        %v2719 = vadd.f32 0.0, %v2718
        %2720 = vmatprep.mubr.bf16.mxu0 0
        %2721 = vmatmul.mubr.bf16.gmra.mrb[0].mxu0 %v1881
        %v2722 = vpop.f32.mrb[0].mxu0
        %v2723 = vadd.f32 0.0, %v2722
        %v2724 = vpop.f32.mrb[0].mxu0
        %v2725 = vadd.f32 0.0, %v2724
        %v2726 = vpop.f32.mrb[0].mxu0
        %v2727 = vadd.f32 0.0, %v2726
        %v2728 = vpop.f32.mrb[0].mxu0
        %v2729 = vadd.f32 0.0, %v2728
        %2730 = vmatprep.mubr.bf16.mxu0 0
        %2731 = vmatmul.mubr.bf16.gmra.mrb[0].mxu0 %v1884
        %v2732 = vpop.f32.mrb[0].mxu0
        %v2733 = vadd.f32 0.0, %v2732
        %v2734 = vpop.f32.mrb[0].mxu0
        %v2735 = vadd.f32 0.0, %v2734
        %v2736 = vpop.f32.mrb[0].mxu0
        %v2737 = vadd.f32 0.0, %v2736
        %v2738 = vpop.f32.mrb[0].mxu0
        %v2739 = vadd.f32 0.0, %v2738
        %2740 = vmatprep.mubr.bf16.mxu0 0
        %2741 = vmatmul.mubr.bf16.gmra.mrb[0].mxu0 %v1887
        %v2742 = vpop.f32.mrb[0].mxu0
        %v2743 = vadd.f32 0.0, %v2742
        %v2744 = vpop.f32.mrb[0].mxu0
        %v2745 = vadd.f32 0.0, %v2744
        %v2746 = vpop.f32.mrb[0].mxu0
        %v2747 = vadd.f32 0.0, %v2746
        %v2748 = vpop.f32.mrb[0].mxu0
        %v2749 = vadd.f32 0.0, %v2748
        %2750 = vmatprep.mubr.bf16.mxu0 0
        %2751 = vmatmul.mubr.bf16.gmra.mrb[0].mxu0 %v1890
        %v2752 = vpop.f32.mrb[0].mxu0
        %v2753 = vadd.f32 0.0, %v2752
        %v2754 = vpop.f32.mrb[0].mxu0
        %v2755 = vadd.f32 0.0, %v2754
        %v2756 = vpop.f32.mrb[0].mxu0
        %v2757 = vadd.f32 0.0, %v2756
        %v2758 = vpop.f32.mrb[0].mxu0
        %v2759 = vadd.f32 0.0, %v2758
        %2760 = vmatprep.mubr.bf16.mxu0 0
        %2761 = vmatmul.mubr.bf16.gmra.mrb[0].mxu0 %v1893
        %v2762 = vpop.f32.mrb[0].mxu0
        %v2763 = vadd.f32 0.0, %v2762
        %v2764 = vpop.f32.mrb[0].mxu0
        %v2765 = vadd.f32 0.0, %v2764
        %v2766 = vpop.f32.mrb[0].mxu0
        %v2767 = vadd.f32 0.0, %v2766
        %v2768 = vpop.f32.mrb[0].mxu0
        %v2769 = vadd.f32 0.0, %v2768
        %2770 = vmatprep.mubr.bf16.mxu0 0
        %2771 = vmatmul.mubr.bf16.gmra.mrb[0].mxu0 %v1896
        %v2772 = vpop.f32.mrb[0].mxu0
        %v2773 = vadd.f32 0.0, %v2772
        %v2774 = vpop.f32.mrb[0].mxu0
        %v2775 = vadd.f32 0.0, %v2774
        %v2776 = vpop.f32.mrb[0].mxu0
        %v2777 = vadd.f32 0.0, %v2776
        %v2778 = vpop.f32.mrb[0].mxu0
        %v2779 = vadd.f32 0.0, %v2778
        %2780 = vdwg.mxu0
        %v2781 = vpack.c.bf16 %v1937, %v1933
        %v2782 = vpack.c.bf16 %v1939, %v1935
        %v2783 = vpack.c.bf16 %v1947, %v1943
        %v2784 = vpack.c.bf16 %v1949, %v1945
        %v2785 = vpack.c.bf16 %v1957, %v1953
        %v2786 = vpack.c.bf16 %v1959, %v1955
        %v2787 = vpack.c.bf16 %v1967, %v1963
        %v2788 = vpack.c.bf16 %v1969, %v1965
        %v2789 = vpack.c.bf16 %v1977, %v1973
        %v2790 = vpack.c.bf16 %v1979, %v1975
        %v2791 = vpack.c.bf16 %v1987, %v1983
        %v2792 = vpack.c.bf16 %v1989, %v1985
        %v2793 = vpack.c.bf16 %v1997, %v1993
        %v2794 = vpack.c.bf16 %v1999, %v1995
        %v2795 = vpack.c.bf16 %v2007, %v2003
        %v2796 = vpack.c.bf16 %v2009, %v2005
        %v2797 = vpack.c.bf16 %v2017, %v2013
        %v2798 = vpack.c.bf16 %v2019, %v2015
        %v2799 = vpack.c.bf16 %v2027, %v2023
        %v2800 = vpack.c.bf16 %v2029, %v2025
        %v2801 = vpack.c.bf16 %v2037, %v2033
        %v2802 = vpack.c.bf16 %v2039, %v2035
        %v2803 = vpack.c.bf16 %v2047, %v2043
        %v2804 = vpack.c.bf16 %v2049, %v2045
        %v2805 = vpack.c.bf16 %v2057, %v2053
        %v2806 = vpack.c.bf16 %v2059, %v2055
        %v2807 = vpack.c.bf16 %v2067, %v2063
        %v2808 = vpack.c.bf16 %v2069, %v2065
        %v2809 = vpack.c.bf16 %v2077, %v2073
        %v2810 = vpack.c.bf16 %v2079, %v2075
        %v2811 = vpack.c.bf16 %v2087, %v2083
        %v2812 = vpack.c.bf16 %v2089, %v2085
        %v2813 = vpack.c.bf16 %v2097, %v2093
        %v2814 = vpack.c.bf16 %v2099, %v2095
        %v2815 = vpack.c.bf16 %v2107, %v2103
        %v2816 = vpack.c.bf16 %v2109, %v2105
        %v2817 = vpack.c.bf16 %v2117, %v2113
        %v2818 = vpack.c.bf16 %v2119, %v2115
        %v2819 = vpack.c.bf16 %v2127, %v2123
        %v2820 = vpack.c.bf16 %v2129, %v2125
        %v2821 = vpack.c.bf16 %v2137, %v2133
        %v2822 = vpack.c.bf16 %v2139, %v2135
        %v2823 = vpack.c.bf16 %v2147, %v2143
        %v2824 = vpack.c.bf16 %v2149, %v2145
        %v2825 = vpack.c.bf16 %v2157, %v2153
        %v2826 = vpack.c.bf16 %v2159, %v2155
        %v2827 = vpack.c.bf16 %v2167, %v2163
        %v2828 = vpack.c.bf16 %v2169, %v2165
        %v2829 = vpack.c.bf16 %v2177, %v2173
        %v2830 = vpack.c.bf16 %v2179, %v2175
        %v2831 = vpack.c.bf16 %v2187, %v2183
        %v2832 = vpack.c.bf16 %v2189, %v2185
        %v2833 = vpack.c.bf16 %v2197, %v2193
        %v2834 = vpack.c.bf16 %v2199, %v2195
        %v2835 = vpack.c.bf16 %v2207, %v2203
        %v2836 = vpack.c.bf16 %v2209, %v2205
        %v2837 = vpack.c.bf16 %v2217, %v2213
        %v2838 = vpack.c.bf16 %v2219, %v2215
        %v2839 = vpack.c.bf16 %v2227, %v2223
        %v2840 = vpack.c.bf16 %v2229, %v2225
        %v2841 = vpack.c.bf16 %v2237, %v2233
        %v2842 = vpack.c.bf16 %v2239, %v2235
        %v2843 = vpack.c.bf16 %v2247, %v2243
        %v2844 = vpack.c.bf16 %v2249, %v2245
        %v2845 = vpack.c.bf16 %v2257, %v2253
        %v2846 = vpack.c.bf16 %v2259, %v2255
        %v2847 = vpack.c.bf16 %v2267, %v2263
        %v2848 = vpack.c.bf16 %v2269, %v2265
        %v2849 = vpack.c.bf16 %v2277, %v2273
        %v2850 = vpack.c.bf16 %v2279, %v2275
        %v2851 = vpack.c.bf16 %v2287, %v2283
        %v2852 = vpack.c.bf16 %v2289, %v2285
        %v2853 = vpack.c.bf16 %v2297, %v2293
        %v2854 = vpack.c.bf16 %v2299, %v2295
        %v2855 = vpack.c.bf16 %v2307, %v2303
        %v2856 = vpack.c.bf16 %v2309, %v2305
        %v2857 = vpack.c.bf16 %v2317, %v2313
        %v2858 = vpack.c.bf16 %v2319, %v2315
        %v2859 = vpack.c.bf16 %v2327, %v2323
        %v2860 = vpack.c.bf16 %v2329, %v2325
        %v2861 = vpack.c.bf16 %v2337, %v2333
        %v2862 = vpack.c.bf16 %v2339, %v2335
        %v2863 = vpack.c.bf16 %v2347, %v2343
        %v2864 = vpack.c.bf16 %v2349, %v2345
        %v2865 = vpack.c.bf16 %v2357, %v2353
        %v2866 = vpack.c.bf16 %v2359, %v2355
        %v2867 = vpack.c.bf16 %v2367, %v2363
        %v2868 = vpack.c.bf16 %v2369, %v2365
        %v2869 = vpack.c.bf16 %v2377, %v2373
        %v2870 = vpack.c.bf16 %v2379, %v2375
        %v2871 = vpack.c.bf16 %v2387, %v2383
        %v2872 = vpack.c.bf16 %v2389, %v2385
        %v2873 = vpack.c.bf16 %v2397, %v2393
        %v2874 = vpack.c.bf16 %v2399, %v2395
        %v2875 = vpack.c.bf16 %v2407, %v2403
        %v2876 = vpack.c.bf16 %v2409, %v2405
        %v2877 = vpack.c.bf16 %v2417, %v2413
        %v2878 = vpack.c.bf16 %v2419, %v2415
        %v2879 = vpack.c.bf16 %v2427, %v2423
        %v2880 = vpack.c.bf16 %v2429, %v2425
        %v2881 = vpack.c.bf16 %v2437, %v2433
        %v2882 = vpack.c.bf16 %v2439, %v2435
        %v2883 = vpack.c.bf16 %v2447, %v2443
        %v2884 = vpack.c.bf16 %v2449, %v2445
        %v2885 = vpack.c.bf16 %v2457, %v2453
        %v2886 = vpack.c.bf16 %v2459, %v2455
        %v2887 = vpack.c.bf16 %v2467, %v2463
        %v2888 = vpack.c.bf16 %v2469, %v2465
        %v2889 = vpack.c.bf16 %v2477, %v2473
        %v2890 = vpack.c.bf16 %v2479, %v2475
        %v2891 = vpack.c.bf16 %v2487, %v2483
        %v2892 = vpack.c.bf16 %v2489, %v2485
        %v2893 = vpack.c.bf16 %v2497, %v2493
        %v2894 = vpack.c.bf16 %v2499, %v2495
        %v2895 = vpack.c.bf16 %v2507, %v2503
        %v2896 = vpack.c.bf16 %v2509, %v2505
        %v2897 = vpack.c.bf16 %v2517, %v2513
        %v2898 = vpack.c.bf16 %v2519, %v2515
        %v2899 = vpack.c.bf16 %v2527, %v2523
        %v2900 = vpack.c.bf16 %v2529, %v2525
        %v2901 = vpack.c.bf16 %v2537, %v2533
        %v2902 = vpack.c.bf16 %v2539, %v2535
        %v2903 = vpack.c.bf16 %v2547, %v2543
        %v2904 = vpack.c.bf16 %v2549, %v2545
        %v2905 = vpack.c.bf16 %v2557, %v2553
        %v2906 = vpack.c.bf16 %v2559, %v2555
        %v2907 = vpack.c.bf16 %v2567, %v2563
        %v2908 = vpack.c.bf16 %v2569, %v2565
        %v2909 = vpack.c.bf16 %v2577, %v2573
        %v2910 = vpack.c.bf16 %v2579, %v2575
        %v2911 = vpack.c.bf16 %v2587, %v2583
        %v2912 = vpack.c.bf16 %v2589, %v2585
        %v2913 = vpack.c.bf16 %v2597, %v2593
        %v2914 = vpack.c.bf16 %v2599, %v2595
        %v2915 = vpack.c.bf16 %v2607, %v2603
        %v2916 = vpack.c.bf16 %v2609, %v2605
        %v2917 = vpack.c.bf16 %v2617, %v2613
        %v2918 = vpack.c.bf16 %v2619, %v2615
        %v2919 = vpack.c.bf16 %v2627, %v2623
        %v2920 = vpack.c.bf16 %v2629, %v2625
        %v2921 = vpack.c.bf16 %v2637, %v2633
        %v2922 = vpack.c.bf16 %v2639, %v2635
        %v2923 = vpack.c.bf16 %v2647, %v2643
        %v2924 = vpack.c.bf16 %v2649, %v2645
        %v2925 = vpack.c.bf16 %v2657, %v2653
        %v2926 = vpack.c.bf16 %v2659, %v2655
        %v2927 = vpack.c.bf16 %v2667, %v2663
        %v2928 = vpack.c.bf16 %v2669, %v2665
        %v2929 = vpack.c.bf16 %v2677, %v2673
        %v2930 = vpack.c.bf16 %v2679, %v2675
        %v2931 = vpack.c.bf16 %v2687, %v2683
        %v2932 = vpack.c.bf16 %v2689, %v2685
        %v2933 = vpack.c.bf16 %v2697, %v2693
        %v2934 = vpack.c.bf16 %v2699, %v2695
        %v2935 = vpack.c.bf16 %v2707, %v2703
        %v2936 = vpack.c.bf16 %v2709, %v2705
        %v2937 = vpack.c.bf16 %v2717, %v2713
        %v2938 = vpack.c.bf16 %v2719, %v2715
        %v2939 = vpack.c.bf16 %v2727, %v2723
        %v2940 = vpack.c.bf16 %v2729, %v2725
        %v2941 = vpack.c.bf16 %v2737, %v2733
        %v2942 = vpack.c.bf16 %v2739, %v2735
        %v2943 = vpack.c.bf16 %v2747, %v2743
        %v2944 = vpack.c.bf16 %v2749, %v2745
        %v2945 = vpack.c.bf16 %v2757, %v2753
        %v2946 = vpack.c.bf16 %v2759, %v2755
        %v2947 = vpack.c.bf16 %v2767, %v2763
        %v2948 = vpack.c.bf16 %v2769, %v2765
        %v2949 = vpack.c.bf16 %v2777, %v2773
        %v2950 = vpack.c.bf16 %v2779, %v2775
        %v2951 = vld [vmem:[#allocation16] sm:$0xf]
        %v2952 = vld [vmem:[#allocation16 + $0x4] sm:$0xf]
        %v2953 = vld [vmem:[#allocation16 + $0x8] sm:$0xf]
        %v2954 = vld [vmem:[#allocation16 + $0xc] sm:$0xf]
        %v2955 = vld [vmem:[#allocation16 + $0x10] sm:$0xf]
        %v2956 = vld [vmem:[#allocation16 + $0x14] sm:$0xf]
        %v2957 = vld [vmem:[#allocation16 + $0x18] sm:$0xf]
        %v2958 = vld [vmem:[#allocation16 + $0x1c] sm:$0xf]
        %v2959 = vld [vmem:[#allocation16 + $0x20] sm:$0xf]
        %v2960 = vld [vmem:[#allocation16 + $0x24] sm:$0xf]
        %v2961 = vld [vmem:[#allocation16 + $0x28] sm:$0xf]
        %v2962 = vld [vmem:[#allocation16 + $0x2c] sm:$0xf]
        %v2963 = vld [vmem:[#allocation16 + $0x30] sm:$0xf]
        %v2964 = vld [vmem:[#allocation16 + $0x34] sm:$0xf]
        %v2965 = vld [vmem:[#allocation16 + $0x38] sm:$0xf]
        %v2966 = vld [vmem:[#allocation16 + $0x3c] sm:$0xf]
        %v2967 = vld [vmem:[#allocation16 + $0x40] sm:$0xf]
        %v2968 = vld [vmem:[#allocation16 + $0x44] sm:$0xf]
        %v2969 = vld [vmem:[#allocation16 + $0x48] sm:$0xf]
        %v2970 = vld [vmem:[#allocation16 + $0x4c] sm:$0xf]
        %v2971 = vld [vmem:[#allocation16 + $0x50] sm:$0xf]
        %v2972 = vld [vmem:[#allocation16 + $0x54] sm:$0xf]
        %v2973 = vld [vmem:[#allocation16 + $0x58] sm:$0xf]
        %v2974 = vld [vmem:[#allocation16 + $0x5c] sm:$0xf]
        %v2975 = vld [vmem:[#allocation16 + $0x60] sm:$0xf]
        %v2976 = vld [vmem:[#allocation16 + $0x64] sm:$0xf]
        %v2977 = vld [vmem:[#allocation16 + $0x68] sm:$0xf]
        %v2978 = vld [vmem:[#allocation16 + $0x6c] sm:$0xf]
        %v2979 = vld [vmem:[#allocation16 + $0x70] sm:$0xf]
        %v2980 = vld [vmem:[#allocation16 + $0x74] sm:$0xf]
        %v2981 = vld [vmem:[#allocation16 + $0x78] sm:$0xf]
        %v2982 = vld [vmem:[#allocation16 + $0x7c] sm:$0xf]
        %v2983 = vld [vmem:[#allocation17] sm:$0x1]
        %v2985 = vlaneseq
        %v2986 = vshrl.u32 %v2985, 7
        %v2987 = vsub.s32 0, %v2986
        %v2988 = vrot.slane %v2983, %v2987
        %v3022 = vunpack.c.l.b16 %v2951
        %v3023 = vunpack.c.l.b16 %v2952
        %v3024 = vunpack.c.l.b16 %v2953
        %v3025 = vunpack.c.l.b16 %v2954
        %v3026 = vunpack.c.l.b16 %v2955
        %v3027 = vunpack.c.l.b16 %v2956
        %v3028 = vunpack.c.l.b16 %v2957
        %v3029 = vunpack.c.l.b16 %v2958
        %v3030 = vunpack.c.l.b16 %v2959
        %v3031 = vunpack.c.l.b16 %v2960
        %v3032 = vunpack.c.l.b16 %v2961
        %v3033 = vunpack.c.l.b16 %v2962
        %v3034 = vunpack.c.l.b16 %v2963
        %v3035 = vunpack.c.l.b16 %v2964
        %v3036 = vunpack.c.l.b16 %v2965
        %v3037 = vunpack.c.l.b16 %v2966
        %v3038 = vunpack.c.l.b16 %v2967
        %v3039 = vunpack.c.l.b16 %v2968
        %v3040 = vunpack.c.l.b16 %v2969
        %v3041 = vunpack.c.l.b16 %v2970
        %v3042 = vunpack.c.l.b16 %v2971
        %v3043 = vunpack.c.l.b16 %v2972
        %v3044 = vunpack.c.l.b16 %v2973
        %v3045 = vunpack.c.l.b16 %v2974
        %v3046 = vunpack.c.l.b16 %v2975
        %v3047 = vunpack.c.l.b16 %v2976
        %v3048 = vunpack.c.l.b16 %v2977
        %v3049 = vunpack.c.l.b16 %v2978
        %v3050 = vunpack.c.l.b16 %v2979
        %v3051 = vunpack.c.l.b16 %v2980
        %v3052 = vunpack.c.l.b16 %v2981
        %v3053 = vunpack.c.l.b16 %v2982
        %v3054 = vpack.c.b16 %v3023, %v3022
        %v3055 = vpack.c.b16 %v3025, %v3024
        %v3056 = vpack.c.b16 %v3027, %v3026
        %v3057 = vpack.c.b16 %v3029, %v3028
        %v3058 = vpack.c.b16 %v3031, %v3030
        %v3059 = vpack.c.b16 %v3033, %v3032
        %v3060 = vpack.c.b16 %v3035, %v3034
        %v3061 = vpack.c.b16 %v3037, %v3036
        %v3062 = vpack.c.b16 %v3039, %v3038
        %v3063 = vpack.c.b16 %v3041, %v3040
        %v3064 = vpack.c.b16 %v3043, %v3042
        %v3065 = vpack.c.b16 %v3045, %v3044
        %v3066 = vpack.c.b16 %v3047, %v3046
        %v3067 = vpack.c.b16 %v3049, %v3048
        %v3068 = vpack.c.b16 %v3051, %v3050
        %v3069 = vpack.c.b16 %v3053, %v3052
        %3086 = vmatprep.subr.bf16.mxu0 0
        %3087 = vmatpush1.bf16.msra.mxu0 %v3054
        %3088 = vmatprep.subr.bf16.mxu0 0
        %3089 = vmatpush1.bf16.msra.mxu0 %v3055
        %3090 = vmatprep.subr.bf16.mxu0 0
        %3091 = vmatpush1.bf16.msra.mxu0 %v3056
        %3092 = vmatprep.subr.bf16.mxu0 0
        %3093 = vmatpush1.bf16.msra.mxu0 %v3057
        %3094 = vmatprep.subr.bf16.mxu0 0
        %3095 = vmatpush1.bf16.msra.mxu0 %v3058
        %3096 = vmatprep.subr.bf16.mxu0 0
        %3097 = vmatpush1.bf16.msra.mxu0 %v3059
        %3098 = vmatprep.subr.bf16.mxu0 0
        %3099 = vmatpush1.bf16.msra.mxu0 %v3060
        %3100 = vmatprep.subr.bf16.mxu0 0
        %3101 = vmatpush1.bf16.msra.mxu0 %v3061
        %3102 = vmatprep.subr.bf16.mxu0 0
        %3103 = vmatpush1.bf16.msra.mxu0 %v3062
        %3104 = vmatprep.subr.bf16.mxu0 0
        %3105 = vmatpush1.bf16.msra.mxu0 %v3063
        %3106 = vmatprep.subr.bf16.mxu0 0
        %3107 = vmatpush1.bf16.msra.mxu0 %v3064
        %3108 = vmatprep.subr.bf16.mxu0 0
        %3109 = vmatpush1.bf16.msra.mxu0 %v3065
        %3110 = vmatprep.subr.bf16.mxu0 0
        %3111 = vmatpush1.bf16.msra.mxu0 %v3066
        %3112 = vmatprep.subr.bf16.mxu0 0
        %3113 = vmatpush1.bf16.msra.mxu0 %v3067
        %3114 = vmatprep.subr.bf16.mxu0 0
        %3115 = vmatpush1.bf16.msra.mxu0 %v3068
        %3116 = vmatprep.subr.bf16.mxu0 0
        %3117 = vmatpush1.bf16.msra.mxu0 %v3069
        %3118 = vmatprep.mubr.bf16.mxu0 %v2782
        %3119 = vmatmul.mubr.bf16.gmra.mrb[0].mxu0 %v2781
        %v3120 = vpop.f32.mrb[0].mxu0
        %v3121 = vadd.f32 %v2988, %v3120
        %v3122 = vpop.f32.mrb[0].mxu0
        %v3123 = vpop.f32.mrb[0].mxu0
        %v3124 = vadd.f32 %v2988, %v3123
        %v3125 = vpop.f32.mrb[0].mxu0
        %3126 = vmatprep.mubr.bf16.mxu0 %v2784
        %3127 = vmatmul.mubr.bf16.gmra.mrb[0].mxu0 %v2783
        %v3128 = vpop.f32.mrb[0].mxu0
        %v3129 = vadd.f32 %v2988, %v3128
        %v3130 = vpop.f32.mrb[0].mxu0
        %v3131 = vpop.f32.mrb[0].mxu0
        %v3132 = vadd.f32 %v2988, %v3131
        %v3133 = vpop.f32.mrb[0].mxu0
        %3134 = vmatprep.mubr.bf16.mxu0 %v2786
        %3135 = vmatmul.mubr.bf16.gmra.mrb[0].mxu0 %v2785
        %v3136 = vpop.f32.mrb[0].mxu0
        %v3137 = vadd.f32 %v2988, %v3136
        %v3138 = vpop.f32.mrb[0].mxu0
        %v3139 = vpop.f32.mrb[0].mxu0
        %v3140 = vadd.f32 %v2988, %v3139
        %v3141 = vpop.f32.mrb[0].mxu0
        %3142 = vmatprep.mubr.bf16.mxu0 %v2788
        %3143 = vmatmul.mubr.bf16.gmra.mrb[0].mxu0 %v2787
        %v3144 = vpop.f32.mrb[0].mxu0
        %v3145 = vadd.f32 %v2988, %v3144
        %v3146 = vpop.f32.mrb[0].mxu0
        %v3147 = vpop.f32.mrb[0].mxu0
        %v3148 = vadd.f32 %v2988, %v3147
        %v3149 = vpop.f32.mrb[0].mxu0
        %3150 = vmatprep.mubr.bf16.mxu0 %v2790
        %3151 = vmatmul.mubr.bf16.gmra.mrb[0].mxu0 %v2789
        %v3152 = vpop.f32.mrb[0].mxu0
        %v3153 = vadd.f32 %v2988, %v3152
        %v3154 = vpop.f32.mrb[0].mxu0
        %v3155 = vpop.f32.mrb[0].mxu0
        %v3156 = vadd.f32 %v2988, %v3155
        %v3157 = vpop.f32.mrb[0].mxu0
        %3158 = vmatprep.mubr.bf16.mxu0 %v2792
        %3159 = vmatmul.mubr.bf16.gmra.mrb[0].mxu0 %v2791
        %v3160 = vpop.f32.mrb[0].mxu0
        %v3161 = vadd.f32 %v2988, %v3160
        %v3162 = vpop.f32.mrb[0].mxu0
        %v3163 = vpop.f32.mrb[0].mxu0
        %v3164 = vadd.f32 %v2988, %v3163
        %v3165 = vpop.f32.mrb[0].mxu0
        %3166 = vmatprep.mubr.bf16.mxu0 %v2794
        %3167 = vmatmul.mubr.bf16.gmra.mrb[0].mxu0 %v2793
        %v3168 = vpop.f32.mrb[0].mxu0
        %v3169 = vadd.f32 %v2988, %v3168
        %v3170 = vpop.f32.mrb[0].mxu0
        %v3171 = vpop.f32.mrb[0].mxu0
        %v3172 = vadd.f32 %v2988, %v3171
        %v3173 = vpop.f32.mrb[0].mxu0
        %3174 = vmatprep.mubr.bf16.mxu0 %v2796
        %3175 = vmatmul.mubr.bf16.gmra.mrb[0].mxu0 %v2795
        %v3176 = vpop.f32.mrb[0].mxu0
        %v3177 = vadd.f32 %v2988, %v3176
        %v3178 = vpop.f32.mrb[0].mxu0
        %v3179 = vpop.f32.mrb[0].mxu0
        %v3180 = vadd.f32 %v2988, %v3179
        %v3181 = vpop.f32.mrb[0].mxu0
        %3182 = vmatprep.mubr.bf16.mxu0 %v2798
        %3183 = vmatmul.mubr.bf16.gmra.mrb[0].mxu0 %v2797
        %v3184 = vpop.f32.mrb[0].mxu0
        %v3185 = vadd.f32 %v2988, %v3184
        %v3186 = vpop.f32.mrb[0].mxu0
        %v3187 = vpop.f32.mrb[0].mxu0
        %v3188 = vadd.f32 %v2988, %v3187
        %v3189 = vpop.f32.mrb[0].mxu0
        %3190 = vmatprep.mubr.bf16.mxu0 %v2800
        %3191 = vmatmul.mubr.bf16.gmra.mrb[0].mxu0 %v2799
        %v3192 = vpop.f32.mrb[0].mxu0
        %v3193 = vadd.f32 %v2988, %v3192
        %v3194 = vpop.f32.mrb[0].mxu0
        %v3195 = vpop.f32.mrb[0].mxu0
        %v3196 = vadd.f32 %v2988, %v3195
        %v3197 = vpop.f32.mrb[0].mxu0
        %3198 = vmatprep.mubr.bf16.mxu0 %v2802
        %3199 = vmatmul.mubr.bf16.gmra.mrb[0].mxu0 %v2801
        %v3200 = vpop.f32.mrb[0].mxu0
        %v3201 = vadd.f32 %v2988, %v3200
        %v3202 = vpop.f32.mrb[0].mxu0
        %v3203 = vpop.f32.mrb[0].mxu0
        %v3204 = vadd.f32 %v2988, %v3203
        %v3205 = vpop.f32.mrb[0].mxu0
        %3206 = vmatprep.mubr.bf16.mxu0 %v2804
        %3207 = vmatmul.mubr.bf16.gmra.mrb[0].mxu0 %v2803
        %v3208 = vpop.f32.mrb[0].mxu0
        %v3209 = vadd.f32 %v2988, %v3208
        %v3210 = vpop.f32.mrb[0].mxu0
        %v3211 = vpop.f32.mrb[0].mxu0
        %v3212 = vadd.f32 %v2988, %v3211
        %v3213 = vpop.f32.mrb[0].mxu0
        %3214 = vmatprep.mubr.bf16.mxu0 %v2806
        %3215 = vmatmul.mubr.bf16.gmra.mrb[0].mxu0 %v2805
        %v3216 = vpop.f32.mrb[0].mxu0
        %v3217 = vadd.f32 %v2988, %v3216
        %v3218 = vpop.f32.mrb[0].mxu0
        %v3219 = vpop.f32.mrb[0].mxu0
        %v3220 = vadd.f32 %v2988, %v3219
        %v3221 = vpop.f32.mrb[0].mxu0
        %3222 = vmatprep.mubr.bf16.mxu0 %v2808
        %3223 = vmatmul.mubr.bf16.gmra.mrb[0].mxu0 %v2807
        %v3224 = vpop.f32.mrb[0].mxu0
        %v3225 = vadd.f32 %v2988, %v3224
        %v3226 = vpop.f32.mrb[0].mxu0
        %v3227 = vpop.f32.mrb[0].mxu0
        %v3228 = vadd.f32 %v2988, %v3227
        %v3229 = vpop.f32.mrb[0].mxu0
        %3230 = vmatprep.mubr.bf16.mxu0 %v2810
        %3231 = vmatmul.mubr.bf16.gmra.mrb[0].mxu0 %v2809
        %v3232 = vpop.f32.mrb[0].mxu0
        %v3233 = vadd.f32 %v2988, %v3232
        %v3234 = vpop.f32.mrb[0].mxu0
        %v3235 = vpop.f32.mrb[0].mxu0
        %v3236 = vadd.f32 %v2988, %v3235
        %v3237 = vpop.f32.mrb[0].mxu0
        %3238 = vmatprep.mubr.bf16.mxu0 %v2812
        %3239 = vmatmul.mubr.bf16.gmra.mrb[0].mxu0 %v2811
        %v3240 = vpop.f32.mrb[0].mxu0
        %v3241 = vadd.f32 %v2988, %v3240
        %v3242 = vpop.f32.mrb[0].mxu0
        %v3243 = vpop.f32.mrb[0].mxu0
        %v3244 = vadd.f32 %v2988, %v3243
        %v3245 = vpop.f32.mrb[0].mxu0
        %3246 = vmatprep.mubr.bf16.mxu0 %v2814
        %3247 = vmatmul.mubr.bf16.gmra.mrb[0].mxu0 %v2813
        %v3248 = vpop.f32.mrb[0].mxu0
        %v3249 = vadd.f32 %v2988, %v3248
        %v3250 = vpop.f32.mrb[0].mxu0
        %v3251 = vpop.f32.mrb[0].mxu0
        %v3252 = vadd.f32 %v2988, %v3251
        %v3253 = vpop.f32.mrb[0].mxu0
        %3254 = vmatprep.mubr.bf16.mxu0 %v2816
        %3255 = vmatmul.mubr.bf16.gmra.mrb[0].mxu0 %v2815
        %v3256 = vpop.f32.mrb[0].mxu0
        %v3257 = vadd.f32 %v2988, %v3256
        %v3258 = vpop.f32.mrb[0].mxu0
        %v3259 = vpop.f32.mrb[0].mxu0
        %v3260 = vadd.f32 %v2988, %v3259
        %v3261 = vpop.f32.mrb[0].mxu0
        %3262 = vmatprep.mubr.bf16.mxu0 %v2818
        %3263 = vmatmul.mubr.bf16.gmra.mrb[0].mxu0 %v2817
        %v3264 = vpop.f32.mrb[0].mxu0
        %v3265 = vadd.f32 %v2988, %v3264
        %v3266 = vpop.f32.mrb[0].mxu0
        %v3267 = vpop.f32.mrb[0].mxu0
        %v3268 = vadd.f32 %v2988, %v3267
        %v3269 = vpop.f32.mrb[0].mxu0
        %3270 = vmatprep.mubr.bf16.mxu0 %v2820
        %3271 = vmatmul.mubr.bf16.gmra.mrb[0].mxu0 %v2819
        %v3272 = vpop.f32.mrb[0].mxu0
        %v3273 = vadd.f32 %v2988, %v3272
        %v3274 = vpop.f32.mrb[0].mxu0
        %v3275 = vpop.f32.mrb[0].mxu0
        %v3276 = vadd.f32 %v2988, %v3275
        %v3277 = vpop.f32.mrb[0].mxu0
        %3278 = vmatprep.mubr.bf16.mxu0 %v2822
        %3279 = vmatmul.mubr.bf16.gmra.mrb[0].mxu0 %v2821
        %v3280 = vpop.f32.mrb[0].mxu0
        %v3281 = vadd.f32 %v2988, %v3280
        %v3282 = vpop.f32.mrb[0].mxu0
        %v3283 = vpop.f32.mrb[0].mxu0
        %v3284 = vadd.f32 %v2988, %v3283
        %v3285 = vpop.f32.mrb[0].mxu0
        %3286 = vmatprep.mubr.bf16.mxu0 %v2824
        %3287 = vmatmul.mubr.bf16.gmra.mrb[0].mxu0 %v2823
        %v3288 = vpop.f32.mrb[0].mxu0
        %v3289 = vadd.f32 %v2988, %v3288
        %v3290 = vpop.f32.mrb[0].mxu0
        %v3291 = vpop.f32.mrb[0].mxu0
        %v3292 = vadd.f32 %v2988, %v3291
        %v3293 = vpop.f32.mrb[0].mxu0
        %3294 = vmatprep.mubr.bf16.mxu0 %v2826
        %3295 = vmatmul.mubr.bf16.gmra.mrb[0].mxu0 %v2825
        %v3296 = vpop.f32.mrb[0].mxu0
        %v3297 = vadd.f32 %v2988, %v3296
        %v3298 = vpop.f32.mrb[0].mxu0
        %v3299 = vpop.f32.mrb[0].mxu0
        %v3300 = vadd.f32 %v2988, %v3299
        %v3301 = vpop.f32.mrb[0].mxu0
        %3302 = vmatprep.mubr.bf16.mxu0 %v2828
        %3303 = vmatmul.mubr.bf16.gmra.mrb[0].mxu0 %v2827
        %v3304 = vpop.f32.mrb[0].mxu0
        %v3305 = vadd.f32 %v2988, %v3304
        %v3306 = vpop.f32.mrb[0].mxu0
        %v3307 = vpop.f32.mrb[0].mxu0
        %v3308 = vadd.f32 %v2988, %v3307
        %v3309 = vpop.f32.mrb[0].mxu0
        %3310 = vmatprep.mubr.bf16.mxu0 %v2830
        %3311 = vmatmul.mubr.bf16.gmra.mrb[0].mxu0 %v2829
        %v3312 = vpop.f32.mrb[0].mxu0
        %v3313 = vadd.f32 %v2988, %v3312
        %v3314 = vpop.f32.mrb[0].mxu0
        %v3315 = vpop.f32.mrb[0].mxu0
        %v3316 = vadd.f32 %v2988, %v3315
        %v3317 = vpop.f32.mrb[0].mxu0
        %3318 = vmatprep.mubr.bf16.mxu0 %v2832
        %3319 = vmatmul.mubr.bf16.gmra.mrb[0].mxu0 %v2831
        %v3320 = vpop.f32.mrb[0].mxu0
        %v3321 = vadd.f32 %v2988, %v3320
        %v3322 = vpop.f32.mrb[0].mxu0
        %v3323 = vpop.f32.mrb[0].mxu0
        %v3324 = vadd.f32 %v2988, %v3323
        %v3325 = vpop.f32.mrb[0].mxu0
        %3326 = vmatprep.mubr.bf16.mxu0 %v2834
        %3327 = vmatmul.mubr.bf16.gmra.mrb[0].mxu0 %v2833
        %v3328 = vpop.f32.mrb[0].mxu0
        %v3329 = vadd.f32 %v2988, %v3328
        %v3330 = vpop.f32.mrb[0].mxu0
        %v3331 = vpop.f32.mrb[0].mxu0
        %v3332 = vadd.f32 %v2988, %v3331
        %v3333 = vpop.f32.mrb[0].mxu0
        %3334 = vmatprep.mubr.bf16.mxu0 %v2836
        %3335 = vmatmul.mubr.bf16.gmra.mrb[0].mxu0 %v2835
        %v3336 = vpop.f32.mrb[0].mxu0
        %v3337 = vadd.f32 %v2988, %v3336
        %v3338 = vpop.f32.mrb[0].mxu0
        %v3339 = vpop.f32.mrb[0].mxu0
        %v3340 = vadd.f32 %v2988, %v3339
        %v3341 = vpop.f32.mrb[0].mxu0
        %3342 = vmatprep.mubr.bf16.mxu0 %v2838
        %3343 = vmatmul.mubr.bf16.gmra.mrb[0].mxu0 %v2837
        %v3344 = vpop.f32.mrb[0].mxu0
        %v3345 = vadd.f32 %v2988, %v3344
        %v3346 = vpop.f32.mrb[0].mxu0
        %v3347 = vpop.f32.mrb[0].mxu0
        %v3348 = vadd.f32 %v2988, %v3347
        %v3349 = vpop.f32.mrb[0].mxu0
        %3350 = vmatprep.mubr.bf16.mxu0 %v2840
        %3351 = vmatmul.mubr.bf16.gmra.mrb[0].mxu0 %v2839
        %v3352 = vpop.f32.mrb[0].mxu0
        %v3353 = vadd.f32 %v2988, %v3352
        %v3354 = vpop.f32.mrb[0].mxu0
        %v3355 = vpop.f32.mrb[0].mxu0
        %v3356 = vadd.f32 %v2988, %v3355
        %v3357 = vpop.f32.mrb[0].mxu0
        %3358 = vmatprep.mubr.bf16.mxu0 %v2842
        %3359 = vmatmul.mubr.bf16.gmra.mrb[0].mxu0 %v2841
        %v3360 = vpop.f32.mrb[0].mxu0
        %v3361 = vadd.f32 %v2988, %v3360
        %v3362 = vpop.f32.mrb[0].mxu0
        %v3363 = vpop.f32.mrb[0].mxu0
        %v3364 = vadd.f32 %v2988, %v3363
        %v3365 = vpop.f32.mrb[0].mxu0
        %3366 = vmatprep.mubr.bf16.mxu0 %v2844
        %3367 = vmatmul.mubr.bf16.gmra.mrb[0].mxu0 %v2843
        %v3368 = vpop.f32.mrb[0].mxu0
        %v3369 = vadd.f32 %v2988, %v3368
        %v3370 = vpop.f32.mrb[0].mxu0
        %v3371 = vpop.f32.mrb[0].mxu0
        %v3372 = vadd.f32 %v2988, %v3371
        %v3373 = vpop.f32.mrb[0].mxu0
        %3374 = vmatprep.mubr.bf16.mxu0 %v2846
        %3375 = vmatmul.mubr.bf16.gmra.mrb[0].mxu0 %v2845
        %v3376 = vpop.f32.mrb[0].mxu0
        %v3377 = vadd.f32 %v2988, %v3376
        %v3378 = vpop.f32.mrb[0].mxu0
        %v3379 = vpop.f32.mrb[0].mxu0
        %v3380 = vadd.f32 %v2988, %v3379
        %v3381 = vpop.f32.mrb[0].mxu0
        %3382 = vmatprep.mubr.bf16.mxu0 %v2848
        %3383 = vmatmul.mubr.bf16.gmra.mrb[0].mxu0 %v2847
        %v3384 = vpop.f32.mrb[0].mxu0
        %v3385 = vadd.f32 %v2988, %v3384
        %v3386 = vpop.f32.mrb[0].mxu0
        %v3387 = vpop.f32.mrb[0].mxu0
        %v3388 = vadd.f32 %v2988, %v3387
        %v3389 = vpop.f32.mrb[0].mxu0
        %3390 = vmatprep.mubr.bf16.mxu0 %v2850
        %3391 = vmatmul.mubr.bf16.gmra.mrb[0].mxu0 %v2849
        %v3392 = vpop.f32.mrb[0].mxu0
        %v3393 = vadd.f32 %v2988, %v3392
        %v3394 = vpop.f32.mrb[0].mxu0
        %v3395 = vpop.f32.mrb[0].mxu0
        %v3396 = vadd.f32 %v2988, %v3395
        %v3397 = vpop.f32.mrb[0].mxu0
        %3398 = vmatprep.mubr.bf16.mxu0 %v2852
        %3399 = vmatmul.mubr.bf16.gmra.mrb[0].mxu0 %v2851
        %v3400 = vpop.f32.mrb[0].mxu0
        %v3401 = vadd.f32 %v2988, %v3400
        %v3402 = vpop.f32.mrb[0].mxu0
        %v3403 = vpop.f32.mrb[0].mxu0
        %v3404 = vadd.f32 %v2988, %v3403
        %v3405 = vpop.f32.mrb[0].mxu0
        %3406 = vmatprep.mubr.bf16.mxu0 %v2854
        %3407 = vmatmul.mubr.bf16.gmra.mrb[0].mxu0 %v2853
        %v3408 = vpop.f32.mrb[0].mxu0
        %v3409 = vadd.f32 %v2988, %v3408
        %v3410 = vpop.f32.mrb[0].mxu0
        %v3411 = vpop.f32.mrb[0].mxu0
        %v3412 = vadd.f32 %v2988, %v3411
        %v3413 = vpop.f32.mrb[0].mxu0
        %3414 = vmatprep.mubr.bf16.mxu0 %v2856
        %3415 = vmatmul.mubr.bf16.gmra.mrb[0].mxu0 %v2855
        %v3416 = vpop.f32.mrb[0].mxu0
        %v3417 = vadd.f32 %v2988, %v3416
        %v3418 = vpop.f32.mrb[0].mxu0
        %v3419 = vpop.f32.mrb[0].mxu0
        %v3420 = vadd.f32 %v2988, %v3419
        %v3421 = vpop.f32.mrb[0].mxu0
        %3422 = vmatprep.mubr.bf16.mxu0 %v2858
        %3423 = vmatmul.mubr.bf16.gmra.mrb[0].mxu0 %v2857
        %v3424 = vpop.f32.mrb[0].mxu0
        %v3425 = vadd.f32 %v2988, %v3424
        %v3426 = vpop.f32.mrb[0].mxu0
        %v3427 = vpop.f32.mrb[0].mxu0
        %v3428 = vadd.f32 %v2988, %v3427
        %v3429 = vpop.f32.mrb[0].mxu0
        %3430 = vmatprep.mubr.bf16.mxu0 %v2860
        %3431 = vmatmul.mubr.bf16.gmra.mrb[0].mxu0 %v2859
        %v3432 = vpop.f32.mrb[0].mxu0
        %v3433 = vadd.f32 %v2988, %v3432
        %v3434 = vpop.f32.mrb[0].mxu0
        %v3435 = vpop.f32.mrb[0].mxu0
        %v3436 = vadd.f32 %v2988, %v3435
        %v3437 = vpop.f32.mrb[0].mxu0
        %3438 = vmatprep.mubr.bf16.mxu0 %v2862
        %3439 = vmatmul.mubr.bf16.gmra.mrb[0].mxu0 %v2861
        %v3440 = vpop.f32.mrb[0].mxu0
        %v3441 = vadd.f32 %v2988, %v3440
        %v3442 = vpop.f32.mrb[0].mxu0
        %v3443 = vpop.f32.mrb[0].mxu0
        %v3444 = vadd.f32 %v2988, %v3443
        %v3445 = vpop.f32.mrb[0].mxu0
        %3446 = vmatprep.mubr.bf16.mxu0 %v2864
        %3447 = vmatmul.mubr.bf16.gmra.mrb[0].mxu0 %v2863
        %v3448 = vpop.f32.mrb[0].mxu0
        %v3449 = vadd.f32 %v2988, %v3448
        %v3450 = vpop.f32.mrb[0].mxu0
        %v3451 = vpop.f32.mrb[0].mxu0
        %v3452 = vadd.f32 %v2988, %v3451
        %v3453 = vpop.f32.mrb[0].mxu0
        %3454 = vmatprep.mubr.bf16.mxu0 %v2866
        %3455 = vmatmul.mubr.bf16.gmra.mrb[0].mxu0 %v2865
        %v3456 = vpop.f32.mrb[0].mxu0
        %v3457 = vadd.f32 %v2988, %v3456
        %v3458 = vpop.f32.mrb[0].mxu0
        %v3459 = vpop.f32.mrb[0].mxu0
        %v3460 = vadd.f32 %v2988, %v3459
        %v3461 = vpop.f32.mrb[0].mxu0
        %3462 = vmatprep.mubr.bf16.mxu0 %v2868
        %3463 = vmatmul.mubr.bf16.gmra.mrb[0].mxu0 %v2867
        %v3464 = vpop.f32.mrb[0].mxu0
        %v3465 = vadd.f32 %v2988, %v3464
        %v3466 = vpop.f32.mrb[0].mxu0
        %v3467 = vpop.f32.mrb[0].mxu0
        %v3468 = vadd.f32 %v2988, %v3467
        %v3469 = vpop.f32.mrb[0].mxu0
        %3470 = vmatprep.mubr.bf16.mxu0 %v2870
        %3471 = vmatmul.mubr.bf16.gmra.mrb[0].mxu0 %v2869
        %v3472 = vpop.f32.mrb[0].mxu0
        %v3473 = vadd.f32 %v2988, %v3472
        %v3474 = vpop.f32.mrb[0].mxu0
        %v3475 = vpop.f32.mrb[0].mxu0
        %v3476 = vadd.f32 %v2988, %v3475
        %v3477 = vpop.f32.mrb[0].mxu0
        %3478 = vmatprep.mubr.bf16.mxu0 %v2872
        %3479 = vmatmul.mubr.bf16.gmra.mrb[0].mxu0 %v2871
        %v3480 = vpop.f32.mrb[0].mxu0
        %v3481 = vadd.f32 %v2988, %v3480
        %v3482 = vpop.f32.mrb[0].mxu0
        %v3483 = vpop.f32.mrb[0].mxu0
        %v3484 = vadd.f32 %v2988, %v3483
        %v3485 = vpop.f32.mrb[0].mxu0
        %3486 = vmatprep.mubr.bf16.mxu0 %v2874
        %3487 = vmatmul.mubr.bf16.gmra.mrb[0].mxu0 %v2873
        %v3488 = vpop.f32.mrb[0].mxu0
        %v3489 = vadd.f32 %v2988, %v3488
        %v3490 = vpop.f32.mrb[0].mxu0
        %v3491 = vpop.f32.mrb[0].mxu0
        %v3492 = vadd.f32 %v2988, %v3491
        %v3493 = vpop.f32.mrb[0].mxu0
        %3494 = vmatprep.mubr.bf16.mxu0 %v2876
        %3495 = vmatmul.mubr.bf16.gmra.mrb[0].mxu0 %v2875
        %v3496 = vpop.f32.mrb[0].mxu0
        %v3497 = vadd.f32 %v2988, %v3496
        %v3498 = vpop.f32.mrb[0].mxu0
        %v3499 = vpop.f32.mrb[0].mxu0
        %v3500 = vadd.f32 %v2988, %v3499
        %v3501 = vpop.f32.mrb[0].mxu0
        %3502 = vmatprep.mubr.bf16.mxu0 %v2878
        %3503 = vmatmul.mubr.bf16.gmra.mrb[0].mxu0 %v2877
        %v3504 = vpop.f32.mrb[0].mxu0
        %v3505 = vadd.f32 %v2988, %v3504
        %v3506 = vpop.f32.mrb[0].mxu0
        %v3507 = vpop.f32.mrb[0].mxu0
        %v3508 = vadd.f32 %v2988, %v3507
        %v3509 = vpop.f32.mrb[0].mxu0
        %3510 = vmatprep.mubr.bf16.mxu0 %v2880
        %3511 = vmatmul.mubr.bf16.gmra.mrb[0].mxu0 %v2879
        %v3512 = vpop.f32.mrb[0].mxu0
        %v3513 = vadd.f32 %v2988, %v3512
        %v3514 = vpop.f32.mrb[0].mxu0
        %v3515 = vpop.f32.mrb[0].mxu0
        %v3516 = vadd.f32 %v2988, %v3515
        %v3517 = vpop.f32.mrb[0].mxu0
        %3518 = vmatprep.mubr.bf16.mxu0 %v2882
        %3519 = vmatmul.mubr.bf16.gmra.mrb[0].mxu0 %v2881
        %v3520 = vpop.f32.mrb[0].mxu0
        %v3521 = vadd.f32 %v2988, %v3520
        %v3522 = vpop.f32.mrb[0].mxu0
        %v3523 = vpop.f32.mrb[0].mxu0
        %v3524 = vadd.f32 %v2988, %v3523
        %v3525 = vpop.f32.mrb[0].mxu0
        %3526 = vmatprep.mubr.bf16.mxu0 %v2884
        %3527 = vmatmul.mubr.bf16.gmra.mrb[0].mxu0 %v2883
        %v3528 = vpop.f32.mrb[0].mxu0
        %v3529 = vadd.f32 %v2988, %v3528
        %v3530 = vpop.f32.mrb[0].mxu0
        %v3531 = vpop.f32.mrb[0].mxu0
        %v3532 = vadd.f32 %v2988, %v3531
        %v3533 = vpop.f32.mrb[0].mxu0
        %3534 = vmatprep.mubr.bf16.mxu0 %v2886
        %3535 = vmatmul.mubr.bf16.gmra.mrb[0].mxu0 %v2885
        %v3536 = vpop.f32.mrb[0].mxu0
        %v3537 = vadd.f32 %v2988, %v3536
        %v3538 = vpop.f32.mrb[0].mxu0
        %v3539 = vpop.f32.mrb[0].mxu0
        %v3540 = vadd.f32 %v2988, %v3539
        %v3541 = vpop.f32.mrb[0].mxu0
        %3542 = vmatprep.mubr.bf16.mxu0 %v2888
        %3543 = vmatmul.mubr.bf16.gmra.mrb[0].mxu0 %v2887
        %v3544 = vpop.f32.mrb[0].mxu0
        %v3545 = vadd.f32 %v2988, %v3544
        %v3546 = vpop.f32.mrb[0].mxu0
        %v3547 = vpop.f32.mrb[0].mxu0
        %v3548 = vadd.f32 %v2988, %v3547
        %v3549 = vpop.f32.mrb[0].mxu0
        %3550 = vmatprep.mubr.bf16.mxu0 %v2890
        %3551 = vmatmul.mubr.bf16.gmra.mrb[0].mxu0 %v2889
        %v3552 = vpop.f32.mrb[0].mxu0
        %v3553 = vadd.f32 %v2988, %v3552
        %v3554 = vpop.f32.mrb[0].mxu0
        %v3555 = vpop.f32.mrb[0].mxu0
        %v3556 = vadd.f32 %v2988, %v3555
        %v3557 = vpop.f32.mrb[0].mxu0
        %3558 = vmatprep.mubr.bf16.mxu0 %v2892
        %3559 = vmatmul.mubr.bf16.gmra.mrb[0].mxu0 %v2891
        %v3560 = vpop.f32.mrb[0].mxu0
        %v3561 = vadd.f32 %v2988, %v3560
        %v3562 = vpop.f32.mrb[0].mxu0
        %v3563 = vpop.f32.mrb[0].mxu0
        %v3564 = vadd.f32 %v2988, %v3563
        %v3565 = vpop.f32.mrb[0].mxu0
        %3566 = vmatprep.mubr.bf16.mxu0 %v2894
        %3567 = vmatmul.mubr.bf16.gmra.mrb[0].mxu0 %v2893
        %v3568 = vpop.f32.mrb[0].mxu0
        %v3569 = vadd.f32 %v2988, %v3568
        %v3570 = vpop.f32.mrb[0].mxu0
        %v3571 = vpop.f32.mrb[0].mxu0
        %v3572 = vadd.f32 %v2988, %v3571
        %v3573 = vpop.f32.mrb[0].mxu0
        %3574 = vmatprep.mubr.bf16.mxu0 %v2896
        %3575 = vmatmul.mubr.bf16.gmra.mrb[0].mxu0 %v2895
        %v3576 = vpop.f32.mrb[0].mxu0
        %v3577 = vadd.f32 %v2988, %v3576
        %v3578 = vpop.f32.mrb[0].mxu0
        %v3579 = vpop.f32.mrb[0].mxu0
        %v3580 = vadd.f32 %v2988, %v3579
        %v3581 = vpop.f32.mrb[0].mxu0
        %3582 = vmatprep.mubr.bf16.mxu0 %v2898
        %3583 = vmatmul.mubr.bf16.gmra.mrb[0].mxu0 %v2897
        %v3584 = vpop.f32.mrb[0].mxu0
        %v3585 = vadd.f32 %v2988, %v3584
        %v3586 = vpop.f32.mrb[0].mxu0
        %v3587 = vpop.f32.mrb[0].mxu0
        %v3588 = vadd.f32 %v2988, %v3587
        %v3589 = vpop.f32.mrb[0].mxu0
        %3590 = vmatprep.mubr.bf16.mxu0 %v2900
        %3591 = vmatmul.mubr.bf16.gmra.mrb[0].mxu0 %v2899
        %v3592 = vpop.f32.mrb[0].mxu0
        %v3593 = vadd.f32 %v2988, %v3592
        %v3594 = vpop.f32.mrb[0].mxu0
        %v3595 = vpop.f32.mrb[0].mxu0
        %v3596 = vadd.f32 %v2988, %v3595
        %v3597 = vpop.f32.mrb[0].mxu0
        %3598 = vmatprep.mubr.bf16.mxu0 %v2902
        %3599 = vmatmul.mubr.bf16.gmra.mrb[0].mxu0 %v2901
        %v3600 = vpop.f32.mrb[0].mxu0
        %v3601 = vadd.f32 %v2988, %v3600
        %v3602 = vpop.f32.mrb[0].mxu0
        %v3603 = vpop.f32.mrb[0].mxu0
        %v3604 = vadd.f32 %v2988, %v3603
        %v3605 = vpop.f32.mrb[0].mxu0
        %3606 = vmatprep.mubr.bf16.mxu0 %v2904
        %3607 = vmatmul.mubr.bf16.gmra.mrb[0].mxu0 %v2903
        %v3608 = vpop.f32.mrb[0].mxu0
        %v3609 = vadd.f32 %v2988, %v3608
        %v3610 = vpop.f32.mrb[0].mxu0
        %v3611 = vpop.f32.mrb[0].mxu0
        %v3612 = vadd.f32 %v2988, %v3611
        %v3613 = vpop.f32.mrb[0].mxu0
        %3614 = vmatprep.mubr.bf16.mxu0 %v2906
        %3615 = vmatmul.mubr.bf16.gmra.mrb[0].mxu0 %v2905
        %v3616 = vpop.f32.mrb[0].mxu0
        %v3617 = vadd.f32 %v2988, %v3616
        %v3618 = vpop.f32.mrb[0].mxu0
        %v3619 = vpop.f32.mrb[0].mxu0
        %v3620 = vadd.f32 %v2988, %v3619
        %v3621 = vpop.f32.mrb[0].mxu0
        %3622 = vmatprep.mubr.bf16.mxu0 %v2908
        %3623 = vmatmul.mubr.bf16.gmra.mrb[0].mxu0 %v2907
        %v3624 = vpop.f32.mrb[0].mxu0
        %v3625 = vadd.f32 %v2988, %v3624
        %v3626 = vpop.f32.mrb[0].mxu0
        %v3627 = vpop.f32.mrb[0].mxu0
        %v3628 = vadd.f32 %v2988, %v3627
        %v3629 = vpop.f32.mrb[0].mxu0
        %3630 = vmatprep.mubr.bf16.mxu0 %v2910
        %3631 = vmatmul.mubr.bf16.gmra.mrb[0].mxu0 %v2909
        %v3632 = vpop.f32.mrb[0].mxu0
        %v3633 = vadd.f32 %v2988, %v3632
        %v3634 = vpop.f32.mrb[0].mxu0
        %v3635 = vpop.f32.mrb[0].mxu0
        %v3636 = vadd.f32 %v2988, %v3635
        %v3637 = vpop.f32.mrb[0].mxu0
        %3638 = vmatprep.mubr.bf16.mxu0 %v2912
        %3639 = vmatmul.mubr.bf16.gmra.mrb[0].mxu0 %v2911
        %v3640 = vpop.f32.mrb[0].mxu0
        %v3641 = vadd.f32 %v2988, %v3640
        %v3642 = vpop.f32.mrb[0].mxu0
        %v3643 = vpop.f32.mrb[0].mxu0
        %v3644 = vadd.f32 %v2988, %v3643
        %v3645 = vpop.f32.mrb[0].mxu0
        %3646 = vmatprep.mubr.bf16.mxu0 %v2914
        %3647 = vmatmul.mubr.bf16.gmra.mrb[0].mxu0 %v2913
        %v3648 = vpop.f32.mrb[0].mxu0
        %v3649 = vadd.f32 %v2988, %v3648
        %v3650 = vpop.f32.mrb[0].mxu0
        %v3651 = vpop.f32.mrb[0].mxu0
        %v3652 = vadd.f32 %v2988, %v3651
        %v3653 = vpop.f32.mrb[0].mxu0
        %3654 = vmatprep.mubr.bf16.mxu0 %v2916
        %3655 = vmatmul.mubr.bf16.gmra.mrb[0].mxu0 %v2915
        %v3656 = vpop.f32.mrb[0].mxu0
        %v3657 = vadd.f32 %v2988, %v3656
        %v3658 = vpop.f32.mrb[0].mxu0
        %v3659 = vpop.f32.mrb[0].mxu0
        %v3660 = vadd.f32 %v2988, %v3659
        %v3661 = vpop.f32.mrb[0].mxu0
        %3662 = vmatprep.mubr.bf16.mxu0 %v2918
        %3663 = vmatmul.mubr.bf16.gmra.mrb[0].mxu0 %v2917
        %v3664 = vpop.f32.mrb[0].mxu0
        %v3665 = vadd.f32 %v2988, %v3664
        %v3666 = vpop.f32.mrb[0].mxu0
        %v3667 = vpop.f32.mrb[0].mxu0
        %v3668 = vadd.f32 %v2988, %v3667
        %v3669 = vpop.f32.mrb[0].mxu0
        %3670 = vmatprep.mubr.bf16.mxu0 %v2920
        %3671 = vmatmul.mubr.bf16.gmra.mrb[0].mxu0 %v2919
        %v3672 = vpop.f32.mrb[0].mxu0
        %v3673 = vadd.f32 %v2988, %v3672
        %v3674 = vpop.f32.mrb[0].mxu0
        %v3675 = vpop.f32.mrb[0].mxu0
        %v3676 = vadd.f32 %v2988, %v3675
        %v3677 = vpop.f32.mrb[0].mxu0
        %3678 = vmatprep.mubr.bf16.mxu0 %v2922
        %3679 = vmatmul.mubr.bf16.gmra.mrb[0].mxu0 %v2921
        %v3680 = vpop.f32.mrb[0].mxu0
        %v3681 = vadd.f32 %v2988, %v3680
        %v3682 = vpop.f32.mrb[0].mxu0
        %v3683 = vpop.f32.mrb[0].mxu0
        %v3684 = vadd.f32 %v2988, %v3683
        %v3685 = vpop.f32.mrb[0].mxu0
        %3686 = vmatprep.mubr.bf16.mxu0 %v2924
        %3687 = vmatmul.mubr.bf16.gmra.mrb[0].mxu0 %v2923
        %v3688 = vpop.f32.mrb[0].mxu0
        %v3689 = vadd.f32 %v2988, %v3688
        %v3690 = vpop.f32.mrb[0].mxu0
        %v3691 = vpop.f32.mrb[0].mxu0
        %v3692 = vadd.f32 %v2988, %v3691
        %v3693 = vpop.f32.mrb[0].mxu0
        %3694 = vmatprep.mubr.bf16.mxu0 %v2926
        %3695 = vmatmul.mubr.bf16.gmra.mrb[0].mxu0 %v2925
        %v3696 = vpop.f32.mrb[0].mxu0
        %v3697 = vadd.f32 %v2988, %v3696
        %v3698 = vpop.f32.mrb[0].mxu0
        %v3699 = vpop.f32.mrb[0].mxu0
        %v3700 = vadd.f32 %v2988, %v3699
        %v3701 = vpop.f32.mrb[0].mxu0
        %3702 = vmatprep.mubr.bf16.mxu0 %v2928
        %3703 = vmatmul.mubr.bf16.gmra.mrb[0].mxu0 %v2927
        %v3704 = vpop.f32.mrb[0].mxu0
        %v3705 = vadd.f32 %v2988, %v3704
        %v3706 = vpop.f32.mrb[0].mxu0
        %v3707 = vpop.f32.mrb[0].mxu0
        %v3708 = vadd.f32 %v2988, %v3707
        %v3709 = vpop.f32.mrb[0].mxu0
        %3710 = vmatprep.mubr.bf16.mxu0 %v2930
        %3711 = vmatmul.mubr.bf16.gmra.mrb[0].mxu0 %v2929
        %v3712 = vpop.f32.mrb[0].mxu0
        %v3713 = vadd.f32 %v2988, %v3712
        %v3714 = vpop.f32.mrb[0].mxu0
        %v3715 = vpop.f32.mrb[0].mxu0
        %v3716 = vadd.f32 %v2988, %v3715
        %v3717 = vpop.f32.mrb[0].mxu0
        %3718 = vmatprep.mubr.bf16.mxu0 %v2932
        %3719 = vmatmul.mubr.bf16.gmra.mrb[0].mxu0 %v2931
        %v3720 = vpop.f32.mrb[0].mxu0
        %v3721 = vadd.f32 %v2988, %v3720
        %v3722 = vpop.f32.mrb[0].mxu0
        %v3723 = vpop.f32.mrb[0].mxu0
        %v3724 = vadd.f32 %v2988, %v3723
        %v3725 = vpop.f32.mrb[0].mxu0
        %3726 = vmatprep.mubr.bf16.mxu0 %v2934
        %3727 = vmatmul.mubr.bf16.gmra.mrb[0].mxu0 %v2933
        %v3728 = vpop.f32.mrb[0].mxu0
        %v3729 = vadd.f32 %v2988, %v3728
        %v3730 = vpop.f32.mrb[0].mxu0
        %v3731 = vpop.f32.mrb[0].mxu0
        %v3732 = vadd.f32 %v2988, %v3731
        %v3733 = vpop.f32.mrb[0].mxu0
        %3734 = vmatprep.mubr.bf16.mxu0 %v2936
        %3735 = vmatmul.mubr.bf16.gmra.mrb[0].mxu0 %v2935
        %v3736 = vpop.f32.mrb[0].mxu0
        %v3737 = vadd.f32 %v2988, %v3736
        %v3738 = vpop.f32.mrb[0].mxu0
        %v3739 = vpop.f32.mrb[0].mxu0
        %v3740 = vadd.f32 %v2988, %v3739
        %v3741 = vpop.f32.mrb[0].mxu0
        %3742 = vmatprep.mubr.bf16.mxu0 %v2938
        %3743 = vmatmul.mubr.bf16.gmra.mrb[0].mxu0 %v2937
        %v3744 = vpop.f32.mrb[0].mxu0
        %v3745 = vadd.f32 %v2988, %v3744
        %v3746 = vpop.f32.mrb[0].mxu0
        %v3747 = vpop.f32.mrb[0].mxu0
        %v3748 = vadd.f32 %v2988, %v3747
        %v3749 = vpop.f32.mrb[0].mxu0
        %3750 = vmatprep.mubr.bf16.mxu0 %v2940
        %3751 = vmatmul.mubr.bf16.gmra.mrb[0].mxu0 %v2939
        %v3752 = vpop.f32.mrb[0].mxu0
        %v3753 = vadd.f32 %v2988, %v3752
        %v3754 = vpop.f32.mrb[0].mxu0
        %v3755 = vpop.f32.mrb[0].mxu0
        %v3756 = vadd.f32 %v2988, %v3755
        %v3757 = vpop.f32.mrb[0].mxu0
        %3758 = vmatprep.mubr.bf16.mxu0 %v2942
        %3759 = vmatmul.mubr.bf16.gmra.mrb[0].mxu0 %v2941
        %v3760 = vpop.f32.mrb[0].mxu0
        %v3761 = vadd.f32 %v2988, %v3760
        %v3762 = vpop.f32.mrb[0].mxu0
        %v3763 = vpop.f32.mrb[0].mxu0
        %v3764 = vadd.f32 %v2988, %v3763
        %v3765 = vpop.f32.mrb[0].mxu0
        %3766 = vmatprep.mubr.bf16.mxu0 %v2944
        %3767 = vmatmul.mubr.bf16.gmra.mrb[0].mxu0 %v2943
        %v3768 = vpop.f32.mrb[0].mxu0
        %v3769 = vadd.f32 %v2988, %v3768
        %v3770 = vpop.f32.mrb[0].mxu0
        %v3771 = vpop.f32.mrb[0].mxu0
        %v3772 = vadd.f32 %v2988, %v3771
        %v3773 = vpop.f32.mrb[0].mxu0
        %3774 = vmatprep.mubr.bf16.mxu0 %v2946
        %3775 = vmatmul.mubr.bf16.gmra.mrb[0].mxu0 %v2945
        %v3776 = vpop.f32.mrb[0].mxu0
        %v3777 = vadd.f32 %v2988, %v3776
        %v3778 = vpop.f32.mrb[0].mxu0
        %v3779 = vpop.f32.mrb[0].mxu0
        %v3780 = vadd.f32 %v2988, %v3779
        %v3781 = vpop.f32.mrb[0].mxu0
        %3782 = vmatprep.mubr.bf16.mxu0 %v2948
        %3783 = vmatmul.mubr.bf16.gmra.mrb[0].mxu0 %v2947
        %v3784 = vpop.f32.mrb[0].mxu0
        %v3785 = vadd.f32 %v2988, %v3784
        %v3786 = vpop.f32.mrb[0].mxu0
        %v3787 = vpop.f32.mrb[0].mxu0
        %v3788 = vadd.f32 %v2988, %v3787
        %v3789 = vpop.f32.mrb[0].mxu0
        %3790 = vmatprep.mubr.bf16.mxu0 %v2950
        %3791 = vmatmul.mubr.bf16.gmra.mrb[0].mxu0 %v2949
        %v3792 = vpop.f32.mrb[0].mxu0
        %v3793 = vadd.f32 %v2988, %v3792
        %v3794 = vpop.f32.mrb[0].mxu0
        %v3795 = vpop.f32.mrb[0].mxu0
        %v3796 = vadd.f32 %v2988, %v3795
        %v3797 = vpop.f32.mrb[0].mxu0
        %3798 = vdwg.mxu0
        %v3799 = vpack.c.bf16 %v685, %v683
        %v3800 = vpack.c.bf16 %v686, %v684
        %v3801 = vpack.c.bf16 %v689, %v687
        %v3802 = vpack.c.bf16 %v690, %v688
        %v3803 = vpack.c.bf16 %v693, %v691
        %v3804 = vpack.c.bf16 %v694, %v692
        %v3805 = vpack.c.bf16 %v697, %v695
        %v3806 = vpack.c.bf16 %v698, %v696
        %v3807 = vpack.c.bf16 %v701, %v699
        %v3808 = vpack.c.bf16 %v702, %v700
        %v3809 = vpack.c.bf16 %v705, %v703
        %v3810 = vpack.c.bf16 %v706, %v704
        %v3811 = vpack.c.bf16 %v709, %v707
        %v3812 = vpack.c.bf16 %v710, %v708
        %v3813 = vpack.c.bf16 %v713, %v711
        %v3814 = vpack.c.bf16 %v714, %v712
        %v3815 = vpack.c.bf16 %v717, %v715
        %v3816 = vpack.c.bf16 %v718, %v716
        %v3817 = vpack.c.bf16 %v721, %v719
        %v3818 = vpack.c.bf16 %v722, %v720
        %v3819 = vpack.c.bf16 %v725, %v723
        %v3820 = vpack.c.bf16 %v726, %v724
        %v3821 = vpack.c.bf16 %v729, %v727
        %v3822 = vpack.c.bf16 %v730, %v728
        %v3823 = vpack.c.bf16 %v733, %v731
        %v3824 = vpack.c.bf16 %v734, %v732
        %v3825 = vpack.c.bf16 %v737, %v735
        %v3826 = vpack.c.bf16 %v738, %v736
        %v3827 = vpack.c.bf16 %v741, %v739
        %v3828 = vpack.c.bf16 %v742, %v740
        %v3829 = vpack.c.bf16 %v745, %v743
        %v3830 = vpack.c.bf16 %v746, %v744
        %v3831 = vpack.c.bf16 %v749, %v747
        %v3832 = vpack.c.bf16 %v750, %v748
        %v3833 = vpack.c.bf16 %v753, %v751
        %v3834 = vpack.c.bf16 %v754, %v752
        %v3835 = vpack.c.bf16 %v757, %v755
        %v3836 = vpack.c.bf16 %v758, %v756
        %v3837 = vpack.c.bf16 %v761, %v759
        %v3838 = vpack.c.bf16 %v762, %v760
        %v3839 = vpack.c.bf16 %v765, %v763
        %v3840 = vpack.c.bf16 %v766, %v764
        %v3841 = vpack.c.bf16 %v769, %v767
        %v3842 = vpack.c.bf16 %v770, %v768
        %v3843 = vpack.c.bf16 %v773, %v771
        %v3844 = vpack.c.bf16 %v774, %v772
        %v3845 = vpack.c.bf16 %v777, %v775
        %v3846 = vpack.c.bf16 %v778, %v776
        %v3847 = vpack.c.bf16 %v781, %v779
        %v3848 = vpack.c.bf16 %v782, %v780
        %v3849 = vpack.c.bf16 %v785, %v783
        %v3850 = vpack.c.bf16 %v786, %v784
        %v3851 = vpack.c.bf16 %v789, %v787
        %v3852 = vpack.c.bf16 %v790, %v788
        %v3853 = vpack.c.bf16 %v793, %v791
        %v3854 = vpack.c.bf16 %v794, %v792
        %v3855 = vpack.c.bf16 %v797, %v795
        %v3856 = vpack.c.bf16 %v798, %v796
        %v3857 = vpack.c.bf16 %v801, %v799
        %v3858 = vpack.c.bf16 %v802, %v800
        %v3859 = vpack.c.bf16 %v805, %v803
        %v3860 = vpack.c.bf16 %v806, %v804
        %v3861 = vpack.c.bf16 %v809, %v807
        %v3862 = vpack.c.bf16 %v810, %v808
        %v3863 = vpack.c.bf16 %v813, %v811
        %v3864 = vpack.c.bf16 %v814, %v812
        %v3865 = vpack.c.bf16 %v817, %v815
        %v3866 = vpack.c.bf16 %v818, %v816
        %v3867 = vpack.c.bf16 %v821, %v819
        %v3868 = vpack.c.bf16 %v822, %v820
        %v3869 = vpack.c.bf16 %v825, %v823
        %v3870 = vpack.c.bf16 %v826, %v824
        %v3871 = vpack.c.bf16 %v829, %v827
        %v3872 = vpack.c.bf16 %v830, %v828
        %v3873 = vpack.c.bf16 %v833, %v831
        %v3874 = vpack.c.bf16 %v834, %v832
        %v3875 = vpack.c.bf16 %v837, %v835
        %v3876 = vpack.c.bf16 %v838, %v836
        %v3877 = vpack.c.bf16 %v841, %v839
        %v3878 = vpack.c.bf16 %v842, %v840
        %v3879 = vpack.c.bf16 %v845, %v843
        %v3880 = vpack.c.bf16 %v846, %v844
        %v3881 = vpack.c.bf16 %v849, %v847
        %v3882 = vpack.c.bf16 %v850, %v848
        %v3883 = vpack.c.bf16 %v853, %v851
        %v3884 = vpack.c.bf16 %v854, %v852
        %v3885 = vpack.c.bf16 %v857, %v855
        %v3886 = vpack.c.bf16 %v858, %v856
        %v3887 = vpack.c.bf16 %v861, %v859
        %v3888 = vpack.c.bf16 %v862, %v860
        %v3889 = vpack.c.bf16 %v865, %v863
        %v3890 = vpack.c.bf16 %v866, %v864
        %v3891 = vpack.c.bf16 %v869, %v867
        %v3892 = vpack.c.bf16 %v870, %v868
        %v3893 = vpack.c.bf16 %v873, %v871
        %v3894 = vpack.c.bf16 %v874, %v872
        %v3895 = vpack.c.bf16 %v877, %v875
        %v3896 = vpack.c.bf16 %v878, %v876
        %v3897 = vpack.c.bf16 %v881, %v879
        %v3898 = vpack.c.bf16 %v882, %v880
        %v3899 = vpack.c.bf16 %v885, %v883
        %v3900 = vpack.c.bf16 %v886, %v884
        %v3901 = vpack.c.bf16 %v889, %v887
        %v3902 = vpack.c.bf16 %v890, %v888
        %v3903 = vpack.c.bf16 %v893, %v891
        %v3904 = vpack.c.bf16 %v894, %v892
        %v3905 = vpack.c.bf16 %v897, %v895
        %v3906 = vpack.c.bf16 %v898, %v896
        %v3907 = vpack.c.bf16 %v901, %v899
        %v3908 = vpack.c.bf16 %v902, %v900
        %v3909 = vpack.c.bf16 %v905, %v903
        %v3910 = vpack.c.bf16 %v906, %v904
        %v3911 = vpack.c.bf16 %v909, %v907
        %v3912 = vpack.c.bf16 %v910, %v908
        %v3913 = vpack.c.bf16 %v913, %v911
        %v3914 = vpack.c.bf16 %v914, %v912
        %v3915 = vpack.c.bf16 %v917, %v915
        %v3916 = vpack.c.bf16 %v918, %v916
        %v3917 = vpack.c.bf16 %v921, %v919
        %v3918 = vpack.c.bf16 %v922, %v920
        %v3919 = vpack.c.bf16 %v925, %v923
        %v3920 = vpack.c.bf16 %v926, %v924
        %v3921 = vpack.c.bf16 %v929, %v927
        %v3922 = vpack.c.bf16 %v930, %v928
        %v3923 = vpack.c.bf16 %v933, %v931
        %v3924 = vpack.c.bf16 %v934, %v932
        %v3925 = vpack.c.bf16 %v937, %v935
        %v3926 = vpack.c.bf16 %v938, %v936
        %v3927 = vpack.c.bf16 %v941, %v939
        %v3928 = vpack.c.bf16 %v942, %v940
        %v3929 = vpack.c.bf16 %v945, %v943
        %v3930 = vpack.c.bf16 %v946, %v944
        %v3931 = vpack.c.bf16 %v949, %v947
        %v3932 = vpack.c.bf16 %v950, %v948
        %v3933 = vpack.c.bf16 %v953, %v951
        %v3934 = vpack.c.bf16 %v954, %v952
        %v3935 = vpack.c.bf16 %v957, %v955
        %v3936 = vpack.c.bf16 %v958, %v956
        %v3937 = vpack.c.bf16 %v961, %v959
        %v3938 = vpack.c.bf16 %v962, %v960
        %v3939 = vpack.c.bf16 %v965, %v963
        %v3940 = vpack.c.bf16 %v966, %v964
        %v3941 = vpack.c.bf16 %v969, %v967
        %v3942 = vpack.c.bf16 %v970, %v968
        %v3943 = vpack.c.bf16 %v973, %v971
        %v3944 = vpack.c.bf16 %v974, %v972
        %v3945 = vpack.c.bf16 %v977, %v975
        %v3946 = vpack.c.bf16 %v978, %v976
        %v3947 = vpack.c.bf16 %v981, %v979
        %v3948 = vpack.c.bf16 %v982, %v980
        %v3949 = vpack.c.bf16 %v985, %v983
        %v3950 = vpack.c.bf16 %v986, %v984
        %v3951 = vpack.c.bf16 %v989, %v987
        %v3952 = vpack.c.bf16 %v990, %v988
        %v3953 = vpack.c.bf16 %v993, %v991
        %v3954 = vpack.c.bf16 %v994, %v992
        %v3955 = vpack.c.bf16 %v997, %v995
        %v3956 = vpack.c.bf16 %v998, %v996
        %v3957 = vpack.c.bf16 %v1001, %v999
        %v3958 = vpack.c.bf16 %v1002, %v1000
        %v3959 = vpack.c.bf16 %v1005, %v1003
        %v3960 = vpack.c.bf16 %v1006, %v1004
        %v3961 = vpack.c.bf16 %v1009, %v1007
        %v3962 = vpack.c.bf16 %v1010, %v1008
        %v3963 = vpack.c.bf16 %v1013, %v1011
        %v3964 = vpack.c.bf16 %v1014, %v1012
        %v3965 = vpack.c.bf16 %v1017, %v1015
        %v3966 = vpack.c.bf16 %v1018, %v1016
        %v3967 = vpack.c.bf16 %v1021, %v1019
        %v3968 = vpack.c.bf16 %v1022, %v1020
        %v3969 = vld [vmem:[#allocation13] sm:$0xf]
        %v3970 = vld [vmem:[#allocation13 + $0x4] sm:$0xf]
        %v3971 = vld [vmem:[#allocation13 + $0x8] sm:$0xf]
        %v3972 = vld [vmem:[#allocation13 + $0xc] sm:$0xf]
        %v3973 = vld [vmem:[#allocation13 + $0x10] sm:$0xf]
        %v3974 = vld [vmem:[#allocation13 + $0x14] sm:$0xf]
        %v3975 = vld [vmem:[#allocation13 + $0x18] sm:$0xf]
        %v3976 = vld [vmem:[#allocation13 + $0x1c] sm:$0xf]
        %v3977 = vld [vmem:[#allocation13 + $0x20] sm:$0xf]
        %v3978 = vld [vmem:[#allocation13 + $0x24] sm:$0xf]
        %v3979 = vld [vmem:[#allocation13 + $0x28] sm:$0xf]
        %v3980 = vld [vmem:[#allocation13 + $0x2c] sm:$0xf]
        %v3981 = vld [vmem:[#allocation13 + $0x30] sm:$0xf]
        %v3982 = vld [vmem:[#allocation13 + $0x34] sm:$0xf]
        %v3983 = vld [vmem:[#allocation13 + $0x38] sm:$0xf]
        %v3984 = vld [vmem:[#allocation13 + $0x3c] sm:$0xf]
        %v3985 = vld [vmem:[#allocation13 + $0x40] sm:$0xf]
        %v3986 = vld [vmem:[#allocation13 + $0x44] sm:$0xf]
        %v3987 = vld [vmem:[#allocation13 + $0x48] sm:$0xf]
        %v3988 = vld [vmem:[#allocation13 + $0x4c] sm:$0xf]
        %v3989 = vld [vmem:[#allocation13 + $0x50] sm:$0xf]
        %v3990 = vld [vmem:[#allocation13 + $0x54] sm:$0xf]
        %v3991 = vld [vmem:[#allocation13 + $0x58] sm:$0xf]
        %v3992 = vld [vmem:[#allocation13 + $0x5c] sm:$0xf]
        %v3993 = vld [vmem:[#allocation13 + $0x60] sm:$0xf]
        %v3994 = vld [vmem:[#allocation13 + $0x64] sm:$0xf]
        %v3995 = vld [vmem:[#allocation13 + $0x68] sm:$0xf]
        %v3996 = vld [vmem:[#allocation13 + $0x6c] sm:$0xf]
        %v3997 = vld [vmem:[#allocation13 + $0x70] sm:$0xf]
        %v3998 = vld [vmem:[#allocation13 + $0x74] sm:$0xf]
        %v3999 = vld [vmem:[#allocation13 + $0x78] sm:$0xf]
        %v4000 = vld [vmem:[#allocation13 + $0x7c] sm:$0xf]
        %v4001 = vld [vmem:[#allocation14] sm:$0x1]
        %v4003 = vlaneseq
        %v4004 = vshrl.u32 %v4003, 7
        %v4005 = vsub.s32 0, %v4004
        %v4006 = vrot.slane %v4001, %v4005
        %v4040 = vunpack.c.l.b16 %v3969
        %v4041 = vunpack.c.l.b16 %v3970
        %v4042 = vunpack.c.l.b16 %v3971
        %v4043 = vunpack.c.l.b16 %v3972
        %v4044 = vunpack.c.l.b16 %v3973
        %v4045 = vunpack.c.l.b16 %v3974
        %v4046 = vunpack.c.l.b16 %v3975
        %v4047 = vunpack.c.l.b16 %v3976
        %v4048 = vunpack.c.l.b16 %v3977
        %v4049 = vunpack.c.l.b16 %v3978
        %v4050 = vunpack.c.l.b16 %v3979
        %v4051 = vunpack.c.l.b16 %v3980
        %v4052 = vunpack.c.l.b16 %v3981
        %v4053 = vunpack.c.l.b16 %v3982
        %v4054 = vunpack.c.l.b16 %v3983
        %v4055 = vunpack.c.l.b16 %v3984
        %v4056 = vunpack.c.l.b16 %v3985
        %v4057 = vunpack.c.l.b16 %v3986
        %v4058 = vunpack.c.l.b16 %v3987
        %v4059 = vunpack.c.l.b16 %v3988
        %v4060 = vunpack.c.l.b16 %v3989
        %v4061 = vunpack.c.l.b16 %v3990
        %v4062 = vunpack.c.l.b16 %v3991
        %v4063 = vunpack.c.l.b16 %v3992
        %v4064 = vunpack.c.l.b16 %v3993
        %v4065 = vunpack.c.l.b16 %v3994
        %v4066 = vunpack.c.l.b16 %v3995
        %v4067 = vunpack.c.l.b16 %v3996
        %v4068 = vunpack.c.l.b16 %v3997
        %v4069 = vunpack.c.l.b16 %v3998
        %v4070 = vunpack.c.l.b16 %v3999
        %v4071 = vunpack.c.l.b16 %v4000
        %v4072 = vpack.c.b16 %v4041, %v4040
        %v4073 = vpack.c.b16 %v4043, %v4042
        %v4074 = vpack.c.b16 %v4045, %v4044
        %v4075 = vpack.c.b16 %v4047, %v4046
        %v4076 = vpack.c.b16 %v4049, %v4048
        %v4077 = vpack.c.b16 %v4051, %v4050
        %v4078 = vpack.c.b16 %v4053, %v4052
        %v4079 = vpack.c.b16 %v4055, %v4054
        %v4080 = vpack.c.b16 %v4057, %v4056
        %v4081 = vpack.c.b16 %v4059, %v4058
        %v4082 = vpack.c.b16 %v4061, %v4060
        %v4083 = vpack.c.b16 %v4063, %v4062
        %v4084 = vpack.c.b16 %v4065, %v4064
        %v4085 = vpack.c.b16 %v4067, %v4066
        %v4086 = vpack.c.b16 %v4069, %v4068
        %v4087 = vpack.c.b16 %v4071, %v4070
        %4104 = vmatprep.subr.bf16.mxu0 0
        %4105 = vmatpush1.bf16.msra.mxu0 %v4072
        %4106 = vmatprep.subr.bf16.mxu0 0
        %4107 = vmatpush1.bf16.msra.mxu0 %v4073
        %4108 = vmatprep.subr.bf16.mxu0 0
        %4109 = vmatpush1.bf16.msra.mxu0 %v4074
        %4110 = vmatprep.subr.bf16.mxu0 0
        %4111 = vmatpush1.bf16.msra.mxu0 %v4075
        %4112 = vmatprep.subr.bf16.mxu0 0
        %4113 = vmatpush1.bf16.msra.mxu0 %v4076
        %4114 = vmatprep.subr.bf16.mxu0 0
        %4115 = vmatpush1.bf16.msra.mxu0 %v4077
        %4116 = vmatprep.subr.bf16.mxu0 0
        %4117 = vmatpush1.bf16.msra.mxu0 %v4078
        %4118 = vmatprep.subr.bf16.mxu0 0
        %4119 = vmatpush1.bf16.msra.mxu0 %v4079
        %4120 = vmatprep.subr.bf16.mxu0 0
        %4121 = vmatpush1.bf16.msra.mxu0 %v4080
        %4122 = vmatprep.subr.bf16.mxu0 0
        %4123 = vmatpush1.bf16.msra.mxu0 %v4081
        %4124 = vmatprep.subr.bf16.mxu0 0
        %4125 = vmatpush1.bf16.msra.mxu0 %v4082
        %4126 = vmatprep.subr.bf16.mxu0 0
        %4127 = vmatpush1.bf16.msra.mxu0 %v4083
        %4128 = vmatprep.subr.bf16.mxu0 0
        %4129 = vmatpush1.bf16.msra.mxu0 %v4084
        %4130 = vmatprep.subr.bf16.mxu0 0
        %4131 = vmatpush1.bf16.msra.mxu0 %v4085
        %4132 = vmatprep.subr.bf16.mxu0 0
        %4133 = vmatpush1.bf16.msra.mxu0 %v4086
        %4134 = vmatprep.subr.bf16.mxu0 0
        %4135 = vmatpush1.bf16.msra.mxu0 %v4087
        %4136 = vmatprep.mubr.bf16.mxu0 %v3800
        %4137 = vmatmul.mubr.bf16.gmra.mrb[0].mxu0 %v3799
        %v4138 = vpop.f32.mrb[0].mxu0
        %v4139 = vadd.f32 %v4006, %v4138
        %v4140 = vpop.f32.mrb[0].mxu0
        %v4141 = vpop.f32.mrb[0].mxu0
        %v4142 = vadd.f32 %v4006, %v4141
        %v4143 = vpop.f32.mrb[0].mxu0
        %4144 = vmatprep.mubr.bf16.mxu0 %v3802
        %4145 = vmatmul.mubr.bf16.gmra.mrb[0].mxu0 %v3801
        %v4146 = vpop.f32.mrb[0].mxu0
        %v4147 = vadd.f32 %v4006, %v4146
        %v4148 = vpop.f32.mrb[0].mxu0
        %v4149 = vpop.f32.mrb[0].mxu0
        %v4150 = vadd.f32 %v4006, %v4149
        %v4151 = vpop.f32.mrb[0].mxu0
        %4152 = vmatprep.mubr.bf16.mxu0 %v3804
        %4153 = vmatmul.mubr.bf16.gmra.mrb[0].mxu0 %v3803
        %v4154 = vpop.f32.mrb[0].mxu0
        %v4155 = vadd.f32 %v4006, %v4154
        %v4156 = vpop.f32.mrb[0].mxu0
        %v4157 = vpop.f32.mrb[0].mxu0
        %v4158 = vadd.f32 %v4006, %v4157
        %v4159 = vpop.f32.mrb[0].mxu0
        %4160 = vmatprep.mubr.bf16.mxu0 %v3806
        %4161 = vmatmul.mubr.bf16.gmra.mrb[0].mxu0 %v3805
        %v4162 = vpop.f32.mrb[0].mxu0
        %v4163 = vadd.f32 %v4006, %v4162
        %v4164 = vpop.f32.mrb[0].mxu0
        %v4165 = vpop.f32.mrb[0].mxu0
        %v4166 = vadd.f32 %v4006, %v4165
        %v4167 = vpop.f32.mrb[0].mxu0
        %4168 = vmatprep.mubr.bf16.mxu0 %v3808
        %4169 = vmatmul.mubr.bf16.gmra.mrb[0].mxu0 %v3807
        %v4170 = vpop.f32.mrb[0].mxu0
        %v4171 = vadd.f32 %v4006, %v4170
        %v4172 = vpop.f32.mrb[0].mxu0
        %v4173 = vpop.f32.mrb[0].mxu0
        %v4174 = vadd.f32 %v4006, %v4173
        %v4175 = vpop.f32.mrb[0].mxu0
        %4176 = vmatprep.mubr.bf16.mxu0 %v3810
        %4177 = vmatmul.mubr.bf16.gmra.mrb[0].mxu0 %v3809
        %v4178 = vpop.f32.mrb[0].mxu0
        %v4179 = vadd.f32 %v4006, %v4178
        %v4180 = vpop.f32.mrb[0].mxu0
        %v4181 = vpop.f32.mrb[0].mxu0
        %v4182 = vadd.f32 %v4006, %v4181
        %v4183 = vpop.f32.mrb[0].mxu0
        %4184 = vmatprep.mubr.bf16.mxu0 %v3812
        %4185 = vmatmul.mubr.bf16.gmra.mrb[0].mxu0 %v3811
        %v4186 = vpop.f32.mrb[0].mxu0
        %v4187 = vadd.f32 %v4006, %v4186
        %v4188 = vpop.f32.mrb[0].mxu0
        %v4189 = vpop.f32.mrb[0].mxu0
        %v4190 = vadd.f32 %v4006, %v4189
        %v4191 = vpop.f32.mrb[0].mxu0
        %4192 = vmatprep.mubr.bf16.mxu0 %v3814
        %4193 = vmatmul.mubr.bf16.gmra.mrb[0].mxu0 %v3813
        %v4194 = vpop.f32.mrb[0].mxu0
        %v4195 = vadd.f32 %v4006, %v4194
        %v4196 = vpop.f32.mrb[0].mxu0
        %v4197 = vpop.f32.mrb[0].mxu0
        %v4198 = vadd.f32 %v4006, %v4197
        %v4199 = vpop.f32.mrb[0].mxu0
        %4200 = vmatprep.mubr.bf16.mxu0 %v3816
        %4201 = vmatmul.mubr.bf16.gmra.mrb[0].mxu0 %v3815
        %v4202 = vpop.f32.mrb[0].mxu0
        %v4203 = vadd.f32 %v4006, %v4202
        %v4204 = vpop.f32.mrb[0].mxu0
        %v4205 = vpop.f32.mrb[0].mxu0
        %v4206 = vadd.f32 %v4006, %v4205
        %v4207 = vpop.f32.mrb[0].mxu0
        %4208 = vmatprep.mubr.bf16.mxu0 %v3818
        %4209 = vmatmul.mubr.bf16.gmra.mrb[0].mxu0 %v3817
        %v4210 = vpop.f32.mrb[0].mxu0
        %v4211 = vadd.f32 %v4006, %v4210
        %v4212 = vpop.f32.mrb[0].mxu0
        %v4213 = vpop.f32.mrb[0].mxu0
        %v4214 = vadd.f32 %v4006, %v4213
        %v4215 = vpop.f32.mrb[0].mxu0
        %4216 = vmatprep.mubr.bf16.mxu0 %v3820
        %4217 = vmatmul.mubr.bf16.gmra.mrb[0].mxu0 %v3819
        %v4218 = vpop.f32.mrb[0].mxu0
        %v4219 = vadd.f32 %v4006, %v4218
        %v4220 = vpop.f32.mrb[0].mxu0
        %v4221 = vpop.f32.mrb[0].mxu0
        %v4222 = vadd.f32 %v4006, %v4221
        %v4223 = vpop.f32.mrb[0].mxu0
        %4224 = vmatprep.mubr.bf16.mxu0 %v3822
        %4225 = vmatmul.mubr.bf16.gmra.mrb[0].mxu0 %v3821
        %v4226 = vpop.f32.mrb[0].mxu0
        %v4227 = vadd.f32 %v4006, %v4226
        %v4228 = vpop.f32.mrb[0].mxu0
        %v4229 = vpop.f32.mrb[0].mxu0
        %v4230 = vadd.f32 %v4006, %v4229
        %v4231 = vpop.f32.mrb[0].mxu0
        %4232 = vmatprep.mubr.bf16.mxu0 %v3824
        %4233 = vmatmul.mubr.bf16.gmra.mrb[0].mxu0 %v3823
        %v4234 = vpop.f32.mrb[0].mxu0
        %v4235 = vadd.f32 %v4006, %v4234
        %v4236 = vpop.f32.mrb[0].mxu0
        %v4237 = vpop.f32.mrb[0].mxu0
        %v4238 = vadd.f32 %v4006, %v4237
        %v4239 = vpop.f32.mrb[0].mxu0
        %4240 = vmatprep.mubr.bf16.mxu0 %v3826
        %4241 = vmatmul.mubr.bf16.gmra.mrb[0].mxu0 %v3825
        %v4242 = vpop.f32.mrb[0].mxu0
        %v4243 = vadd.f32 %v4006, %v4242
        %v4244 = vpop.f32.mrb[0].mxu0
        %v4245 = vpop.f32.mrb[0].mxu0
        %v4246 = vadd.f32 %v4006, %v4245
        %v4247 = vpop.f32.mrb[0].mxu0
        %4248 = vmatprep.mubr.bf16.mxu0 %v3828
        %4249 = vmatmul.mubr.bf16.gmra.mrb[0].mxu0 %v3827
        %v4250 = vpop.f32.mrb[0].mxu0
        %v4251 = vadd.f32 %v4006, %v4250
        %v4252 = vpop.f32.mrb[0].mxu0
        %v4253 = vpop.f32.mrb[0].mxu0
        %v4254 = vadd.f32 %v4006, %v4253
        %v4255 = vpop.f32.mrb[0].mxu0
        %4256 = vmatprep.mubr.bf16.mxu0 %v3830
        %4257 = vmatmul.mubr.bf16.gmra.mrb[0].mxu0 %v3829
        %v4258 = vpop.f32.mrb[0].mxu0
        %v4259 = vadd.f32 %v4006, %v4258
        %v4260 = vpop.f32.mrb[0].mxu0
        %v4261 = vpop.f32.mrb[0].mxu0
        %v4262 = vadd.f32 %v4006, %v4261
        %v4263 = vpop.f32.mrb[0].mxu0
        %4264 = vmatprep.mubr.bf16.mxu0 %v3832
        %4265 = vmatmul.mubr.bf16.gmra.mrb[0].mxu0 %v3831
        %v4266 = vpop.f32.mrb[0].mxu0
        %v4267 = vadd.f32 %v4006, %v4266
        %v4268 = vpop.f32.mrb[0].mxu0
        %v4269 = vpop.f32.mrb[0].mxu0
        %v4270 = vadd.f32 %v4006, %v4269
        %v4271 = vpop.f32.mrb[0].mxu0
        %4272 = vmatprep.mubr.bf16.mxu0 %v3834
        %4273 = vmatmul.mubr.bf16.gmra.mrb[0].mxu0 %v3833
        %v4274 = vpop.f32.mrb[0].mxu0
        %v4275 = vadd.f32 %v4006, %v4274
        %v4276 = vpop.f32.mrb[0].mxu0
        %v4277 = vpop.f32.mrb[0].mxu0
        %v4278 = vadd.f32 %v4006, %v4277
        %v4279 = vpop.f32.mrb[0].mxu0
        %4280 = vmatprep.mubr.bf16.mxu0 %v3836
        %4281 = vmatmul.mubr.bf16.gmra.mrb[0].mxu0 %v3835
        %v4282 = vpop.f32.mrb[0].mxu0
        %v4283 = vadd.f32 %v4006, %v4282
        %v4284 = vpop.f32.mrb[0].mxu0
        %v4285 = vpop.f32.mrb[0].mxu0
        %v4286 = vadd.f32 %v4006, %v4285
        %v4287 = vpop.f32.mrb[0].mxu0
        %4288 = vmatprep.mubr.bf16.mxu0 %v3838
        %4289 = vmatmul.mubr.bf16.gmra.mrb[0].mxu0 %v3837
        %v4290 = vpop.f32.mrb[0].mxu0
        %v4291 = vadd.f32 %v4006, %v4290
        %v4292 = vpop.f32.mrb[0].mxu0
        %v4293 = vpop.f32.mrb[0].mxu0
        %v4294 = vadd.f32 %v4006, %v4293
        %v4295 = vpop.f32.mrb[0].mxu0
        %4296 = vmatprep.mubr.bf16.mxu0 %v3840
        %4297 = vmatmul.mubr.bf16.gmra.mrb[0].mxu0 %v3839
        %v4298 = vpop.f32.mrb[0].mxu0
        %v4299 = vadd.f32 %v4006, %v4298
        %v4300 = vpop.f32.mrb[0].mxu0
        %v4301 = vpop.f32.mrb[0].mxu0
        %v4302 = vadd.f32 %v4006, %v4301
        %v4303 = vpop.f32.mrb[0].mxu0
        %4304 = vmatprep.mubr.bf16.mxu0 %v3842
        %4305 = vmatmul.mubr.bf16.gmra.mrb[0].mxu0 %v3841
        %v4306 = vpop.f32.mrb[0].mxu0
        %v4307 = vadd.f32 %v4006, %v4306
        %v4308 = vpop.f32.mrb[0].mxu0
        %v4309 = vpop.f32.mrb[0].mxu0
        %v4310 = vadd.f32 %v4006, %v4309
        %v4311 = vpop.f32.mrb[0].mxu0
        %4312 = vmatprep.mubr.bf16.mxu0 %v3844
        %4313 = vmatmul.mubr.bf16.gmra.mrb[0].mxu0 %v3843
        %v4314 = vpop.f32.mrb[0].mxu0
        %v4315 = vadd.f32 %v4006, %v4314
        %v4316 = vpop.f32.mrb[0].mxu0
        %v4317 = vpop.f32.mrb[0].mxu0
        %v4318 = vadd.f32 %v4006, %v4317
        %v4319 = vpop.f32.mrb[0].mxu0
        %4320 = vmatprep.mubr.bf16.mxu0 %v3846
        %4321 = vmatmul.mubr.bf16.gmra.mrb[0].mxu0 %v3845
        %v4322 = vpop.f32.mrb[0].mxu0
        %v4323 = vadd.f32 %v4006, %v4322
        %v4324 = vpop.f32.mrb[0].mxu0
        %v4325 = vpop.f32.mrb[0].mxu0
        %v4326 = vadd.f32 %v4006, %v4325
        %v4327 = vpop.f32.mrb[0].mxu0
        %4328 = vmatprep.mubr.bf16.mxu0 %v3848
        %4329 = vmatmul.mubr.bf16.gmra.mrb[0].mxu0 %v3847
        %v4330 = vpop.f32.mrb[0].mxu0
        %v4331 = vadd.f32 %v4006, %v4330
        %v4332 = vpop.f32.mrb[0].mxu0
        %v4333 = vpop.f32.mrb[0].mxu0
        %v4334 = vadd.f32 %v4006, %v4333
        %v4335 = vpop.f32.mrb[0].mxu0
        %4336 = vmatprep.mubr.bf16.mxu0 %v3850
        %4337 = vmatmul.mubr.bf16.gmra.mrb[0].mxu0 %v3849
        %v4338 = vpop.f32.mrb[0].mxu0
        %v4339 = vadd.f32 %v4006, %v4338
        %v4340 = vpop.f32.mrb[0].mxu0
        %v4341 = vpop.f32.mrb[0].mxu0
        %v4342 = vadd.f32 %v4006, %v4341
        %v4343 = vpop.f32.mrb[0].mxu0
        %4344 = vmatprep.mubr.bf16.mxu0 %v3852
        %4345 = vmatmul.mubr.bf16.gmra.mrb[0].mxu0 %v3851
        %v4346 = vpop.f32.mrb[0].mxu0
        %v4347 = vadd.f32 %v4006, %v4346
        %v4348 = vpop.f32.mrb[0].mxu0
        %v4349 = vpop.f32.mrb[0].mxu0
        %v4350 = vadd.f32 %v4006, %v4349
        %v4351 = vpop.f32.mrb[0].mxu0
        %4352 = vmatprep.mubr.bf16.mxu0 %v3854
        %4353 = vmatmul.mubr.bf16.gmra.mrb[0].mxu0 %v3853
        %v4354 = vpop.f32.mrb[0].mxu0
        %v4355 = vadd.f32 %v4006, %v4354
        %v4356 = vpop.f32.mrb[0].mxu0
        %v4357 = vpop.f32.mrb[0].mxu0
        %v4358 = vadd.f32 %v4006, %v4357
        %v4359 = vpop.f32.mrb[0].mxu0
        %4360 = vmatprep.mubr.bf16.mxu0 %v3856
        %4361 = vmatmul.mubr.bf16.gmra.mrb[0].mxu0 %v3855
        %v4362 = vpop.f32.mrb[0].mxu0
        %v4363 = vadd.f32 %v4006, %v4362
        %v4364 = vpop.f32.mrb[0].mxu0
        %v4365 = vpop.f32.mrb[0].mxu0
        %v4366 = vadd.f32 %v4006, %v4365
        %v4367 = vpop.f32.mrb[0].mxu0
        %4368 = vmatprep.mubr.bf16.mxu0 %v3858
        %4369 = vmatmul.mubr.bf16.gmra.mrb[0].mxu0 %v3857
        %v4370 = vpop.f32.mrb[0].mxu0
        %v4371 = vadd.f32 %v4006, %v4370
        %v4372 = vpop.f32.mrb[0].mxu0
        %v4373 = vpop.f32.mrb[0].mxu0
        %v4374 = vadd.f32 %v4006, %v4373
        %v4375 = vpop.f32.mrb[0].mxu0
        %4376 = vmatprep.mubr.bf16.mxu0 %v3860
        %4377 = vmatmul.mubr.bf16.gmra.mrb[0].mxu0 %v3859
        %v4378 = vpop.f32.mrb[0].mxu0
        %v4379 = vadd.f32 %v4006, %v4378
        %v4380 = vpop.f32.mrb[0].mxu0
        %v4381 = vpop.f32.mrb[0].mxu0
        %v4382 = vadd.f32 %v4006, %v4381
        %v4383 = vpop.f32.mrb[0].mxu0
        %4384 = vmatprep.mubr.bf16.mxu0 %v3862
        %4385 = vmatmul.mubr.bf16.gmra.mrb[0].mxu0 %v3861
        %v4386 = vpop.f32.mrb[0].mxu0
        %v4387 = vadd.f32 %v4006, %v4386
        %v4388 = vpop.f32.mrb[0].mxu0
        %v4389 = vpop.f32.mrb[0].mxu0
        %v4390 = vadd.f32 %v4006, %v4389
        %v4391 = vpop.f32.mrb[0].mxu0
        %4392 = vmatprep.mubr.bf16.mxu0 %v3864
        %4393 = vmatmul.mubr.bf16.gmra.mrb[0].mxu0 %v3863
        %v4394 = vpop.f32.mrb[0].mxu0
        %v4395 = vadd.f32 %v4006, %v4394
        %v4396 = vpop.f32.mrb[0].mxu0
        %v4397 = vpop.f32.mrb[0].mxu0
        %v4398 = vadd.f32 %v4006, %v4397
        %v4399 = vpop.f32.mrb[0].mxu0
        %4400 = vmatprep.mubr.bf16.mxu0 %v3866
        %4401 = vmatmul.mubr.bf16.gmra.mrb[0].mxu0 %v3865
        %v4402 = vpop.f32.mrb[0].mxu0
        %v4403 = vadd.f32 %v4006, %v4402
        %v4404 = vpop.f32.mrb[0].mxu0
        %v4405 = vpop.f32.mrb[0].mxu0
        %v4406 = vadd.f32 %v4006, %v4405
        %v4407 = vpop.f32.mrb[0].mxu0
        %4408 = vmatprep.mubr.bf16.mxu0 %v3868
        %4409 = vmatmul.mubr.bf16.gmra.mrb[0].mxu0 %v3867
        %v4410 = vpop.f32.mrb[0].mxu0
        %v4411 = vadd.f32 %v4006, %v4410
        %v4412 = vpop.f32.mrb[0].mxu0
        %v4413 = vpop.f32.mrb[0].mxu0
        %v4414 = vadd.f32 %v4006, %v4413
        %v4415 = vpop.f32.mrb[0].mxu0
        %4416 = vmatprep.mubr.bf16.mxu0 %v3870
        %4417 = vmatmul.mubr.bf16.gmra.mrb[0].mxu0 %v3869
        %v4418 = vpop.f32.mrb[0].mxu0
        %v4419 = vadd.f32 %v4006, %v4418
        %v4420 = vpop.f32.mrb[0].mxu0
        %v4421 = vpop.f32.mrb[0].mxu0
        %v4422 = vadd.f32 %v4006, %v4421
        %v4423 = vpop.f32.mrb[0].mxu0
        %4424 = vmatprep.mubr.bf16.mxu0 %v3872
        %4425 = vmatmul.mubr.bf16.gmra.mrb[0].mxu0 %v3871
        %v4426 = vpop.f32.mrb[0].mxu0
        %v4427 = vadd.f32 %v4006, %v4426
        %v4428 = vpop.f32.mrb[0].mxu0
        %v4429 = vpop.f32.mrb[0].mxu0
        %v4430 = vadd.f32 %v4006, %v4429
        %v4431 = vpop.f32.mrb[0].mxu0
        %4432 = vmatprep.mubr.bf16.mxu0 %v3874
        %4433 = vmatmul.mubr.bf16.gmra.mrb[0].mxu0 %v3873
        %v4434 = vpop.f32.mrb[0].mxu0
        %v4435 = vadd.f32 %v4006, %v4434
        %v4436 = vpop.f32.mrb[0].mxu0
        %v4437 = vpop.f32.mrb[0].mxu0
        %v4438 = vadd.f32 %v4006, %v4437
        %v4439 = vpop.f32.mrb[0].mxu0
        %4440 = vmatprep.mubr.bf16.mxu0 %v3876
        %4441 = vmatmul.mubr.bf16.gmra.mrb[0].mxu0 %v3875
        %v4442 = vpop.f32.mrb[0].mxu0
        %v4443 = vadd.f32 %v4006, %v4442
        %v4444 = vpop.f32.mrb[0].mxu0
        %v4445 = vpop.f32.mrb[0].mxu0
        %v4446 = vadd.f32 %v4006, %v4445
        %v4447 = vpop.f32.mrb[0].mxu0
        %4448 = vmatprep.mubr.bf16.mxu0 %v3878
        %4449 = vmatmul.mubr.bf16.gmra.mrb[0].mxu0 %v3877
        %v4450 = vpop.f32.mrb[0].mxu0
        %v4451 = vadd.f32 %v4006, %v4450
        %v4452 = vpop.f32.mrb[0].mxu0
        %v4453 = vpop.f32.mrb[0].mxu0
        %v4454 = vadd.f32 %v4006, %v4453
        %v4455 = vpop.f32.mrb[0].mxu0
        %4456 = vmatprep.mubr.bf16.mxu0 %v3880
        %4457 = vmatmul.mubr.bf16.gmra.mrb[0].mxu0 %v3879
        %v4458 = vpop.f32.mrb[0].mxu0
        %v4459 = vadd.f32 %v4006, %v4458
        %v4460 = vpop.f32.mrb[0].mxu0
        %v4461 = vpop.f32.mrb[0].mxu0
        %v4462 = vadd.f32 %v4006, %v4461
        %v4463 = vpop.f32.mrb[0].mxu0
        %4464 = vmatprep.mubr.bf16.mxu0 %v3882
        %4465 = vmatmul.mubr.bf16.gmra.mrb[0].mxu0 %v3881
        %v4466 = vpop.f32.mrb[0].mxu0
        %v4467 = vadd.f32 %v4006, %v4466
        %v4468 = vpop.f32.mrb[0].mxu0
        %v4469 = vpop.f32.mrb[0].mxu0
        %v4470 = vadd.f32 %v4006, %v4469
        %v4471 = vpop.f32.mrb[0].mxu0
        %4472 = vmatprep.mubr.bf16.mxu0 %v3884
        %4473 = vmatmul.mubr.bf16.gmra.mrb[0].mxu0 %v3883
        %v4474 = vpop.f32.mrb[0].mxu0
        %v4475 = vadd.f32 %v4006, %v4474
        %v4476 = vpop.f32.mrb[0].mxu0
        %v4477 = vpop.f32.mrb[0].mxu0
        %v4478 = vadd.f32 %v4006, %v4477
        %v4479 = vpop.f32.mrb[0].mxu0
        %4480 = vmatprep.mubr.bf16.mxu0 %v3886
        %4481 = vmatmul.mubr.bf16.gmra.mrb[0].mxu0 %v3885
        %v4482 = vpop.f32.mrb[0].mxu0
        %v4483 = vadd.f32 %v4006, %v4482
        %v4484 = vpop.f32.mrb[0].mxu0
        %v4485 = vpop.f32.mrb[0].mxu0
        %v4486 = vadd.f32 %v4006, %v4485
        %v4487 = vpop.f32.mrb[0].mxu0
        %4488 = vmatprep.mubr.bf16.mxu0 %v3888
        %4489 = vmatmul.mubr.bf16.gmra.mrb[0].mxu0 %v3887
        %v4490 = vpop.f32.mrb[0].mxu0
        %v4491 = vadd.f32 %v4006, %v4490
        %v4492 = vpop.f32.mrb[0].mxu0
        %v4493 = vpop.f32.mrb[0].mxu0
        %v4494 = vadd.f32 %v4006, %v4493
        %v4495 = vpop.f32.mrb[0].mxu0
        %4496 = vmatprep.mubr.bf16.mxu0 %v3890
        %4497 = vmatmul.mubr.bf16.gmra.mrb[0].mxu0 %v3889
        %v4498 = vpop.f32.mrb[0].mxu0
        %v4499 = vadd.f32 %v4006, %v4498
        %v4500 = vpop.f32.mrb[0].mxu0
        %v4501 = vpop.f32.mrb[0].mxu0
        %v4502 = vadd.f32 %v4006, %v4501
        %v4503 = vpop.f32.mrb[0].mxu0
        %4504 = vmatprep.mubr.bf16.mxu0 %v3892
        %4505 = vmatmul.mubr.bf16.gmra.mrb[0].mxu0 %v3891
        %v4506 = vpop.f32.mrb[0].mxu0
        %v4507 = vadd.f32 %v4006, %v4506
        %v4508 = vpop.f32.mrb[0].mxu0
        %v4509 = vpop.f32.mrb[0].mxu0
        %v4510 = vadd.f32 %v4006, %v4509
        %v4511 = vpop.f32.mrb[0].mxu0
        %4512 = vmatprep.mubr.bf16.mxu0 %v3894
        %4513 = vmatmul.mubr.bf16.gmra.mrb[0].mxu0 %v3893
        %v4514 = vpop.f32.mrb[0].mxu0
        %v4515 = vadd.f32 %v4006, %v4514
        %v4516 = vpop.f32.mrb[0].mxu0
        %v4517 = vpop.f32.mrb[0].mxu0
        %v4518 = vadd.f32 %v4006, %v4517
        %v4519 = vpop.f32.mrb[0].mxu0
        %4520 = vmatprep.mubr.bf16.mxu0 %v3896
        %4521 = vmatmul.mubr.bf16.gmra.mrb[0].mxu0 %v3895
        %v4522 = vpop.f32.mrb[0].mxu0
        %v4523 = vadd.f32 %v4006, %v4522
        %v4524 = vpop.f32.mrb[0].mxu0
        %v4525 = vpop.f32.mrb[0].mxu0
        %v4526 = vadd.f32 %v4006, %v4525
        %v4527 = vpop.f32.mrb[0].mxu0
        %4528 = vmatprep.mubr.bf16.mxu0 %v3898
        %4529 = vmatmul.mubr.bf16.gmra.mrb[0].mxu0 %v3897
        %v4530 = vpop.f32.mrb[0].mxu0
        %v4531 = vadd.f32 %v4006, %v4530
        %v4532 = vpop.f32.mrb[0].mxu0
        %v4533 = vpop.f32.mrb[0].mxu0
        %v4534 = vadd.f32 %v4006, %v4533
        %v4535 = vpop.f32.mrb[0].mxu0
        %4536 = vmatprep.mubr.bf16.mxu0 %v3900
        %4537 = vmatmul.mubr.bf16.gmra.mrb[0].mxu0 %v3899
        %v4538 = vpop.f32.mrb[0].mxu0
        %v4539 = vadd.f32 %v4006, %v4538
        %v4540 = vpop.f32.mrb[0].mxu0
        %v4541 = vpop.f32.mrb[0].mxu0
        %v4542 = vadd.f32 %v4006, %v4541
        %v4543 = vpop.f32.mrb[0].mxu0
        %4544 = vmatprep.mubr.bf16.mxu0 %v3902
        %4545 = vmatmul.mubr.bf16.gmra.mrb[0].mxu0 %v3901
        %v4546 = vpop.f32.mrb[0].mxu0
        %v4547 = vadd.f32 %v4006, %v4546
        %v4548 = vpop.f32.mrb[0].mxu0
        %v4549 = vpop.f32.mrb[0].mxu0
        %v4550 = vadd.f32 %v4006, %v4549
        %v4551 = vpop.f32.mrb[0].mxu0
        %4552 = vmatprep.mubr.bf16.mxu0 %v3904
        %4553 = vmatmul.mubr.bf16.gmra.mrb[0].mxu0 %v3903
        %v4554 = vpop.f32.mrb[0].mxu0
        %v4555 = vadd.f32 %v4006, %v4554
        %v4556 = vpop.f32.mrb[0].mxu0
        %v4557 = vpop.f32.mrb[0].mxu0
        %v4558 = vadd.f32 %v4006, %v4557
        %v4559 = vpop.f32.mrb[0].mxu0
        %4560 = vmatprep.mubr.bf16.mxu0 %v3906
        %4561 = vmatmul.mubr.bf16.gmra.mrb[0].mxu0 %v3905
        %v4562 = vpop.f32.mrb[0].mxu0
        %v4563 = vadd.f32 %v4006, %v4562
        %v4564 = vpop.f32.mrb[0].mxu0
        %v4565 = vpop.f32.mrb[0].mxu0
        %v4566 = vadd.f32 %v4006, %v4565
        %v4567 = vpop.f32.mrb[0].mxu0
        %4568 = vmatprep.mubr.bf16.mxu0 %v3908
        %4569 = vmatmul.mubr.bf16.gmra.mrb[0].mxu0 %v3907
        %v4570 = vpop.f32.mrb[0].mxu0
        %v4571 = vadd.f32 %v4006, %v4570
        %v4572 = vpop.f32.mrb[0].mxu0
        %v4573 = vpop.f32.mrb[0].mxu0
        %v4574 = vadd.f32 %v4006, %v4573
        %v4575 = vpop.f32.mrb[0].mxu0
        %4576 = vmatprep.mubr.bf16.mxu0 %v3910
        %4577 = vmatmul.mubr.bf16.gmra.mrb[0].mxu0 %v3909
        %v4578 = vpop.f32.mrb[0].mxu0
        %v4579 = vadd.f32 %v4006, %v4578
        %v4580 = vpop.f32.mrb[0].mxu0
        %v4581 = vpop.f32.mrb[0].mxu0
        %v4582 = vadd.f32 %v4006, %v4581
        %v4583 = vpop.f32.mrb[0].mxu0
        %4584 = vmatprep.mubr.bf16.mxu0 %v3912
        %4585 = vmatmul.mubr.bf16.gmra.mrb[0].mxu0 %v3911
        %v4586 = vpop.f32.mrb[0].mxu0
        %v4587 = vadd.f32 %v4006, %v4586
        %v4588 = vpop.f32.mrb[0].mxu0
        %v4589 = vpop.f32.mrb[0].mxu0
        %v4590 = vadd.f32 %v4006, %v4589
        %v4591 = vpop.f32.mrb[0].mxu0
        %4592 = vmatprep.mubr.bf16.mxu0 %v3914
        %4593 = vmatmul.mubr.bf16.gmra.mrb[0].mxu0 %v3913
        %v4594 = vpop.f32.mrb[0].mxu0
        %v4595 = vadd.f32 %v4006, %v4594
        %v4596 = vpop.f32.mrb[0].mxu0
        %v4597 = vpop.f32.mrb[0].mxu0
        %v4598 = vadd.f32 %v4006, %v4597
        %v4599 = vpop.f32.mrb[0].mxu0
        %4600 = vmatprep.mubr.bf16.mxu0 %v3916
        %4601 = vmatmul.mubr.bf16.gmra.mrb[0].mxu0 %v3915
        %v4602 = vpop.f32.mrb[0].mxu0
        %v4603 = vadd.f32 %v4006, %v4602
        %v4604 = vpop.f32.mrb[0].mxu0
        %v4605 = vpop.f32.mrb[0].mxu0
        %v4606 = vadd.f32 %v4006, %v4605
        %v4607 = vpop.f32.mrb[0].mxu0
        %4608 = vmatprep.mubr.bf16.mxu0 %v3918
        %4609 = vmatmul.mubr.bf16.gmra.mrb[0].mxu0 %v3917
        %v4610 = vpop.f32.mrb[0].mxu0
        %v4611 = vadd.f32 %v4006, %v4610
        %v4612 = vpop.f32.mrb[0].mxu0
        %v4613 = vpop.f32.mrb[0].mxu0
        %v4614 = vadd.f32 %v4006, %v4613
        %v4615 = vpop.f32.mrb[0].mxu0
        %4616 = vmatprep.mubr.bf16.mxu0 %v3920
        %4617 = vmatmul.mubr.bf16.gmra.mrb[0].mxu0 %v3919
        %v4618 = vpop.f32.mrb[0].mxu0
        %v4619 = vadd.f32 %v4006, %v4618
        %v4620 = vpop.f32.mrb[0].mxu0
        %v4621 = vpop.f32.mrb[0].mxu0
        %v4622 = vadd.f32 %v4006, %v4621
        %v4623 = vpop.f32.mrb[0].mxu0
        %4624 = vmatprep.mubr.bf16.mxu0 %v3922
        %4625 = vmatmul.mubr.bf16.gmra.mrb[0].mxu0 %v3921
        %v4626 = vpop.f32.mrb[0].mxu0
        %v4627 = vadd.f32 %v4006, %v4626
        %v4628 = vpop.f32.mrb[0].mxu0
        %v4629 = vpop.f32.mrb[0].mxu0
        %v4630 = vadd.f32 %v4006, %v4629
        %v4631 = vpop.f32.mrb[0].mxu0
        %4632 = vmatprep.mubr.bf16.mxu0 %v3924
        %4633 = vmatmul.mubr.bf16.gmra.mrb[0].mxu0 %v3923
        %v4634 = vpop.f32.mrb[0].mxu0
        %v4635 = vadd.f32 %v4006, %v4634
        %v4636 = vpop.f32.mrb[0].mxu0
        %v4637 = vpop.f32.mrb[0].mxu0
        %v4638 = vadd.f32 %v4006, %v4637
        %v4639 = vpop.f32.mrb[0].mxu0
        %4640 = vmatprep.mubr.bf16.mxu0 %v3926
        %4641 = vmatmul.mubr.bf16.gmra.mrb[0].mxu0 %v3925
        %v4642 = vpop.f32.mrb[0].mxu0
        %v4643 = vadd.f32 %v4006, %v4642
        %v4644 = vpop.f32.mrb[0].mxu0
        %v4645 = vpop.f32.mrb[0].mxu0
        %v4646 = vadd.f32 %v4006, %v4645
        %v4647 = vpop.f32.mrb[0].mxu0
        %4648 = vmatprep.mubr.bf16.mxu0 %v3928
        %4649 = vmatmul.mubr.bf16.gmra.mrb[0].mxu0 %v3927
        %v4650 = vpop.f32.mrb[0].mxu0
        %v4651 = vadd.f32 %v4006, %v4650
        %v4652 = vpop.f32.mrb[0].mxu0
        %v4653 = vpop.f32.mrb[0].mxu0
        %v4654 = vadd.f32 %v4006, %v4653
        %v4655 = vpop.f32.mrb[0].mxu0
        %4656 = vmatprep.mubr.bf16.mxu0 %v3930
        %4657 = vmatmul.mubr.bf16.gmra.mrb[0].mxu0 %v3929
        %v4658 = vpop.f32.mrb[0].mxu0
        %v4659 = vadd.f32 %v4006, %v4658
        %v4660 = vpop.f32.mrb[0].mxu0
        %v4661 = vpop.f32.mrb[0].mxu0
        %v4662 = vadd.f32 %v4006, %v4661
        %v4663 = vpop.f32.mrb[0].mxu0
        %4664 = vmatprep.mubr.bf16.mxu0 %v3932
        %4665 = vmatmul.mubr.bf16.gmra.mrb[0].mxu0 %v3931
        %v4666 = vpop.f32.mrb[0].mxu0
        %v4667 = vadd.f32 %v4006, %v4666
        %v4668 = vpop.f32.mrb[0].mxu0
        %v4669 = vpop.f32.mrb[0].mxu0
        %v4670 = vadd.f32 %v4006, %v4669
        %v4671 = vpop.f32.mrb[0].mxu0
        %4672 = vmatprep.mubr.bf16.mxu0 %v3934
        %4673 = vmatmul.mubr.bf16.gmra.mrb[0].mxu0 %v3933
        %v4674 = vpop.f32.mrb[0].mxu0
        %v4675 = vadd.f32 %v4006, %v4674
        %v4676 = vpop.f32.mrb[0].mxu0
        %v4677 = vpop.f32.mrb[0].mxu0
        %v4678 = vadd.f32 %v4006, %v4677
        %v4679 = vpop.f32.mrb[0].mxu0
        %4680 = vmatprep.mubr.bf16.mxu0 %v3936
        %4681 = vmatmul.mubr.bf16.gmra.mrb[0].mxu0 %v3935
        %v4682 = vpop.f32.mrb[0].mxu0
        %v4683 = vadd.f32 %v4006, %v4682
        %v4684 = vpop.f32.mrb[0].mxu0
        %v4685 = vpop.f32.mrb[0].mxu0
        %v4686 = vadd.f32 %v4006, %v4685
        %v4687 = vpop.f32.mrb[0].mxu0
        %4688 = vmatprep.mubr.bf16.mxu0 %v3938
        %4689 = vmatmul.mubr.bf16.gmra.mrb[0].mxu0 %v3937
        %v4690 = vpop.f32.mrb[0].mxu0
        %v4691 = vadd.f32 %v4006, %v4690
        %v4692 = vpop.f32.mrb[0].mxu0
        %v4693 = vpop.f32.mrb[0].mxu0
        %v4694 = vadd.f32 %v4006, %v4693
        %v4695 = vpop.f32.mrb[0].mxu0
        %4696 = vmatprep.mubr.bf16.mxu0 %v3940
        %4697 = vmatmul.mubr.bf16.gmra.mrb[0].mxu0 %v3939
        %v4698 = vpop.f32.mrb[0].mxu0
        %v4699 = vadd.f32 %v4006, %v4698
        %v4700 = vpop.f32.mrb[0].mxu0
        %v4701 = vpop.f32.mrb[0].mxu0
        %v4702 = vadd.f32 %v4006, %v4701
        %v4703 = vpop.f32.mrb[0].mxu0
        %4704 = vmatprep.mubr.bf16.mxu0 %v3942
        %4705 = vmatmul.mubr.bf16.gmra.mrb[0].mxu0 %v3941
        %v4706 = vpop.f32.mrb[0].mxu0
        %v4707 = vadd.f32 %v4006, %v4706
        %v4708 = vpop.f32.mrb[0].mxu0
        %v4709 = vpop.f32.mrb[0].mxu0
        %v4710 = vadd.f32 %v4006, %v4709
        %v4711 = vpop.f32.mrb[0].mxu0
        %4712 = vmatprep.mubr.bf16.mxu0 %v3944
        %4713 = vmatmul.mubr.bf16.gmra.mrb[0].mxu0 %v3943
        %v4714 = vpop.f32.mrb[0].mxu0
        %v4715 = vadd.f32 %v4006, %v4714
        %v4716 = vpop.f32.mrb[0].mxu0
        %v4717 = vpop.f32.mrb[0].mxu0
        %v4718 = vadd.f32 %v4006, %v4717
        %v4719 = vpop.f32.mrb[0].mxu0
        %4720 = vmatprep.mubr.bf16.mxu0 %v3946
        %4721 = vmatmul.mubr.bf16.gmra.mrb[0].mxu0 %v3945
        %v4722 = vpop.f32.mrb[0].mxu0
        %v4723 = vadd.f32 %v4006, %v4722
        %v4724 = vpop.f32.mrb[0].mxu0
        %v4725 = vpop.f32.mrb[0].mxu0
        %v4726 = vadd.f32 %v4006, %v4725
        %v4727 = vpop.f32.mrb[0].mxu0
        %4728 = vmatprep.mubr.bf16.mxu0 %v3948
        %4729 = vmatmul.mubr.bf16.gmra.mrb[0].mxu0 %v3947
        %v4730 = vpop.f32.mrb[0].mxu0
        %v4731 = vadd.f32 %v4006, %v4730
        %v4732 = vpop.f32.mrb[0].mxu0
        %v4733 = vpop.f32.mrb[0].mxu0
        %v4734 = vadd.f32 %v4006, %v4733
        %v4735 = vpop.f32.mrb[0].mxu0
        %4736 = vmatprep.mubr.bf16.mxu0 %v3950
        %4737 = vmatmul.mubr.bf16.gmra.mrb[0].mxu0 %v3949
        %v4738 = vpop.f32.mrb[0].mxu0
        %v4739 = vadd.f32 %v4006, %v4738
        %v4740 = vpop.f32.mrb[0].mxu0
        %v4741 = vpop.f32.mrb[0].mxu0
        %v4742 = vadd.f32 %v4006, %v4741
        %v4743 = vpop.f32.mrb[0].mxu0
        %4744 = vmatprep.mubr.bf16.mxu0 %v3952
        %4745 = vmatmul.mubr.bf16.gmra.mrb[0].mxu0 %v3951
        %v4746 = vpop.f32.mrb[0].mxu0
        %v4747 = vadd.f32 %v4006, %v4746
        %v4748 = vpop.f32.mrb[0].mxu0
        %v4749 = vpop.f32.mrb[0].mxu0
        %v4750 = vadd.f32 %v4006, %v4749
        %v4751 = vpop.f32.mrb[0].mxu0
        %4752 = vmatprep.mubr.bf16.mxu0 %v3954
        %4753 = vmatmul.mubr.bf16.gmra.mrb[0].mxu0 %v3953
        %v4754 = vpop.f32.mrb[0].mxu0
        %v4755 = vadd.f32 %v4006, %v4754
        %v4756 = vpop.f32.mrb[0].mxu0
        %v4757 = vpop.f32.mrb[0].mxu0
        %v4758 = vadd.f32 %v4006, %v4757
        %v4759 = vpop.f32.mrb[0].mxu0
        %4760 = vmatprep.mubr.bf16.mxu0 %v3956
        %4761 = vmatmul.mubr.bf16.gmra.mrb[0].mxu0 %v3955
        %v4762 = vpop.f32.mrb[0].mxu0
        %v4763 = vadd.f32 %v4006, %v4762
        %v4764 = vpop.f32.mrb[0].mxu0
        %v4765 = vpop.f32.mrb[0].mxu0
        %v4766 = vadd.f32 %v4006, %v4765
        %v4767 = vpop.f32.mrb[0].mxu0
        %4768 = vmatprep.mubr.bf16.mxu0 %v3958
        %4769 = vmatmul.mubr.bf16.gmra.mrb[0].mxu0 %v3957
        %v4770 = vpop.f32.mrb[0].mxu0
        %v4771 = vadd.f32 %v4006, %v4770
        %v4772 = vpop.f32.mrb[0].mxu0
        %v4773 = vpop.f32.mrb[0].mxu0
        %v4774 = vadd.f32 %v4006, %v4773
        %v4775 = vpop.f32.mrb[0].mxu0
        %4776 = vmatprep.mubr.bf16.mxu0 %v3960
        %4777 = vmatmul.mubr.bf16.gmra.mrb[0].mxu0 %v3959
        %v4778 = vpop.f32.mrb[0].mxu0
        %v4779 = vadd.f32 %v4006, %v4778
        %v4780 = vpop.f32.mrb[0].mxu0
        %v4781 = vpop.f32.mrb[0].mxu0
        %v4782 = vadd.f32 %v4006, %v4781
        %v4783 = vpop.f32.mrb[0].mxu0
        %4784 = vmatprep.mubr.bf16.mxu0 %v3962
        %4785 = vmatmul.mubr.bf16.gmra.mrb[0].mxu0 %v3961
        %v4786 = vpop.f32.mrb[0].mxu0
        %v4787 = vadd.f32 %v4006, %v4786
        %v4788 = vpop.f32.mrb[0].mxu0
        %v4789 = vpop.f32.mrb[0].mxu0
        %v4790 = vadd.f32 %v4006, %v4789
        %v4791 = vpop.f32.mrb[0].mxu0
        %4792 = vmatprep.mubr.bf16.mxu0 %v3964
        %4793 = vmatmul.mubr.bf16.gmra.mrb[0].mxu0 %v3963
        %v4794 = vpop.f32.mrb[0].mxu0
        %v4795 = vadd.f32 %v4006, %v4794
        %v4796 = vpop.f32.mrb[0].mxu0
        %v4797 = vpop.f32.mrb[0].mxu0
        %v4798 = vadd.f32 %v4006, %v4797
        %v4799 = vpop.f32.mrb[0].mxu0
        %4800 = vmatprep.mubr.bf16.mxu0 %v3966
        %4801 = vmatmul.mubr.bf16.gmra.mrb[0].mxu0 %v3965
        %v4802 = vpop.f32.mrb[0].mxu0
        %v4803 = vadd.f32 %v4006, %v4802
        %v4804 = vpop.f32.mrb[0].mxu0
        %v4805 = vpop.f32.mrb[0].mxu0
        %v4806 = vadd.f32 %v4006, %v4805
        %v4807 = vpop.f32.mrb[0].mxu0
        %4808 = vmatprep.mubr.bf16.mxu0 %v3968
        %4809 = vmatmul.mubr.bf16.gmra.mrb[0].mxu0 %v3967
        %v4810 = vpop.f32.mrb[0].mxu0
        %v4811 = vadd.f32 %v4006, %v4810
        %v4812 = vpop.f32.mrb[0].mxu0
        %v4813 = vpop.f32.mrb[0].mxu0
        %v4814 = vadd.f32 %v4006, %v4813
        %v4815 = vpop.f32.mrb[0].mxu0
        %4816 = vdwg.mxu0
        %v4817 = vmul.f32 %v4139, %v3121
        %v4818 = vmul.f32 %v4142, %v3124
        %v4819 = vmul.f32 %v4147, %v3129
        %v4820 = vmul.f32 %v4150, %v3132
        %v4821 = vmul.f32 %v4155, %v3137
        %v4822 = vmul.f32 %v4158, %v3140
        %v4823 = vmul.f32 %v4163, %v3145
        %v4824 = vmul.f32 %v4166, %v3148
        %v4825 = vmul.f32 %v4171, %v3153
        %v4826 = vmul.f32 %v4174, %v3156
        %v4827 = vmul.f32 %v4179, %v3161
        %v4828 = vmul.f32 %v4182, %v3164
        %v4829 = vmul.f32 %v4187, %v3169
        %v4830 = vmul.f32 %v4190, %v3172
        %v4831 = vmul.f32 %v4195, %v3177
        %v4832 = vmul.f32 %v4198, %v3180
        %v4833 = vmul.f32 %v4203, %v3185
        %v4834 = vmul.f32 %v4206, %v3188
        %v4835 = vmul.f32 %v4211, %v3193
        %v4836 = vmul.f32 %v4214, %v3196
        %v4837 = vmul.f32 %v4219, %v3201
        %v4838 = vmul.f32 %v4222, %v3204
        %v4839 = vmul.f32 %v4227, %v3209
        %v4840 = vmul.f32 %v4230, %v3212
        %v4841 = vmul.f32 %v4235, %v3217
        %v4842 = vmul.f32 %v4238, %v3220
        %v4843 = vmul.f32 %v4243, %v3225
        %v4844 = vmul.f32 %v4246, %v3228
        %v4845 = vmul.f32 %v4251, %v3233
        %v4846 = vmul.f32 %v4254, %v3236
        %v4847 = vmul.f32 %v4259, %v3241
        %v4848 = vmul.f32 %v4262, %v3244
        %v4849 = vmul.f32 %v4267, %v3249
        %v4850 = vmul.f32 %v4270, %v3252
        %v4851 = vmul.f32 %v4275, %v3257
        %v4852 = vmul.f32 %v4278, %v3260
        %v4853 = vmul.f32 %v4283, %v3265
        %v4854 = vmul.f32 %v4286, %v3268
        %v4855 = vmul.f32 %v4291, %v3273
        %v4856 = vmul.f32 %v4294, %v3276
        %v4857 = vmul.f32 %v4299, %v3281
        %v4858 = vmul.f32 %v4302, %v3284
        %v4859 = vmul.f32 %v4307, %v3289
        %v4860 = vmul.f32 %v4310, %v3292
        %v4861 = vmul.f32 %v4315, %v3297
        %v4862 = vmul.f32 %v4318, %v3300
        %v4863 = vmul.f32 %v4323, %v3305
        %v4864 = vmul.f32 %v4326, %v3308
        %v4865 = vmul.f32 %v4331, %v3313
        %v4866 = vmul.f32 %v4334, %v3316
        %v4867 = vmul.f32 %v4339, %v3321
        %v4868 = vmul.f32 %v4342, %v3324
        %v4869 = vmul.f32 %v4347, %v3329
        %v4870 = vmul.f32 %v4350, %v3332
        %v4871 = vmul.f32 %v4355, %v3337
        %v4872 = vmul.f32 %v4358, %v3340
        %v4873 = vmul.f32 %v4363, %v3345
        %v4874 = vmul.f32 %v4366, %v3348
        %v4875 = vmul.f32 %v4371, %v3353
        %v4876 = vmul.f32 %v4374, %v3356
        %v4877 = vmul.f32 %v4379, %v3361
        %v4878 = vmul.f32 %v4382, %v3364
        %v4879 = vmul.f32 %v4387, %v3369
        %v4880 = vmul.f32 %v4390, %v3372
        %v4881 = vmul.f32 %v4395, %v3377
        %v4882 = vmul.f32 %v4398, %v3380
        %v4883 = vmul.f32 %v4403, %v3385
        %v4884 = vmul.f32 %v4406, %v3388
        %v4885 = vmul.f32 %v4411, %v3393
        %v4886 = vmul.f32 %v4414, %v3396
        %v4887 = vmul.f32 %v4419, %v3401
        %v4888 = vmul.f32 %v4422, %v3404
        %v4889 = vmul.f32 %v4427, %v3409
        %v4890 = vmul.f32 %v4430, %v3412
        %v4891 = vmul.f32 %v4435, %v3417
        %v4892 = vmul.f32 %v4438, %v3420
        %v4893 = vmul.f32 %v4443, %v3425
        %v4894 = vmul.f32 %v4446, %v3428
        %v4895 = vmul.f32 %v4451, %v3433
        %v4896 = vmul.f32 %v4454, %v3436
        %v4897 = vmul.f32 %v4459, %v3441
        %v4898 = vmul.f32 %v4462, %v3444
        %v4899 = vmul.f32 %v4467, %v3449
        %v4900 = vmul.f32 %v4470, %v3452
        %v4901 = vmul.f32 %v4475, %v3457
        %v4902 = vmul.f32 %v4478, %v3460
        %v4903 = vmul.f32 %v4483, %v3465
        %v4904 = vmul.f32 %v4486, %v3468
        %v4905 = vmul.f32 %v4491, %v3473
        %v4906 = vmul.f32 %v4494, %v3476
        %v4907 = vmul.f32 %v4499, %v3481
        %v4908 = vmul.f32 %v4502, %v3484
        %v4909 = vmul.f32 %v4507, %v3489
        %v4910 = vmul.f32 %v4510, %v3492
        %v4911 = vmul.f32 %v4515, %v3497
        %v4912 = vmul.f32 %v4518, %v3500
        %v4913 = vmul.f32 %v4523, %v3505
        %v4914 = vmul.f32 %v4526, %v3508
        %v4915 = vmul.f32 %v4531, %v3513
        %v4916 = vmul.f32 %v4534, %v3516
        %v4917 = vmul.f32 %v4539, %v3521
        %v4918 = vmul.f32 %v4542, %v3524
        %v4919 = vmul.f32 %v4547, %v3529
        %v4920 = vmul.f32 %v4550, %v3532
        %v4921 = vmul.f32 %v4555, %v3537
        %v4922 = vmul.f32 %v4558, %v3540
        %v4923 = vmul.f32 %v4563, %v3545
        %v4924 = vmul.f32 %v4566, %v3548
        %v4925 = vmul.f32 %v4571, %v3553
        %v4926 = vmul.f32 %v4574, %v3556
        %v4927 = vmul.f32 %v4579, %v3561
        %v4928 = vmul.f32 %v4582, %v3564
        %v4929 = vmul.f32 %v4587, %v3569
        %v4930 = vmul.f32 %v4590, %v3572
        %v4931 = vmul.f32 %v4595, %v3577
        %v4932 = vmul.f32 %v4598, %v3580
        %v4933 = vmul.f32 %v4603, %v3585
        %v4934 = vmul.f32 %v4606, %v3588
        %v4935 = vmul.f32 %v4611, %v3593
        %v4936 = vmul.f32 %v4614, %v3596
        %v4937 = vmul.f32 %v4619, %v3601
        %v4938 = vmul.f32 %v4622, %v3604
        %v4939 = vmul.f32 %v4627, %v3609
        %v4940 = vmul.f32 %v4630, %v3612
        %v4941 = vmul.f32 %v4635, %v3617
        %v4942 = vmul.f32 %v4638, %v3620
        %v4943 = vmul.f32 %v4643, %v3625
        %v4944 = vmul.f32 %v4646, %v3628
        %v4945 = vmul.f32 %v4651, %v3633
        %v4946 = vmul.f32 %v4654, %v3636
        %v4947 = vmul.f32 %v4659, %v3641
        %v4948 = vmul.f32 %v4662, %v3644
        %v4949 = vmul.f32 %v4667, %v3649
        %v4950 = vmul.f32 %v4670, %v3652
        %v4951 = vmul.f32 %v4675, %v3657
        %v4952 = vmul.f32 %v4678, %v3660
        %v4953 = vmul.f32 %v4683, %v3665
        %v4954 = vmul.f32 %v4686, %v3668
        %v4955 = vmul.f32 %v4691, %v3673
        %v4956 = vmul.f32 %v4694, %v3676
        %v4957 = vmul.f32 %v4699, %v3681
        %v4958 = vmul.f32 %v4702, %v3684
        %v4959 = vmul.f32 %v4707, %v3689
        %v4960 = vmul.f32 %v4710, %v3692
        %v4961 = vmul.f32 %v4715, %v3697
        %v4962 = vmul.f32 %v4718, %v3700
        %v4963 = vmul.f32 %v4723, %v3705
        %v4964 = vmul.f32 %v4726, %v3708
        %v4965 = vmul.f32 %v4731, %v3713
        %v4966 = vmul.f32 %v4734, %v3716
        %v4967 = vmul.f32 %v4739, %v3721
        %v4968 = vmul.f32 %v4742, %v3724
        %v4969 = vmul.f32 %v4747, %v3729
        %v4970 = vmul.f32 %v4750, %v3732
        %v4971 = vmul.f32 %v4755, %v3737
        %v4972 = vmul.f32 %v4758, %v3740
        %v4973 = vmul.f32 %v4763, %v3745
        %v4974 = vmul.f32 %v4766, %v3748
        %v4975 = vmul.f32 %v4771, %v3753
        %v4976 = vmul.f32 %v4774, %v3756
        %v4977 = vmul.f32 %v4779, %v3761
        %v4978 = vmul.f32 %v4782, %v3764
        %v4979 = vmul.f32 %v4787, %v3769
        %v4980 = vmul.f32 %v4790, %v3772
        %v4981 = vmul.f32 %v4795, %v3777
        %v4982 = vmul.f32 %v4798, %v3780
        %v4983 = vmul.f32 %v4803, %v3785
        %v4984 = vmul.f32 %v4806, %v3788
        %v4985 = vmul.f32 %v4811, %v3793
        %v4986 = vmul.f32 %v4814, %v3796
        %4987 = vadd.xlane.f32.xlu0 %v4817
        %v4988 = vpop.xlane.xlu0 %4987
        %4989 = vadd.xlane.f32.xlu0 %v4818
        %v4990 = vpop.xlane.xlu0 %4989
        %4991 = vadd.xlane.f32.xlu0 %v4819
        %v4992 = vpop.xlane.xlu0 %4991
        %4993 = vadd.xlane.f32.xlu0 %v4820
        %v4994 = vpop.xlane.xlu0 %4993
        %4995 = vadd.xlane.f32.xlu0 %v4821
        %v4996 = vpop.xlane.xlu0 %4995
        %4997 = vadd.xlane.f32.xlu0 %v4822
        %v4998 = vpop.xlane.xlu0 %4997
        %4999 = vadd.xlane.f32.xlu0 %v4823
        %v5000 = vpop.xlane.xlu0 %4999
        %5001 = vadd.xlane.f32.xlu0 %v4824
        %v5002 = vpop.xlane.xlu0 %5001
        %5003 = vadd.xlane.f32.xlu0 %v4825
        %v5004 = vpop.xlane.xlu0 %5003
        %5005 = vadd.xlane.f32.xlu0 %v4826
        %v5006 = vpop.xlane.xlu0 %5005
        %5007 = vadd.xlane.f32.xlu0 %v4827
        %v5008 = vpop.xlane.xlu0 %5007
        %5009 = vadd.xlane.f32.xlu0 %v4828
        %v5010 = vpop.xlane.xlu0 %5009
        %5011 = vadd.xlane.f32.xlu0 %v4829
        %v5012 = vpop.xlane.xlu0 %5011
        %5013 = vadd.xlane.f32.xlu0 %v4830
        %v5014 = vpop.xlane.xlu0 %5013
        %5015 = vadd.xlane.f32.xlu0 %v4831
        %v5016 = vpop.xlane.xlu0 %5015
        %5017 = vadd.xlane.f32.xlu0 %v4832
        %v5018 = vpop.xlane.xlu0 %5017
        %5019 = vadd.xlane.f32.xlu0 %v4833
        %v5020 = vpop.xlane.xlu0 %5019
        %5021 = vadd.xlane.f32.xlu0 %v4834
        %v5022 = vpop.xlane.xlu0 %5021
        %5023 = vadd.xlane.f32.xlu0 %v4835
        %v5024 = vpop.xlane.xlu0 %5023
        %5025 = vadd.xlane.f32.xlu0 %v4836
        %v5026 = vpop.xlane.xlu0 %5025
        %5027 = vadd.xlane.f32.xlu0 %v4837
        %v5028 = vpop.xlane.xlu0 %5027
        %5029 = vadd.xlane.f32.xlu0 %v4838
        %v5030 = vpop.xlane.xlu0 %5029
        %5031 = vadd.xlane.f32.xlu0 %v4839
        %v5032 = vpop.xlane.xlu0 %5031
        %5033 = vadd.xlane.f32.xlu0 %v4840
        %v5034 = vpop.xlane.xlu0 %5033
        %5035 = vadd.xlane.f32.xlu0 %v4841
        %v5036 = vpop.xlane.xlu0 %5035
        %5037 = vadd.xlane.f32.xlu0 %v4842
        %v5038 = vpop.xlane.xlu0 %5037
        %5039 = vadd.xlane.f32.xlu0 %v4843
        %v5040 = vpop.xlane.xlu0 %5039
        %5041 = vadd.xlane.f32.xlu0 %v4844
        %v5042 = vpop.xlane.xlu0 %5041
        %5043 = vadd.xlane.f32.xlu0 %v4845
        %v5044 = vpop.xlane.xlu0 %5043
        %5045 = vadd.xlane.f32.xlu0 %v4846
        %v5046 = vpop.xlane.xlu0 %5045
        %5047 = vadd.xlane.f32.xlu0 %v4847
        %v5048 = vpop.xlane.xlu0 %5047
        %5049 = vadd.xlane.f32.xlu0 %v4848
        %v5050 = vpop.xlane.xlu0 %5049
        %5051 = vadd.xlane.f32.xlu0 %v4849
        %v5052 = vpop.xlane.xlu0 %5051
        %5053 = vadd.xlane.f32.xlu0 %v4850
        %v5054 = vpop.xlane.xlu0 %5053
        %5055 = vadd.xlane.f32.xlu0 %v4851
        %v5056 = vpop.xlane.xlu0 %5055
        %5057 = vadd.xlane.f32.xlu0 %v4852
        %v5058 = vpop.xlane.xlu0 %5057
        %5059 = vadd.xlane.f32.xlu0 %v4853
        %v5060 = vpop.xlane.xlu0 %5059
        %5061 = vadd.xlane.f32.xlu0 %v4854
        %v5062 = vpop.xlane.xlu0 %5061
        %5063 = vadd.xlane.f32.xlu0 %v4855
        %v5064 = vpop.xlane.xlu0 %5063
        %5065 = vadd.xlane.f32.xlu0 %v4856
        %v5066 = vpop.xlane.xlu0 %5065
        %5067 = vadd.xlane.f32.xlu0 %v4857
        %v5068 = vpop.xlane.xlu0 %5067
        %5069 = vadd.xlane.f32.xlu0 %v4858
        %v5070 = vpop.xlane.xlu0 %5069
        %5071 = vadd.xlane.f32.xlu0 %v4859
        %v5072 = vpop.xlane.xlu0 %5071
        %5073 = vadd.xlane.f32.xlu0 %v4860
        %v5074 = vpop.xlane.xlu0 %5073
        %5075 = vadd.xlane.f32.xlu0 %v4861
        %v5076 = vpop.xlane.xlu0 %5075
        %5077 = vadd.xlane.f32.xlu0 %v4862
        %v5078 = vpop.xlane.xlu0 %5077
        %5079 = vadd.xlane.f32.xlu0 %v4863
        %v5080 = vpop.xlane.xlu0 %5079
        %5081 = vadd.xlane.f32.xlu0 %v4864
        %v5082 = vpop.xlane.xlu0 %5081
        %5083 = vadd.xlane.f32.xlu0 %v4865
        %v5084 = vpop.xlane.xlu0 %5083
        %5085 = vadd.xlane.f32.xlu0 %v4866
        %v5086 = vpop.xlane.xlu0 %5085
        %5087 = vadd.xlane.f32.xlu0 %v4867
        %v5088 = vpop.xlane.xlu0 %5087
        %5089 = vadd.xlane.f32.xlu0 %v4868
        %v5090 = vpop.xlane.xlu0 %5089
        %5091 = vadd.xlane.f32.xlu0 %v4869
        %v5092 = vpop.xlane.xlu0 %5091
        %5093 = vadd.xlane.f32.xlu0 %v4870
        %v5094 = vpop.xlane.xlu0 %5093
        %5095 = vadd.xlane.f32.xlu0 %v4871
        %v5096 = vpop.xlane.xlu0 %5095
        %5097 = vadd.xlane.f32.xlu0 %v4872
        %v5098 = vpop.xlane.xlu0 %5097
        %5099 = vadd.xlane.f32.xlu0 %v4873
        %v5100 = vpop.xlane.xlu0 %5099
        %5101 = vadd.xlane.f32.xlu0 %v4874
        %v5102 = vpop.xlane.xlu0 %5101
        %5103 = vadd.xlane.f32.xlu0 %v4875
        %v5104 = vpop.xlane.xlu0 %5103
        %5105 = vadd.xlane.f32.xlu0 %v4876
        %v5106 = vpop.xlane.xlu0 %5105
        %5107 = vadd.xlane.f32.xlu0 %v4877
        %v5108 = vpop.xlane.xlu0 %5107
        %5109 = vadd.xlane.f32.xlu0 %v4878
        %v5110 = vpop.xlane.xlu0 %5109
        %5111 = vadd.xlane.f32.xlu0 %v4879
        %v5112 = vpop.xlane.xlu0 %5111
        %5113 = vadd.xlane.f32.xlu0 %v4880
        %v5114 = vpop.xlane.xlu0 %5113
        %5115 = vadd.xlane.f32.xlu0 %v4881
        %v5116 = vpop.xlane.xlu0 %5115
        %5117 = vadd.xlane.f32.xlu0 %v4882
        %v5118 = vpop.xlane.xlu0 %5117
        %5119 = vadd.xlane.f32.xlu0 %v4883
        %v5120 = vpop.xlane.xlu0 %5119
        %5121 = vadd.xlane.f32.xlu0 %v4884
        %v5122 = vpop.xlane.xlu0 %5121
        %5123 = vadd.xlane.f32.xlu0 %v4885
        %v5124 = vpop.xlane.xlu0 %5123
        %5125 = vadd.xlane.f32.xlu0 %v4886
        %v5126 = vpop.xlane.xlu0 %5125
        %5127 = vadd.xlane.f32.xlu0 %v4887
        %v5128 = vpop.xlane.xlu0 %5127
        %5129 = vadd.xlane.f32.xlu0 %v4888
        %v5130 = vpop.xlane.xlu0 %5129
        %5131 = vadd.xlane.f32.xlu0 %v4889
        %v5132 = vpop.xlane.xlu0 %5131
        %5133 = vadd.xlane.f32.xlu0 %v4890
        %v5134 = vpop.xlane.xlu0 %5133
        %5135 = vadd.xlane.f32.xlu0 %v4891
        %v5136 = vpop.xlane.xlu0 %5135
        %5137 = vadd.xlane.f32.xlu0 %v4892
        %v5138 = vpop.xlane.xlu0 %5137
        %5139 = vadd.xlane.f32.xlu0 %v4893
        %v5140 = vpop.xlane.xlu0 %5139
        %5141 = vadd.xlane.f32.xlu0 %v4894
        %v5142 = vpop.xlane.xlu0 %5141
        %5143 = vadd.xlane.f32.xlu0 %v4895
        %v5144 = vpop.xlane.xlu0 %5143
        %5145 = vadd.xlane.f32.xlu0 %v4896
        %v5146 = vpop.xlane.xlu0 %5145
        %5147 = vadd.xlane.f32.xlu0 %v4897
        %v5148 = vpop.xlane.xlu0 %5147
        %5149 = vadd.xlane.f32.xlu0 %v4898
        %v5150 = vpop.xlane.xlu0 %5149
        %5151 = vadd.xlane.f32.xlu0 %v4899
        %v5152 = vpop.xlane.xlu0 %5151
        %5153 = vadd.xlane.f32.xlu0 %v4900
        %v5154 = vpop.xlane.xlu0 %5153
        %5155 = vadd.xlane.f32.xlu0 %v4901
        %v5156 = vpop.xlane.xlu0 %5155
        %5157 = vadd.xlane.f32.xlu0 %v4902
        %v5158 = vpop.xlane.xlu0 %5157
        %5159 = vadd.xlane.f32.xlu0 %v4903
        %v5160 = vpop.xlane.xlu0 %5159
        %5161 = vadd.xlane.f32.xlu0 %v4904
        %v5162 = vpop.xlane.xlu0 %5161
        %5163 = vadd.xlane.f32.xlu0 %v4905
        %v5164 = vpop.xlane.xlu0 %5163
        %5165 = vadd.xlane.f32.xlu0 %v4906
        %v5166 = vpop.xlane.xlu0 %5165
        %5167 = vadd.xlane.f32.xlu0 %v4907
        %v5168 = vpop.xlane.xlu0 %5167
        %5169 = vadd.xlane.f32.xlu0 %v4908
        %v5170 = vpop.xlane.xlu0 %5169
        %5171 = vadd.xlane.f32.xlu0 %v4909
        %v5172 = vpop.xlane.xlu0 %5171
        %5173 = vadd.xlane.f32.xlu0 %v4910
        %v5174 = vpop.xlane.xlu0 %5173
        %5175 = vadd.xlane.f32.xlu0 %v4911
        %v5176 = vpop.xlane.xlu0 %5175
        %5177 = vadd.xlane.f32.xlu0 %v4912
        %v5178 = vpop.xlane.xlu0 %5177
        %5179 = vadd.xlane.f32.xlu0 %v4913
        %v5180 = vpop.xlane.xlu0 %5179
        %5181 = vadd.xlane.f32.xlu0 %v4914
        %v5182 = vpop.xlane.xlu0 %5181
        %5183 = vadd.xlane.f32.xlu0 %v4915
        %v5184 = vpop.xlane.xlu0 %5183
        %5185 = vadd.xlane.f32.xlu0 %v4916
        %v5186 = vpop.xlane.xlu0 %5185
        %5187 = vadd.xlane.f32.xlu0 %v4917
        %v5188 = vpop.xlane.xlu0 %5187
        %5189 = vadd.xlane.f32.xlu0 %v4918
        %v5190 = vpop.xlane.xlu0 %5189
        %5191 = vadd.xlane.f32.xlu0 %v4919
        %v5192 = vpop.xlane.xlu0 %5191
        %5193 = vadd.xlane.f32.xlu0 %v4920
        %v5194 = vpop.xlane.xlu0 %5193
        %5195 = vadd.xlane.f32.xlu0 %v4921
        %v5196 = vpop.xlane.xlu0 %5195
        %5197 = vadd.xlane.f32.xlu0 %v4922
        %v5198 = vpop.xlane.xlu0 %5197
        %5199 = vadd.xlane.f32.xlu0 %v4923
        %v5200 = vpop.xlane.xlu0 %5199
        %5201 = vadd.xlane.f32.xlu0 %v4924
        %v5202 = vpop.xlane.xlu0 %5201
        %5203 = vadd.xlane.f32.xlu0 %v4925
        %v5204 = vpop.xlane.xlu0 %5203
        %5205 = vadd.xlane.f32.xlu0 %v4926
        %v5206 = vpop.xlane.xlu0 %5205
        %5207 = vadd.xlane.f32.xlu0 %v4927
        %v5208 = vpop.xlane.xlu0 %5207
        %5209 = vadd.xlane.f32.xlu0 %v4928
        %v5210 = vpop.xlane.xlu0 %5209
        %5211 = vadd.xlane.f32.xlu0 %v4929
        %v5212 = vpop.xlane.xlu0 %5211
        %5213 = vadd.xlane.f32.xlu0 %v4930
        %v5214 = vpop.xlane.xlu0 %5213
        %5215 = vadd.xlane.f32.xlu0 %v4931
        %v5216 = vpop.xlane.xlu0 %5215
        %5217 = vadd.xlane.f32.xlu0 %v4932
        %v5218 = vpop.xlane.xlu0 %5217
        %5219 = vadd.xlane.f32.xlu0 %v4933
        %v5220 = vpop.xlane.xlu0 %5219
        %5221 = vadd.xlane.f32.xlu0 %v4934
        %v5222 = vpop.xlane.xlu0 %5221
        %5223 = vadd.xlane.f32.xlu0 %v4935
        %v5224 = vpop.xlane.xlu0 %5223
        %5225 = vadd.xlane.f32.xlu0 %v4936
        %v5226 = vpop.xlane.xlu0 %5225
        %5227 = vadd.xlane.f32.xlu0 %v4937
        %v5228 = vpop.xlane.xlu0 %5227
        %5229 = vadd.xlane.f32.xlu0 %v4938
        %v5230 = vpop.xlane.xlu0 %5229
        %5231 = vadd.xlane.f32.xlu0 %v4939
        %v5232 = vpop.xlane.xlu0 %5231
        %5233 = vadd.xlane.f32.xlu0 %v4940
        %v5234 = vpop.xlane.xlu0 %5233
        %5235 = vadd.xlane.f32.xlu0 %v4941
        %v5236 = vpop.xlane.xlu0 %5235
        %5237 = vadd.xlane.f32.xlu0 %v4942
        %v5238 = vpop.xlane.xlu0 %5237
        %5239 = vadd.xlane.f32.xlu0 %v4943
        %v5240 = vpop.xlane.xlu0 %5239
        %5241 = vadd.xlane.f32.xlu0 %v4944
        %v5242 = vpop.xlane.xlu0 %5241
        %5243 = vadd.xlane.f32.xlu0 %v4945
        %v5244 = vpop.xlane.xlu0 %5243
        %5245 = vadd.xlane.f32.xlu0 %v4946
        %v5246 = vpop.xlane.xlu0 %5245
        %5247 = vadd.xlane.f32.xlu0 %v4947
        %v5248 = vpop.xlane.xlu0 %5247
        %5249 = vadd.xlane.f32.xlu0 %v4948
        %v5250 = vpop.xlane.xlu0 %5249
        %5251 = vadd.xlane.f32.xlu0 %v4949
        %v5252 = vpop.xlane.xlu0 %5251
        %5253 = vadd.xlane.f32.xlu0 %v4950
        %v5254 = vpop.xlane.xlu0 %5253
        %5255 = vadd.xlane.f32.xlu0 %v4951
        %v5256 = vpop.xlane.xlu0 %5255
        %5257 = vadd.xlane.f32.xlu0 %v4952
        %v5258 = vpop.xlane.xlu0 %5257
        %5259 = vadd.xlane.f32.xlu0 %v4953
        %v5260 = vpop.xlane.xlu0 %5259
        %5261 = vadd.xlane.f32.xlu0 %v4954
        %v5262 = vpop.xlane.xlu0 %5261
        %5263 = vadd.xlane.f32.xlu0 %v4955
        %v5264 = vpop.xlane.xlu0 %5263
        %5265 = vadd.xlane.f32.xlu0 %v4956
        %v5266 = vpop.xlane.xlu0 %5265
        %5267 = vadd.xlane.f32.xlu0 %v4957
        %v5268 = vpop.xlane.xlu0 %5267
        %5269 = vadd.xlane.f32.xlu0 %v4958
        %v5270 = vpop.xlane.xlu0 %5269
        %5271 = vadd.xlane.f32.xlu0 %v4959
        %v5272 = vpop.xlane.xlu0 %5271
        %5273 = vadd.xlane.f32.xlu0 %v4960
        %v5274 = vpop.xlane.xlu0 %5273
        %5275 = vadd.xlane.f32.xlu0 %v4961
        %v5276 = vpop.xlane.xlu0 %5275
        %5277 = vadd.xlane.f32.xlu0 %v4962
        %v5278 = vpop.xlane.xlu0 %5277
        %5279 = vadd.xlane.f32.xlu0 %v4963
        %v5280 = vpop.xlane.xlu0 %5279
        %5281 = vadd.xlane.f32.xlu0 %v4964
        %v5282 = vpop.xlane.xlu0 %5281
        %5283 = vadd.xlane.f32.xlu0 %v4965
        %v5284 = vpop.xlane.xlu0 %5283
        %5285 = vadd.xlane.f32.xlu0 %v4966
        %v5286 = vpop.xlane.xlu0 %5285
        %5287 = vadd.xlane.f32.xlu0 %v4967
        %v5288 = vpop.xlane.xlu0 %5287
        %5289 = vadd.xlane.f32.xlu0 %v4968
        %v5290 = vpop.xlane.xlu0 %5289
        %5291 = vadd.xlane.f32.xlu0 %v4969
        %v5292 = vpop.xlane.xlu0 %5291
        %5293 = vadd.xlane.f32.xlu0 %v4970
        %v5294 = vpop.xlane.xlu0 %5293
        %5295 = vadd.xlane.f32.xlu0 %v4971
        %v5296 = vpop.xlane.xlu0 %5295
        %5297 = vadd.xlane.f32.xlu0 %v4972
        %v5298 = vpop.xlane.xlu0 %5297
        %5299 = vadd.xlane.f32.xlu0 %v4973
        %v5300 = vpop.xlane.xlu0 %5299
        %5301 = vadd.xlane.f32.xlu0 %v4974
        %v5302 = vpop.xlane.xlu0 %5301
        %5303 = vadd.xlane.f32.xlu0 %v4975
        %v5304 = vpop.xlane.xlu0 %5303
        %5305 = vadd.xlane.f32.xlu0 %v4976
        %v5306 = vpop.xlane.xlu0 %5305
        %5307 = vadd.xlane.f32.xlu0 %v4977
        %v5308 = vpop.xlane.xlu0 %5307
        %5309 = vadd.xlane.f32.xlu0 %v4978
        %v5310 = vpop.xlane.xlu0 %5309
        %5311 = vadd.xlane.f32.xlu0 %v4979
        %v5312 = vpop.xlane.xlu0 %5311
        %5313 = vadd.xlane.f32.xlu0 %v4980
        %v5314 = vpop.xlane.xlu0 %5313
        %5315 = vadd.xlane.f32.xlu0 %v4981
        %v5316 = vpop.xlane.xlu0 %5315
        %5317 = vadd.xlane.f32.xlu0 %v4982
        %v5318 = vpop.xlane.xlu0 %5317
        %5319 = vadd.xlane.f32.xlu0 %v4983
        %v5320 = vpop.xlane.xlu0 %5319
        %5321 = vadd.xlane.f32.xlu0 %v4984
        %v5322 = vpop.xlane.xlu0 %5321
        %5323 = vadd.xlane.f32.xlu0 %v4985
        %v5324 = vpop.xlane.xlu0 %5323
        %5325 = vadd.xlane.f32.xlu0 %v4986
        %v5326 = vpop.xlane.xlu0 %5325
        %v5327 = vxor.u32 %v4988, 2147483648
        %v5328 = vxor.u32 %v4990, 2147483648
        %v5329 = vxor.u32 %v4992, 2147483648
        %v5330 = vxor.u32 %v4994, 2147483648
        %v5331 = vxor.u32 %v4996, 2147483648
        %v5332 = vxor.u32 %v4998, 2147483648
        %v5333 = vxor.u32 %v5000, 2147483648
        %v5334 = vxor.u32 %v5002, 2147483648
        %v5335 = vxor.u32 %v5004, 2147483648
        %v5336 = vxor.u32 %v5006, 2147483648
        %v5337 = vxor.u32 %v5008, 2147483648
        %v5338 = vxor.u32 %v5010, 2147483648
        %v5339 = vxor.u32 %v5012, 2147483648
        %v5340 = vxor.u32 %v5014, 2147483648
        %v5341 = vxor.u32 %v5016, 2147483648
        %v5342 = vxor.u32 %v5018, 2147483648
        %v5343 = vxor.u32 %v5020, 2147483648
        %v5344 = vxor.u32 %v5022, 2147483648
        %v5345 = vxor.u32 %v5024, 2147483648
        %v5346 = vxor.u32 %v5026, 2147483648
        %v5347 = vxor.u32 %v5028, 2147483648
        %v5348 = vxor.u32 %v5030, 2147483648
        %v5349 = vxor.u32 %v5032, 2147483648
        %v5350 = vxor.u32 %v5034, 2147483648
        %v5351 = vxor.u32 %v5036, 2147483648
        %v5352 = vxor.u32 %v5038, 2147483648
        %v5353 = vxor.u32 %v5040, 2147483648
        %v5354 = vxor.u32 %v5042, 2147483648
        %v5355 = vxor.u32 %v5044, 2147483648
        %v5356 = vxor.u32 %v5046, 2147483648
        %v5357 = vxor.u32 %v5048, 2147483648
        %v5358 = vxor.u32 %v5050, 2147483648
        %v5359 = vxor.u32 %v5052, 2147483648
        %v5360 = vxor.u32 %v5054, 2147483648
        %v5361 = vxor.u32 %v5056, 2147483648
        %v5362 = vxor.u32 %v5058, 2147483648
        %v5363 = vxor.u32 %v5060, 2147483648
        %v5364 = vxor.u32 %v5062, 2147483648
        %v5365 = vxor.u32 %v5064, 2147483648
        %v5366 = vxor.u32 %v5066, 2147483648
        %v5367 = vxor.u32 %v5068, 2147483648
        %v5368 = vxor.u32 %v5070, 2147483648
        %v5369 = vxor.u32 %v5072, 2147483648
        %v5370 = vxor.u32 %v5074, 2147483648
        %v5371 = vxor.u32 %v5076, 2147483648
        %v5372 = vxor.u32 %v5078, 2147483648
        %v5373 = vxor.u32 %v5080, 2147483648
        %v5374 = vxor.u32 %v5082, 2147483648
        %v5375 = vxor.u32 %v5084, 2147483648
        %v5376 = vxor.u32 %v5086, 2147483648
        %v5377 = vxor.u32 %v5088, 2147483648
        %v5378 = vxor.u32 %v5090, 2147483648
        %v5379 = vxor.u32 %v5092, 2147483648
        %v5380 = vxor.u32 %v5094, 2147483648
        %v5381 = vxor.u32 %v5096, 2147483648
        %v5382 = vxor.u32 %v5098, 2147483648
        %v5383 = vxor.u32 %v5100, 2147483648
        %v5384 = vxor.u32 %v5102, 2147483648
        %v5385 = vxor.u32 %v5104, 2147483648
        %v5386 = vxor.u32 %v5106, 2147483648
        %v5387 = vxor.u32 %v5108, 2147483648
        %v5388 = vxor.u32 %v5110, 2147483648
        %v5389 = vxor.u32 %v5112, 2147483648
        %v5390 = vxor.u32 %v5114, 2147483648
        %v5391 = vxor.u32 %v5116, 2147483648
        %v5392 = vxor.u32 %v5118, 2147483648
        %v5393 = vxor.u32 %v5120, 2147483648
        %v5394 = vxor.u32 %v5122, 2147483648
        %v5395 = vxor.u32 %v5124, 2147483648
        %v5396 = vxor.u32 %v5126, 2147483648
        %v5397 = vxor.u32 %v5128, 2147483648
        %v5398 = vxor.u32 %v5130, 2147483648
        %v5399 = vxor.u32 %v5132, 2147483648
        %v5400 = vxor.u32 %v5134, 2147483648
        %v5401 = vxor.u32 %v5136, 2147483648
        %v5402 = vxor.u32 %v5138, 2147483648
        %v5403 = vxor.u32 %v5140, 2147483648
        %v5404 = vxor.u32 %v5142, 2147483648
        %v5405 = vxor.u32 %v5144, 2147483648
        %v5406 = vxor.u32 %v5146, 2147483648
        %v5407 = vxor.u32 %v5148, 2147483648
        %v5408 = vxor.u32 %v5150, 2147483648
        %v5409 = vxor.u32 %v5152, 2147483648
        %v5410 = vxor.u32 %v5154, 2147483648
        %v5411 = vxor.u32 %v5156, 2147483648
        %v5412 = vxor.u32 %v5158, 2147483648
        %v5413 = vxor.u32 %v5160, 2147483648
        %v5414 = vxor.u32 %v5162, 2147483648
        %v5415 = vxor.u32 %v5164, 2147483648
        %v5416 = vxor.u32 %v5166, 2147483648
        %v5417 = vxor.u32 %v5168, 2147483648
        %v5418 = vxor.u32 %v5170, 2147483648
        %v5419 = vxor.u32 %v5172, 2147483648
        %v5420 = vxor.u32 %v5174, 2147483648
        %v5421 = vxor.u32 %v5176, 2147483648
        %v5422 = vxor.u32 %v5178, 2147483648
        %v5423 = vxor.u32 %v5180, 2147483648
        %v5424 = vxor.u32 %v5182, 2147483648
        %v5425 = vxor.u32 %v5184, 2147483648
        %v5426 = vxor.u32 %v5186, 2147483648
        %v5427 = vxor.u32 %v5188, 2147483648
        %v5428 = vxor.u32 %v5190, 2147483648
        %v5429 = vxor.u32 %v5192, 2147483648
        %v5430 = vxor.u32 %v5194, 2147483648
        %v5431 = vxor.u32 %v5196, 2147483648
        %v5432 = vxor.u32 %v5198, 2147483648
        %v5433 = vxor.u32 %v5200, 2147483648
        %v5434 = vxor.u32 %v5202, 2147483648
        %v5435 = vxor.u32 %v5204, 2147483648
        %v5436 = vxor.u32 %v5206, 2147483648
        %v5437 = vxor.u32 %v5208, 2147483648
        %v5438 = vxor.u32 %v5210, 2147483648
        %v5439 = vxor.u32 %v5212, 2147483648
        %v5440 = vxor.u32 %v5214, 2147483648
        %v5441 = vxor.u32 %v5216, 2147483648
        %v5442 = vxor.u32 %v5218, 2147483648
        %v5443 = vxor.u32 %v5220, 2147483648
        %v5444 = vxor.u32 %v5222, 2147483648
        %v5445 = vxor.u32 %v5224, 2147483648
        %v5446 = vxor.u32 %v5226, 2147483648
        %v5447 = vxor.u32 %v5228, 2147483648
        %v5448 = vxor.u32 %v5230, 2147483648
        %v5449 = vxor.u32 %v5232, 2147483648
        %v5450 = vxor.u32 %v5234, 2147483648
        %v5451 = vxor.u32 %v5236, 2147483648
        %v5452 = vxor.u32 %v5238, 2147483648
        %v5453 = vxor.u32 %v5240, 2147483648
        %v5454 = vxor.u32 %v5242, 2147483648
        %v5455 = vxor.u32 %v5244, 2147483648
        %v5456 = vxor.u32 %v5246, 2147483648
        %v5457 = vxor.u32 %v5248, 2147483648
        %v5458 = vxor.u32 %v5250, 2147483648
        %v5459 = vxor.u32 %v5252, 2147483648
        %v5460 = vxor.u32 %v5254, 2147483648
        %v5461 = vxor.u32 %v5256, 2147483648
        %v5462 = vxor.u32 %v5258, 2147483648
        %v5463 = vxor.u32 %v5260, 2147483648
        %v5464 = vxor.u32 %v5262, 2147483648
        %v5465 = vxor.u32 %v5264, 2147483648
        %v5466 = vxor.u32 %v5266, 2147483648
        %v5467 = vxor.u32 %v5268, 2147483648
        %v5468 = vxor.u32 %v5270, 2147483648
        %v5469 = vxor.u32 %v5272, 2147483648
        %v5470 = vxor.u32 %v5274, 2147483648
        %v5471 = vxor.u32 %v5276, 2147483648
        %v5472 = vxor.u32 %v5278, 2147483648
        %v5473 = vxor.u32 %v5280, 2147483648
        %v5474 = vxor.u32 %v5282, 2147483648
        %v5475 = vxor.u32 %v5284, 2147483648
        %v5476 = vxor.u32 %v5286, 2147483648
        %v5477 = vxor.u32 %v5288, 2147483648
        %v5478 = vxor.u32 %v5290, 2147483648
        %v5479 = vxor.u32 %v5292, 2147483648
        %v5480 = vxor.u32 %v5294, 2147483648
        %v5481 = vxor.u32 %v5296, 2147483648
        %v5482 = vxor.u32 %v5298, 2147483648
        %v5483 = vxor.u32 %v5300, 2147483648
        %v5484 = vxor.u32 %v5302, 2147483648
        %v5485 = vxor.u32 %v5304, 2147483648
        %v5486 = vxor.u32 %v5306, 2147483648
        %v5487 = vxor.u32 %v5308, 2147483648
        %v5488 = vxor.u32 %v5310, 2147483648
        %v5489 = vxor.u32 %v5312, 2147483648
        %v5490 = vxor.u32 %v5314, 2147483648
        %v5491 = vxor.u32 %v5316, 2147483648
        %v5492 = vxor.u32 %v5318, 2147483648
        %v5493 = vxor.u32 %v5320, 2147483648
        %v5494 = vxor.u32 %v5322, 2147483648
        %v5495 = vxor.u32 %v5324, 2147483648
        %v5496 = vxor.u32 %v5326, 2147483648
        %v5497 = vmul.f32 %v5327, 1.442695
        %v5498 = vpow.pop %v5497
        %v5499 = vmul.f32 %v5328, 1.442695
        %v5500 = vpow.pop %v5499
        %v5501 = vmul.f32 %v5329, 1.442695
        %v5502 = vpow.pop %v5501
        %v5503 = vmul.f32 %v5330, 1.442695
        %v5504 = vpow.pop %v5503
        %v5505 = vmul.f32 %v5331, 1.442695
        %v5506 = vpow.pop %v5505
        %v5507 = vmul.f32 %v5332, 1.442695
        %v5508 = vpow.pop %v5507
        %v5509 = vmul.f32 %v5333, 1.442695
        %v5510 = vpow.pop %v5509
        %v5511 = vmul.f32 %v5334, 1.442695
        %v5512 = vpow.pop %v5511
        %v5513 = vmul.f32 %v5335, 1.442695
        %v5514 = vpow.pop %v5513
        %v5515 = vmul.f32 %v5336, 1.442695
        %v5516 = vpow.pop %v5515
        %v5517 = vmul.f32 %v5337, 1.442695
        %v5518 = vpow.pop %v5517
        %v5519 = vmul.f32 %v5338, 1.442695
        %v5520 = vpow.pop %v5519
        %v5521 = vmul.f32 %v5339, 1.442695
        %v5522 = vpow.pop %v5521
        %v5523 = vmul.f32 %v5340, 1.442695
        %v5524 = vpow.pop %v5523
        %v5525 = vmul.f32 %v5341, 1.442695
        %v5526 = vpow.pop %v5525
        %v5527 = vmul.f32 %v5342, 1.442695
        %v5528 = vpow.pop %v5527
        %v5529 = vmul.f32 %v5343, 1.442695
        %v5530 = vpow.pop %v5529
        %v5531 = vmul.f32 %v5344, 1.442695
        %v5532 = vpow.pop %v5531
        %v5533 = vmul.f32 %v5345, 1.442695
        %v5534 = vpow.pop %v5533
        %v5535 = vmul.f32 %v5346, 1.442695
        %v5536 = vpow.pop %v5535
        %v5537 = vmul.f32 %v5347, 1.442695
        %v5538 = vpow.pop %v5537
        %v5539 = vmul.f32 %v5348, 1.442695
        %v5540 = vpow.pop %v5539
        %v5541 = vmul.f32 %v5349, 1.442695
        %v5542 = vpow.pop %v5541
        %v5543 = vmul.f32 %v5350, 1.442695
        %v5544 = vpow.pop %v5543
        %v5545 = vmul.f32 %v5351, 1.442695
        %v5546 = vpow.pop %v5545
        %v5547 = vmul.f32 %v5352, 1.442695
        %v5548 = vpow.pop %v5547
        %v5549 = vmul.f32 %v5353, 1.442695
        %v5550 = vpow.pop %v5549
        %v5551 = vmul.f32 %v5354, 1.442695
        %v5552 = vpow.pop %v5551
        %v5553 = vmul.f32 %v5355, 1.442695
        %v5554 = vpow.pop %v5553
        %v5555 = vmul.f32 %v5356, 1.442695
        %v5556 = vpow.pop %v5555
        %v5557 = vmul.f32 %v5357, 1.442695
        %v5558 = vpow.pop %v5557
        %v5559 = vmul.f32 %v5358, 1.442695
        %v5560 = vpow.pop %v5559
        %v5561 = vmul.f32 %v5359, 1.442695
        %v5562 = vpow.pop %v5561
        %v5563 = vmul.f32 %v5360, 1.442695
        %v5564 = vpow.pop %v5563
        %v5565 = vmul.f32 %v5361, 1.442695
        %v5566 = vpow.pop %v5565
        %v5567 = vmul.f32 %v5362, 1.442695
        %v5568 = vpow.pop %v5567
        %v5569 = vmul.f32 %v5363, 1.442695
        %v5570 = vpow.pop %v5569
        %v5571 = vmul.f32 %v5364, 1.442695
        %v5572 = vpow.pop %v5571
        %v5573 = vmul.f32 %v5365, 1.442695
        %v5574 = vpow.pop %v5573
        %v5575 = vmul.f32 %v5366, 1.442695
        %v5576 = vpow.pop %v5575
        %v5577 = vmul.f32 %v5367, 1.442695
        %v5578 = vpow.pop %v5577
        %v5579 = vmul.f32 %v5368, 1.442695
        %v5580 = vpow.pop %v5579
        %v5581 = vmul.f32 %v5369, 1.442695
        %v5582 = vpow.pop %v5581
        %v5583 = vmul.f32 %v5370, 1.442695
        %v5584 = vpow.pop %v5583
        %v5585 = vmul.f32 %v5371, 1.442695
        %v5586 = vpow.pop %v5585
        %v5587 = vmul.f32 %v5372, 1.442695
        %v5588 = vpow.pop %v5587
        %v5589 = vmul.f32 %v5373, 1.442695
        %v5590 = vpow.pop %v5589
        %v5591 = vmul.f32 %v5374, 1.442695
        %v5592 = vpow.pop %v5591
        %v5593 = vmul.f32 %v5375, 1.442695
        %v5594 = vpow.pop %v5593
        %v5595 = vmul.f32 %v5376, 1.442695
        %v5596 = vpow.pop %v5595
        %v5597 = vmul.f32 %v5377, 1.442695
        %v5598 = vpow.pop %v5597
        %v5599 = vmul.f32 %v5378, 1.442695
        %v5600 = vpow.pop %v5599
        %v5601 = vmul.f32 %v5379, 1.442695
        %v5602 = vpow.pop %v5601
        %v5603 = vmul.f32 %v5380, 1.442695
        %v5604 = vpow.pop %v5603
        %v5605 = vmul.f32 %v5381, 1.442695
        %v5606 = vpow.pop %v5605
        %v5607 = vmul.f32 %v5382, 1.442695
        %v5608 = vpow.pop %v5607
        %v5609 = vmul.f32 %v5383, 1.442695
        %v5610 = vpow.pop %v5609
        %v5611 = vmul.f32 %v5384, 1.442695
        %v5612 = vpow.pop %v5611
        %v5613 = vmul.f32 %v5385, 1.442695
        %v5614 = vpow.pop %v5613
        %v5615 = vmul.f32 %v5386, 1.442695
        %v5616 = vpow.pop %v5615
        %v5617 = vmul.f32 %v5387, 1.442695
        %v5618 = vpow.pop %v5617
        %v5619 = vmul.f32 %v5388, 1.442695
        %v5620 = vpow.pop %v5619
        %v5621 = vmul.f32 %v5389, 1.442695
        %v5622 = vpow.pop %v5621
        %v5623 = vmul.f32 %v5390, 1.442695
        %v5624 = vpow.pop %v5623
        %v5625 = vmul.f32 %v5391, 1.442695
        %v5626 = vpow.pop %v5625
        %v5627 = vmul.f32 %v5392, 1.442695
        %v5628 = vpow.pop %v5627
        %v5629 = vmul.f32 %v5393, 1.442695
        %v5630 = vpow.pop %v5629
        %v5631 = vmul.f32 %v5394, 1.442695
        %v5632 = vpow.pop %v5631
        %v5633 = vmul.f32 %v5395, 1.442695
        %v5634 = vpow.pop %v5633
        %v5635 = vmul.f32 %v5396, 1.442695
        %v5636 = vpow.pop %v5635
        %v5637 = vmul.f32 %v5397, 1.442695
        %v5638 = vpow.pop %v5637
        %v5639 = vmul.f32 %v5398, 1.442695
        %v5640 = vpow.pop %v5639
        %v5641 = vmul.f32 %v5399, 1.442695
        %v5642 = vpow.pop %v5641
        %v5643 = vmul.f32 %v5400, 1.442695
        %v5644 = vpow.pop %v5643
        %v5645 = vmul.f32 %v5401, 1.442695
        %v5646 = vpow.pop %v5645
        %v5647 = vmul.f32 %v5402, 1.442695
        %v5648 = vpow.pop %v5647
        %v5649 = vmul.f32 %v5403, 1.442695
        %v5650 = vpow.pop %v5649
        %v5651 = vmul.f32 %v5404, 1.442695
        %v5652 = vpow.pop %v5651
        %v5653 = vmul.f32 %v5405, 1.442695
        %v5654 = vpow.pop %v5653
        %v5655 = vmul.f32 %v5406, 1.442695
        %v5656 = vpow.pop %v5655
        %v5657 = vmul.f32 %v5407, 1.442695
        %v5658 = vpow.pop %v5657
        %v5659 = vmul.f32 %v5408, 1.442695
        %v5660 = vpow.pop %v5659
        %v5661 = vmul.f32 %v5409, 1.442695
        %v5662 = vpow.pop %v5661
        %v5663 = vmul.f32 %v5410, 1.442695
        %v5664 = vpow.pop %v5663
        %v5665 = vmul.f32 %v5411, 1.442695
        %v5666 = vpow.pop %v5665
        %v5667 = vmul.f32 %v5412, 1.442695
        %v5668 = vpow.pop %v5667
        %v5669 = vmul.f32 %v5413, 1.442695
        %v5670 = vpow.pop %v5669
        %v5671 = vmul.f32 %v5414, 1.442695
        %v5672 = vpow.pop %v5671
        %v5673 = vmul.f32 %v5415, 1.442695
        %v5674 = vpow.pop %v5673
        %v5675 = vmul.f32 %v5416, 1.442695
        %v5676 = vpow.pop %v5675
        %v5677 = vmul.f32 %v5417, 1.442695
        %v5678 = vpow.pop %v5677
        %v5679 = vmul.f32 %v5418, 1.442695
        %v5680 = vpow.pop %v5679
        %v5681 = vmul.f32 %v5419, 1.442695
        %v5682 = vpow.pop %v5681
        %v5683 = vmul.f32 %v5420, 1.442695
        %v5684 = vpow.pop %v5683
        %v5685 = vmul.f32 %v5421, 1.442695
        %v5686 = vpow.pop %v5685
        %v5687 = vmul.f32 %v5422, 1.442695
        %v5688 = vpow.pop %v5687
        %v5689 = vmul.f32 %v5423, 1.442695
        %v5690 = vpow.pop %v5689
        %v5691 = vmul.f32 %v5424, 1.442695
        %v5692 = vpow.pop %v5691
        %v5693 = vmul.f32 %v5425, 1.442695
        %v5694 = vpow.pop %v5693
        %v5695 = vmul.f32 %v5426, 1.442695
        %v5696 = vpow.pop %v5695
        %v5697 = vmul.f32 %v5427, 1.442695
        %v5698 = vpow.pop %v5697
        %v5699 = vmul.f32 %v5428, 1.442695
        %v5700 = vpow.pop %v5699
        %v5701 = vmul.f32 %v5429, 1.442695
        %v5702 = vpow.pop %v5701
        %v5703 = vmul.f32 %v5430, 1.442695
        %v5704 = vpow.pop %v5703
        %v5705 = vmul.f32 %v5431, 1.442695
        %v5706 = vpow.pop %v5705
        %v5707 = vmul.f32 %v5432, 1.442695
        %v5708 = vpow.pop %v5707
        %v5709 = vmul.f32 %v5433, 1.442695
        %v5710 = vpow.pop %v5709
        %v5711 = vmul.f32 %v5434, 1.442695
        %v5712 = vpow.pop %v5711
        %v5713 = vmul.f32 %v5435, 1.442695
        %v5714 = vpow.pop %v5713
        %v5715 = vmul.f32 %v5436, 1.442695
        %v5716 = vpow.pop %v5715
        %v5717 = vmul.f32 %v5437, 1.442695
        %v5718 = vpow.pop %v5717
        %v5719 = vmul.f32 %v5438, 1.442695
        %v5720 = vpow.pop %v5719
        %v5721 = vmul.f32 %v5439, 1.442695
        %v5722 = vpow.pop %v5721
        %v5723 = vmul.f32 %v5440, 1.442695
        %v5724 = vpow.pop %v5723
        %v5725 = vmul.f32 %v5441, 1.442695
        %v5726 = vpow.pop %v5725
        %v5727 = vmul.f32 %v5442, 1.442695
        %v5728 = vpow.pop %v5727
        %v5729 = vmul.f32 %v5443, 1.442695
        %v5730 = vpow.pop %v5729
        %v5731 = vmul.f32 %v5444, 1.442695
        %v5732 = vpow.pop %v5731
        %v5733 = vmul.f32 %v5445, 1.442695
        %v5734 = vpow.pop %v5733
        %v5735 = vmul.f32 %v5446, 1.442695
        %v5736 = vpow.pop %v5735
        %v5737 = vmul.f32 %v5447, 1.442695
        %v5738 = vpow.pop %v5737
        %v5739 = vmul.f32 %v5448, 1.442695
        %v5740 = vpow.pop %v5739
        %v5741 = vmul.f32 %v5449, 1.442695
        %v5742 = vpow.pop %v5741
        %v5743 = vmul.f32 %v5450, 1.442695
        %v5744 = vpow.pop %v5743
        %v5745 = vmul.f32 %v5451, 1.442695
        %v5746 = vpow.pop %v5745
        %v5747 = vmul.f32 %v5452, 1.442695
        %v5748 = vpow.pop %v5747
        %v5749 = vmul.f32 %v5453, 1.442695
        %v5750 = vpow.pop %v5749
        %v5751 = vmul.f32 %v5454, 1.442695
        %v5752 = vpow.pop %v5751
        %v5753 = vmul.f32 %v5455, 1.442695
        %v5754 = vpow.pop %v5753
        %v5755 = vmul.f32 %v5456, 1.442695
        %v5756 = vpow.pop %v5755
        %v5757 = vmul.f32 %v5457, 1.442695
        %v5758 = vpow.pop %v5757
        %v5759 = vmul.f32 %v5458, 1.442695
        %v5760 = vpow.pop %v5759
        %v5761 = vmul.f32 %v5459, 1.442695
        %v5762 = vpow.pop %v5761
        %v5763 = vmul.f32 %v5460, 1.442695
        %v5764 = vpow.pop %v5763
        %v5765 = vmul.f32 %v5461, 1.442695
        %v5766 = vpow.pop %v5765
        %v5767 = vmul.f32 %v5462, 1.442695
        %v5768 = vpow.pop %v5767
        %v5769 = vmul.f32 %v5463, 1.442695
        %v5770 = vpow.pop %v5769
        %v5771 = vmul.f32 %v5464, 1.442695
        %v5772 = vpow.pop %v5771
        %v5773 = vmul.f32 %v5465, 1.442695
        %v5774 = vpow.pop %v5773
        %v5775 = vmul.f32 %v5466, 1.442695
        %v5776 = vpow.pop %v5775
        %v5777 = vmul.f32 %v5467, 1.442695
        %v5778 = vpow.pop %v5777
        %v5779 = vmul.f32 %v5468, 1.442695
        %v5780 = vpow.pop %v5779
        %v5781 = vmul.f32 %v5469, 1.442695
        %v5782 = vpow.pop %v5781
        %v5783 = vmul.f32 %v5470, 1.442695
        %v5784 = vpow.pop %v5783
        %v5785 = vmul.f32 %v5471, 1.442695
        %v5786 = vpow.pop %v5785
        %v5787 = vmul.f32 %v5472, 1.442695
        %v5788 = vpow.pop %v5787
        %v5789 = vmul.f32 %v5473, 1.442695
        %v5790 = vpow.pop %v5789
        %v5791 = vmul.f32 %v5474, 1.442695
        %v5792 = vpow.pop %v5791
        %v5793 = vmul.f32 %v5475, 1.442695
        %v5794 = vpow.pop %v5793
        %v5795 = vmul.f32 %v5476, 1.442695
        %v5796 = vpow.pop %v5795
        %v5797 = vmul.f32 %v5477, 1.442695
        %v5798 = vpow.pop %v5797
        %v5799 = vmul.f32 %v5478, 1.442695
        %v5800 = vpow.pop %v5799
        %v5801 = vmul.f32 %v5479, 1.442695
        %v5802 = vpow.pop %v5801
        %v5803 = vmul.f32 %v5480, 1.442695
        %v5804 = vpow.pop %v5803
        %v5805 = vmul.f32 %v5481, 1.442695
        %v5806 = vpow.pop %v5805
        %v5807 = vmul.f32 %v5482, 1.442695
        %v5808 = vpow.pop %v5807
        %v5809 = vmul.f32 %v5483, 1.442695
        %v5810 = vpow.pop %v5809
        %v5811 = vmul.f32 %v5484, 1.442695
        %v5812 = vpow.pop %v5811
        %v5813 = vmul.f32 %v5485, 1.442695
        %v5814 = vpow.pop %v5813
        %v5815 = vmul.f32 %v5486, 1.442695
        %v5816 = vpow.pop %v5815
        %v5817 = vmul.f32 %v5487, 1.442695
        %v5818 = vpow.pop %v5817
        %v5819 = vmul.f32 %v5488, 1.442695
        %v5820 = vpow.pop %v5819
        %v5821 = vmul.f32 %v5489, 1.442695
        %v5822 = vpow.pop %v5821
        %v5823 = vmul.f32 %v5490, 1.442695
        %v5824 = vpow.pop %v5823
        %v5825 = vmul.f32 %v5491, 1.442695
        %v5826 = vpow.pop %v5825
        %v5827 = vmul.f32 %v5492, 1.442695
        %v5828 = vpow.pop %v5827
        %v5829 = vmul.f32 %v5493, 1.442695
        %v5830 = vpow.pop %v5829
        %v5831 = vmul.f32 %v5494, 1.442695
        %v5832 = vpow.pop %v5831
        %v5833 = vmul.f32 %v5495, 1.442695
        %v5834 = vpow.pop %v5833
        %v5835 = vmul.f32 %v5496, 1.442695
        %v5836 = vpow.pop %v5835
        %v5837 = vadd.f32 %v5498, 1.0
        %v5838 = vadd.f32 %v5500, 1.0
        %v5839 = vadd.f32 %v5502, 1.0
        %v5840 = vadd.f32 %v5504, 1.0
        %v5841 = vadd.f32 %v5506, 1.0
        %v5842 = vadd.f32 %v5508, 1.0
        %v5843 = vadd.f32 %v5510, 1.0
        %v5844 = vadd.f32 %v5512, 1.0
        %v5845 = vadd.f32 %v5514, 1.0
        %v5846 = vadd.f32 %v5516, 1.0
        %v5847 = vadd.f32 %v5518, 1.0
        %v5848 = vadd.f32 %v5520, 1.0
        %v5849 = vadd.f32 %v5522, 1.0
        %v5850 = vadd.f32 %v5524, 1.0
        %v5851 = vadd.f32 %v5526, 1.0
        %v5852 = vadd.f32 %v5528, 1.0
        %v5853 = vadd.f32 %v5530, 1.0
        %v5854 = vadd.f32 %v5532, 1.0
        %v5855 = vadd.f32 %v5534, 1.0
        %v5856 = vadd.f32 %v5536, 1.0
        %v5857 = vadd.f32 %v5538, 1.0
        %v5858 = vadd.f32 %v5540, 1.0
        %v5859 = vadd.f32 %v5542, 1.0
        %v5860 = vadd.f32 %v5544, 1.0
        %v5861 = vadd.f32 %v5546, 1.0
        %v5862 = vadd.f32 %v5548, 1.0
        %v5863 = vadd.f32 %v5550, 1.0
        %v5864 = vadd.f32 %v5552, 1.0
        %v5865 = vadd.f32 %v5554, 1.0
        %v5866 = vadd.f32 %v5556, 1.0
        %v5867 = vadd.f32 %v5558, 1.0
        %v5868 = vadd.f32 %v5560, 1.0
        %v5869 = vadd.f32 %v5562, 1.0
        %v5870 = vadd.f32 %v5564, 1.0
        %v5871 = vadd.f32 %v5566, 1.0
        %v5872 = vadd.f32 %v5568, 1.0
        %v5873 = vadd.f32 %v5570, 1.0
        %v5874 = vadd.f32 %v5572, 1.0
        %v5875 = vadd.f32 %v5574, 1.0
        %v5876 = vadd.f32 %v5576, 1.0
        %v5877 = vadd.f32 %v5578, 1.0
        %v5878 = vadd.f32 %v5580, 1.0
        %v5879 = vadd.f32 %v5582, 1.0
        %v5880 = vadd.f32 %v5584, 1.0
        %v5881 = vadd.f32 %v5586, 1.0
        %v5882 = vadd.f32 %v5588, 1.0
        %v5883 = vadd.f32 %v5590, 1.0
        %v5884 = vadd.f32 %v5592, 1.0
        %v5885 = vadd.f32 %v5594, 1.0
        %v5886 = vadd.f32 %v5596, 1.0
        %v5887 = vadd.f32 %v5598, 1.0
        %v5888 = vadd.f32 %v5600, 1.0
        %v5889 = vadd.f32 %v5602, 1.0
        %v5890 = vadd.f32 %v5604, 1.0
        %v5891 = vadd.f32 %v5606, 1.0
        %v5892 = vadd.f32 %v5608, 1.0
        %v5893 = vadd.f32 %v5610, 1.0
        %v5894 = vadd.f32 %v5612, 1.0
        %v5895 = vadd.f32 %v5614, 1.0
        %v5896 = vadd.f32 %v5616, 1.0
        %v5897 = vadd.f32 %v5618, 1.0
        %v5898 = vadd.f32 %v5620, 1.0
        %v5899 = vadd.f32 %v5622, 1.0
        %v5900 = vadd.f32 %v5624, 1.0
        %v5901 = vadd.f32 %v5626, 1.0
        %v5902 = vadd.f32 %v5628, 1.0
        %v5903 = vadd.f32 %v5630, 1.0
        %v5904 = vadd.f32 %v5632, 1.0
        %v5905 = vadd.f32 %v5634, 1.0
        %v5906 = vadd.f32 %v5636, 1.0
        %v5907 = vadd.f32 %v5638, 1.0
        %v5908 = vadd.f32 %v5640, 1.0
        %v5909 = vadd.f32 %v5642, 1.0
        %v5910 = vadd.f32 %v5644, 1.0
        %v5911 = vadd.f32 %v5646, 1.0
        %v5912 = vadd.f32 %v5648, 1.0
        %v5913 = vadd.f32 %v5650, 1.0
        %v5914 = vadd.f32 %v5652, 1.0
        %v5915 = vadd.f32 %v5654, 1.0
        %v5916 = vadd.f32 %v5656, 1.0
        %v5917 = vadd.f32 %v5658, 1.0
        %v5918 = vadd.f32 %v5660, 1.0
        %v5919 = vadd.f32 %v5662, 1.0
        %v5920 = vadd.f32 %v5664, 1.0
        %v5921 = vadd.f32 %v5666, 1.0
        %v5922 = vadd.f32 %v5668, 1.0
        %v5923 = vadd.f32 %v5670, 1.0
        %v5924 = vadd.f32 %v5672, 1.0
        %v5925 = vadd.f32 %v5674, 1.0
        %v5926 = vadd.f32 %v5676, 1.0
        %v5927 = vadd.f32 %v5678, 1.0
        %v5928 = vadd.f32 %v5680, 1.0
        %v5929 = vadd.f32 %v5682, 1.0
        %v5930 = vadd.f32 %v5684, 1.0
        %v5931 = vadd.f32 %v5686, 1.0
        %v5932 = vadd.f32 %v5688, 1.0
        %v5933 = vadd.f32 %v5690, 1.0
        %v5934 = vadd.f32 %v5692, 1.0
        %v5935 = vadd.f32 %v5694, 1.0
        %v5936 = vadd.f32 %v5696, 1.0
        %v5937 = vadd.f32 %v5698, 1.0
        %v5938 = vadd.f32 %v5700, 1.0
        %v5939 = vadd.f32 %v5702, 1.0
        %v5940 = vadd.f32 %v5704, 1.0
        %v5941 = vadd.f32 %v5706, 1.0
        %v5942 = vadd.f32 %v5708, 1.0
        %v5943 = vadd.f32 %v5710, 1.0
        %v5944 = vadd.f32 %v5712, 1.0
        %v5945 = vadd.f32 %v5714, 1.0
        %v5946 = vadd.f32 %v5716, 1.0
        %v5947 = vadd.f32 %v5718, 1.0
        %v5948 = vadd.f32 %v5720, 1.0
        %v5949 = vadd.f32 %v5722, 1.0
        %v5950 = vadd.f32 %v5724, 1.0
        %v5951 = vadd.f32 %v5726, 1.0
        %v5952 = vadd.f32 %v5728, 1.0
        %v5953 = vadd.f32 %v5730, 1.0
        %v5954 = vadd.f32 %v5732, 1.0
        %v5955 = vadd.f32 %v5734, 1.0
        %v5956 = vadd.f32 %v5736, 1.0
        %v5957 = vadd.f32 %v5738, 1.0
        %v5958 = vadd.f32 %v5740, 1.0
        %v5959 = vadd.f32 %v5742, 1.0
        %v5960 = vadd.f32 %v5744, 1.0
        %v5961 = vadd.f32 %v5746, 1.0
        %v5962 = vadd.f32 %v5748, 1.0
        %v5963 = vadd.f32 %v5750, 1.0
        %v5964 = vadd.f32 %v5752, 1.0
        %v5965 = vadd.f32 %v5754, 1.0
        %v5966 = vadd.f32 %v5756, 1.0
        %v5967 = vadd.f32 %v5758, 1.0
        %v5968 = vadd.f32 %v5760, 1.0
        %v5969 = vadd.f32 %v5762, 1.0
        %v5970 = vadd.f32 %v5764, 1.0
        %v5971 = vadd.f32 %v5766, 1.0
        %v5972 = vadd.f32 %v5768, 1.0
        %v5973 = vadd.f32 %v5770, 1.0
        %v5974 = vadd.f32 %v5772, 1.0
        %v5975 = vadd.f32 %v5774, 1.0
        %v5976 = vadd.f32 %v5776, 1.0
        %v5977 = vadd.f32 %v5778, 1.0
        %v5978 = vadd.f32 %v5780, 1.0
        %v5979 = vadd.f32 %v5782, 1.0
        %v5980 = vadd.f32 %v5784, 1.0
        %v5981 = vadd.f32 %v5786, 1.0
        %v5982 = vadd.f32 %v5788, 1.0
        %v5983 = vadd.f32 %v5790, 1.0
        %v5984 = vadd.f32 %v5792, 1.0
        %v5985 = vadd.f32 %v5794, 1.0
        %v5986 = vadd.f32 %v5796, 1.0
        %v5987 = vadd.f32 %v5798, 1.0
        %v5988 = vadd.f32 %v5800, 1.0
        %v5989 = vadd.f32 %v5802, 1.0
        %v5990 = vadd.f32 %v5804, 1.0
        %v5991 = vadd.f32 %v5806, 1.0
        %v5992 = vadd.f32 %v5808, 1.0
        %v5993 = vadd.f32 %v5810, 1.0
        %v5994 = vadd.f32 %v5812, 1.0
        %v5995 = vadd.f32 %v5814, 1.0
        %v5996 = vadd.f32 %v5816, 1.0
        %v5997 = vadd.f32 %v5818, 1.0
        %v5998 = vadd.f32 %v5820, 1.0
        %v5999 = vadd.f32 %v5822, 1.0
        %v6000 = vadd.f32 %v5824, 1.0
        %v6001 = vadd.f32 %v5826, 1.0
        %v6002 = vadd.f32 %v5828, 1.0
        %v6003 = vadd.f32 %v5830, 1.0
        %v6004 = vadd.f32 %v5832, 1.0
        %v6005 = vadd.f32 %v5834, 1.0
        %v6006 = vadd.f32 %v5836, 1.0
        %v6007 = vrcp.pop %v5837
        %v6008 = vmul.f32 1.0, %v6007
        %v6009 = vrcp.pop %v5838
        %v6010 = vmul.f32 1.0, %v6009
        %v6011 = vrcp.pop %v5839
        %v6012 = vmul.f32 1.0, %v6011
        %v6013 = vrcp.pop %v5840
        %v6014 = vmul.f32 1.0, %v6013
        %v6015 = vrcp.pop %v5841
        %v6016 = vmul.f32 1.0, %v6015
        %v6017 = vrcp.pop %v5842
        %v6018 = vmul.f32 1.0, %v6017
        %v6019 = vrcp.pop %v5843
        %v6020 = vmul.f32 1.0, %v6019
        %v6021 = vrcp.pop %v5844
        %v6022 = vmul.f32 1.0, %v6021
        %v6023 = vrcp.pop %v5845
        %v6024 = vmul.f32 1.0, %v6023
        %v6025 = vrcp.pop %v5846
        %v6026 = vmul.f32 1.0, %v6025
        %v6027 = vrcp.pop %v5847
        %v6028 = vmul.f32 1.0, %v6027
        %v6029 = vrcp.pop %v5848
        %v6030 = vmul.f32 1.0, %v6029
        %v6031 = vrcp.pop %v5849
        %v6032 = vmul.f32 1.0, %v6031
        %v6033 = vrcp.pop %v5850
        %v6034 = vmul.f32 1.0, %v6033
        %v6035 = vrcp.pop %v5851
        %v6036 = vmul.f32 1.0, %v6035
        %v6037 = vrcp.pop %v5852
        %v6038 = vmul.f32 1.0, %v6037
        %v6039 = vrcp.pop %v5853
        %v6040 = vmul.f32 1.0, %v6039
        %v6041 = vrcp.pop %v5854
        %v6042 = vmul.f32 1.0, %v6041
        %v6043 = vrcp.pop %v5855
        %v6044 = vmul.f32 1.0, %v6043
        %v6045 = vrcp.pop %v5856
        %v6046 = vmul.f32 1.0, %v6045
        %v6047 = vrcp.pop %v5857
        %v6048 = vmul.f32 1.0, %v6047
        %v6049 = vrcp.pop %v5858
        %v6050 = vmul.f32 1.0, %v6049
        %v6051 = vrcp.pop %v5859
        %v6052 = vmul.f32 1.0, %v6051
        %v6053 = vrcp.pop %v5860
        %v6054 = vmul.f32 1.0, %v6053
        %v6055 = vrcp.pop %v5861
        %v6056 = vmul.f32 1.0, %v6055
        %v6057 = vrcp.pop %v5862
        %v6058 = vmul.f32 1.0, %v6057
        %v6059 = vrcp.pop %v5863
        %v6060 = vmul.f32 1.0, %v6059
        %v6061 = vrcp.pop %v5864
        %v6062 = vmul.f32 1.0, %v6061
        %v6063 = vrcp.pop %v5865
        %v6064 = vmul.f32 1.0, %v6063
        %v6065 = vrcp.pop %v5866
        %v6066 = vmul.f32 1.0, %v6065
        %v6067 = vrcp.pop %v5867
        %v6068 = vmul.f32 1.0, %v6067
        %v6069 = vrcp.pop %v5868
        %v6070 = vmul.f32 1.0, %v6069
        %v6071 = vrcp.pop %v5869
        %v6072 = vmul.f32 1.0, %v6071
        %v6073 = vrcp.pop %v5870
        %v6074 = vmul.f32 1.0, %v6073
        %v6075 = vrcp.pop %v5871
        %v6076 = vmul.f32 1.0, %v6075
        %v6077 = vrcp.pop %v5872
        %v6078 = vmul.f32 1.0, %v6077
        %v6079 = vrcp.pop %v5873
        %v6080 = vmul.f32 1.0, %v6079
        %v6081 = vrcp.pop %v5874
        %v6082 = vmul.f32 1.0, %v6081
        %v6083 = vrcp.pop %v5875
        %v6084 = vmul.f32 1.0, %v6083
        %v6085 = vrcp.pop %v5876
        %v6086 = vmul.f32 1.0, %v6085
        %v6087 = vrcp.pop %v5877
        %v6088 = vmul.f32 1.0, %v6087
        %v6089 = vrcp.pop %v5878
        %v6090 = vmul.f32 1.0, %v6089
        %v6091 = vrcp.pop %v5879
        %v6092 = vmul.f32 1.0, %v6091
        %v6093 = vrcp.pop %v5880
        %v6094 = vmul.f32 1.0, %v6093
        %v6095 = vrcp.pop %v5881
        %v6096 = vmul.f32 1.0, %v6095
        %v6097 = vrcp.pop %v5882
        %v6098 = vmul.f32 1.0, %v6097
        %v6099 = vrcp.pop %v5883
        %v6100 = vmul.f32 1.0, %v6099
        %v6101 = vrcp.pop %v5884
        %v6102 = vmul.f32 1.0, %v6101
        %v6103 = vrcp.pop %v5885
        %v6104 = vmul.f32 1.0, %v6103
        %v6105 = vrcp.pop %v5886
        %v6106 = vmul.f32 1.0, %v6105
        %v6107 = vrcp.pop %v5887
        %v6108 = vmul.f32 1.0, %v6107
        %v6109 = vrcp.pop %v5888
        %v6110 = vmul.f32 1.0, %v6109
        %v6111 = vrcp.pop %v5889
        %v6112 = vmul.f32 1.0, %v6111
        %v6113 = vrcp.pop %v5890
        %v6114 = vmul.f32 1.0, %v6113
        %v6115 = vrcp.pop %v5891
        %v6116 = vmul.f32 1.0, %v6115
        %v6117 = vrcp.pop %v5892
        %v6118 = vmul.f32 1.0, %v6117
        %v6119 = vrcp.pop %v5893
        %v6120 = vmul.f32 1.0, %v6119
        %v6121 = vrcp.pop %v5894
        %v6122 = vmul.f32 1.0, %v6121
        %v6123 = vrcp.pop %v5895
        %v6124 = vmul.f32 1.0, %v6123
        %v6125 = vrcp.pop %v5896
        %v6126 = vmul.f32 1.0, %v6125
        %v6127 = vrcp.pop %v5897
        %v6128 = vmul.f32 1.0, %v6127
        %v6129 = vrcp.pop %v5898
        %v6130 = vmul.f32 1.0, %v6129
        %v6131 = vrcp.pop %v5899
        %v6132 = vmul.f32 1.0, %v6131
        %v6133 = vrcp.pop %v5900
        %v6134 = vmul.f32 1.0, %v6133
        %v6135 = vrcp.pop %v5901
        %v6136 = vmul.f32 1.0, %v6135
        %v6137 = vrcp.pop %v5902
        %v6138 = vmul.f32 1.0, %v6137
        %v6139 = vrcp.pop %v5903
        %v6140 = vmul.f32 1.0, %v6139
        %v6141 = vrcp.pop %v5904
        %v6142 = vmul.f32 1.0, %v6141
        %v6143 = vrcp.pop %v5905
        %v6144 = vmul.f32 1.0, %v6143
        %v6145 = vrcp.pop %v5906
        %v6146 = vmul.f32 1.0, %v6145
        %v6147 = vrcp.pop %v5907
        %v6148 = vmul.f32 1.0, %v6147
        %v6149 = vrcp.pop %v5908
        %v6150 = vmul.f32 1.0, %v6149
        %v6151 = vrcp.pop %v5909
        %v6152 = vmul.f32 1.0, %v6151
        %v6153 = vrcp.pop %v5910
        %v6154 = vmul.f32 1.0, %v6153
        %v6155 = vrcp.pop %v5911
        %v6156 = vmul.f32 1.0, %v6155
        %v6157 = vrcp.pop %v5912
        %v6158 = vmul.f32 1.0, %v6157
        %v6159 = vrcp.pop %v5913
        %v6160 = vmul.f32 1.0, %v6159
        %v6161 = vrcp.pop %v5914
        %v6162 = vmul.f32 1.0, %v6161
        %v6163 = vrcp.pop %v5915
        %v6164 = vmul.f32 1.0, %v6163
        %v6165 = vrcp.pop %v5916
        %v6166 = vmul.f32 1.0, %v6165
        %v6167 = vrcp.pop %v5917
        %v6168 = vmul.f32 1.0, %v6167
        %v6169 = vrcp.pop %v5918
        %v6170 = vmul.f32 1.0, %v6169
        %v6171 = vrcp.pop %v5919
        %v6172 = vmul.f32 1.0, %v6171
        %v6173 = vrcp.pop %v5920
        %v6174 = vmul.f32 1.0, %v6173
        %v6175 = vrcp.pop %v5921
        %v6176 = vmul.f32 1.0, %v6175
        %v6177 = vrcp.pop %v5922
        %v6178 = vmul.f32 1.0, %v6177
        %v6179 = vrcp.pop %v5923
        %v6180 = vmul.f32 1.0, %v6179
        %v6181 = vrcp.pop %v5924
        %v6182 = vmul.f32 1.0, %v6181
        %v6183 = vrcp.pop %v5925
        %v6184 = vmul.f32 1.0, %v6183
        %v6185 = vrcp.pop %v5926
        %v6186 = vmul.f32 1.0, %v6185
        %v6187 = vrcp.pop %v5927
        %v6188 = vmul.f32 1.0, %v6187
        %v6189 = vrcp.pop %v5928
        %v6190 = vmul.f32 1.0, %v6189
        %v6191 = vrcp.pop %v5929
        %v6192 = vmul.f32 1.0, %v6191
        %v6193 = vrcp.pop %v5930
        %v6194 = vmul.f32 1.0, %v6193
        %v6195 = vrcp.pop %v5931
        %v6196 = vmul.f32 1.0, %v6195
        %v6197 = vrcp.pop %v5932
        %v6198 = vmul.f32 1.0, %v6197
        %v6199 = vrcp.pop %v5933
        %v6200 = vmul.f32 1.0, %v6199
        %v6201 = vrcp.pop %v5934
        %v6202 = vmul.f32 1.0, %v6201
        %v6203 = vrcp.pop %v5935
        %v6204 = vmul.f32 1.0, %v6203
        %v6205 = vrcp.pop %v5936
        %v6206 = vmul.f32 1.0, %v6205
        %v6207 = vrcp.pop %v5937
        %v6208 = vmul.f32 1.0, %v6207
        %v6209 = vrcp.pop %v5938
        %v6210 = vmul.f32 1.0, %v6209
        %v6211 = vrcp.pop %v5939
        %v6212 = vmul.f32 1.0, %v6211
        %v6213 = vrcp.pop %v5940
        %v6214 = vmul.f32 1.0, %v6213
        %v6215 = vrcp.pop %v5941
        %v6216 = vmul.f32 1.0, %v6215
        %v6217 = vrcp.pop %v5942
        %v6218 = vmul.f32 1.0, %v6217
        %v6219 = vrcp.pop %v5943
        %v6220 = vmul.f32 1.0, %v6219
        %v6221 = vrcp.pop %v5944
        %v6222 = vmul.f32 1.0, %v6221
        %v6223 = vrcp.pop %v5945
        %v6224 = vmul.f32 1.0, %v6223
        %v6225 = vrcp.pop %v5946
        %v6226 = vmul.f32 1.0, %v6225
        %v6227 = vrcp.pop %v5947
        %v6228 = vmul.f32 1.0, %v6227
        %v6229 = vrcp.pop %v5948
        %v6230 = vmul.f32 1.0, %v6229
        %v6231 = vrcp.pop %v5949
        %v6232 = vmul.f32 1.0, %v6231
        %v6233 = vrcp.pop %v5950
        %v6234 = vmul.f32 1.0, %v6233
        %v6235 = vrcp.pop %v5951
        %v6236 = vmul.f32 1.0, %v6235
        %v6237 = vrcp.pop %v5952
        %v6238 = vmul.f32 1.0, %v6237
        %v6239 = vrcp.pop %v5953
        %v6240 = vmul.f32 1.0, %v6239
        %v6241 = vrcp.pop %v5954
        %v6242 = vmul.f32 1.0, %v6241
        %v6243 = vrcp.pop %v5955
        %v6244 = vmul.f32 1.0, %v6243
        %v6245 = vrcp.pop %v5956
        %v6246 = vmul.f32 1.0, %v6245
        %v6247 = vrcp.pop %v5957
        %v6248 = vmul.f32 1.0, %v6247
        %v6249 = vrcp.pop %v5958
        %v6250 = vmul.f32 1.0, %v6249
        %v6251 = vrcp.pop %v5959
        %v6252 = vmul.f32 1.0, %v6251
        %v6253 = vrcp.pop %v5960
        %v6254 = vmul.f32 1.0, %v6253
        %v6255 = vrcp.pop %v5961
        %v6256 = vmul.f32 1.0, %v6255
        %v6257 = vrcp.pop %v5962
        %v6258 = vmul.f32 1.0, %v6257
        %v6259 = vrcp.pop %v5963
        %v6260 = vmul.f32 1.0, %v6259
        %v6261 = vrcp.pop %v5964
        %v6262 = vmul.f32 1.0, %v6261
        %v6263 = vrcp.pop %v5965
        %v6264 = vmul.f32 1.0, %v6263
        %v6265 = vrcp.pop %v5966
        %v6266 = vmul.f32 1.0, %v6265
        %v6267 = vrcp.pop %v5967
        %v6268 = vmul.f32 1.0, %v6267
        %v6269 = vrcp.pop %v5968
        %v6270 = vmul.f32 1.0, %v6269
        %v6271 = vrcp.pop %v5969
        %v6272 = vmul.f32 1.0, %v6271
        %v6273 = vrcp.pop %v5970
        %v6274 = vmul.f32 1.0, %v6273
        %v6275 = vrcp.pop %v5971
        %v6276 = vmul.f32 1.0, %v6275
        %v6277 = vrcp.pop %v5972
        %v6278 = vmul.f32 1.0, %v6277
        %v6279 = vrcp.pop %v5973
        %v6280 = vmul.f32 1.0, %v6279
        %v6281 = vrcp.pop %v5974
        %v6282 = vmul.f32 1.0, %v6281
        %v6283 = vrcp.pop %v5975
        %v6284 = vmul.f32 1.0, %v6283
        %v6285 = vrcp.pop %v5976
        %v6286 = vmul.f32 1.0, %v6285
        %v6287 = vrcp.pop %v5977
        %v6288 = vmul.f32 1.0, %v6287
        %v6289 = vrcp.pop %v5978
        %v6290 = vmul.f32 1.0, %v6289
        %v6291 = vrcp.pop %v5979
        %v6292 = vmul.f32 1.0, %v6291
        %v6293 = vrcp.pop %v5980
        %v6294 = vmul.f32 1.0, %v6293
        %v6295 = vrcp.pop %v5981
        %v6296 = vmul.f32 1.0, %v6295
        %v6297 = vrcp.pop %v5982
        %v6298 = vmul.f32 1.0, %v6297
        %v6299 = vrcp.pop %v5983
        %v6300 = vmul.f32 1.0, %v6299
        %v6301 = vrcp.pop %v5984
        %v6302 = vmul.f32 1.0, %v6301
        %v6303 = vrcp.pop %v5985
        %v6304 = vmul.f32 1.0, %v6303
        %v6305 = vrcp.pop %v5986
        %v6306 = vmul.f32 1.0, %v6305
        %v6307 = vrcp.pop %v5987
        %v6308 = vmul.f32 1.0, %v6307
        %v6309 = vrcp.pop %v5988
        %v6310 = vmul.f32 1.0, %v6309
        %v6311 = vrcp.pop %v5989
        %v6312 = vmul.f32 1.0, %v6311
        %v6313 = vrcp.pop %v5990
        %v6314 = vmul.f32 1.0, %v6313
        %v6315 = vrcp.pop %v5991
        %v6316 = vmul.f32 1.0, %v6315
        %v6317 = vrcp.pop %v5992
        %v6318 = vmul.f32 1.0, %v6317
        %v6319 = vrcp.pop %v5993
        %v6320 = vmul.f32 1.0, %v6319
        %v6321 = vrcp.pop %v5994
        %v6322 = vmul.f32 1.0, %v6321
        %v6323 = vrcp.pop %v5995
        %v6324 = vmul.f32 1.0, %v6323
        %v6325 = vrcp.pop %v5996
        %v6326 = vmul.f32 1.0, %v6325
        %v6327 = vrcp.pop %v5997
        %v6328 = vmul.f32 1.0, %v6327
        %v6329 = vrcp.pop %v5998
        %v6330 = vmul.f32 1.0, %v6329
        %v6331 = vrcp.pop %v5999
        %v6332 = vmul.f32 1.0, %v6331
        %v6333 = vrcp.pop %v6000
        %v6334 = vmul.f32 1.0, %v6333
        %v6335 = vrcp.pop %v6001
        %v6336 = vmul.f32 1.0, %v6335
        %v6337 = vrcp.pop %v6002
        %v6338 = vmul.f32 1.0, %v6337
        %v6339 = vrcp.pop %v6003
        %v6340 = vmul.f32 1.0, %v6339
        %v6341 = vrcp.pop %v6004
        %v6342 = vmul.f32 1.0, %v6341
        %v6343 = vrcp.pop %v6005
        %v6344 = vmul.f32 1.0, %v6343
        %v6345 = vrcp.pop %v6006
        %v6346 = vmul.f32 1.0, %v6345
        %v6347 = vsub.f32 1.0, %v6008
        %v6348 = vsub.f32 1.0, %v6010
        %v6349 = vsub.f32 1.0, %v6012
        %v6350 = vsub.f32 1.0, %v6014
        %v6351 = vsub.f32 1.0, %v6016
        %v6352 = vsub.f32 1.0, %v6018
        %v6353 = vsub.f32 1.0, %v6020
        %v6354 = vsub.f32 1.0, %v6022
        %v6355 = vsub.f32 1.0, %v6024
        %v6356 = vsub.f32 1.0, %v6026
        %v6357 = vsub.f32 1.0, %v6028
        %v6358 = vsub.f32 1.0, %v6030
        %v6359 = vsub.f32 1.0, %v6032
        %v6360 = vsub.f32 1.0, %v6034
        %v6361 = vsub.f32 1.0, %v6036
        %v6362 = vsub.f32 1.0, %v6038
        %v6363 = vsub.f32 1.0, %v6040
        %v6364 = vsub.f32 1.0, %v6042
        %v6365 = vsub.f32 1.0, %v6044
        %v6366 = vsub.f32 1.0, %v6046
        %v6367 = vsub.f32 1.0, %v6048
        %v6368 = vsub.f32 1.0, %v6050
        %v6369 = vsub.f32 1.0, %v6052
        %v6370 = vsub.f32 1.0, %v6054
        %v6371 = vsub.f32 1.0, %v6056
        %v6372 = vsub.f32 1.0, %v6058
        %v6373 = vsub.f32 1.0, %v6060
        %v6374 = vsub.f32 1.0, %v6062
        %v6375 = vsub.f32 1.0, %v6064
        %v6376 = vsub.f32 1.0, %v6066
        %v6377 = vsub.f32 1.0, %v6068
        %v6378 = vsub.f32 1.0, %v6070
        %v6379 = vsub.f32 1.0, %v6072
        %v6380 = vsub.f32 1.0, %v6074
        %v6381 = vsub.f32 1.0, %v6076
        %v6382 = vsub.f32 1.0, %v6078
        %v6383 = vsub.f32 1.0, %v6080
        %v6384 = vsub.f32 1.0, %v6082
        %v6385 = vsub.f32 1.0, %v6084
        %v6386 = vsub.f32 1.0, %v6086
        %v6387 = vsub.f32 1.0, %v6088
        %v6388 = vsub.f32 1.0, %v6090
        %v6389 = vsub.f32 1.0, %v6092
        %v6390 = vsub.f32 1.0, %v6094
        %v6391 = vsub.f32 1.0, %v6096
        %v6392 = vsub.f32 1.0, %v6098
        %v6393 = vsub.f32 1.0, %v6100
        %v6394 = vsub.f32 1.0, %v6102
        %v6395 = vsub.f32 1.0, %v6104
        %v6396 = vsub.f32 1.0, %v6106
        %v6397 = vsub.f32 1.0, %v6108
        %v6398 = vsub.f32 1.0, %v6110
        %v6399 = vsub.f32 1.0, %v6112
        %v6400 = vsub.f32 1.0, %v6114
        %v6401 = vsub.f32 1.0, %v6116
        %v6402 = vsub.f32 1.0, %v6118
        %v6403 = vsub.f32 1.0, %v6120
        %v6404 = vsub.f32 1.0, %v6122
        %v6405 = vsub.f32 1.0, %v6124
        %v6406 = vsub.f32 1.0, %v6126
        %v6407 = vsub.f32 1.0, %v6128
        %v6408 = vsub.f32 1.0, %v6130
        %v6409 = vsub.f32 1.0, %v6132
        %v6410 = vsub.f32 1.0, %v6134
        %v6411 = vsub.f32 1.0, %v6136
        %v6412 = vsub.f32 1.0, %v6138
        %v6413 = vsub.f32 1.0, %v6140
        %v6414 = vsub.f32 1.0, %v6142
        %v6415 = vsub.f32 1.0, %v6144
        %v6416 = vsub.f32 1.0, %v6146
        %v6417 = vsub.f32 1.0, %v6148
        %v6418 = vsub.f32 1.0, %v6150
        %v6419 = vsub.f32 1.0, %v6152
        %v6420 = vsub.f32 1.0, %v6154
        %v6421 = vsub.f32 1.0, %v6156
        %v6422 = vsub.f32 1.0, %v6158
        %v6423 = vsub.f32 1.0, %v6160
        %v6424 = vsub.f32 1.0, %v6162
        %v6425 = vsub.f32 1.0, %v6164
        %v6426 = vsub.f32 1.0, %v6166
        %v6427 = vsub.f32 1.0, %v6168
        %v6428 = vsub.f32 1.0, %v6170
        %v6429 = vsub.f32 1.0, %v6172
        %v6430 = vsub.f32 1.0, %v6174
        %v6431 = vsub.f32 1.0, %v6176
        %v6432 = vsub.f32 1.0, %v6178
        %v6433 = vsub.f32 1.0, %v6180
        %v6434 = vsub.f32 1.0, %v6182
        %v6435 = vsub.f32 1.0, %v6184
        %v6436 = vsub.f32 1.0, %v6186
        %v6437 = vsub.f32 1.0, %v6188
        %v6438 = vsub.f32 1.0, %v6190
        %v6439 = vsub.f32 1.0, %v6192
        %v6440 = vsub.f32 1.0, %v6194
        %v6441 = vsub.f32 1.0, %v6196
        %v6442 = vsub.f32 1.0, %v6198
        %v6443 = vsub.f32 1.0, %v6200
        %v6444 = vsub.f32 1.0, %v6202
        %v6445 = vsub.f32 1.0, %v6204
        %v6446 = vsub.f32 1.0, %v6206
        %v6447 = vsub.f32 1.0, %v6208
        %v6448 = vsub.f32 1.0, %v6210
        %v6449 = vsub.f32 1.0, %v6212
        %v6450 = vsub.f32 1.0, %v6214
        %v6451 = vsub.f32 1.0, %v6216
        %v6452 = vsub.f32 1.0, %v6218
        %v6453 = vsub.f32 1.0, %v6220
        %v6454 = vsub.f32 1.0, %v6222
        %v6455 = vsub.f32 1.0, %v6224
        %v6456 = vsub.f32 1.0, %v6226
        %v6457 = vsub.f32 1.0, %v6228
        %v6458 = vsub.f32 1.0, %v6230
        %v6459 = vsub.f32 1.0, %v6232
        %v6460 = vsub.f32 1.0, %v6234
        %v6461 = vsub.f32 1.0, %v6236
        %v6462 = vsub.f32 1.0, %v6238
        %v6463 = vsub.f32 1.0, %v6240
        %v6464 = vsub.f32 1.0, %v6242
        %v6465 = vsub.f32 1.0, %v6244
        %v6466 = vsub.f32 1.0, %v6246
        %v6467 = vsub.f32 1.0, %v6248
        %v6468 = vsub.f32 1.0, %v6250
        %v6469 = vsub.f32 1.0, %v6252
        %v6470 = vsub.f32 1.0, %v6254
        %v6471 = vsub.f32 1.0, %v6256
        %v6472 = vsub.f32 1.0, %v6258
        %v6473 = vsub.f32 1.0, %v6260
        %v6474 = vsub.f32 1.0, %v6262
        %v6475 = vsub.f32 1.0, %v6264
        %v6476 = vsub.f32 1.0, %v6266
        %v6477 = vsub.f32 1.0, %v6268
        %v6478 = vsub.f32 1.0, %v6270
        %v6479 = vsub.f32 1.0, %v6272
        %v6480 = vsub.f32 1.0, %v6274
        %v6481 = vsub.f32 1.0, %v6276
        %v6482 = vsub.f32 1.0, %v6278
        %v6483 = vsub.f32 1.0, %v6280
        %v6484 = vsub.f32 1.0, %v6282
        %v6485 = vsub.f32 1.0, %v6284
        %v6486 = vsub.f32 1.0, %v6286
        %v6487 = vsub.f32 1.0, %v6288
        %v6488 = vsub.f32 1.0, %v6290
        %v6489 = vsub.f32 1.0, %v6292
        %v6490 = vsub.f32 1.0, %v6294
        %v6491 = vsub.f32 1.0, %v6296
        %v6492 = vsub.f32 1.0, %v6298
        %v6493 = vsub.f32 1.0, %v6300
        %v6494 = vsub.f32 1.0, %v6302
        %v6495 = vsub.f32 1.0, %v6304
        %v6496 = vsub.f32 1.0, %v6306
        %v6497 = vsub.f32 1.0, %v6308
        %v6498 = vsub.f32 1.0, %v6310
        %v6499 = vsub.f32 1.0, %v6312
        %v6500 = vsub.f32 1.0, %v6314
        %v6501 = vsub.f32 1.0, %v6316
        %v6502 = vsub.f32 1.0, %v6318
        %v6503 = vsub.f32 1.0, %v6320
        %v6504 = vsub.f32 1.0, %v6322
        %v6505 = vsub.f32 1.0, %v6324
        %v6506 = vsub.f32 1.0, %v6326
        %v6507 = vsub.f32 1.0, %v6328
        %v6508 = vsub.f32 1.0, %v6330
        %v6509 = vsub.f32 1.0, %v6332
        %v6510 = vsub.f32 1.0, %v6334
        %v6511 = vsub.f32 1.0, %v6336
        %v6512 = vsub.f32 1.0, %v6338
        %v6513 = vsub.f32 1.0, %v6340
        %v6514 = vsub.f32 1.0, %v6342
        %v6515 = vsub.f32 1.0, %v6344
        %v6516 = vsub.f32 1.0, %v6346
        %v6517 = vmul.f32 %v6347, %v683
        %v6518 = vmul.f32 %v6347, %v684
        %v6519 = vmul.f32 %v6348, %v685
        %v6520 = vmul.f32 %v6348, %v686
        %v6521 = vmul.f32 %v6349, %v687
        %v6522 = vmul.f32 %v6349, %v688
        %v6523 = vmul.f32 %v6350, %v689
        %v6524 = vmul.f32 %v6350, %v690
        %v6525 = vmul.f32 %v6351, %v691
        %v6526 = vmul.f32 %v6351, %v692
        %v6527 = vmul.f32 %v6352, %v693
        %v6528 = vmul.f32 %v6352, %v694
        %v6529 = vmul.f32 %v6353, %v695
        %v6530 = vmul.f32 %v6353, %v696
        %v6531 = vmul.f32 %v6354, %v697
        %v6532 = vmul.f32 %v6354, %v698
        %v6533 = vmul.f32 %v6355, %v699
        %v6534 = vmul.f32 %v6355, %v700
        %v6535 = vmul.f32 %v6356, %v701
        %v6536 = vmul.f32 %v6356, %v702
        %v6537 = vmul.f32 %v6357, %v703
        %v6538 = vmul.f32 %v6357, %v704
        %v6539 = vmul.f32 %v6358, %v705
        %v6540 = vmul.f32 %v6358, %v706
        %v6541 = vmul.f32 %v6359, %v707
        %v6542 = vmul.f32 %v6359, %v708
        %v6543 = vmul.f32 %v6360, %v709
        %v6544 = vmul.f32 %v6360, %v710
        %v6545 = vmul.f32 %v6361, %v711
        %v6546 = vmul.f32 %v6361, %v712
        %v6547 = vmul.f32 %v6362, %v713
        %v6548 = vmul.f32 %v6362, %v714
        %v6549 = vmul.f32 %v6363, %v715
        %v6550 = vmul.f32 %v6363, %v716
        %v6551 = vmul.f32 %v6364, %v717
        %v6552 = vmul.f32 %v6364, %v718
        %v6553 = vmul.f32 %v6365, %v719
        %v6554 = vmul.f32 %v6365, %v720
        %v6555 = vmul.f32 %v6366, %v721
        %v6556 = vmul.f32 %v6366, %v722
        %v6557 = vmul.f32 %v6367, %v723
        %v6558 = vmul.f32 %v6367, %v724
        %v6559 = vmul.f32 %v6368, %v725
        %v6560 = vmul.f32 %v6368, %v726
        %v6561 = vmul.f32 %v6369, %v727
        %v6562 = vmul.f32 %v6369, %v728
        %v6563 = vmul.f32 %v6370, %v729
        %v6564 = vmul.f32 %v6370, %v730
        %v6565 = vmul.f32 %v6371, %v731
        %v6566 = vmul.f32 %v6371, %v732
        %v6567 = vmul.f32 %v6372, %v733
        %v6568 = vmul.f32 %v6372, %v734
        %v6569 = vmul.f32 %v6373, %v735
        %v6570 = vmul.f32 %v6373, %v736
        %v6571 = vmul.f32 %v6374, %v737
        %v6572 = vmul.f32 %v6374, %v738
        %v6573 = vmul.f32 %v6375, %v739
        %v6574 = vmul.f32 %v6375, %v740
        %v6575 = vmul.f32 %v6376, %v741
        %v6576 = vmul.f32 %v6376, %v742
        %v6577 = vmul.f32 %v6377, %v743
        %v6578 = vmul.f32 %v6377, %v744
        %v6579 = vmul.f32 %v6378, %v745
        %v6580 = vmul.f32 %v6378, %v746
        %v6581 = vmul.f32 %v6379, %v747
        %v6582 = vmul.f32 %v6379, %v748
        %v6583 = vmul.f32 %v6380, %v749
        %v6584 = vmul.f32 %v6380, %v750
        %v6585 = vmul.f32 %v6381, %v751
        %v6586 = vmul.f32 %v6381, %v752
        %v6587 = vmul.f32 %v6382, %v753
        %v6588 = vmul.f32 %v6382, %v754
        %v6589 = vmul.f32 %v6383, %v755
        %v6590 = vmul.f32 %v6383, %v756
        %v6591 = vmul.f32 %v6384, %v757
        %v6592 = vmul.f32 %v6384, %v758
        %v6593 = vmul.f32 %v6385, %v759
        %v6594 = vmul.f32 %v6385, %v760
        %v6595 = vmul.f32 %v6386, %v761
        %v6596 = vmul.f32 %v6386, %v762
        %v6597 = vmul.f32 %v6387, %v763
        %v6598 = vmul.f32 %v6387, %v764
        %v6599 = vmul.f32 %v6388, %v765
        %v6600 = vmul.f32 %v6388, %v766
        %v6601 = vmul.f32 %v6389, %v767
        %v6602 = vmul.f32 %v6389, %v768
        %v6603 = vmul.f32 %v6390, %v769
        %v6604 = vmul.f32 %v6390, %v770
        %v6605 = vmul.f32 %v6391, %v771
        %v6606 = vmul.f32 %v6391, %v772
        %v6607 = vmul.f32 %v6392, %v773
        %v6608 = vmul.f32 %v6392, %v774
        %v6609 = vmul.f32 %v6393, %v775
        %v6610 = vmul.f32 %v6393, %v776
        %v6611 = vmul.f32 %v6394, %v777
        %v6612 = vmul.f32 %v6394, %v778
        %v6613 = vmul.f32 %v6395, %v779
        %v6614 = vmul.f32 %v6395, %v780
        %v6615 = vmul.f32 %v6396, %v781
        %v6616 = vmul.f32 %v6396, %v782
        %v6617 = vmul.f32 %v6397, %v783
        %v6618 = vmul.f32 %v6397, %v784
        %v6619 = vmul.f32 %v6398, %v785
        %v6620 = vmul.f32 %v6398, %v786
        %v6621 = vmul.f32 %v6399, %v787
        %v6622 = vmul.f32 %v6399, %v788
        %v6623 = vmul.f32 %v6400, %v789
        %v6624 = vmul.f32 %v6400, %v790
        %v6625 = vmul.f32 %v6401, %v791
        %v6626 = vmul.f32 %v6401, %v792
        %v6627 = vmul.f32 %v6402, %v793
        %v6628 = vmul.f32 %v6402, %v794
        %v6629 = vmul.f32 %v6403, %v795
        %v6630 = vmul.f32 %v6403, %v796
        %v6631 = vmul.f32 %v6404, %v797
        %v6632 = vmul.f32 %v6404, %v798
        %v6633 = vmul.f32 %v6405, %v799
        %v6634 = vmul.f32 %v6405, %v800
        %v6635 = vmul.f32 %v6406, %v801
        %v6636 = vmul.f32 %v6406, %v802
        %v6637 = vmul.f32 %v6407, %v803
        %v6638 = vmul.f32 %v6407, %v804
        %v6639 = vmul.f32 %v6408, %v805
        %v6640 = vmul.f32 %v6408, %v806
        %v6641 = vmul.f32 %v6409, %v807
        %v6642 = vmul.f32 %v6409, %v808
        %v6643 = vmul.f32 %v6410, %v809
        %v6644 = vmul.f32 %v6410, %v810
        %v6645 = vmul.f32 %v6411, %v811
        %v6646 = vmul.f32 %v6411, %v812
        %v6647 = vmul.f32 %v6412, %v813
        %v6648 = vmul.f32 %v6412, %v814
        %v6649 = vmul.f32 %v6413, %v815
        %v6650 = vmul.f32 %v6413, %v816
        %v6651 = vmul.f32 %v6414, %v817
        %v6652 = vmul.f32 %v6414, %v818
        %v6653 = vmul.f32 %v6415, %v819
        %v6654 = vmul.f32 %v6415, %v820
        %v6655 = vmul.f32 %v6416, %v821
        %v6656 = vmul.f32 %v6416, %v822
        %v6657 = vmul.f32 %v6417, %v823
        %v6658 = vmul.f32 %v6417, %v824
        %v6659 = vmul.f32 %v6418, %v825
        %v6660 = vmul.f32 %v6418, %v826
        %v6661 = vmul.f32 %v6419, %v827
        %v6662 = vmul.f32 %v6419, %v828
        %v6663 = vmul.f32 %v6420, %v829
        %v6664 = vmul.f32 %v6420, %v830
        %v6665 = vmul.f32 %v6421, %v831
        %v6666 = vmul.f32 %v6421, %v832
        %v6667 = vmul.f32 %v6422, %v833
        %v6668 = vmul.f32 %v6422, %v834
        %v6669 = vmul.f32 %v6423, %v835
        %v6670 = vmul.f32 %v6423, %v836
        %v6671 = vmul.f32 %v6424, %v837
        %v6672 = vmul.f32 %v6424, %v838
        %v6673 = vmul.f32 %v6425, %v839
        %v6674 = vmul.f32 %v6425, %v840
        %v6675 = vmul.f32 %v6426, %v841
        %v6676 = vmul.f32 %v6426, %v842
        %v6677 = vmul.f32 %v6427, %v843
        %v6678 = vmul.f32 %v6427, %v844
        %v6679 = vmul.f32 %v6428, %v845
        %v6680 = vmul.f32 %v6428, %v846
        %v6681 = vmul.f32 %v6429, %v847
        %v6682 = vmul.f32 %v6429, %v848
        %v6683 = vmul.f32 %v6430, %v849
        %v6684 = vmul.f32 %v6430, %v850
        %v6685 = vmul.f32 %v6431, %v851
        %v6686 = vmul.f32 %v6431, %v852
        %v6687 = vmul.f32 %v6432, %v853
        %v6688 = vmul.f32 %v6432, %v854
        %v6689 = vmul.f32 %v6433, %v855
        %v6690 = vmul.f32 %v6433, %v856
        %v6691 = vmul.f32 %v6434, %v857
        %v6692 = vmul.f32 %v6434, %v858
        %v6693 = vmul.f32 %v6435, %v859
        %v6694 = vmul.f32 %v6435, %v860
        %v6695 = vmul.f32 %v6436, %v861
        %v6696 = vmul.f32 %v6436, %v862
        %v6697 = vmul.f32 %v6437, %v863
        %v6698 = vmul.f32 %v6437, %v864
        %v6699 = vmul.f32 %v6438, %v865
        %v6700 = vmul.f32 %v6438, %v866
        %v6701 = vmul.f32 %v6439, %v867
        %v6702 = vmul.f32 %v6439, %v868
        %v6703 = vmul.f32 %v6440, %v869
        %v6704 = vmul.f32 %v6440, %v870
        %v6705 = vmul.f32 %v6441, %v871
        %v6706 = vmul.f32 %v6441, %v872
        %v6707 = vmul.f32 %v6442, %v873
        %v6708 = vmul.f32 %v6442, %v874
        %v6709 = vmul.f32 %v6443, %v875
        %v6710 = vmul.f32 %v6443, %v876
        %v6711 = vmul.f32 %v6444, %v877
        %v6712 = vmul.f32 %v6444, %v878
        %v6713 = vmul.f32 %v6445, %v879
        %v6714 = vmul.f32 %v6445, %v880
        %v6715 = vmul.f32 %v6446, %v881
        %v6716 = vmul.f32 %v6446, %v882
        %v6717 = vmul.f32 %v6447, %v883
        %v6718 = vmul.f32 %v6447, %v884
        %v6719 = vmul.f32 %v6448, %v885
        %v6720 = vmul.f32 %v6448, %v886
        %v6721 = vmul.f32 %v6449, %v887
        %v6722 = vmul.f32 %v6449, %v888
        %v6723 = vmul.f32 %v6450, %v889
        %v6724 = vmul.f32 %v6450, %v890
        %v6725 = vmul.f32 %v6451, %v891
        %v6726 = vmul.f32 %v6451, %v892
        %v6727 = vmul.f32 %v6452, %v893
        %v6728 = vmul.f32 %v6452, %v894
        %v6729 = vmul.f32 %v6453, %v895
        %v6730 = vmul.f32 %v6453, %v896
        %v6731 = vmul.f32 %v6454, %v897
        %v6732 = vmul.f32 %v6454, %v898
        %v6733 = vmul.f32 %v6455, %v899
        %v6734 = vmul.f32 %v6455, %v900
        %v6735 = vmul.f32 %v6456, %v901
        %v6736 = vmul.f32 %v6456, %v902
        %v6737 = vmul.f32 %v6457, %v903
        %v6738 = vmul.f32 %v6457, %v904
        %v6739 = vmul.f32 %v6458, %v905
        %v6740 = vmul.f32 %v6458, %v906
        %v6741 = vmul.f32 %v6459, %v907
        %v6742 = vmul.f32 %v6459, %v908
        %v6743 = vmul.f32 %v6460, %v909
        %v6744 = vmul.f32 %v6460, %v910
        %v6745 = vmul.f32 %v6461, %v911
        %v6746 = vmul.f32 %v6461, %v912
        %v6747 = vmul.f32 %v6462, %v913
        %v6748 = vmul.f32 %v6462, %v914
        %v6749 = vmul.f32 %v6463, %v915
        %v6750 = vmul.f32 %v6463, %v916
        %v6751 = vmul.f32 %v6464, %v917
        %v6752 = vmul.f32 %v6464, %v918
        %v6753 = vmul.f32 %v6465, %v919
        %v6754 = vmul.f32 %v6465, %v920
        %v6755 = vmul.f32 %v6466, %v921
        %v6756 = vmul.f32 %v6466, %v922
        %v6757 = vmul.f32 %v6467, %v923
        %v6758 = vmul.f32 %v6467, %v924
        %v6759 = vmul.f32 %v6468, %v925
        %v6760 = vmul.f32 %v6468, %v926
        %v6761 = vmul.f32 %v6469, %v927
        %v6762 = vmul.f32 %v6469, %v928
        %v6763 = vmul.f32 %v6470, %v929
        %v6764 = vmul.f32 %v6470, %v930
        %v6765 = vmul.f32 %v6471, %v931
        %v6766 = vmul.f32 %v6471, %v932
        %v6767 = vmul.f32 %v6472, %v933
        %v6768 = vmul.f32 %v6472, %v934
        %v6769 = vmul.f32 %v6473, %v935
        %v6770 = vmul.f32 %v6473, %v936
        %v6771 = vmul.f32 %v6474, %v937
        %v6772 = vmul.f32 %v6474, %v938
        %v6773 = vmul.f32 %v6475, %v939
        %v6774 = vmul.f32 %v6475, %v940
        %v6775 = vmul.f32 %v6476, %v941
        %v6776 = vmul.f32 %v6476, %v942
        %v6777 = vmul.f32 %v6477, %v943
        %v6778 = vmul.f32 %v6477, %v944
        %v6779 = vmul.f32 %v6478, %v945
        %v6780 = vmul.f32 %v6478, %v946
        %v6781 = vmul.f32 %v6479, %v947
        %v6782 = vmul.f32 %v6479, %v948
        %v6783 = vmul.f32 %v6480, %v949
        %v6784 = vmul.f32 %v6480, %v950
        %v6785 = vmul.f32 %v6481, %v951
        %v6786 = vmul.f32 %v6481, %v952
        %v6787 = vmul.f32 %v6482, %v953
        %v6788 = vmul.f32 %v6482, %v954
        %v6789 = vmul.f32 %v6483, %v955
        %v6790 = vmul.f32 %v6483, %v956
        %v6791 = vmul.f32 %v6484, %v957
        %v6792 = vmul.f32 %v6484, %v958
        %v6793 = vmul.f32 %v6485, %v959
        %v6794 = vmul.f32 %v6485, %v960
        %v6795 = vmul.f32 %v6486, %v961
        %v6796 = vmul.f32 %v6486, %v962
        %v6797 = vmul.f32 %v6487, %v963
        %v6798 = vmul.f32 %v6487, %v964
        %v6799 = vmul.f32 %v6488, %v965
        %v6800 = vmul.f32 %v6488, %v966
        %v6801 = vmul.f32 %v6489, %v967
        %v6802 = vmul.f32 %v6489, %v968
        %v6803 = vmul.f32 %v6490, %v969
        %v6804 = vmul.f32 %v6490, %v970
        %v6805 = vmul.f32 %v6491, %v971
        %v6806 = vmul.f32 %v6491, %v972
        %v6807 = vmul.f32 %v6492, %v973
        %v6808 = vmul.f32 %v6492, %v974
        %v6809 = vmul.f32 %v6493, %v975
        %v6810 = vmul.f32 %v6493, %v976
        %v6811 = vmul.f32 %v6494, %v977
        %v6812 = vmul.f32 %v6494, %v978
        %v6813 = vmul.f32 %v6495, %v979
        %v6814 = vmul.f32 %v6495, %v980
        %v6815 = vmul.f32 %v6496, %v981
        %v6816 = vmul.f32 %v6496, %v982
        %v6817 = vmul.f32 %v6497, %v983
        %v6818 = vmul.f32 %v6497, %v984
        %v6819 = vmul.f32 %v6498, %v985
        %v6820 = vmul.f32 %v6498, %v986
        %v6821 = vmul.f32 %v6499, %v987
        %v6822 = vmul.f32 %v6499, %v988
        %v6823 = vmul.f32 %v6500, %v989
        %v6824 = vmul.f32 %v6500, %v990
        %v6825 = vmul.f32 %v6501, %v991
        %v6826 = vmul.f32 %v6501, %v992
        %v6827 = vmul.f32 %v6502, %v993
        %v6828 = vmul.f32 %v6502, %v994
        %v6829 = vmul.f32 %v6503, %v995
        %v6830 = vmul.f32 %v6503, %v996
        %v6831 = vmul.f32 %v6504, %v997
        %v6832 = vmul.f32 %v6504, %v998
        %v6833 = vmul.f32 %v6505, %v999
        %v6834 = vmul.f32 %v6505, %v1000
        %v6835 = vmul.f32 %v6506, %v1001
        %v6836 = vmul.f32 %v6506, %v1002
        %v6837 = vmul.f32 %v6507, %v1003
        %v6838 = vmul.f32 %v6507, %v1004
        %v6839 = vmul.f32 %v6508, %v1005
        %v6840 = vmul.f32 %v6508, %v1006
        %v6841 = vmul.f32 %v6509, %v1007
        %v6842 = vmul.f32 %v6509, %v1008
        %v6843 = vmul.f32 %v6510, %v1009
        %v6844 = vmul.f32 %v6510, %v1010
        %v6845 = vmul.f32 %v6511, %v1011
        %v6846 = vmul.f32 %v6511, %v1012
        %v6847 = vmul.f32 %v6512, %v1013
        %v6848 = vmul.f32 %v6512, %v1014
        %v6849 = vmul.f32 %v6513, %v1015
        %v6850 = vmul.f32 %v6513, %v1016
        %v6851 = vmul.f32 %v6514, %v1017
        %v6852 = vmul.f32 %v6514, %v1018
        %v6853 = vmul.f32 %v6515, %v1019
        %v6854 = vmul.f32 %v6515, %v1020
        %v6855 = vmul.f32 %v6516, %v1021
        %v6856 = vmul.f32 %v6516, %v1022
        %v6857 = vmul.f32 %v6008, %v1933
        %v6858 = vmul.f32 %v6008, %v1935
        %v6859 = vmul.f32 %v6010, %v1937
        %v6860 = vmul.f32 %v6010, %v1939
        %v6861 = vmul.f32 %v6012, %v1943
        %v6862 = vmul.f32 %v6012, %v1945
        %v6863 = vmul.f32 %v6014, %v1947
        %v6864 = vmul.f32 %v6014, %v1949
        %v6865 = vmul.f32 %v6016, %v1953
        %v6866 = vmul.f32 %v6016, %v1955
        %v6867 = vmul.f32 %v6018, %v1957
        %v6868 = vmul.f32 %v6018, %v1959
        %v6869 = vmul.f32 %v6020, %v1963
        %v6870 = vmul.f32 %v6020, %v1965
        %v6871 = vmul.f32 %v6022, %v1967
        %v6872 = vmul.f32 %v6022, %v1969
        %v6873 = vmul.f32 %v6024, %v1973
        %v6874 = vmul.f32 %v6024, %v1975
        %v6875 = vmul.f32 %v6026, %v1977
        %v6876 = vmul.f32 %v6026, %v1979
        %v6877 = vmul.f32 %v6028, %v1983
        %v6878 = vmul.f32 %v6028, %v1985
        %v6879 = vmul.f32 %v6030, %v1987
        %v6880 = vmul.f32 %v6030, %v1989
        %v6881 = vmul.f32 %v6032, %v1993
        %v6882 = vmul.f32 %v6032, %v1995
        %v6883 = vmul.f32 %v6034, %v1997
        %v6884 = vmul.f32 %v6034, %v1999
        %v6885 = vmul.f32 %v6036, %v2003
        %v6886 = vmul.f32 %v6036, %v2005
        %v6887 = vmul.f32 %v6038, %v2007
        %v6888 = vmul.f32 %v6038, %v2009
        %v6889 = vmul.f32 %v6040, %v2013
        %v6890 = vmul.f32 %v6040, %v2015
        %v6891 = vmul.f32 %v6042, %v2017
        %v6892 = vmul.f32 %v6042, %v2019
        %v6893 = vmul.f32 %v6044, %v2023
        %v6894 = vmul.f32 %v6044, %v2025
        %v6895 = vmul.f32 %v6046, %v2027
        %v6896 = vmul.f32 %v6046, %v2029
        %v6897 = vmul.f32 %v6048, %v2033
        %v6898 = vmul.f32 %v6048, %v2035
        %v6899 = vmul.f32 %v6050, %v2037
        %v6900 = vmul.f32 %v6050, %v2039
        %v6901 = vmul.f32 %v6052, %v2043
        %v6902 = vmul.f32 %v6052, %v2045
        %v6903 = vmul.f32 %v6054, %v2047
        %v6904 = vmul.f32 %v6054, %v2049
        %v6905 = vmul.f32 %v6056, %v2053
        %v6906 = vmul.f32 %v6056, %v2055
        %v6907 = vmul.f32 %v6058, %v2057
        %v6908 = vmul.f32 %v6058, %v2059
        %v6909 = vmul.f32 %v6060, %v2063
        %v6910 = vmul.f32 %v6060, %v2065
        %v6911 = vmul.f32 %v6062, %v2067
        %v6912 = vmul.f32 %v6062, %v2069
        %v6913 = vmul.f32 %v6064, %v2073
        %v6914 = vmul.f32 %v6064, %v2075
        %v6915 = vmul.f32 %v6066, %v2077
        %v6916 = vmul.f32 %v6066, %v2079
        %v6917 = vmul.f32 %v6068, %v2083
        %v6918 = vmul.f32 %v6068, %v2085
        %v6919 = vmul.f32 %v6070, %v2087
        %v6920 = vmul.f32 %v6070, %v2089
        %v6921 = vmul.f32 %v6072, %v2093
        %v6922 = vmul.f32 %v6072, %v2095
        %v6923 = vmul.f32 %v6074, %v2097
        %v6924 = vmul.f32 %v6074, %v2099
        %v6925 = vmul.f32 %v6076, %v2103
        %v6926 = vmul.f32 %v6076, %v2105
        %v6927 = vmul.f32 %v6078, %v2107
        %v6928 = vmul.f32 %v6078, %v2109
        %v6929 = vmul.f32 %v6080, %v2113
        %v6930 = vmul.f32 %v6080, %v2115
        %v6931 = vmul.f32 %v6082, %v2117
        %v6932 = vmul.f32 %v6082, %v2119
        %v6933 = vmul.f32 %v6084, %v2123
        %v6934 = vmul.f32 %v6084, %v2125
        %v6935 = vmul.f32 %v6086, %v2127
        %v6936 = vmul.f32 %v6086, %v2129
        %v6937 = vmul.f32 %v6088, %v2133
        %v6938 = vmul.f32 %v6088, %v2135
        %v6939 = vmul.f32 %v6090, %v2137
        %v6940 = vmul.f32 %v6090, %v2139
        %v6941 = vmul.f32 %v6092, %v2143
        %v6942 = vmul.f32 %v6092, %v2145
        %v6943 = vmul.f32 %v6094, %v2147
        %v6944 = vmul.f32 %v6094, %v2149
        %v6945 = vmul.f32 %v6096, %v2153
        %v6946 = vmul.f32 %v6096, %v2155
        %v6947 = vmul.f32 %v6098, %v2157
        %v6948 = vmul.f32 %v6098, %v2159
        %v6949 = vmul.f32 %v6100, %v2163
        %v6950 = vmul.f32 %v6100, %v2165
        %v6951 = vmul.f32 %v6102, %v2167
        %v6952 = vmul.f32 %v6102, %v2169
        %v6953 = vmul.f32 %v6104, %v2173
        %v6954 = vmul.f32 %v6104, %v2175
        %v6955 = vmul.f32 %v6106, %v2177
        %v6956 = vmul.f32 %v6106, %v2179
        %v6957 = vmul.f32 %v6108, %v2183
        %v6958 = vmul.f32 %v6108, %v2185
        %v6959 = vmul.f32 %v6110, %v2187
        %v6960 = vmul.f32 %v6110, %v2189
        %v6961 = vmul.f32 %v6112, %v2193
        %v6962 = vmul.f32 %v6112, %v2195
        %v6963 = vmul.f32 %v6114, %v2197
        %v6964 = vmul.f32 %v6114, %v2199
        %v6965 = vmul.f32 %v6116, %v2203
        %v6966 = vmul.f32 %v6116, %v2205
        %v6967 = vmul.f32 %v6118, %v2207
        %v6968 = vmul.f32 %v6118, %v2209
        %v6969 = vmul.f32 %v6120, %v2213
        %v6970 = vmul.f32 %v6120, %v2215
        %v6971 = vmul.f32 %v6122, %v2217
        %v6972 = vmul.f32 %v6122, %v2219
        %v6973 = vmul.f32 %v6124, %v2223
        %v6974 = vmul.f32 %v6124, %v2225
        %v6975 = vmul.f32 %v6126, %v2227
        %v6976 = vmul.f32 %v6126, %v2229
        %v6977 = vmul.f32 %v6128, %v2233
        %v6978 = vmul.f32 %v6128, %v2235
        %v6979 = vmul.f32 %v6130, %v2237
        %v6980 = vmul.f32 %v6130, %v2239
        %v6981 = vmul.f32 %v6132, %v2243
        %v6982 = vmul.f32 %v6132, %v2245
        %v6983 = vmul.f32 %v6134, %v2247
        %v6984 = vmul.f32 %v6134, %v2249
        %v6985 = vmul.f32 %v6136, %v2253
        %v6986 = vmul.f32 %v6136, %v2255
        %v6987 = vmul.f32 %v6138, %v2257
        %v6988 = vmul.f32 %v6138, %v2259
        %v6989 = vmul.f32 %v6140, %v2263
        %v6990 = vmul.f32 %v6140, %v2265
        %v6991 = vmul.f32 %v6142, %v2267
        %v6992 = vmul.f32 %v6142, %v2269
        %v6993 = vmul.f32 %v6144, %v2273
        %v6994 = vmul.f32 %v6144, %v2275
        %v6995 = vmul.f32 %v6146, %v2277
        %v6996 = vmul.f32 %v6146, %v2279
        %v6997 = vmul.f32 %v6148, %v2283
        %v6998 = vmul.f32 %v6148, %v2285
        %v6999 = vmul.f32 %v6150, %v2287
        %v7000 = vmul.f32 %v6150, %v2289
        %v7001 = vmul.f32 %v6152, %v2293
        %v7002 = vmul.f32 %v6152, %v2295
        %v7003 = vmul.f32 %v6154, %v2297
        %v7004 = vmul.f32 %v6154, %v2299
        %v7005 = vmul.f32 %v6156, %v2303
        %v7006 = vmul.f32 %v6156, %v2305
        %v7007 = vmul.f32 %v6158, %v2307
        %v7008 = vmul.f32 %v6158, %v2309
        %v7009 = vmul.f32 %v6160, %v2313
        %v7010 = vmul.f32 %v6160, %v2315
        %v7011 = vmul.f32 %v6162, %v2317
        %v7012 = vmul.f32 %v6162, %v2319
        %v7013 = vmul.f32 %v6164, %v2323
        %v7014 = vmul.f32 %v6164, %v2325
        %v7015 = vmul.f32 %v6166, %v2327
        %v7016 = vmul.f32 %v6166, %v2329
        %v7017 = vmul.f32 %v6168, %v2333
        %v7018 = vmul.f32 %v6168, %v2335
        %v7019 = vmul.f32 %v6170, %v2337
        %v7020 = vmul.f32 %v6170, %v2339
        %v7021 = vmul.f32 %v6172, %v2343
        %v7022 = vmul.f32 %v6172, %v2345
        %v7023 = vmul.f32 %v6174, %v2347
        %v7024 = vmul.f32 %v6174, %v2349
        %v7025 = vmul.f32 %v6176, %v2353
        %v7026 = vmul.f32 %v6176, %v2355
        %v7027 = vmul.f32 %v6178, %v2357
        %v7028 = vmul.f32 %v6178, %v2359
        %v7029 = vmul.f32 %v6180, %v2363
        %v7030 = vmul.f32 %v6180, %v2365
        %v7031 = vmul.f32 %v6182, %v2367
        %v7032 = vmul.f32 %v6182, %v2369
        %v7033 = vmul.f32 %v6184, %v2373
        %v7034 = vmul.f32 %v6184, %v2375
        %v7035 = vmul.f32 %v6186, %v2377
        %v7036 = vmul.f32 %v6186, %v2379
        %v7037 = vmul.f32 %v6188, %v2383
        %v7038 = vmul.f32 %v6188, %v2385
        %v7039 = vmul.f32 %v6190, %v2387
        %v7040 = vmul.f32 %v6190, %v2389
        %v7041 = vmul.f32 %v6192, %v2393
        %v7042 = vmul.f32 %v6192, %v2395
        %v7043 = vmul.f32 %v6194, %v2397
        %v7044 = vmul.f32 %v6194, %v2399
        %v7045 = vmul.f32 %v6196, %v2403
        %v7046 = vmul.f32 %v6196, %v2405
        %v7047 = vmul.f32 %v6198, %v2407
        %v7048 = vmul.f32 %v6198, %v2409
        %v7049 = vmul.f32 %v6200, %v2413
        %v7050 = vmul.f32 %v6200, %v2415
        %v7051 = vmul.f32 %v6202, %v2417
        %v7052 = vmul.f32 %v6202, %v2419
        %v7053 = vmul.f32 %v6204, %v2423
        %v7054 = vmul.f32 %v6204, %v2425
        %v7055 = vmul.f32 %v6206, %v2427
        %v7056 = vmul.f32 %v6206, %v2429
        %v7057 = vmul.f32 %v6208, %v2433
        %v7058 = vmul.f32 %v6208, %v2435
        %v7059 = vmul.f32 %v6210, %v2437
        %v7060 = vmul.f32 %v6210, %v2439
        %v7061 = vmul.f32 %v6212, %v2443
        %v7062 = vmul.f32 %v6212, %v2445
        %v7063 = vmul.f32 %v6214, %v2447
        %v7064 = vmul.f32 %v6214, %v2449
        %v7065 = vmul.f32 %v6216, %v2453
        %v7066 = vmul.f32 %v6216, %v2455
        %v7067 = vmul.f32 %v6218, %v2457
        %v7068 = vmul.f32 %v6218, %v2459
        %v7069 = vmul.f32 %v6220, %v2463
        %v7070 = vmul.f32 %v6220, %v2465
        %v7071 = vmul.f32 %v6222, %v2467
        %v7072 = vmul.f32 %v6222, %v2469
        %v7073 = vmul.f32 %v6224, %v2473
        %v7074 = vmul.f32 %v6224, %v2475
        %v7075 = vmul.f32 %v6226, %v2477
        %v7076 = vmul.f32 %v6226, %v2479
        %v7077 = vmul.f32 %v6228, %v2483
        %v7078 = vmul.f32 %v6228, %v2485
        %v7079 = vmul.f32 %v6230, %v2487
        %v7080 = vmul.f32 %v6230, %v2489
        %v7081 = vmul.f32 %v6232, %v2493
        %v7082 = vmul.f32 %v6232, %v2495
        %v7083 = vmul.f32 %v6234, %v2497
        %v7084 = vmul.f32 %v6234, %v2499
        %v7085 = vmul.f32 %v6236, %v2503
        %v7086 = vmul.f32 %v6236, %v2505
        %v7087 = vmul.f32 %v6238, %v2507
        %v7088 = vmul.f32 %v6238, %v2509
        %v7089 = vmul.f32 %v6240, %v2513
        %v7090 = vmul.f32 %v6240, %v2515
        %v7091 = vmul.f32 %v6242, %v2517
        %v7092 = vmul.f32 %v6242, %v2519
        %v7093 = vmul.f32 %v6244, %v2523
        %v7094 = vmul.f32 %v6244, %v2525
        %v7095 = vmul.f32 %v6246, %v2527
        %v7096 = vmul.f32 %v6246, %v2529
        %v7097 = vmul.f32 %v6248, %v2533
        %v7098 = vmul.f32 %v6248, %v2535
        %v7099 = vmul.f32 %v6250, %v2537
        %v7100 = vmul.f32 %v6250, %v2539
        %v7101 = vmul.f32 %v6252, %v2543
        %v7102 = vmul.f32 %v6252, %v2545
        %v7103 = vmul.f32 %v6254, %v2547
        %v7104 = vmul.f32 %v6254, %v2549
        %v7105 = vmul.f32 %v6256, %v2553
        %v7106 = vmul.f32 %v6256, %v2555
        %v7107 = vmul.f32 %v6258, %v2557
        %v7108 = vmul.f32 %v6258, %v2559
        %v7109 = vmul.f32 %v6260, %v2563
        %v7110 = vmul.f32 %v6260, %v2565
        %v7111 = vmul.f32 %v6262, %v2567
        %v7112 = vmul.f32 %v6262, %v2569
        %v7113 = vmul.f32 %v6264, %v2573
        %v7114 = vmul.f32 %v6264, %v2575
        %v7115 = vmul.f32 %v6266, %v2577
        %v7116 = vmul.f32 %v6266, %v2579
        %v7117 = vmul.f32 %v6268, %v2583
        %v7118 = vmul.f32 %v6268, %v2585
        %v7119 = vmul.f32 %v6270, %v2587
        %v7120 = vmul.f32 %v6270, %v2589
        %v7121 = vmul.f32 %v6272, %v2593
        %v7122 = vmul.f32 %v6272, %v2595
        %v7123 = vmul.f32 %v6274, %v2597
        %v7124 = vmul.f32 %v6274, %v2599
        %v7125 = vmul.f32 %v6276, %v2603
        %v7126 = vmul.f32 %v6276, %v2605
        %v7127 = vmul.f32 %v6278, %v2607
        %v7128 = vmul.f32 %v6278, %v2609
        %v7129 = vmul.f32 %v6280, %v2613
        %v7130 = vmul.f32 %v6280, %v2615
        %v7131 = vmul.f32 %v6282, %v2617
        %v7132 = vmul.f32 %v6282, %v2619
        %v7133 = vmul.f32 %v6284, %v2623
        %v7134 = vmul.f32 %v6284, %v2625
        %v7135 = vmul.f32 %v6286, %v2627
        %v7136 = vmul.f32 %v6286, %v2629
        %v7137 = vmul.f32 %v6288, %v2633
        %v7138 = vmul.f32 %v6288, %v2635
        %v7139 = vmul.f32 %v6290, %v2637
        %v7140 = vmul.f32 %v6290, %v2639
        %v7141 = vmul.f32 %v6292, %v2643
        %v7142 = vmul.f32 %v6292, %v2645
        %v7143 = vmul.f32 %v6294, %v2647
        %v7144 = vmul.f32 %v6294, %v2649
        %v7145 = vmul.f32 %v6296, %v2653
        %v7146 = vmul.f32 %v6296, %v2655
        %v7147 = vmul.f32 %v6298, %v2657
        %v7148 = vmul.f32 %v6298, %v2659
        %v7149 = vmul.f32 %v6300, %v2663
        %v7150 = vmul.f32 %v6300, %v2665
        %v7151 = vmul.f32 %v6302, %v2667
        %v7152 = vmul.f32 %v6302, %v2669
        %v7153 = vmul.f32 %v6304, %v2673
        %v7154 = vmul.f32 %v6304, %v2675
        %v7155 = vmul.f32 %v6306, %v2677
        %v7156 = vmul.f32 %v6306, %v2679
        %v7157 = vmul.f32 %v6308, %v2683
        %v7158 = vmul.f32 %v6308, %v2685
        %v7159 = vmul.f32 %v6310, %v2687
        %v7160 = vmul.f32 %v6310, %v2689
        %v7161 = vmul.f32 %v6312, %v2693
        %v7162 = vmul.f32 %v6312, %v2695
        %v7163 = vmul.f32 %v6314, %v2697
        %v7164 = vmul.f32 %v6314, %v2699
        %v7165 = vmul.f32 %v6316, %v2703
        %v7166 = vmul.f32 %v6316, %v2705
        %v7167 = vmul.f32 %v6318, %v2707
        %v7168 = vmul.f32 %v6318, %v2709
        %v7169 = vmul.f32 %v6320, %v2713
        %v7170 = vmul.f32 %v6320, %v2715
        %v7171 = vmul.f32 %v6322, %v2717
        %v7172 = vmul.f32 %v6322, %v2719
        %v7173 = vmul.f32 %v6324, %v2723
        %v7174 = vmul.f32 %v6324, %v2725
        %v7175 = vmul.f32 %v6326, %v2727
        %v7176 = vmul.f32 %v6326, %v2729
        %v7177 = vmul.f32 %v6328, %v2733
        %v7178 = vmul.f32 %v6328, %v2735
        %v7179 = vmul.f32 %v6330, %v2737
        %v7180 = vmul.f32 %v6330, %v2739
        %v7181 = vmul.f32 %v6332, %v2743
        %v7182 = vmul.f32 %v6332, %v2745
        %v7183 = vmul.f32 %v6334, %v2747
        %v7184 = vmul.f32 %v6334, %v2749
        %v7185 = vmul.f32 %v6336, %v2753
        %v7186 = vmul.f32 %v6336, %v2755
        %v7187 = vmul.f32 %v6338, %v2757
        %v7188 = vmul.f32 %v6338, %v2759
        %v7189 = vmul.f32 %v6340, %v2763
        %v7190 = vmul.f32 %v6340, %v2765
        %v7191 = vmul.f32 %v6342, %v2767
        %v7192 = vmul.f32 %v6342, %v2769
        %v7193 = vmul.f32 %v6344, %v2773
        %v7194 = vmul.f32 %v6344, %v2775
        %v7195 = vmul.f32 %v6346, %v2777
        %v7196 = vmul.f32 %v6346, %v2779
        %v7197 = vadd.f32 %v6517, %v6857
        %v7198 = vadd.f32 %v6518, %v6858
        %v7199 = vadd.f32 %v6519, %v6859
        %v7200 = vadd.f32 %v6520, %v6860
        %v7201 = vadd.f32 %v6521, %v6861
        %v7202 = vadd.f32 %v6522, %v6862
        %v7203 = vadd.f32 %v6523, %v6863
        %v7204 = vadd.f32 %v6524, %v6864
        %v7205 = vadd.f32 %v6525, %v6865
        %v7206 = vadd.f32 %v6526, %v6866
        %v7207 = vadd.f32 %v6527, %v6867
        %v7208 = vadd.f32 %v6528, %v6868
        %v7209 = vadd.f32 %v6529, %v6869
        %v7210 = vadd.f32 %v6530, %v6870
        %v7211 = vadd.f32 %v6531, %v6871
        %v7212 = vadd.f32 %v6532, %v6872
        %v7213 = vadd.f32 %v6533, %v6873
        %v7214 = vadd.f32 %v6534, %v6874
        %v7215 = vadd.f32 %v6535, %v6875
        %v7216 = vadd.f32 %v6536, %v6876
        %v7217 = vadd.f32 %v6537, %v6877
        %v7218 = vadd.f32 %v6538, %v6878
        %v7219 = vadd.f32 %v6539, %v6879
        %v7220 = vadd.f32 %v6540, %v6880
        %v7221 = vadd.f32 %v6541, %v6881
        %v7222 = vadd.f32 %v6542, %v6882
        %v7223 = vadd.f32 %v6543, %v6883
        %v7224 = vadd.f32 %v6544, %v6884
        %v7225 = vadd.f32 %v6545, %v6885
        %v7226 = vadd.f32 %v6546, %v6886
        %v7227 = vadd.f32 %v6547, %v6887
        %v7228 = vadd.f32 %v6548, %v6888
        %v7229 = vadd.f32 %v6549, %v6889
        %v7230 = vadd.f32 %v6550, %v6890
        %v7231 = vadd.f32 %v6551, %v6891
        %v7232 = vadd.f32 %v6552, %v6892
        %v7233 = vadd.f32 %v6553, %v6893
        %v7234 = vadd.f32 %v6554, %v6894
        %v7235 = vadd.f32 %v6555, %v6895
        %v7236 = vadd.f32 %v6556, %v6896
        %v7237 = vadd.f32 %v6557, %v6897
        %v7238 = vadd.f32 %v6558, %v6898
        %v7239 = vadd.f32 %v6559, %v6899
        %v7240 = vadd.f32 %v6560, %v6900
        %v7241 = vadd.f32 %v6561, %v6901
        %v7242 = vadd.f32 %v6562, %v6902
        %v7243 = vadd.f32 %v6563, %v6903
        %v7244 = vadd.f32 %v6564, %v6904
        %v7245 = vadd.f32 %v6565, %v6905
        %v7246 = vadd.f32 %v6566, %v6906
        %v7247 = vadd.f32 %v6567, %v6907
        %v7248 = vadd.f32 %v6568, %v6908
        %v7249 = vadd.f32 %v6569, %v6909
        %v7250 = vadd.f32 %v6570, %v6910
        %v7251 = vadd.f32 %v6571, %v6911
        %v7252 = vadd.f32 %v6572, %v6912
        %v7253 = vadd.f32 %v6573, %v6913
        %v7254 = vadd.f32 %v6574, %v6914
        %v7255 = vadd.f32 %v6575, %v6915
        %v7256 = vadd.f32 %v6576, %v6916
        %v7257 = vadd.f32 %v6577, %v6917
        %v7258 = vadd.f32 %v6578, %v6918
        %v7259 = vadd.f32 %v6579, %v6919
        %v7260 = vadd.f32 %v6580, %v6920
        %v7261 = vadd.f32 %v6581, %v6921
        %v7262 = vadd.f32 %v6582, %v6922
        %v7263 = vadd.f32 %v6583, %v6923
        %v7264 = vadd.f32 %v6584, %v6924
        %v7265 = vadd.f32 %v6585, %v6925
        %v7266 = vadd.f32 %v6586, %v6926
        %v7267 = vadd.f32 %v6587, %v6927
        %v7268 = vadd.f32 %v6588, %v6928
        %v7269 = vadd.f32 %v6589, %v6929
        %v7270 = vadd.f32 %v6590, %v6930
        %v7271 = vadd.f32 %v6591, %v6931
        %v7272 = vadd.f32 %v6592, %v6932
        %v7273 = vadd.f32 %v6593, %v6933
        %v7274 = vadd.f32 %v6594, %v6934
        %v7275 = vadd.f32 %v6595, %v6935
        %v7276 = vadd.f32 %v6596, %v6936
        %v7277 = vadd.f32 %v6597, %v6937
        %v7278 = vadd.f32 %v6598, %v6938
        %v7279 = vadd.f32 %v6599, %v6939
        %v7280 = vadd.f32 %v6600, %v6940
        %v7281 = vadd.f32 %v6601, %v6941
        %v7282 = vadd.f32 %v6602, %v6942
        %v7283 = vadd.f32 %v6603, %v6943
        %v7284 = vadd.f32 %v6604, %v6944
        %v7285 = vadd.f32 %v6605, %v6945
        %v7286 = vadd.f32 %v6606, %v6946
        %v7287 = vadd.f32 %v6607, %v6947
        %v7288 = vadd.f32 %v6608, %v6948
        %v7289 = vadd.f32 %v6609, %v6949
        %v7290 = vadd.f32 %v6610, %v6950
        %v7291 = vadd.f32 %v6611, %v6951
        %v7292 = vadd.f32 %v6612, %v6952
        %v7293 = vadd.f32 %v6613, %v6953
        %v7294 = vadd.f32 %v6614, %v6954
        %v7295 = vadd.f32 %v6615, %v6955
        %v7296 = vadd.f32 %v6616, %v6956
        %v7297 = vadd.f32 %v6617, %v6957
        %v7298 = vadd.f32 %v6618, %v6958
        %v7299 = vadd.f32 %v6619, %v6959
        %v7300 = vadd.f32 %v6620, %v6960
        %v7301 = vadd.f32 %v6621, %v6961
        %v7302 = vadd.f32 %v6622, %v6962
        %v7303 = vadd.f32 %v6623, %v6963
        %v7304 = vadd.f32 %v6624, %v6964
        %v7305 = vadd.f32 %v6625, %v6965
        %v7306 = vadd.f32 %v6626, %v6966
        %v7307 = vadd.f32 %v6627, %v6967
        %v7308 = vadd.f32 %v6628, %v6968
        %v7309 = vadd.f32 %v6629, %v6969
        %v7310 = vadd.f32 %v6630, %v6970
        %v7311 = vadd.f32 %v6631, %v6971
        %v7312 = vadd.f32 %v6632, %v6972
        %v7313 = vadd.f32 %v6633, %v6973
        %v7314 = vadd.f32 %v6634, %v6974
        %v7315 = vadd.f32 %v6635, %v6975
        %v7316 = vadd.f32 %v6636, %v6976
        %v7317 = vadd.f32 %v6637, %v6977
        %v7318 = vadd.f32 %v6638, %v6978
        %v7319 = vadd.f32 %v6639, %v6979
        %v7320 = vadd.f32 %v6640, %v6980
        %v7321 = vadd.f32 %v6641, %v6981
        %v7322 = vadd.f32 %v6642, %v6982
        %v7323 = vadd.f32 %v6643, %v6983
        %v7324 = vadd.f32 %v6644, %v6984
        %v7325 = vadd.f32 %v6645, %v6985
        %v7326 = vadd.f32 %v6646, %v6986
        %v7327 = vadd.f32 %v6647, %v6987
        %v7328 = vadd.f32 %v6648, %v6988
        %v7329 = vadd.f32 %v6649, %v6989
        %v7330 = vadd.f32 %v6650, %v6990
        %v7331 = vadd.f32 %v6651, %v6991
        %v7332 = vadd.f32 %v6652, %v6992
        %v7333 = vadd.f32 %v6653, %v6993
        %v7334 = vadd.f32 %v6654, %v6994
        %v7335 = vadd.f32 %v6655, %v6995
        %v7336 = vadd.f32 %v6656, %v6996
        %v7337 = vadd.f32 %v6657, %v6997
        %v7338 = vadd.f32 %v6658, %v6998
        %v7339 = vadd.f32 %v6659, %v6999
        %v7340 = vadd.f32 %v6660, %v7000
        %v7341 = vadd.f32 %v6661, %v7001
        %v7342 = vadd.f32 %v6662, %v7002
        %v7343 = vadd.f32 %v6663, %v7003
        %v7344 = vadd.f32 %v6664, %v7004
        %v7345 = vadd.f32 %v6665, %v7005
        %v7346 = vadd.f32 %v6666, %v7006
        %v7347 = vadd.f32 %v6667, %v7007
        %v7348 = vadd.f32 %v6668, %v7008
        %v7349 = vadd.f32 %v6669, %v7009
        %v7350 = vadd.f32 %v6670, %v7010
        %v7351 = vadd.f32 %v6671, %v7011
        %v7352 = vadd.f32 %v6672, %v7012
        %v7353 = vadd.f32 %v6673, %v7013
        %v7354 = vadd.f32 %v6674, %v7014
        %v7355 = vadd.f32 %v6675, %v7015
        %v7356 = vadd.f32 %v6676, %v7016
        %v7357 = vadd.f32 %v6677, %v7017
        %v7358 = vadd.f32 %v6678, %v7018
        %v7359 = vadd.f32 %v6679, %v7019
        %v7360 = vadd.f32 %v6680, %v7020
        %v7361 = vadd.f32 %v6681, %v7021
        %v7362 = vadd.f32 %v6682, %v7022
        %v7363 = vadd.f32 %v6683, %v7023
        %v7364 = vadd.f32 %v6684, %v7024
        %v7365 = vadd.f32 %v6685, %v7025
        %v7366 = vadd.f32 %v6686, %v7026
        %v7367 = vadd.f32 %v6687, %v7027
        %v7368 = vadd.f32 %v6688, %v7028
        %v7369 = vadd.f32 %v6689, %v7029
        %v7370 = vadd.f32 %v6690, %v7030
        %v7371 = vadd.f32 %v6691, %v7031
        %v7372 = vadd.f32 %v6692, %v7032
        %v7373 = vadd.f32 %v6693, %v7033
        %v7374 = vadd.f32 %v6694, %v7034
        %v7375 = vadd.f32 %v6695, %v7035
        %v7376 = vadd.f32 %v6696, %v7036
        %v7377 = vadd.f32 %v6697, %v7037
        %v7378 = vadd.f32 %v6698, %v7038
        %v7379 = vadd.f32 %v6699, %v7039
        %v7380 = vadd.f32 %v6700, %v7040
        %v7381 = vadd.f32 %v6701, %v7041
        %v7382 = vadd.f32 %v6702, %v7042
        %v7383 = vadd.f32 %v6703, %v7043
        %v7384 = vadd.f32 %v6704, %v7044
        %v7385 = vadd.f32 %v6705, %v7045
        %v7386 = vadd.f32 %v6706, %v7046
        %v7387 = vadd.f32 %v6707, %v7047
        %v7388 = vadd.f32 %v6708, %v7048
        %v7389 = vadd.f32 %v6709, %v7049
        %v7390 = vadd.f32 %v6710, %v7050
        %v7391 = vadd.f32 %v6711, %v7051
        %v7392 = vadd.f32 %v6712, %v7052
        %v7393 = vadd.f32 %v6713, %v7053
        %v7394 = vadd.f32 %v6714, %v7054
        %v7395 = vadd.f32 %v6715, %v7055
        %v7396 = vadd.f32 %v6716, %v7056
        %v7397 = vadd.f32 %v6717, %v7057
        %v7398 = vadd.f32 %v6718, %v7058
        %v7399 = vadd.f32 %v6719, %v7059
        %v7400 = vadd.f32 %v6720, %v7060
        %v7401 = vadd.f32 %v6721, %v7061
        %v7402 = vadd.f32 %v6722, %v7062
        %v7403 = vadd.f32 %v6723, %v7063
        %v7404 = vadd.f32 %v6724, %v7064
        %v7405 = vadd.f32 %v6725, %v7065
        %v7406 = vadd.f32 %v6726, %v7066
        %v7407 = vadd.f32 %v6727, %v7067
        %v7408 = vadd.f32 %v6728, %v7068
        %v7409 = vadd.f32 %v6729, %v7069
        %v7410 = vadd.f32 %v6730, %v7070
        %v7411 = vadd.f32 %v6731, %v7071
        %v7412 = vadd.f32 %v6732, %v7072
        %v7413 = vadd.f32 %v6733, %v7073
        %v7414 = vadd.f32 %v6734, %v7074
        %v7415 = vadd.f32 %v6735, %v7075
        %v7416 = vadd.f32 %v6736, %v7076
        %v7417 = vadd.f32 %v6737, %v7077
        %v7418 = vadd.f32 %v6738, %v7078
        %v7419 = vadd.f32 %v6739, %v7079
        %v7420 = vadd.f32 %v6740, %v7080
        %v7421 = vadd.f32 %v6741, %v7081
        %v7422 = vadd.f32 %v6742, %v7082
        %v7423 = vadd.f32 %v6743, %v7083
        %v7424 = vadd.f32 %v6744, %v7084
        %v7425 = vadd.f32 %v6745, %v7085
        %v7426 = vadd.f32 %v6746, %v7086
        %v7427 = vadd.f32 %v6747, %v7087
        %v7428 = vadd.f32 %v6748, %v7088
        %v7429 = vadd.f32 %v6749, %v7089
        %v7430 = vadd.f32 %v6750, %v7090
        %v7431 = vadd.f32 %v6751, %v7091
        %v7432 = vadd.f32 %v6752, %v7092
        %v7433 = vadd.f32 %v6753, %v7093
        %v7434 = vadd.f32 %v6754, %v7094
        %v7435 = vadd.f32 %v6755, %v7095
        %v7436 = vadd.f32 %v6756, %v7096
        %v7437 = vadd.f32 %v6757, %v7097
        %v7438 = vadd.f32 %v6758, %v7098
        %v7439 = vadd.f32 %v6759, %v7099
        %v7440 = vadd.f32 %v6760, %v7100
        %v7441 = vadd.f32 %v6761, %v7101
        %v7442 = vadd.f32 %v6762, %v7102
        %v7443 = vadd.f32 %v6763, %v7103
        %v7444 = vadd.f32 %v6764, %v7104
        %v7445 = vadd.f32 %v6765, %v7105
        %v7446 = vadd.f32 %v6766, %v7106
        %v7447 = vadd.f32 %v6767, %v7107
        %v7448 = vadd.f32 %v6768, %v7108
        %v7449 = vadd.f32 %v6769, %v7109
        %v7450 = vadd.f32 %v6770, %v7110
        %v7451 = vadd.f32 %v6771, %v7111
        %v7452 = vadd.f32 %v6772, %v7112
        %v7453 = vadd.f32 %v6773, %v7113
        %v7454 = vadd.f32 %v6774, %v7114
        %v7455 = vadd.f32 %v6775, %v7115
        %v7456 = vadd.f32 %v6776, %v7116
        %v7457 = vadd.f32 %v6777, %v7117
        %v7458 = vadd.f32 %v6778, %v7118
        %v7459 = vadd.f32 %v6779, %v7119
        %v7460 = vadd.f32 %v6780, %v7120
        %v7461 = vadd.f32 %v6781, %v7121
        %v7462 = vadd.f32 %v6782, %v7122
        %v7463 = vadd.f32 %v6783, %v7123
        %v7464 = vadd.f32 %v6784, %v7124
        %v7465 = vadd.f32 %v6785, %v7125
        %v7466 = vadd.f32 %v6786, %v7126
        %v7467 = vadd.f32 %v6787, %v7127
        %v7468 = vadd.f32 %v6788, %v7128
        %v7469 = vadd.f32 %v6789, %v7129
        %v7470 = vadd.f32 %v6790, %v7130
        %v7471 = vadd.f32 %v6791, %v7131
        %v7472 = vadd.f32 %v6792, %v7132
        %v7473 = vadd.f32 %v6793, %v7133
        %v7474 = vadd.f32 %v6794, %v7134
        %v7475 = vadd.f32 %v6795, %v7135
        %v7476 = vadd.f32 %v6796, %v7136
        %v7477 = vadd.f32 %v6797, %v7137
        %v7478 = vadd.f32 %v6798, %v7138
        %v7479 = vadd.f32 %v6799, %v7139
        %v7480 = vadd.f32 %v6800, %v7140
        %v7481 = vadd.f32 %v6801, %v7141
        %v7482 = vadd.f32 %v6802, %v7142
        %v7483 = vadd.f32 %v6803, %v7143
        %v7484 = vadd.f32 %v6804, %v7144
        %v7485 = vadd.f32 %v6805, %v7145
        %v7486 = vadd.f32 %v6806, %v7146
        %v7487 = vadd.f32 %v6807, %v7147
        %v7488 = vadd.f32 %v6808, %v7148
        %v7489 = vadd.f32 %v6809, %v7149
        %v7490 = vadd.f32 %v6810, %v7150
        %v7491 = vadd.f32 %v6811, %v7151
        %v7492 = vadd.f32 %v6812, %v7152
        %v7493 = vadd.f32 %v6813, %v7153
        %v7494 = vadd.f32 %v6814, %v7154
        %v7495 = vadd.f32 %v6815, %v7155
        %v7496 = vadd.f32 %v6816, %v7156
        %v7497 = vadd.f32 %v6817, %v7157
        %v7498 = vadd.f32 %v6818, %v7158
        %v7499 = vadd.f32 %v6819, %v7159
        %v7500 = vadd.f32 %v6820, %v7160
        %v7501 = vadd.f32 %v6821, %v7161
        %v7502 = vadd.f32 %v6822, %v7162
        %v7503 = vadd.f32 %v6823, %v7163
        %v7504 = vadd.f32 %v6824, %v7164
        %v7505 = vadd.f32 %v6825, %v7165
        %v7506 = vadd.f32 %v6826, %v7166
        %v7507 = vadd.f32 %v6827, %v7167
        %v7508 = vadd.f32 %v6828, %v7168
        %v7509 = vadd.f32 %v6829, %v7169
        %v7510 = vadd.f32 %v6830, %v7170
        %v7511 = vadd.f32 %v6831, %v7171
        %v7512 = vadd.f32 %v6832, %v7172
        %v7513 = vadd.f32 %v6833, %v7173
        %v7514 = vadd.f32 %v6834, %v7174
        %v7515 = vadd.f32 %v6835, %v7175
        %v7516 = vadd.f32 %v6836, %v7176
        %v7517 = vadd.f32 %v6837, %v7177
        %v7518 = vadd.f32 %v6838, %v7178
        %v7519 = vadd.f32 %v6839, %v7179
        %v7520 = vadd.f32 %v6840, %v7180
        %v7521 = vadd.f32 %v6841, %v7181
        %v7522 = vadd.f32 %v6842, %v7182
        %v7523 = vadd.f32 %v6843, %v7183
        %v7524 = vadd.f32 %v6844, %v7184
        %v7525 = vadd.f32 %v6845, %v7185
        %v7526 = vadd.f32 %v6846, %v7186
        %v7527 = vadd.f32 %v6847, %v7187
        %v7528 = vadd.f32 %v6848, %v7188
        %v7529 = vadd.f32 %v6849, %v7189
        %v7530 = vadd.f32 %v6850, %v7190
        %v7531 = vadd.f32 %v6851, %v7191
        %v7532 = vadd.f32 %v6852, %v7192
        %v7533 = vadd.f32 %v6853, %v7193
        %v7534 = vadd.f32 %v6854, %v7194
        %v7535 = vadd.f32 %v6855, %v7195
        %v7536 = vadd.f32 %v6856, %v7196
        %v7537 = vld [vmem:[%s6] sm:$0xf]
        %v7538 = vld [vmem:[%s6 + $0x4] sm:$0xf]
        %v7539 = vld [vmem:[%s6 + $0x8] sm:$0xf]
        %v7540 = vld [vmem:[%s6 + $0xc] sm:$0xf]
        %v7541 = vld [vmem:[%s6 + $0x10] sm:$0xf]
        %v7542 = vld [vmem:[%s6 + $0x14] sm:$0xf]
        %v7543 = vld [vmem:[%s6 + $0x18] sm:$0xf]
        %v7544 = vld [vmem:[%s6 + $0x1c] sm:$0xf]
        %v7545 = vpack.c.bf16 %v7199, %v7197
        %v7546 = vpack.c.bf16 %v7200, %v7198
        %v7555 = vunpack.c.l.b16 %v7537
        %v7556 = vunpack.c.l.b16 %v7538
        %v7557 = vunpack.c.l.b16 %v7539
        %v7558 = vunpack.c.l.b16 %v7540
        %v7559 = vunpack.c.l.b16 %v7541
        %v7560 = vunpack.c.l.b16 %v7542
        %v7561 = vunpack.c.l.b16 %v7543
        %v7562 = vunpack.c.l.b16 %v7544
        %v7563 = vpack.c.b16 %v7556, %v7555
        %v7564 = vpack.c.b16 %v7558, %v7557
        %v7565 = vpack.c.b16 %v7560, %v7559
        %v7566 = vpack.c.b16 %v7562, %v7561
        %vm7567 = vcmask 130048
        %v7569 = vsel %vm7567, %v7563, 0
        %v7572 = vsel %vm7567, %v7564, 0
        %v7575 = vsel %vm7567, %v7565, 0
        %v7578 = vsel %vm7567, %v7566, 0
        %7580 = vmatprep.subr.bf16.mxu0 %v7546
        %7581 = vmatpush1.bf16.msra.mxu0 %v7545
        %7582 = vmatprep.subr.bf16.mxu0 0
        %7583 = vmatpush1.bf16.msra.mxu0 0
        %7584 = vmatprep.subr.bf16.mxu0 0
        %7585 = vmatpush1.bf16.msra.mxu0 0
        %7586 = vmatprep.subr.bf16.mxu0 0
        %7587 = vmatpush1.bf16.msra.mxu0 0
        %7588 = vmatprep.subr.bf16.mxu0 0
        %7589 = vmatpush1.bf16.msra.mxu0 0
        %7590 = vmatprep.subr.bf16.mxu0 0
        %7591 = vmatpush1.bf16.msra.mxu0 0
        %7592 = vmatprep.subr.bf16.mxu0 0
        %7593 = vmatpush1.bf16.msra.mxu0 0
        %7594 = vmatprep.subr.bf16.mxu0 0
        %7595 = vmatpush1.bf16.msra.mxu0 0
        %7596 = vmatprep.subr.bf16.mxu0 0
        %7597 = vmatpush1.bf16.msra.mxu0 0
        %7598 = vmatprep.subr.bf16.mxu0 0
        %7599 = vmatpush1.bf16.msra.mxu0 0
        %7600 = vmatprep.subr.bf16.mxu0 0
        %7601 = vmatpush1.bf16.msra.mxu0 0
        %7602 = vmatprep.subr.bf16.mxu0 0
        %7603 = vmatpush1.bf16.msra.mxu0 0
        %7604 = vmatprep.subr.bf16.mxu0 0
        %7605 = vmatpush1.bf16.msra.mxu0 0
        %7606 = vmatprep.subr.bf16.mxu0 0
        %7607 = vmatpush1.bf16.msra.mxu0 0
        %7608 = vmatprep.subr.bf16.mxu0 0
        %7609 = vmatpush1.bf16.msra.mxu0 0
        %7610 = vmatprep.subr.bf16.mxu0 0
        %7611 = vmatpush1.bf16.msra.mxu0 0
        %7612 = vmatprep.mubr.bf16.mxu0 0
        %7613 = vmatmul.mubr.bf16.gmra.mrb[0].mxu0 %v7569
        %v7614 = vpop.f32.mrb[0].mxu0
        %v7615 = vadd.f32 %v7201, %v7614
        %v7616 = vpop.f32.mrb[0].mxu0
        %v7617 = vadd.f32 %v7202, %v7616
        %v7618 = vpop.f32.mrb[0].mxu0
        %v7619 = vadd.f32 %v7203, %v7618
        %v7620 = vpop.f32.mrb[0].mxu0
        %v7621 = vadd.f32 %v7204, %v7620
        %7622 = vmatprep.mubr.bf16.mxu0 0
        %7623 = vmatmul.mubr.bf16.gmra.mrb[0].mxu0 %v7572
        %v7624 = vpop.f32.mrb[0].mxu0
        %v7625 = vadd.f32 %v7205, %v7624
        %v7626 = vpop.f32.mrb[0].mxu0
        %v7627 = vadd.f32 %v7206, %v7626
        %v7628 = vpop.f32.mrb[0].mxu0
        %v7629 = vadd.f32 %v7207, %v7628
        %v7630 = vpop.f32.mrb[0].mxu0
        %v7631 = vadd.f32 %v7208, %v7630
        %7632 = vmatprep.mubr.bf16.mxu0 0
        %7633 = vmatmul.mubr.bf16.gmra.mrb[0].mxu0 %v7575
        %v7634 = vpop.f32.mrb[0].mxu0
        %v7635 = vadd.f32 %v7209, %v7634
        %v7636 = vpop.f32.mrb[0].mxu0
        %v7637 = vadd.f32 %v7210, %v7636
        %v7638 = vpop.f32.mrb[0].mxu0
        %v7639 = vadd.f32 %v7211, %v7638
        %v7640 = vpop.f32.mrb[0].mxu0
        %v7641 = vadd.f32 %v7212, %v7640
        %7642 = vmatprep.mubr.bf16.mxu0 0
        %7643 = vmatmul.mubr.bf16.gmra.mrb[0].mxu0 %v7578
        %v7644 = vpop.f32.mrb[0].mxu0
        %v7645 = vadd.f32 %v7213, %v7644
        %v7646 = vpop.f32.mrb[0].mxu0
        %v7647 = vadd.f32 %v7214, %v7646
        %v7648 = vpop.f32.mrb[0].mxu0
        %v7649 = vadd.f32 %v7215, %v7648
        %v7650 = vpop.f32.mrb[0].mxu0
        %v7651 = vadd.f32 %v7216, %v7650
        %7652 = vdwg.mxu0
        %v7653 = vld [vmem:[%s7] sm:$0xf]
        %v7654 = vld [vmem:[%s7 + $0x4] sm:$0xf]
        %v7655 = vld [vmem:[%s7 + $0x8] sm:$0xf]
        %v7656 = vld [vmem:[%s7 + $0xc] sm:$0xf]
        %v7657 = vld [vmem:[%s7 + $0x10] sm:$0xf]
        %v7658 = vld [vmem:[%s7 + $0x14] sm:$0xf]
        %v7659 = vld [vmem:[%s7 + $0x18] sm:$0xf]
        %v7660 = vld [vmem:[%s7 + $0x1c] sm:$0xf]
        %v7661 = vld [vmem:[%s7 + $0x20] sm:$0xf]
        %v7662 = vld [vmem:[%s7 + $0x24] sm:$0xf]
        %v7663 = vld [vmem:[%s7 + $0x28] sm:$0xf]
        %v7664 = vld [vmem:[%s7 + $0x2c] sm:$0xf]
        %v7665 = vld [vmem:[%s7 + $0x30] sm:$0xf]
        %v7666 = vld [vmem:[%s7 + $0x34] sm:$0xf]
        %v7667 = vld [vmem:[%s7 + $0x38] sm:$0xf]
        %v7668 = vld [vmem:[%s7 + $0x3c] sm:$0xf]
        %v7669 = vld [vmem:[%s7 + $0x40] sm:$0xf]
        %v7670 = vld [vmem:[%s7 + $0x44] sm:$0xf]
        %v7671 = vld [vmem:[%s7 + $0x48] sm:$0xf]
        %v7672 = vld [vmem:[%s7 + $0x4c] sm:$0xf]
        %v7673 = vld [vmem:[%s7 + $0x50] sm:$0xf]
        %v7674 = vld [vmem:[%s7 + $0x54] sm:$0xf]
        %v7675 = vld [vmem:[%s7 + $0x58] sm:$0xf]
        %v7676 = vld [vmem:[%s7 + $0x5c] sm:$0xf]
        %v7677 = vld [vmem:[%s7 + $0x60] sm:$0xf]
        %v7678 = vld [vmem:[%s7 + $0x64] sm:$0xf]
        %v7679 = vld [vmem:[%s7 + $0x68] sm:$0xf]
        %v7680 = vld [vmem:[%s7 + $0x6c] sm:$0xf]
        %v7681 = vld [vmem:[%s7 + $0x70] sm:$0xf]
        %v7682 = vld [vmem:[%s7 + $0x74] sm:$0xf]
        %v7683 = vld [vmem:[%s7 + $0x78] sm:$0xf]
        %v7684 = vld [vmem:[%s7 + $0x7c] sm:$0xf]
        %v7685 = vpack.c.bf16 %v7619, %v7615
        %v7686 = vpack.c.bf16 %v7621, %v7617
        %v7687 = vpack.c.bf16 %v7629, %v7625
        %v7688 = vpack.c.bf16 %v7631, %v7627
        %v7689 = vpack.c.bf16 %v7639, %v7635
        %v7690 = vpack.c.bf16 %v7641, %v7637
        %v7691 = vpack.c.bf16 %v7649, %v7645
        %v7692 = vpack.c.bf16 %v7651, %v7647
        %v7725 = vunpack.c.l.b16 %v7653
        %v7726 = vunpack.c.l.b16 %v7654
        %v7727 = vunpack.c.l.b16 %v7655
        %v7728 = vunpack.c.l.b16 %v7656
        %v7729 = vunpack.c.l.b16 %v7657
        %v7730 = vunpack.c.l.b16 %v7658
        %v7731 = vunpack.c.l.b16 %v7659
        %v7732 = vunpack.c.l.b16 %v7660
        %v7733 = vunpack.c.l.b16 %v7661
        %v7734 = vunpack.c.l.b16 %v7662
        %v7735 = vunpack.c.l.b16 %v7663
        %v7736 = vunpack.c.l.b16 %v7664
        %v7737 = vunpack.c.l.b16 %v7665
        %v7738 = vunpack.c.l.b16 %v7666
        %v7739 = vunpack.c.l.b16 %v7667
        %v7740 = vunpack.c.l.b16 %v7668
        %v7741 = vunpack.c.l.b16 %v7669
        %v7742 = vunpack.c.l.b16 %v7670
        %v7743 = vunpack.c.l.b16 %v7671
        %v7744 = vunpack.c.l.b16 %v7672
        %v7745 = vunpack.c.l.b16 %v7673
        %v7746 = vunpack.c.l.b16 %v7674
        %v7747 = vunpack.c.l.b16 %v7675
        %v7748 = vunpack.c.l.b16 %v7676
        %v7749 = vunpack.c.l.b16 %v7677
        %v7750 = vunpack.c.l.b16 %v7678
        %v7751 = vunpack.c.l.b16 %v7679
        %v7752 = vunpack.c.l.b16 %v7680
        %v7753 = vunpack.c.l.b16 %v7681
        %v7754 = vunpack.c.l.b16 %v7682
        %v7755 = vunpack.c.l.b16 %v7683
        %v7756 = vunpack.c.l.b16 %v7684
        %v7757 = vpack.c.b16 %v7726, %v7725
        %v7758 = vpack.c.b16 %v7728, %v7727
        %v7759 = vpack.c.b16 %v7730, %v7729
        %v7760 = vpack.c.b16 %v7732, %v7731
        %v7761 = vpack.c.b16 %v7734, %v7733
        %v7762 = vpack.c.b16 %v7736, %v7735
        %v7763 = vpack.c.b16 %v7738, %v7737
        %v7764 = vpack.c.b16 %v7740, %v7739
        %v7765 = vpack.c.b16 %v7742, %v7741
        %v7766 = vpack.c.b16 %v7744, %v7743
        %v7767 = vpack.c.b16 %v7746, %v7745
        %v7768 = vpack.c.b16 %v7748, %v7747
        %v7769 = vpack.c.b16 %v7750, %v7749
        %v7770 = vpack.c.b16 %v7752, %v7751
        %v7771 = vpack.c.b16 %v7754, %v7753
        %v7772 = vpack.c.b16 %v7756, %v7755
        %v7774 = vsel %vm1642, %v7757, 0
        %v7777 = vsel %vm1642, %v7758, 0
        %v7780 = vsel %vm1642, %v7759, 0
        %v7783 = vsel %vm1642, %v7760, 0
        %v7786 = vsel %vm1642, %v7761, 0
        %v7789 = vsel %vm1642, %v7762, 0
        %v7792 = vsel %vm1642, %v7763, 0
        %v7795 = vsel %vm1642, %v7764, 0
        %v7798 = vsel %vm1642, %v7765, 0
        %v7801 = vsel %vm1642, %v7766, 0
        %v7804 = vsel %vm1642, %v7767, 0
        %v7807 = vsel %vm1642, %v7768, 0
        %v7810 = vsel %vm1642, %v7769, 0
        %v7813 = vsel %vm1642, %v7770, 0
        %v7816 = vsel %vm1642, %v7771, 0
        %v7819 = vsel %vm1642, %v7772, 0
        %7821 = vmatprep.subr.bf16.mxu0 %v7686
        %7822 = vmatpush1.bf16.msra.mxu0 %v7685
        %7823 = vmatprep.subr.bf16.mxu0 %v7688
        %7824 = vmatpush1.bf16.msra.mxu0 %v7687
        %7825 = vmatprep.subr.bf16.mxu0 %v7690
        %7826 = vmatpush1.bf16.msra.mxu0 %v7689
        %7827 = vmatprep.subr.bf16.mxu0 %v7692
        %7828 = vmatpush1.bf16.msra.mxu0 %v7691
        %7829 = vmatprep.subr.bf16.mxu0 0
        %7830 = vmatpush1.bf16.msra.mxu0 0
        %7831 = vmatprep.subr.bf16.mxu0 0
        %7832 = vmatpush1.bf16.msra.mxu0 0
        %7833 = vmatprep.subr.bf16.mxu0 0
        %7834 = vmatpush1.bf16.msra.mxu0 0
        %7835 = vmatprep.subr.bf16.mxu0 0
        %7836 = vmatpush1.bf16.msra.mxu0 0
        %7837 = vmatprep.subr.bf16.mxu0 0
        %7838 = vmatpush1.bf16.msra.mxu0 0
        %7839 = vmatprep.subr.bf16.mxu0 0
        %7840 = vmatpush1.bf16.msra.mxu0 0
        %7841 = vmatprep.subr.bf16.mxu0 0
        %7842 = vmatpush1.bf16.msra.mxu0 0
        %7843 = vmatprep.subr.bf16.mxu0 0
        %7844 = vmatpush1.bf16.msra.mxu0 0
        %7845 = vmatprep.subr.bf16.mxu0 0
        %7846 = vmatpush1.bf16.msra.mxu0 0
        %7847 = vmatprep.subr.bf16.mxu0 0
        %7848 = vmatpush1.bf16.msra.mxu0 0
        %7849 = vmatprep.subr.bf16.mxu0 0
        %7850 = vmatpush1.bf16.msra.mxu0 0
        %7851 = vmatprep.subr.bf16.mxu0 0
        %7852 = vmatpush1.bf16.msra.mxu0 0
        %7853 = vmatprep.mubr.bf16.mxu0 0
        %7854 = vmatmul.mubr.bf16.gmra.mrb[0].mxu0 %v7774
        %v7855 = vpop.f32.mrb[0].mxu0
        %v7856 = vadd.f32 %v7217, %v7855
        %v7857 = vpop.f32.mrb[0].mxu0
        %v7858 = vadd.f32 %v7218, %v7857
        %v7859 = vpop.f32.mrb[0].mxu0
        %v7860 = vadd.f32 %v7219, %v7859
        %v7861 = vpop.f32.mrb[0].mxu0
        %v7862 = vadd.f32 %v7220, %v7861
        %7863 = vmatprep.mubr.bf16.mxu0 0
        %7864 = vmatmul.mubr.bf16.gmra.mrb[0].mxu0 %v7777
        %v7865 = vpop.f32.mrb[0].mxu0
        %v7866 = vadd.f32 %v7221, %v7865
        %v7867 = vpop.f32.mrb[0].mxu0
        %v7868 = vadd.f32 %v7222, %v7867
        %v7869 = vpop.f32.mrb[0].mxu0
        %v7870 = vadd.f32 %v7223, %v7869
        %v7871 = vpop.f32.mrb[0].mxu0
        %v7872 = vadd.f32 %v7224, %v7871
        %7873 = vmatprep.mubr.bf16.mxu0 0
        %7874 = vmatmul.mubr.bf16.gmra.mrb[0].mxu0 %v7780
        %v7875 = vpop.f32.mrb[0].mxu0
        %v7876 = vadd.f32 %v7225, %v7875
        %v7877 = vpop.f32.mrb[0].mxu0
        %v7878 = vadd.f32 %v7226, %v7877
        %v7879 = vpop.f32.mrb[0].mxu0
        %v7880 = vadd.f32 %v7227, %v7879
        %v7881 = vpop.f32.mrb[0].mxu0
        %v7882 = vadd.f32 %v7228, %v7881
        %7883 = vmatprep.mubr.bf16.mxu0 0
        %7884 = vmatmul.mubr.bf16.gmra.mrb[0].mxu0 %v7783
        %v7885 = vpop.f32.mrb[0].mxu0
        %v7886 = vadd.f32 %v7229, %v7885
        %v7887 = vpop.f32.mrb[0].mxu0
        %v7888 = vadd.f32 %v7230, %v7887
        %v7889 = vpop.f32.mrb[0].mxu0
        %v7890 = vadd.f32 %v7231, %v7889
        %v7891 = vpop.f32.mrb[0].mxu0
        %v7892 = vadd.f32 %v7232, %v7891
        %7893 = vmatprep.mubr.bf16.mxu0 0
        %7894 = vmatmul.mubr.bf16.gmra.mrb[0].mxu0 %v7786
        %v7895 = vpop.f32.mrb[0].mxu0
        %v7896 = vadd.f32 %v7233, %v7895
        %v7897 = vpop.f32.mrb[0].mxu0
        %v7898 = vadd.f32 %v7234, %v7897
        %v7899 = vpop.f32.mrb[0].mxu0
        %v7900 = vadd.f32 %v7235, %v7899
        %v7901 = vpop.f32.mrb[0].mxu0
        %v7902 = vadd.f32 %v7236, %v7901
        %7903 = vmatprep.mubr.bf16.mxu0 0
        %7904 = vmatmul.mubr.bf16.gmra.mrb[0].mxu0 %v7789
        %v7905 = vpop.f32.mrb[0].mxu0
        %v7906 = vadd.f32 %v7237, %v7905
        %v7907 = vpop.f32.mrb[0].mxu0
        %v7908 = vadd.f32 %v7238, %v7907
        %v7909 = vpop.f32.mrb[0].mxu0
        %v7910 = vadd.f32 %v7239, %v7909
        %v7911 = vpop.f32.mrb[0].mxu0
        %v7912 = vadd.f32 %v7240, %v7911
        %7913 = vmatprep.mubr.bf16.mxu0 0
        %7914 = vmatmul.mubr.bf16.gmra.mrb[0].mxu0 %v7792
        %v7915 = vpop.f32.mrb[0].mxu0
        %v7916 = vadd.f32 %v7241, %v7915
        %v7917 = vpop.f32.mrb[0].mxu0
        %v7918 = vadd.f32 %v7242, %v7917
        %v7919 = vpop.f32.mrb[0].mxu0
        %v7920 = vadd.f32 %v7243, %v7919
        %v7921 = vpop.f32.mrb[0].mxu0
        %v7922 = vadd.f32 %v7244, %v7921
        %7923 = vmatprep.mubr.bf16.mxu0 0
        %7924 = vmatmul.mubr.bf16.gmra.mrb[0].mxu0 %v7795
        %v7925 = vpop.f32.mrb[0].mxu0
        %v7926 = vadd.f32 %v7245, %v7925
        %v7927 = vpop.f32.mrb[0].mxu0
        %v7928 = vadd.f32 %v7246, %v7927
        %v7929 = vpop.f32.mrb[0].mxu0
        %v7930 = vadd.f32 %v7247, %v7929
        %v7931 = vpop.f32.mrb[0].mxu0
        %v7932 = vadd.f32 %v7248, %v7931
        %7933 = vmatprep.mubr.bf16.mxu0 0
        %7934 = vmatmul.mubr.bf16.gmra.mrb[0].mxu0 %v7798
        %v7935 = vpop.f32.mrb[0].mxu0
        %v7936 = vadd.f32 %v7249, %v7935
        %v7937 = vpop.f32.mrb[0].mxu0
        %v7938 = vadd.f32 %v7250, %v7937
        %v7939 = vpop.f32.mrb[0].mxu0
        %v7940 = vadd.f32 %v7251, %v7939
        %v7941 = vpop.f32.mrb[0].mxu0
        %v7942 = vadd.f32 %v7252, %v7941
        %7943 = vmatprep.mubr.bf16.mxu0 0
        %7944 = vmatmul.mubr.bf16.gmra.mrb[0].mxu0 %v7801
        %v7945 = vpop.f32.mrb[0].mxu0
        %v7946 = vadd.f32 %v7253, %v7945
        %v7947 = vpop.f32.mrb[0].mxu0
        %v7948 = vadd.f32 %v7254, %v7947
        %v7949 = vpop.f32.mrb[0].mxu0
        %v7950 = vadd.f32 %v7255, %v7949
        %v7951 = vpop.f32.mrb[0].mxu0
        %v7952 = vadd.f32 %v7256, %v7951
        %7953 = vmatprep.mubr.bf16.mxu0 0
        %7954 = vmatmul.mubr.bf16.gmra.mrb[0].mxu0 %v7804
        %v7955 = vpop.f32.mrb[0].mxu0
        %v7956 = vadd.f32 %v7257, %v7955
        %v7957 = vpop.f32.mrb[0].mxu0
        %v7958 = vadd.f32 %v7258, %v7957
        %v7959 = vpop.f32.mrb[0].mxu0
        %v7960 = vadd.f32 %v7259, %v7959
        %v7961 = vpop.f32.mrb[0].mxu0
        %v7962 = vadd.f32 %v7260, %v7961
        %7963 = vmatprep.mubr.bf16.mxu0 0
        %7964 = vmatmul.mubr.bf16.gmra.mrb[0].mxu0 %v7807
        %v7965 = vpop.f32.mrb[0].mxu0
        %v7966 = vadd.f32 %v7261, %v7965
        %v7967 = vpop.f32.mrb[0].mxu0
        %v7968 = vadd.f32 %v7262, %v7967
        %v7969 = vpop.f32.mrb[0].mxu0
        %v7970 = vadd.f32 %v7263, %v7969
        %v7971 = vpop.f32.mrb[0].mxu0
        %v7972 = vadd.f32 %v7264, %v7971
        %7973 = vmatprep.mubr.bf16.mxu0 0
        %7974 = vmatmul.mubr.bf16.gmra.mrb[0].mxu0 %v7810
        %v7975 = vpop.f32.mrb[0].mxu0
        %v7976 = vadd.f32 %v7265, %v7975
        %v7977 = vpop.f32.mrb[0].mxu0
        %v7978 = vadd.f32 %v7266, %v7977
        %v7979 = vpop.f32.mrb[0].mxu0
        %v7980 = vadd.f32 %v7267, %v7979
        %v7981 = vpop.f32.mrb[0].mxu0
        %v7982 = vadd.f32 %v7268, %v7981
        %7983 = vmatprep.mubr.bf16.mxu0 0
        %7984 = vmatmul.mubr.bf16.gmra.mrb[0].mxu0 %v7813
        %v7985 = vpop.f32.mrb[0].mxu0
        %v7986 = vadd.f32 %v7269, %v7985
        %v7987 = vpop.f32.mrb[0].mxu0
        %v7988 = vadd.f32 %v7270, %v7987
        %v7989 = vpop.f32.mrb[0].mxu0
        %v7990 = vadd.f32 %v7271, %v7989
        %v7991 = vpop.f32.mrb[0].mxu0
        %v7992 = vadd.f32 %v7272, %v7991
        %7993 = vmatprep.mubr.bf16.mxu0 0
        %7994 = vmatmul.mubr.bf16.gmra.mrb[0].mxu0 %v7816
        %v7995 = vpop.f32.mrb[0].mxu0
        %v7996 = vadd.f32 %v7273, %v7995
        %v7997 = vpop.f32.mrb[0].mxu0
        %v7998 = vadd.f32 %v7274, %v7997
        %v7999 = vpop.f32.mrb[0].mxu0
        %v8000 = vadd.f32 %v7275, %v7999
        %v8001 = vpop.f32.mrb[0].mxu0
        %v8002 = vadd.f32 %v7276, %v8001
        %8003 = vmatprep.mubr.bf16.mxu0 0
        %8004 = vmatmul.mubr.bf16.gmra.mrb[0].mxu0 %v7819
        %v8005 = vpop.f32.mrb[0].mxu0
        %v8006 = vadd.f32 %v7277, %v8005
        %v8007 = vpop.f32.mrb[0].mxu0
        %v8008 = vadd.f32 %v7278, %v8007
        %v8009 = vpop.f32.mrb[0].mxu0
        %v8010 = vadd.f32 %v7279, %v8009
        %v8011 = vpop.f32.mrb[0].mxu0
        %v8012 = vadd.f32 %v7280, %v8011
        %8013 = vdwg.mxu0
        %v8014 = vld [vmem:[#allocation11] sm:$0xff]
        %v8015 = vld [vmem:[#allocation11 + $0x8] sm:$0xff]
        %v8016 = vld [vmem:[#allocation11 + $0x10] sm:$0xff]
        %v8017 = vld [vmem:[#allocation11 + $0x18] sm:$0xff]
        %v8018 = vld [vmem:[#allocation11 + $0x20] sm:$0xff]
        %v8019 = vld [vmem:[#allocation11 + $0x28] sm:$0xff]
        %v8020 = vld [vmem:[#allocation11 + $0x30] sm:$0xff]
        %v8021 = vld [vmem:[#allocation11 + $0x38] sm:$0xff]
        %v8022 = vld [vmem:[#allocation11 + $0x40] sm:$0xff]
        %v8023 = vld [vmem:[#allocation11 + $0x48] sm:$0xff]
        %v8024 = vld [vmem:[#allocation11 + $0x50] sm:$0xff]
        %v8025 = vld [vmem:[#allocation11 + $0x58] sm:$0xff]
        %v8026 = vld [vmem:[#allocation11 + $0x60] sm:$0xff]
        %v8027 = vld [vmem:[#allocation11 + $0x68] sm:$0xff]
        %v8028 = vld [vmem:[#allocation11 + $0x70] sm:$0xff]
        %v8029 = vld [vmem:[#allocation11 + $0x78] sm:$0xff]
        %v8030 = vld [vmem:[#allocation11 + $0x80] sm:$0xff]
        %v8031 = vld [vmem:[#allocation11 + $0x88] sm:$0xff]
        %v8032 = vld [vmem:[#allocation11 + $0x90] sm:$0xff]
        %v8033 = vld [vmem:[#allocation11 + $0x98] sm:$0xff]
        %v8034 = vld [vmem:[#allocation11 + $0xa0] sm:$0xff]
        %v8035 = vld [vmem:[#allocation11 + $0xa8] sm:$0xff]
        %v8036 = vld [vmem:[#allocation11 + $0xb0] sm:$0xff]
        %v8037 = vld [vmem:[#allocation11 + $0xb8] sm:$0xff]
        %v8038 = vld [vmem:[#allocation11 + $0xc0] sm:$0xff]
        %v8039 = vld [vmem:[#allocation11 + $0xc8] sm:$0xff]
        %v8040 = vld [vmem:[#allocation11 + $0xd0] sm:$0xff]
        %v8041 = vld [vmem:[#allocation11 + $0xd8] sm:$0xff]
        %v8042 = vld [vmem:[#allocation11 + $0xe0] sm:$0xff]
        %v8043 = vld [vmem:[#allocation11 + $0xe8] sm:$0xff]
        %v8044 = vld [vmem:[#allocation11 + $0xf0] sm:$0xff]
        %v8045 = vld [vmem:[#allocation11 + $0xf8] sm:$0xff]
        %v8046 = vld [vmem:[#allocation11 + $0x100] sm:$0xff]
        %v8047 = vld [vmem:[#allocation11 + $0x108] sm:$0xff]
        %v8048 = vld [vmem:[#allocation11 + $0x110] sm:$0xff]
        %v8049 = vld [vmem:[#allocation11 + $0x118] sm:$0xff]
        %v8050 = vld [vmem:[#allocation11 + $0x120] sm:$0xff]
        %v8051 = vld [vmem:[#allocation11 + $0x128] sm:$0xff]
        %v8052 = vld [vmem:[#allocation11 + $0x130] sm:$0xff]
        %v8053 = vld [vmem:[#allocation11 + $0x138] sm:$0xff]
        %v8054 = vld [vmem:[#allocation11 + $0x140] sm:$0xff]
        %v8055 = vld [vmem:[#allocation11 + $0x148] sm:$0xff]
        %v8056 = vld [vmem:[#allocation11 + $0x150] sm:$0xff]
        %v8057 = vld [vmem:[#allocation11 + $0x158] sm:$0xff]
        %v8058 = vld [vmem:[#allocation11 + $0x160] sm:$0xff]
        %v8059 = vld [vmem:[#allocation11 + $0x168] sm:$0xff]
        %v8060 = vld [vmem:[#allocation11 + $0x170] sm:$0xff]
        %v8061 = vld [vmem:[#allocation11 + $0x178] sm:$0xff]
        %v8062 = vld [vmem:[#allocation11 + $0x180] sm:$0xff]
        %v8063 = vld [vmem:[#allocation11 + $0x188] sm:$0xff]
        %v8064 = vld [vmem:[#allocation11 + $0x190] sm:$0xff]
        %v8065 = vld [vmem:[#allocation11 + $0x198] sm:$0xff]
        %v8066 = vld [vmem:[#allocation11 + $0x1a0] sm:$0xff]
        %v8067 = vld [vmem:[#allocation11 + $0x1a8] sm:$0xff]
        %v8068 = vld [vmem:[#allocation11 + $0x1b0] sm:$0xff]
        %v8069 = vld [vmem:[#allocation11 + $0x1b8] sm:$0xff]
        %v8070 = vld [vmem:[#allocation11 + $0x1c0] sm:$0xff]
        %v8071 = vld [vmem:[#allocation11 + $0x1c8] sm:$0xff]
        %v8072 = vld [vmem:[#allocation11 + $0x1d0] sm:$0xff]
        %v8073 = vld [vmem:[#allocation11 + $0x1d8] sm:$0xff]
        %v8074 = vld [vmem:[#allocation11 + $0x1e0] sm:$0xff]
        %v8075 = vld [vmem:[#allocation11 + $0x1e8] sm:$0xff]
        %v8076 = vld [vmem:[#allocation11 + $0x1f0] sm:$0xff]
        %v8077 = vld [vmem:[#allocation11 + $0x1f8] sm:$0xff]
        %v8078 = vld [vmem:[#allocation11 + $0x200] sm:$0xff]
        %v8079 = vld [vmem:[#allocation11 + $0x208] sm:$0xff]
        %v8080 = vld [vmem:[#allocation11 + $0x210] sm:$0xff]
        %v8081 = vld [vmem:[#allocation11 + $0x218] sm:$0xff]
        %v8082 = vld [vmem:[#allocation11 + $0x220] sm:$0xff]
        %v8083 = vld [vmem:[#allocation11 + $0x228] sm:$0xff]
        %v8084 = vld [vmem:[#allocation11 + $0x230] sm:$0xff]
        %v8085 = vld [vmem:[#allocation11 + $0x238] sm:$0xff]
        %v8086 = vld [vmem:[#allocation11 + $0x240] sm:$0xff]
        %v8087 = vld [vmem:[#allocation11 + $0x248] sm:$0xff]
        %v8088 = vld [vmem:[#allocation11 + $0x250] sm:$0xff]
        %v8089 = vld [vmem:[#allocation11 + $0x258] sm:$0xff]
        %v8090 = vld [vmem:[#allocation11 + $0x260] sm:$0xff]
        %v8091 = vld [vmem:[#allocation11 + $0x268] sm:$0xff]
        %v8092 = vld [vmem:[#allocation11 + $0x270] sm:$0xff]
        %v8093 = vld [vmem:[#allocation11 + $0x278] sm:$0xff]
        %v8094 = vld [vmem:[#allocation11 + $0x280] sm:$0xff]
        %v8095 = vld [vmem:[#allocation11 + $0x288] sm:$0xff]
        %v8096 = vld [vmem:[#allocation11 + $0x290] sm:$0xff]
        %v8097 = vld [vmem:[#allocation11 + $0x298] sm:$0xff]
        %v8098 = vld [vmem:[#allocation11 + $0x2a0] sm:$0xff]
        %v8099 = vld [vmem:[#allocation11 + $0x2a8] sm:$0xff]
        %v8100 = vld [vmem:[#allocation11 + $0x2b0] sm:$0xff]
        %v8101 = vld [vmem:[#allocation11 + $0x2b8] sm:$0xff]
        %v8102 = vld [vmem:[#allocation11 + $0x2c0] sm:$0xff]
        %v8103 = vld [vmem:[#allocation11 + $0x2c8] sm:$0xff]
        %v8104 = vld [vmem:[#allocation11 + $0x2d0] sm:$0xff]
        %v8105 = vld [vmem:[#allocation11 + $0x2d8] sm:$0xff]
        %v8106 = vld [vmem:[#allocation11 + $0x2e0] sm:$0xff]
        %v8107 = vld [vmem:[#allocation11 + $0x2e8] sm:$0xff]
        %v8108 = vld [vmem:[#allocation11 + $0x2f0] sm:$0xff]
        %v8109 = vld [vmem:[#allocation11 + $0x2f8] sm:$0xff]
        %v8110 = vld [vmem:[#allocation11 + $0x300] sm:$0xff]
        %v8111 = vld [vmem:[#allocation11 + $0x308] sm:$0xff]
        %v8112 = vld [vmem:[#allocation11 + $0x310] sm:$0xff]
        %v8113 = vld [vmem:[#allocation11 + $0x318] sm:$0xff]
        %v8114 = vld [vmem:[#allocation11 + $0x320] sm:$0xff]
        %v8115 = vld [vmem:[#allocation11 + $0x328] sm:$0xff]
        %v8116 = vld [vmem:[#allocation11 + $0x330] sm:$0xff]
        %v8117 = vld [vmem:[#allocation11 + $0x338] sm:$0xff]
        %v8118 = vld [vmem:[#allocation11 + $0x340] sm:$0xff]
        %v8119 = vld [vmem:[#allocation11 + $0x348] sm:$0xff]
        %v8120 = vld [vmem:[#allocation11 + $0x350] sm:$0xff]
        %v8121 = vld [vmem:[#allocation11 + $0x358] sm:$0xff]
        %v8122 = vld [vmem:[#allocation11 + $0x360] sm:$0xff]
        %v8123 = vld [vmem:[#allocation11 + $0x368] sm:$0xff]
        %v8124 = vld [vmem:[#allocation11 + $0x370] sm:$0xff]
        %v8125 = vld [vmem:[#allocation11 + $0x378] sm:$0xff]
        %v8126 = vld [vmem:[#allocation11 + $0x380] sm:$0xff]
        %v8127 = vld [vmem:[#allocation11 + $0x388] sm:$0xff]
        %v8128 = vld [vmem:[#allocation11 + $0x390] sm:$0xff]
        %v8129 = vld [vmem:[#allocation11 + $0x398] sm:$0xff]
        %v8130 = vld [vmem:[#allocation11 + $0x3a0] sm:$0xff]
        %v8131 = vld [vmem:[#allocation11 + $0x3a8] sm:$0xff]
        %v8132 = vld [vmem:[#allocation11 + $0x3b0] sm:$0xff]
        %v8133 = vld [vmem:[#allocation11 + $0x3b8] sm:$0xff]
        %v8134 = vld [vmem:[#allocation11 + $0x3c0] sm:$0xff]
        %v8135 = vld [vmem:[#allocation11 + $0x3c8] sm:$0xff]
        %v8136 = vld [vmem:[#allocation11 + $0x3d0] sm:$0xff]
        %v8137 = vld [vmem:[#allocation11 + $0x3d8] sm:$0xff]
        %v8138 = vld [vmem:[#allocation11 + $0x3e0] sm:$0xff]
        %v8139 = vld [vmem:[#allocation11 + $0x3e8] sm:$0xff]
        %v8140 = vld [vmem:[#allocation11 + $0x3f0] sm:$0xff]
        %v8141 = vld [vmem:[#allocation11 + $0x3f8] sm:$0xff]
        %v8142 = vpack.c.bf16 %v7860, %v7856
        %v8143 = vpack.c.bf16 %v7862, %v7858
        %v8144 = vpack.c.bf16 %v7870, %v7866
        %v8145 = vpack.c.bf16 %v7872, %v7868
        %v8146 = vpack.c.bf16 %v7880, %v7876
        %v8147 = vpack.c.bf16 %v7882, %v7878
        %v8148 = vpack.c.bf16 %v7890, %v7886
        %v8149 = vpack.c.bf16 %v7892, %v7888
        %v8150 = vpack.c.bf16 %v7900, %v7896
        %v8151 = vpack.c.bf16 %v7902, %v7898
        %v8152 = vpack.c.bf16 %v7910, %v7906
        %v8153 = vpack.c.bf16 %v7912, %v7908
        %v8154 = vpack.c.bf16 %v7920, %v7916
        %v8155 = vpack.c.bf16 %v7922, %v7918
        %v8156 = vpack.c.bf16 %v7930, %v7926
        %v8157 = vpack.c.bf16 %v7932, %v7928
        %v8158 = vpack.c.bf16 %v7940, %v7936
        %v8159 = vpack.c.bf16 %v7942, %v7938
        %v8160 = vpack.c.bf16 %v7950, %v7946
        %v8161 = vpack.c.bf16 %v7952, %v7948
        %v8162 = vpack.c.bf16 %v7960, %v7956
        %v8163 = vpack.c.bf16 %v7962, %v7958
        %v8164 = vpack.c.bf16 %v7970, %v7966
        %v8165 = vpack.c.bf16 %v7972, %v7968
        %v8166 = vpack.c.bf16 %v7980, %v7976
        %v8167 = vpack.c.bf16 %v7982, %v7978
        %v8168 = vpack.c.bf16 %v7990, %v7986
        %v8169 = vpack.c.bf16 %v7992, %v7988
        %v8170 = vpack.c.bf16 %v8000, %v7996
        %v8171 = vpack.c.bf16 %v8002, %v7998
        %v8172 = vpack.c.bf16 %v8010, %v8006
        %v8173 = vpack.c.bf16 %v8012, %v8008
        %v8302 = vunpack.c.l.b16 %v8014
        %v8303 = vunpack.c.h.b16 %v8014
        %v8304 = vunpack.c.l.b16 %v8015
        %v8305 = vunpack.c.h.b16 %v8015
        %v8306 = vunpack.c.l.b16 %v8016
        %v8307 = vunpack.c.h.b16 %v8016
        %v8308 = vunpack.c.l.b16 %v8017
        %v8309 = vunpack.c.h.b16 %v8017
        %v8310 = vunpack.c.l.b16 %v8018
        %v8311 = vunpack.c.h.b16 %v8018
        %v8312 = vunpack.c.l.b16 %v8019
        %v8313 = vunpack.c.h.b16 %v8019
        %v8314 = vunpack.c.l.b16 %v8020
        %v8315 = vunpack.c.h.b16 %v8020
        %v8316 = vunpack.c.l.b16 %v8021
        %v8317 = vunpack.c.h.b16 %v8021
        %v8318 = vunpack.c.l.b16 %v8022
        %v8319 = vunpack.c.h.b16 %v8022
        %v8320 = vunpack.c.l.b16 %v8023
        %v8321 = vunpack.c.h.b16 %v8023
        %v8322 = vunpack.c.l.b16 %v8024
        %v8323 = vunpack.c.h.b16 %v8024
        %v8324 = vunpack.c.l.b16 %v8025
        %v8325 = vunpack.c.h.b16 %v8025
        %v8326 = vunpack.c.l.b16 %v8026
        %v8327 = vunpack.c.h.b16 %v8026
        %v8328 = vunpack.c.l.b16 %v8027
        %v8329 = vunpack.c.h.b16 %v8027
        %v8330 = vunpack.c.l.b16 %v8028
        %v8331 = vunpack.c.h.b16 %v8028
        %v8332 = vunpack.c.l.b16 %v8029
        %v8333 = vunpack.c.h.b16 %v8029
        %v8334 = vunpack.c.l.b16 %v8030
        %v8335 = vunpack.c.h.b16 %v8030
        %v8336 = vunpack.c.l.b16 %v8031
        %v8337 = vunpack.c.h.b16 %v8031
        %v8338 = vunpack.c.l.b16 %v8032
        %v8339 = vunpack.c.h.b16 %v8032
        %v8340 = vunpack.c.l.b16 %v8033
        %v8341 = vunpack.c.h.b16 %v8033
        %v8342 = vunpack.c.l.b16 %v8034
        %v8343 = vunpack.c.h.b16 %v8034
        %v8344 = vunpack.c.l.b16 %v8035
        %v8345 = vunpack.c.h.b16 %v8035
        %v8346 = vunpack.c.l.b16 %v8036
        %v8347 = vunpack.c.h.b16 %v8036
        %v8348 = vunpack.c.l.b16 %v8037
        %v8349 = vunpack.c.h.b16 %v8037
        %v8350 = vunpack.c.l.b16 %v8038
        %v8351 = vunpack.c.h.b16 %v8038
        %v8352 = vunpack.c.l.b16 %v8039
        %v8353 = vunpack.c.h.b16 %v8039
        %v8354 = vunpack.c.l.b16 %v8040
        %v8355 = vunpack.c.h.b16 %v8040
        %v8356 = vunpack.c.l.b16 %v8041
        %v8357 = vunpack.c.h.b16 %v8041
        %v8358 = vunpack.c.l.b16 %v8042
        %v8359 = vunpack.c.h.b16 %v8042
        %v8360 = vunpack.c.l.b16 %v8043
        %v8361 = vunpack.c.h.b16 %v8043
        %v8362 = vunpack.c.l.b16 %v8044
        %v8363 = vunpack.c.h.b16 %v8044
        %v8364 = vunpack.c.l.b16 %v8045
        %v8365 = vunpack.c.h.b16 %v8045
        %v8366 = vunpack.c.l.b16 %v8046
        %v8367 = vunpack.c.h.b16 %v8046
        %v8368 = vunpack.c.l.b16 %v8047
        %v8369 = vunpack.c.h.b16 %v8047
        %v8370 = vunpack.c.l.b16 %v8048
        %v8371 = vunpack.c.h.b16 %v8048
        %v8372 = vunpack.c.l.b16 %v8049
        %v8373 = vunpack.c.h.b16 %v8049
        %v8374 = vunpack.c.l.b16 %v8050
        %v8375 = vunpack.c.h.b16 %v8050
        %v8376 = vunpack.c.l.b16 %v8051
        %v8377 = vunpack.c.h.b16 %v8051
        %v8378 = vunpack.c.l.b16 %v8052
        %v8379 = vunpack.c.h.b16 %v8052
        %v8380 = vunpack.c.l.b16 %v8053
        %v8381 = vunpack.c.h.b16 %v8053
        %v8382 = vunpack.c.l.b16 %v8054
        %v8383 = vunpack.c.h.b16 %v8054
        %v8384 = vunpack.c.l.b16 %v8055
        %v8385 = vunpack.c.h.b16 %v8055
        %v8386 = vunpack.c.l.b16 %v8056
        %v8387 = vunpack.c.h.b16 %v8056
        %v8388 = vunpack.c.l.b16 %v8057
        %v8389 = vunpack.c.h.b16 %v8057
        %v8390 = vunpack.c.l.b16 %v8058
        %v8391 = vunpack.c.h.b16 %v8058
        %v8392 = vunpack.c.l.b16 %v8059
        %v8393 = vunpack.c.h.b16 %v8059
        %v8394 = vunpack.c.l.b16 %v8060
        %v8395 = vunpack.c.h.b16 %v8060
        %v8396 = vunpack.c.l.b16 %v8061
        %v8397 = vunpack.c.h.b16 %v8061
        %v8398 = vunpack.c.l.b16 %v8062
        %v8399 = vunpack.c.h.b16 %v8062
        %v8400 = vunpack.c.l.b16 %v8063
        %v8401 = vunpack.c.h.b16 %v8063
        %v8402 = vunpack.c.l.b16 %v8064
        %v8403 = vunpack.c.h.b16 %v8064
        %v8404 = vunpack.c.l.b16 %v8065
        %v8405 = vunpack.c.h.b16 %v8065
        %v8406 = vunpack.c.l.b16 %v8066
        %v8407 = vunpack.c.h.b16 %v8066
        %v8408 = vunpack.c.l.b16 %v8067
        %v8409 = vunpack.c.h.b16 %v8067
        %v8410 = vunpack.c.l.b16 %v8068
        %v8411 = vunpack.c.h.b16 %v8068
        %v8412 = vunpack.c.l.b16 %v8069
        %v8413 = vunpack.c.h.b16 %v8069
        %v8414 = vunpack.c.l.b16 %v8070
        %v8415 = vunpack.c.h.b16 %v8070
        %v8416 = vunpack.c.l.b16 %v8071
        %v8417 = vunpack.c.h.b16 %v8071
        %v8418 = vunpack.c.l.b16 %v8072
        %v8419 = vunpack.c.h.b16 %v8072
        %v8420 = vunpack.c.l.b16 %v8073
        %v8421 = vunpack.c.h.b16 %v8073
        %v8422 = vunpack.c.l.b16 %v8074
        %v8423 = vunpack.c.h.b16 %v8074
        %v8424 = vunpack.c.l.b16 %v8075
        %v8425 = vunpack.c.h.b16 %v8075
        %v8426 = vunpack.c.l.b16 %v8076
        %v8427 = vunpack.c.h.b16 %v8076
        %v8428 = vunpack.c.l.b16 %v8077
        %v8429 = vunpack.c.h.b16 %v8077
        %v8430 = vunpack.c.l.b16 %v8078
        %v8431 = vunpack.c.h.b16 %v8078
        %v8432 = vunpack.c.l.b16 %v8079
        %v8433 = vunpack.c.h.b16 %v8079
        %v8434 = vunpack.c.l.b16 %v8080
        %v8435 = vunpack.c.h.b16 %v8080
        %v8436 = vunpack.c.l.b16 %v8081
        %v8437 = vunpack.c.h.b16 %v8081
        %v8438 = vunpack.c.l.b16 %v8082
        %v8439 = vunpack.c.h.b16 %v8082
        %v8440 = vunpack.c.l.b16 %v8083
        %v8441 = vunpack.c.h.b16 %v8083
        %v8442 = vunpack.c.l.b16 %v8084
        %v8443 = vunpack.c.h.b16 %v8084
        %v8444 = vunpack.c.l.b16 %v8085
        %v8445 = vunpack.c.h.b16 %v8085
        %v8446 = vunpack.c.l.b16 %v8086
        %v8447 = vunpack.c.h.b16 %v8086
        %v8448 = vunpack.c.l.b16 %v8087
        %v8449 = vunpack.c.h.b16 %v8087
        %v8450 = vunpack.c.l.b16 %v8088
        %v8451 = vunpack.c.h.b16 %v8088
        %v8452 = vunpack.c.l.b16 %v8089
        %v8453 = vunpack.c.h.b16 %v8089
        %v8454 = vunpack.c.l.b16 %v8090
        %v8455 = vunpack.c.h.b16 %v8090
        %v8456 = vunpack.c.l.b16 %v8091
        %v8457 = vunpack.c.h.b16 %v8091
        %v8458 = vunpack.c.l.b16 %v8092
        %v8459 = vunpack.c.h.b16 %v8092
        %v8460 = vunpack.c.l.b16 %v8093
        %v8461 = vunpack.c.h.b16 %v8093
        %v8462 = vunpack.c.l.b16 %v8094
        %v8463 = vunpack.c.h.b16 %v8094
        %v8464 = vunpack.c.l.b16 %v8095
        %v8465 = vunpack.c.h.b16 %v8095
        %v8466 = vunpack.c.l.b16 %v8096
        %v8467 = vunpack.c.h.b16 %v8096
        %v8468 = vunpack.c.l.b16 %v8097
        %v8469 = vunpack.c.h.b16 %v8097
        %v8470 = vunpack.c.l.b16 %v8098
        %v8471 = vunpack.c.h.b16 %v8098
        %v8472 = vunpack.c.l.b16 %v8099
        %v8473 = vunpack.c.h.b16 %v8099
        %v8474 = vunpack.c.l.b16 %v8100
        %v8475 = vunpack.c.h.b16 %v8100
        %v8476 = vunpack.c.l.b16 %v8101
        %v8477 = vunpack.c.h.b16 %v8101
        %v8478 = vunpack.c.l.b16 %v8102
        %v8479 = vunpack.c.h.b16 %v8102
        %v8480 = vunpack.c.l.b16 %v8103
        %v8481 = vunpack.c.h.b16 %v8103
        %v8482 = vunpack.c.l.b16 %v8104
        %v8483 = vunpack.c.h.b16 %v8104
        %v8484 = vunpack.c.l.b16 %v8105
        %v8485 = vunpack.c.h.b16 %v8105
        %v8486 = vunpack.c.l.b16 %v8106
        %v8487 = vunpack.c.h.b16 %v8106
        %v8488 = vunpack.c.l.b16 %v8107
        %v8489 = vunpack.c.h.b16 %v8107
        %v8490 = vunpack.c.l.b16 %v8108
        %v8491 = vunpack.c.h.b16 %v8108
        %v8492 = vunpack.c.l.b16 %v8109
        %v8493 = vunpack.c.h.b16 %v8109
        %v8494 = vunpack.c.l.b16 %v8110
        %v8495 = vunpack.c.h.b16 %v8110
        %v8496 = vunpack.c.l.b16 %v8111
        %v8497 = vunpack.c.h.b16 %v8111
        %v8498 = vunpack.c.l.b16 %v8112
        %v8499 = vunpack.c.h.b16 %v8112
        %v8500 = vunpack.c.l.b16 %v8113
        %v8501 = vunpack.c.h.b16 %v8113
        %v8502 = vunpack.c.l.b16 %v8114
        %v8503 = vunpack.c.h.b16 %v8114
        %v8504 = vunpack.c.l.b16 %v8115
        %v8505 = vunpack.c.h.b16 %v8115
        %v8506 = vunpack.c.l.b16 %v8116
        %v8507 = vunpack.c.h.b16 %v8116
        %v8508 = vunpack.c.l.b16 %v8117
        %v8509 = vunpack.c.h.b16 %v8117
        %v8510 = vunpack.c.l.b16 %v8118
        %v8511 = vunpack.c.h.b16 %v8118
        %v8512 = vunpack.c.l.b16 %v8119
        %v8513 = vunpack.c.h.b16 %v8119
        %v8514 = vunpack.c.l.b16 %v8120
        %v8515 = vunpack.c.h.b16 %v8120
        %v8516 = vunpack.c.l.b16 %v8121
        %v8517 = vunpack.c.h.b16 %v8121
        %v8518 = vunpack.c.l.b16 %v8122
        %v8519 = vunpack.c.h.b16 %v8122
        %v8520 = vunpack.c.l.b16 %v8123
        %v8521 = vunpack.c.h.b16 %v8123
        %v8522 = vunpack.c.l.b16 %v8124
        %v8523 = vunpack.c.h.b16 %v8124
        %v8524 = vunpack.c.l.b16 %v8125
        %v8525 = vunpack.c.h.b16 %v8125
        %v8526 = vunpack.c.l.b16 %v8126
        %v8527 = vunpack.c.h.b16 %v8126
        %v8528 = vunpack.c.l.b16 %v8127
        %v8529 = vunpack.c.h.b16 %v8127
        %v8530 = vunpack.c.l.b16 %v8128
        %v8531 = vunpack.c.h.b16 %v8128
        %v8532 = vunpack.c.l.b16 %v8129
        %v8533 = vunpack.c.h.b16 %v8129
        %v8534 = vunpack.c.l.b16 %v8130
        %v8535 = vunpack.c.h.b16 %v8130
        %v8536 = vunpack.c.l.b16 %v8131
        %v8537 = vunpack.c.h.b16 %v8131
        %v8538 = vunpack.c.l.b16 %v8132
        %v8539 = vunpack.c.h.b16 %v8132
        %v8540 = vunpack.c.l.b16 %v8133
        %v8541 = vunpack.c.h.b16 %v8133
        %v8542 = vunpack.c.l.b16 %v8134
        %v8543 = vunpack.c.h.b16 %v8134
        %v8544 = vunpack.c.l.b16 %v8135
        %v8545 = vunpack.c.h.b16 %v8135
        %v8546 = vunpack.c.l.b16 %v8136
        %v8547 = vunpack.c.h.b16 %v8136
        %v8548 = vunpack.c.l.b16 %v8137
        %v8549 = vunpack.c.h.b16 %v8137
        %v8550 = vunpack.c.l.b16 %v8138
        %v8551 = vunpack.c.h.b16 %v8138
        %v8552 = vunpack.c.l.b16 %v8139
        %v8553 = vunpack.c.h.b16 %v8139
        %v8554 = vunpack.c.l.b16 %v8140
        %v8555 = vunpack.c.h.b16 %v8140
        %v8556 = vunpack.c.l.b16 %v8141
        %v8557 = vunpack.c.h.b16 %v8141
        %v8558 = vpack.c.b16 %v8304, %v8302
        %v8559 = vpack.c.b16 %v8305, %v8303
        %v8560 = vpack.c.b16 %v8308, %v8306
        %v8561 = vpack.c.b16 %v8309, %v8307
        %v8562 = vpack.c.b16 %v8312, %v8310
        %v8563 = vpack.c.b16 %v8313, %v8311
        %v8564 = vpack.c.b16 %v8316, %v8314
        %v8565 = vpack.c.b16 %v8317, %v8315
        %v8566 = vpack.c.b16 %v8320, %v8318
        %v8567 = vpack.c.b16 %v8321, %v8319
        %v8568 = vpack.c.b16 %v8324, %v8322
        %v8569 = vpack.c.b16 %v8325, %v8323
        %v8570 = vpack.c.b16 %v8328, %v8326
        %v8571 = vpack.c.b16 %v8329, %v8327
        %v8572 = vpack.c.b16 %v8332, %v8330
        %v8573 = vpack.c.b16 %v8333, %v8331
        %v8574 = vpack.c.b16 %v8336, %v8334
        %v8575 = vpack.c.b16 %v8337, %v8335
        %v8576 = vpack.c.b16 %v8340, %v8338
        %v8577 = vpack.c.b16 %v8341, %v8339
        %v8578 = vpack.c.b16 %v8344, %v8342
        %v8579 = vpack.c.b16 %v8345, %v8343
        %v8580 = vpack.c.b16 %v8348, %v8346
        %v8581 = vpack.c.b16 %v8349, %v8347
        %v8582 = vpack.c.b16 %v8352, %v8350
        %v8583 = vpack.c.b16 %v8353, %v8351
        %v8584 = vpack.c.b16 %v8356, %v8354
        %v8585 = vpack.c.b16 %v8357, %v8355
        %v8586 = vpack.c.b16 %v8360, %v8358
        %v8587 = vpack.c.b16 %v8361, %v8359
        %v8588 = vpack.c.b16 %v8364, %v8362
        %v8589 = vpack.c.b16 %v8365, %v8363
        %v8590 = vpack.c.b16 %v8368, %v8366
        %v8591 = vpack.c.b16 %v8369, %v8367
        %v8592 = vpack.c.b16 %v8372, %v8370
        %v8593 = vpack.c.b16 %v8373, %v8371
        %v8594 = vpack.c.b16 %v8376, %v8374
        %v8595 = vpack.c.b16 %v8377, %v8375
        %v8596 = vpack.c.b16 %v8380, %v8378
        %v8597 = vpack.c.b16 %v8381, %v8379
        %v8598 = vpack.c.b16 %v8384, %v8382
        %v8599 = vpack.c.b16 %v8385, %v8383
        %v8600 = vpack.c.b16 %v8388, %v8386
        %v8601 = vpack.c.b16 %v8389, %v8387
        %v8602 = vpack.c.b16 %v8392, %v8390
        %v8603 = vpack.c.b16 %v8393, %v8391
        %v8604 = vpack.c.b16 %v8396, %v8394
        %v8605 = vpack.c.b16 %v8397, %v8395
        %v8606 = vpack.c.b16 %v8400, %v8398
        %v8607 = vpack.c.b16 %v8401, %v8399
        %v8608 = vpack.c.b16 %v8404, %v8402
        %v8609 = vpack.c.b16 %v8405, %v8403
        %v8610 = vpack.c.b16 %v8408, %v8406
        %v8611 = vpack.c.b16 %v8409, %v8407
        %v8612 = vpack.c.b16 %v8412, %v8410
        %v8613 = vpack.c.b16 %v8413, %v8411
        %v8614 = vpack.c.b16 %v8416, %v8414
        %v8615 = vpack.c.b16 %v8417, %v8415
        %v8616 = vpack.c.b16 %v8420, %v8418
        %v8617 = vpack.c.b16 %v8421, %v8419
        %v8618 = vpack.c.b16 %v8424, %v8422
        %v8619 = vpack.c.b16 %v8425, %v8423
        %v8620 = vpack.c.b16 %v8428, %v8426
        %v8621 = vpack.c.b16 %v8429, %v8427
        %v8622 = vpack.c.b16 %v8432, %v8430
        %v8623 = vpack.c.b16 %v8433, %v8431
        %v8624 = vpack.c.b16 %v8436, %v8434
        %v8625 = vpack.c.b16 %v8437, %v8435
        %v8626 = vpack.c.b16 %v8440, %v8438
        %v8627 = vpack.c.b16 %v8441, %v8439
        %v8628 = vpack.c.b16 %v8444, %v8442
        %v8629 = vpack.c.b16 %v8445, %v8443
        %v8630 = vpack.c.b16 %v8448, %v8446
        %v8631 = vpack.c.b16 %v8449, %v8447
        %v8632 = vpack.c.b16 %v8452, %v8450
        %v8633 = vpack.c.b16 %v8453, %v8451
        %v8634 = vpack.c.b16 %v8456, %v8454
        %v8635 = vpack.c.b16 %v8457, %v8455
        %v8636 = vpack.c.b16 %v8460, %v8458
        %v8637 = vpack.c.b16 %v8461, %v8459
        %v8638 = vpack.c.b16 %v8464, %v8462
        %v8639 = vpack.c.b16 %v8465, %v8463
        %v8640 = vpack.c.b16 %v8468, %v8466
        %v8641 = vpack.c.b16 %v8469, %v8467
        %v8642 = vpack.c.b16 %v8472, %v8470
        %v8643 = vpack.c.b16 %v8473, %v8471
        %v8644 = vpack.c.b16 %v8476, %v8474
        %v8645 = vpack.c.b16 %v8477, %v8475
        %v8646 = vpack.c.b16 %v8480, %v8478
        %v8647 = vpack.c.b16 %v8481, %v8479
        %v8648 = vpack.c.b16 %v8484, %v8482
        %v8649 = vpack.c.b16 %v8485, %v8483
        %v8650 = vpack.c.b16 %v8488, %v8486
        %v8651 = vpack.c.b16 %v8489, %v8487
        %v8652 = vpack.c.b16 %v8492, %v8490
        %v8653 = vpack.c.b16 %v8493, %v8491
        %v8654 = vpack.c.b16 %v8496, %v8494
        %v8655 = vpack.c.b16 %v8497, %v8495
        %v8656 = vpack.c.b16 %v8500, %v8498
        %v8657 = vpack.c.b16 %v8501, %v8499
        %v8658 = vpack.c.b16 %v8504, %v8502
        %v8659 = vpack.c.b16 %v8505, %v8503
        %v8660 = vpack.c.b16 %v8508, %v8506
        %v8661 = vpack.c.b16 %v8509, %v8507
        %v8662 = vpack.c.b16 %v8512, %v8510
        %v8663 = vpack.c.b16 %v8513, %v8511
        %v8664 = vpack.c.b16 %v8516, %v8514
        %v8665 = vpack.c.b16 %v8517, %v8515
        %v8666 = vpack.c.b16 %v8520, %v8518
        %v8667 = vpack.c.b16 %v8521, %v8519
        %v8668 = vpack.c.b16 %v8524, %v8522
        %v8669 = vpack.c.b16 %v8525, %v8523
        %v8670 = vpack.c.b16 %v8528, %v8526
        %v8671 = vpack.c.b16 %v8529, %v8527
        %v8672 = vpack.c.b16 %v8532, %v8530
        %v8673 = vpack.c.b16 %v8533, %v8531
        %v8674 = vpack.c.b16 %v8536, %v8534
        %v8675 = vpack.c.b16 %v8537, %v8535
        %v8676 = vpack.c.b16 %v8540, %v8538
        %v8677 = vpack.c.b16 %v8541, %v8539
        %v8678 = vpack.c.b16 %v8544, %v8542
        %v8679 = vpack.c.b16 %v8545, %v8543
        %v8680 = vpack.c.b16 %v8548, %v8546
        %v8681 = vpack.c.b16 %v8549, %v8547
        %v8682 = vpack.c.b16 %v8552, %v8550
        %v8683 = vpack.c.b16 %v8553, %v8551
        %v8684 = vpack.c.b16 %v8556, %v8554
        %v8685 = vpack.c.b16 %v8557, %v8555
        %8814 = vmatprep.subr.bf16.mxu0 %v8143
        %8815 = vmatpush1.bf16.msra.mxu0 %v8142
        %8816 = vmatprep.subr.bf16.mxu0 %v8145
        %8817 = vmatpush1.bf16.msra.mxu0 %v8144
        %8818 = vmatprep.subr.bf16.mxu0 %v8147
        %8819 = vmatpush1.bf16.msra.mxu0 %v8146
        %8820 = vmatprep.subr.bf16.mxu0 %v8149
        %8821 = vmatpush1.bf16.msra.mxu0 %v8148
        %8822 = vmatprep.subr.bf16.mxu0 %v8151
        %8823 = vmatpush1.bf16.msra.mxu0 %v8150
        %8824 = vmatprep.subr.bf16.mxu0 %v8153
        %8825 = vmatpush1.bf16.msra.mxu0 %v8152
        %8826 = vmatprep.subr.bf16.mxu0 %v8155
        %8827 = vmatpush1.bf16.msra.mxu0 %v8154
        %8828 = vmatprep.subr.bf16.mxu0 %v8157
        %8829 = vmatpush1.bf16.msra.mxu0 %v8156
        %8830 = vmatprep.subr.bf16.mxu0 %v8159
        %8831 = vmatpush1.bf16.msra.mxu0 %v8158
        %8832 = vmatprep.subr.bf16.mxu0 %v8161
        %8833 = vmatpush1.bf16.msra.mxu0 %v8160
        %8834 = vmatprep.subr.bf16.mxu0 %v8163
        %8835 = vmatpush1.bf16.msra.mxu0 %v8162
        %8836 = vmatprep.subr.bf16.mxu0 %v8165
        %8837 = vmatpush1.bf16.msra.mxu0 %v8164
        %8838 = vmatprep.subr.bf16.mxu0 %v8167
        %8839 = vmatpush1.bf16.msra.mxu0 %v8166
        %8840 = vmatprep.subr.bf16.mxu0 %v8169
        %8841 = vmatpush1.bf16.msra.mxu0 %v8168
        %8842 = vmatprep.subr.bf16.mxu0 %v8171
        %8843 = vmatpush1.bf16.msra.mxu0 %v8170
        %8844 = vmatprep.subr.bf16.mxu0 %v8173
        %8845 = vmatpush1.bf16.msra.mxu0 %v8172
        %8846 = vmatprep.mubr.bf16.mxu0 %v8559
        %8847 = vmatmul.mubr.bf16.gmra.mrb[0].mxu0 %v8558
        %v8848 = vpop.f32.mrb[0].mxu0
        %v8849 = vadd.f32 %v7281, %v8848
        %v8850 = vpop.f32.mrb[0].mxu0
        %v8851 = vadd.f32 %v7282, %v8850
        %v8852 = vpop.f32.mrb[0].mxu0
        %v8853 = vadd.f32 %v7283, %v8852
        %v8854 = vpop.f32.mrb[0].mxu0
        %v8855 = vadd.f32 %v7284, %v8854
        %8856 = vmatprep.mubr.bf16.mxu0 %v8561
        %8857 = vmatmul.mubr.bf16.gmra.mrb[0].mxu0 %v8560
        %v8858 = vpop.f32.mrb[0].mxu0
        %v8859 = vadd.f32 %v7285, %v8858
        %v8860 = vpop.f32.mrb[0].mxu0
        %v8861 = vadd.f32 %v7286, %v8860
        %v8862 = vpop.f32.mrb[0].mxu0
        %v8863 = vadd.f32 %v7287, %v8862
        %v8864 = vpop.f32.mrb[0].mxu0
        %v8865 = vadd.f32 %v7288, %v8864
        %8866 = vmatprep.mubr.bf16.mxu0 %v8563
        %8867 = vmatmul.mubr.bf16.gmra.mrb[0].mxu0 %v8562
        %v8868 = vpop.f32.mrb[0].mxu0
        %v8869 = vadd.f32 %v7289, %v8868
        %v8870 = vpop.f32.mrb[0].mxu0
        %v8871 = vadd.f32 %v7290, %v8870
        %v8872 = vpop.f32.mrb[0].mxu0
        %v8873 = vadd.f32 %v7291, %v8872
        %v8874 = vpop.f32.mrb[0].mxu0
        %v8875 = vadd.f32 %v7292, %v8874
        %8876 = vmatprep.mubr.bf16.mxu0 %v8565
        %8877 = vmatmul.mubr.bf16.gmra.mrb[0].mxu0 %v8564
        %v8878 = vpop.f32.mrb[0].mxu0
        %v8879 = vadd.f32 %v7293, %v8878
        %v8880 = vpop.f32.mrb[0].mxu0
        %v8881 = vadd.f32 %v7294, %v8880
        %v8882 = vpop.f32.mrb[0].mxu0
        %v8883 = vadd.f32 %v7295, %v8882
        %v8884 = vpop.f32.mrb[0].mxu0
        %v8885 = vadd.f32 %v7296, %v8884
        %8886 = vmatprep.mubr.bf16.mxu0 %v8567
        %8887 = vmatmul.mubr.bf16.gmra.mrb[0].mxu0 %v8566
        %v8888 = vpop.f32.mrb[0].mxu0
        %v8889 = vadd.f32 %v7297, %v8888
        %v8890 = vpop.f32.mrb[0].mxu0
        %v8891 = vadd.f32 %v7298, %v8890
        %v8892 = vpop.f32.mrb[0].mxu0
        %v8893 = vadd.f32 %v7299, %v8892
        %v8894 = vpop.f32.mrb[0].mxu0
        %v8895 = vadd.f32 %v7300, %v8894
        %8896 = vmatprep.mubr.bf16.mxu0 %v8569
        %8897 = vmatmul.mubr.bf16.gmra.mrb[0].mxu0 %v8568
        %v8898 = vpop.f32.mrb[0].mxu0
        %v8899 = vadd.f32 %v7301, %v8898
        %v8900 = vpop.f32.mrb[0].mxu0
        %v8901 = vadd.f32 %v7302, %v8900
        %v8902 = vpop.f32.mrb[0].mxu0
        %v8903 = vadd.f32 %v7303, %v8902
        %v8904 = vpop.f32.mrb[0].mxu0
        %v8905 = vadd.f32 %v7304, %v8904
        %8906 = vmatprep.mubr.bf16.mxu0 %v8571
        %8907 = vmatmul.mubr.bf16.gmra.mrb[0].mxu0 %v8570
        %v8908 = vpop.f32.mrb[0].mxu0
        %v8909 = vadd.f32 %v7305, %v8908
        %v8910 = vpop.f32.mrb[0].mxu0
        %v8911 = vadd.f32 %v7306, %v8910
        %v8912 = vpop.f32.mrb[0].mxu0
        %v8913 = vadd.f32 %v7307, %v8912
        %v8914 = vpop.f32.mrb[0].mxu0
        %v8915 = vadd.f32 %v7308, %v8914
        %8916 = vmatprep.mubr.bf16.mxu0 %v8573
        %8917 = vmatmul.mubr.bf16.gmra.mrb[0].mxu0 %v8572
        %v8918 = vpop.f32.mrb[0].mxu0
        %v8919 = vadd.f32 %v7309, %v8918
        %v8920 = vpop.f32.mrb[0].mxu0
        %v8921 = vadd.f32 %v7310, %v8920
        %v8922 = vpop.f32.mrb[0].mxu0
        %v8923 = vadd.f32 %v7311, %v8922
        %v8924 = vpop.f32.mrb[0].mxu0
        %v8925 = vadd.f32 %v7312, %v8924
        %8926 = vmatprep.mubr.bf16.mxu0 %v8575
        %8927 = vmatmul.mubr.bf16.gmra.mrb[0].mxu0 %v8574
        %v8928 = vpop.f32.mrb[0].mxu0
        %v8929 = vadd.f32 %v7313, %v8928
        %v8930 = vpop.f32.mrb[0].mxu0
        %v8931 = vadd.f32 %v7314, %v8930
        %v8932 = vpop.f32.mrb[0].mxu0
        %v8933 = vadd.f32 %v7315, %v8932
        %v8934 = vpop.f32.mrb[0].mxu0
        %v8935 = vadd.f32 %v7316, %v8934
        %8936 = vmatprep.mubr.bf16.mxu0 %v8577
        %8937 = vmatmul.mubr.bf16.gmra.mrb[0].mxu0 %v8576
        %v8938 = vpop.f32.mrb[0].mxu0
        %v8939 = vadd.f32 %v7317, %v8938
        %v8940 = vpop.f32.mrb[0].mxu0
        %v8941 = vadd.f32 %v7318, %v8940
        %v8942 = vpop.f32.mrb[0].mxu0
        %v8943 = vadd.f32 %v7319, %v8942
        %v8944 = vpop.f32.mrb[0].mxu0
        %v8945 = vadd.f32 %v7320, %v8944
        %8946 = vmatprep.mubr.bf16.mxu0 %v8579
        %8947 = vmatmul.mubr.bf16.gmra.mrb[0].mxu0 %v8578
        %v8948 = vpop.f32.mrb[0].mxu0
        %v8949 = vadd.f32 %v7321, %v8948
        %v8950 = vpop.f32.mrb[0].mxu0
        %v8951 = vadd.f32 %v7322, %v8950
        %v8952 = vpop.f32.mrb[0].mxu0
        %v8953 = vadd.f32 %v7323, %v8952
        %v8954 = vpop.f32.mrb[0].mxu0
        %v8955 = vadd.f32 %v7324, %v8954
        %8956 = vmatprep.mubr.bf16.mxu0 %v8581
        %8957 = vmatmul.mubr.bf16.gmra.mrb[0].mxu0 %v8580
        %v8958 = vpop.f32.mrb[0].mxu0
        %v8959 = vadd.f32 %v7325, %v8958
        %v8960 = vpop.f32.mrb[0].mxu0
        %v8961 = vadd.f32 %v7326, %v8960
        %v8962 = vpop.f32.mrb[0].mxu0
        %v8963 = vadd.f32 %v7327, %v8962
        %v8964 = vpop.f32.mrb[0].mxu0
        %v8965 = vadd.f32 %v7328, %v8964
        %8966 = vmatprep.mubr.bf16.mxu0 %v8583
        %8967 = vmatmul.mubr.bf16.gmra.mrb[0].mxu0 %v8582
        %v8968 = vpop.f32.mrb[0].mxu0
        %v8969 = vadd.f32 %v7329, %v8968
        %v8970 = vpop.f32.mrb[0].mxu0
        %v8971 = vadd.f32 %v7330, %v8970
        %v8972 = vpop.f32.mrb[0].mxu0
        %v8973 = vadd.f32 %v7331, %v8972
        %v8974 = vpop.f32.mrb[0].mxu0
        %v8975 = vadd.f32 %v7332, %v8974
        %8976 = vmatprep.mubr.bf16.mxu0 %v8585
        %8977 = vmatmul.mubr.bf16.gmra.mrb[0].mxu0 %v8584
        %v8978 = vpop.f32.mrb[0].mxu0
        %v8979 = vadd.f32 %v7333, %v8978
        %v8980 = vpop.f32.mrb[0].mxu0
        %v8981 = vadd.f32 %v7334, %v8980
        %v8982 = vpop.f32.mrb[0].mxu0
        %v8983 = vadd.f32 %v7335, %v8982
        %v8984 = vpop.f32.mrb[0].mxu0
        %v8985 = vadd.f32 %v7336, %v8984
        %8986 = vmatprep.mubr.bf16.mxu0 %v8587
        %8987 = vmatmul.mubr.bf16.gmra.mrb[0].mxu0 %v8586
        %v8988 = vpop.f32.mrb[0].mxu0
        %v8989 = vadd.f32 %v7337, %v8988
        %v8990 = vpop.f32.mrb[0].mxu0
        %v8991 = vadd.f32 %v7338, %v8990
        %v8992 = vpop.f32.mrb[0].mxu0
        %v8993 = vadd.f32 %v7339, %v8992
        %v8994 = vpop.f32.mrb[0].mxu0
        %v8995 = vadd.f32 %v7340, %v8994
        %8996 = vmatprep.mubr.bf16.mxu0 %v8589
        %8997 = vmatmul.mubr.bf16.gmra.mrb[0].mxu0 %v8588
        %v8998 = vpop.f32.mrb[0].mxu0
        %v8999 = vadd.f32 %v7341, %v8998
        %v9000 = vpop.f32.mrb[0].mxu0
        %v9001 = vadd.f32 %v7342, %v9000
        %v9002 = vpop.f32.mrb[0].mxu0
        %v9003 = vadd.f32 %v7343, %v9002
        %v9004 = vpop.f32.mrb[0].mxu0
        %v9005 = vadd.f32 %v7344, %v9004
        %9006 = vmatprep.mubr.bf16.mxu0 %v8591
        %9007 = vmatmul.mubr.bf16.gmra.mrb[0].mxu0 %v8590
        %v9008 = vpop.f32.mrb[0].mxu0
        %v9009 = vadd.f32 %v7345, %v9008
        %v9010 = vpop.f32.mrb[0].mxu0
        %v9011 = vadd.f32 %v7346, %v9010
        %v9012 = vpop.f32.mrb[0].mxu0
        %v9013 = vadd.f32 %v7347, %v9012
        %v9014 = vpop.f32.mrb[0].mxu0
        %v9015 = vadd.f32 %v7348, %v9014
        %9016 = vmatprep.mubr.bf16.mxu0 %v8593
        %9017 = vmatmul.mubr.bf16.gmra.mrb[0].mxu0 %v8592
        %v9018 = vpop.f32.mrb[0].mxu0
        %v9019 = vadd.f32 %v7349, %v9018
        %v9020 = vpop.f32.mrb[0].mxu0
        %v9021 = vadd.f32 %v7350, %v9020
        %v9022 = vpop.f32.mrb[0].mxu0
        %v9023 = vadd.f32 %v7351, %v9022
        %v9024 = vpop.f32.mrb[0].mxu0
        %v9025 = vadd.f32 %v7352, %v9024
        %9026 = vmatprep.mubr.bf16.mxu0 %v8595
        %9027 = vmatmul.mubr.bf16.gmra.mrb[0].mxu0 %v8594
        %v9028 = vpop.f32.mrb[0].mxu0
        %v9029 = vadd.f32 %v7353, %v9028
        %v9030 = vpop.f32.mrb[0].mxu0
        %v9031 = vadd.f32 %v7354, %v9030
        %v9032 = vpop.f32.mrb[0].mxu0
        %v9033 = vadd.f32 %v7355, %v9032
        %v9034 = vpop.f32.mrb[0].mxu0
        %v9035 = vadd.f32 %v7356, %v9034
        %9036 = vmatprep.mubr.bf16.mxu0 %v8597
        %9037 = vmatmul.mubr.bf16.gmra.mrb[0].mxu0 %v8596
        %v9038 = vpop.f32.mrb[0].mxu0
        %v9039 = vadd.f32 %v7357, %v9038
        %v9040 = vpop.f32.mrb[0].mxu0
        %v9041 = vadd.f32 %v7358, %v9040
        %v9042 = vpop.f32.mrb[0].mxu0
        %v9043 = vadd.f32 %v7359, %v9042
        %v9044 = vpop.f32.mrb[0].mxu0
        %v9045 = vadd.f32 %v7360, %v9044
        %9046 = vmatprep.mubr.bf16.mxu0 %v8599
        %9047 = vmatmul.mubr.bf16.gmra.mrb[0].mxu0 %v8598
        %v9048 = vpop.f32.mrb[0].mxu0
        %v9049 = vadd.f32 %v7361, %v9048
        %v9050 = vpop.f32.mrb[0].mxu0
        %v9051 = vadd.f32 %v7362, %v9050
        %v9052 = vpop.f32.mrb[0].mxu0
        %v9053 = vadd.f32 %v7363, %v9052
        %v9054 = vpop.f32.mrb[0].mxu0
        %v9055 = vadd.f32 %v7364, %v9054
        %9056 = vmatprep.mubr.bf16.mxu0 %v8601
        %9057 = vmatmul.mubr.bf16.gmra.mrb[0].mxu0 %v8600
        %v9058 = vpop.f32.mrb[0].mxu0
        %v9059 = vadd.f32 %v7365, %v9058
        %v9060 = vpop.f32.mrb[0].mxu0
        %v9061 = vadd.f32 %v7366, %v9060
        %v9062 = vpop.f32.mrb[0].mxu0
        %v9063 = vadd.f32 %v7367, %v9062
        %v9064 = vpop.f32.mrb[0].mxu0
        %v9065 = vadd.f32 %v7368, %v9064
        %9066 = vmatprep.mubr.bf16.mxu0 %v8603
        %9067 = vmatmul.mubr.bf16.gmra.mrb[0].mxu0 %v8602
        %v9068 = vpop.f32.mrb[0].mxu0
        %v9069 = vadd.f32 %v7369, %v9068
        %v9070 = vpop.f32.mrb[0].mxu0
        %v9071 = vadd.f32 %v7370, %v9070
        %v9072 = vpop.f32.mrb[0].mxu0
        %v9073 = vadd.f32 %v7371, %v9072
        %v9074 = vpop.f32.mrb[0].mxu0
        %v9075 = vadd.f32 %v7372, %v9074
        %9076 = vmatprep.mubr.bf16.mxu0 %v8605
        %9077 = vmatmul.mubr.bf16.gmra.mrb[0].mxu0 %v8604
        %v9078 = vpop.f32.mrb[0].mxu0
        %v9079 = vadd.f32 %v7373, %v9078
        %v9080 = vpop.f32.mrb[0].mxu0
        %v9081 = vadd.f32 %v7374, %v9080
        %v9082 = vpop.f32.mrb[0].mxu0
        %v9083 = vadd.f32 %v7375, %v9082
        %v9084 = vpop.f32.mrb[0].mxu0
        %v9085 = vadd.f32 %v7376, %v9084
        %9086 = vmatprep.mubr.bf16.mxu0 %v8607
        %9087 = vmatmul.mubr.bf16.gmra.mrb[0].mxu0 %v8606
        %v9088 = vpop.f32.mrb[0].mxu0
        %v9089 = vadd.f32 %v7377, %v9088
        %v9090 = vpop.f32.mrb[0].mxu0
        %v9091 = vadd.f32 %v7378, %v9090
        %v9092 = vpop.f32.mrb[0].mxu0
        %v9093 = vadd.f32 %v7379, %v9092
        %v9094 = vpop.f32.mrb[0].mxu0
        %v9095 = vadd.f32 %v7380, %v9094
        %9096 = vmatprep.mubr.bf16.mxu0 %v8609
        %9097 = vmatmul.mubr.bf16.gmra.mrb[0].mxu0 %v8608
        %v9098 = vpop.f32.mrb[0].mxu0
        %v9099 = vadd.f32 %v7381, %v9098
        %v9100 = vpop.f32.mrb[0].mxu0
        %v9101 = vadd.f32 %v7382, %v9100
        %v9102 = vpop.f32.mrb[0].mxu0
        %v9103 = vadd.f32 %v7383, %v9102
        %v9104 = vpop.f32.mrb[0].mxu0
        %v9105 = vadd.f32 %v7384, %v9104
        %9106 = vmatprep.mubr.bf16.mxu0 %v8611
        %9107 = vmatmul.mubr.bf16.gmra.mrb[0].mxu0 %v8610
        %v9108 = vpop.f32.mrb[0].mxu0
        %v9109 = vadd.f32 %v7385, %v9108
        %v9110 = vpop.f32.mrb[0].mxu0
        %v9111 = vadd.f32 %v7386, %v9110
        %v9112 = vpop.f32.mrb[0].mxu0
        %v9113 = vadd.f32 %v7387, %v9112
        %v9114 = vpop.f32.mrb[0].mxu0
        %v9115 = vadd.f32 %v7388, %v9114
        %9116 = vmatprep.mubr.bf16.mxu0 %v8613
        %9117 = vmatmul.mubr.bf16.gmra.mrb[0].mxu0 %v8612
        %v9118 = vpop.f32.mrb[0].mxu0
        %v9119 = vadd.f32 %v7389, %v9118
        %v9120 = vpop.f32.mrb[0].mxu0
        %v9121 = vadd.f32 %v7390, %v9120
        %v9122 = vpop.f32.mrb[0].mxu0
        %v9123 = vadd.f32 %v7391, %v9122
        %v9124 = vpop.f32.mrb[0].mxu0
        %v9125 = vadd.f32 %v7392, %v9124
        %9126 = vmatprep.mubr.bf16.mxu0 %v8615
        %9127 = vmatmul.mubr.bf16.gmra.mrb[0].mxu0 %v8614
        %v9128 = vpop.f32.mrb[0].mxu0
        %v9129 = vadd.f32 %v7393, %v9128
        %v9130 = vpop.f32.mrb[0].mxu0
        %v9131 = vadd.f32 %v7394, %v9130
        %v9132 = vpop.f32.mrb[0].mxu0
        %v9133 = vadd.f32 %v7395, %v9132
        %v9134 = vpop.f32.mrb[0].mxu0
        %v9135 = vadd.f32 %v7396, %v9134
        %9136 = vmatprep.mubr.bf16.mxu0 %v8617
        %9137 = vmatmul.mubr.bf16.gmra.mrb[0].mxu0 %v8616
        %v9138 = vpop.f32.mrb[0].mxu0
        %v9139 = vadd.f32 %v7397, %v9138
        %v9140 = vpop.f32.mrb[0].mxu0
        %v9141 = vadd.f32 %v7398, %v9140
        %v9142 = vpop.f32.mrb[0].mxu0
        %v9143 = vadd.f32 %v7399, %v9142
        %v9144 = vpop.f32.mrb[0].mxu0
        %v9145 = vadd.f32 %v7400, %v9144
        %9146 = vmatprep.mubr.bf16.mxu0 %v8619
        %9147 = vmatmul.mubr.bf16.gmra.mrb[0].mxu0 %v8618
        %v9148 = vpop.f32.mrb[0].mxu0
        %v9149 = vadd.f32 %v7401, %v9148
        %v9150 = vpop.f32.mrb[0].mxu0
        %v9151 = vadd.f32 %v7402, %v9150
        %v9152 = vpop.f32.mrb[0].mxu0
        %v9153 = vadd.f32 %v7403, %v9152
        %v9154 = vpop.f32.mrb[0].mxu0
        %v9155 = vadd.f32 %v7404, %v9154
        %9156 = vmatprep.mubr.bf16.mxu0 %v8621
        %9157 = vmatmul.mubr.bf16.gmra.mrb[0].mxu0 %v8620
        %v9158 = vpop.f32.mrb[0].mxu0
        %v9159 = vadd.f32 %v7405, %v9158
        %v9160 = vpop.f32.mrb[0].mxu0
        %v9161 = vadd.f32 %v7406, %v9160
        %v9162 = vpop.f32.mrb[0].mxu0
        %v9163 = vadd.f32 %v7407, %v9162
        %v9164 = vpop.f32.mrb[0].mxu0
        %v9165 = vadd.f32 %v7408, %v9164
        %9166 = vmatprep.mubr.bf16.mxu0 %v8623
        %9167 = vmatmul.mubr.bf16.gmra.mrb[0].mxu0 %v8622
        %v9168 = vpop.f32.mrb[0].mxu0
        %v9169 = vadd.f32 %v7409, %v9168
        %v9170 = vpop.f32.mrb[0].mxu0
        %v9171 = vadd.f32 %v7410, %v9170
        %v9172 = vpop.f32.mrb[0].mxu0
        %v9173 = vadd.f32 %v7411, %v9172
        %v9174 = vpop.f32.mrb[0].mxu0
        %v9175 = vadd.f32 %v7412, %v9174
        %9176 = vmatprep.mubr.bf16.mxu0 %v8625
        %9177 = vmatmul.mubr.bf16.gmra.mrb[0].mxu0 %v8624
        %v9178 = vpop.f32.mrb[0].mxu0
        %v9179 = vadd.f32 %v7413, %v9178
        %v9180 = vpop.f32.mrb[0].mxu0
        %v9181 = vadd.f32 %v7414, %v9180
        %v9182 = vpop.f32.mrb[0].mxu0
        %v9183 = vadd.f32 %v7415, %v9182
        %v9184 = vpop.f32.mrb[0].mxu0
        %v9185 = vadd.f32 %v7416, %v9184
        %9186 = vmatprep.mubr.bf16.mxu0 %v8627
        %9187 = vmatmul.mubr.bf16.gmra.mrb[0].mxu0 %v8626
        %v9188 = vpop.f32.mrb[0].mxu0
        %v9189 = vadd.f32 %v7417, %v9188
        %v9190 = vpop.f32.mrb[0].mxu0
        %v9191 = vadd.f32 %v7418, %v9190
        %v9192 = vpop.f32.mrb[0].mxu0
        %v9193 = vadd.f32 %v7419, %v9192
        %v9194 = vpop.f32.mrb[0].mxu0
        %v9195 = vadd.f32 %v7420, %v9194
        %9196 = vmatprep.mubr.bf16.mxu0 %v8629
        %9197 = vmatmul.mubr.bf16.gmra.mrb[0].mxu0 %v8628
        %v9198 = vpop.f32.mrb[0].mxu0
        %v9199 = vadd.f32 %v7421, %v9198
        %v9200 = vpop.f32.mrb[0].mxu0
        %v9201 = vadd.f32 %v7422, %v9200
        %v9202 = vpop.f32.mrb[0].mxu0
        %v9203 = vadd.f32 %v7423, %v9202
        %v9204 = vpop.f32.mrb[0].mxu0
        %v9205 = vadd.f32 %v7424, %v9204
        %9206 = vmatprep.mubr.bf16.mxu0 %v8631
        %9207 = vmatmul.mubr.bf16.gmra.mrb[0].mxu0 %v8630
        %v9208 = vpop.f32.mrb[0].mxu0
        %v9209 = vadd.f32 %v7425, %v9208
        %v9210 = vpop.f32.mrb[0].mxu0
        %v9211 = vadd.f32 %v7426, %v9210
        %v9212 = vpop.f32.mrb[0].mxu0
        %v9213 = vadd.f32 %v7427, %v9212
        %v9214 = vpop.f32.mrb[0].mxu0
        %v9215 = vadd.f32 %v7428, %v9214
        %9216 = vmatprep.mubr.bf16.mxu0 %v8633
        %9217 = vmatmul.mubr.bf16.gmra.mrb[0].mxu0 %v8632
        %v9218 = vpop.f32.mrb[0].mxu0
        %v9219 = vadd.f32 %v7429, %v9218
        %v9220 = vpop.f32.mrb[0].mxu0
        %v9221 = vadd.f32 %v7430, %v9220
        %v9222 = vpop.f32.mrb[0].mxu0
        %v9223 = vadd.f32 %v7431, %v9222
        %v9224 = vpop.f32.mrb[0].mxu0
        %v9225 = vadd.f32 %v7432, %v9224
        %9226 = vmatprep.mubr.bf16.mxu0 %v8635
        %9227 = vmatmul.mubr.bf16.gmra.mrb[0].mxu0 %v8634
        %v9228 = vpop.f32.mrb[0].mxu0
        %v9229 = vadd.f32 %v7433, %v9228
        %v9230 = vpop.f32.mrb[0].mxu0
        %v9231 = vadd.f32 %v7434, %v9230
        %v9232 = vpop.f32.mrb[0].mxu0
        %v9233 = vadd.f32 %v7435, %v9232
        %v9234 = vpop.f32.mrb[0].mxu0
        %v9235 = vadd.f32 %v7436, %v9234
        %9236 = vmatprep.mubr.bf16.mxu0 %v8637
        %9237 = vmatmul.mubr.bf16.gmra.mrb[0].mxu0 %v8636
        %v9238 = vpop.f32.mrb[0].mxu0
        %v9239 = vadd.f32 %v7437, %v9238
        %v9240 = vpop.f32.mrb[0].mxu0
        %v9241 = vadd.f32 %v7438, %v9240
        %v9242 = vpop.f32.mrb[0].mxu0
        %v9243 = vadd.f32 %v7439, %v9242
        %v9244 = vpop.f32.mrb[0].mxu0
        %v9245 = vadd.f32 %v7440, %v9244
        %9246 = vmatprep.mubr.bf16.mxu0 %v8639
        %9247 = vmatmul.mubr.bf16.gmra.mrb[0].mxu0 %v8638
        %v9248 = vpop.f32.mrb[0].mxu0
        %v9249 = vadd.f32 %v7441, %v9248
        %v9250 = vpop.f32.mrb[0].mxu0
        %v9251 = vadd.f32 %v7442, %v9250
        %v9252 = vpop.f32.mrb[0].mxu0
        %v9253 = vadd.f32 %v7443, %v9252
        %v9254 = vpop.f32.mrb[0].mxu0
        %v9255 = vadd.f32 %v7444, %v9254
        %9256 = vmatprep.mubr.bf16.mxu0 %v8641
        %9257 = vmatmul.mubr.bf16.gmra.mrb[0].mxu0 %v8640
        %v9258 = vpop.f32.mrb[0].mxu0
        %v9259 = vadd.f32 %v7445, %v9258
        %v9260 = vpop.f32.mrb[0].mxu0
        %v9261 = vadd.f32 %v7446, %v9260
        %v9262 = vpop.f32.mrb[0].mxu0
        %v9263 = vadd.f32 %v7447, %v9262
        %v9264 = vpop.f32.mrb[0].mxu0
        %v9265 = vadd.f32 %v7448, %v9264
        %9266 = vmatprep.mubr.bf16.mxu0 %v8643
        %9267 = vmatmul.mubr.bf16.gmra.mrb[0].mxu0 %v8642
        %v9268 = vpop.f32.mrb[0].mxu0
        %v9269 = vadd.f32 %v7449, %v9268
        %v9270 = vpop.f32.mrb[0].mxu0
        %v9271 = vadd.f32 %v7450, %v9270
        %v9272 = vpop.f32.mrb[0].mxu0
        %v9273 = vadd.f32 %v7451, %v9272
        %v9274 = vpop.f32.mrb[0].mxu0
        %v9275 = vadd.f32 %v7452, %v9274
        %9276 = vmatprep.mubr.bf16.mxu0 %v8645
        %9277 = vmatmul.mubr.bf16.gmra.mrb[0].mxu0 %v8644
        %v9278 = vpop.f32.mrb[0].mxu0
        %v9279 = vadd.f32 %v7453, %v9278
        %v9280 = vpop.f32.mrb[0].mxu0
        %v9281 = vadd.f32 %v7454, %v9280
        %v9282 = vpop.f32.mrb[0].mxu0
        %v9283 = vadd.f32 %v7455, %v9282
        %v9284 = vpop.f32.mrb[0].mxu0
        %v9285 = vadd.f32 %v7456, %v9284
        %9286 = vmatprep.mubr.bf16.mxu0 %v8647
        %9287 = vmatmul.mubr.bf16.gmra.mrb[0].mxu0 %v8646
        %v9288 = vpop.f32.mrb[0].mxu0
        %v9289 = vadd.f32 %v7457, %v9288
        %v9290 = vpop.f32.mrb[0].mxu0
        %v9291 = vadd.f32 %v7458, %v9290
        %v9292 = vpop.f32.mrb[0].mxu0
        %v9293 = vadd.f32 %v7459, %v9292
        %v9294 = vpop.f32.mrb[0].mxu0
        %v9295 = vadd.f32 %v7460, %v9294
        %9296 = vmatprep.mubr.bf16.mxu0 %v8649
        %9297 = vmatmul.mubr.bf16.gmra.mrb[0].mxu0 %v8648
        %v9298 = vpop.f32.mrb[0].mxu0
        %v9299 = vadd.f32 %v7461, %v9298
        %v9300 = vpop.f32.mrb[0].mxu0
        %v9301 = vadd.f32 %v7462, %v9300
        %v9302 = vpop.f32.mrb[0].mxu0
        %v9303 = vadd.f32 %v7463, %v9302
        %v9304 = vpop.f32.mrb[0].mxu0
        %v9305 = vadd.f32 %v7464, %v9304
        %9306 = vmatprep.mubr.bf16.mxu0 %v8651
        %9307 = vmatmul.mubr.bf16.gmra.mrb[0].mxu0 %v8650
        %v9308 = vpop.f32.mrb[0].mxu0
        %v9309 = vadd.f32 %v7465, %v9308
        %v9310 = vpop.f32.mrb[0].mxu0
        %v9311 = vadd.f32 %v7466, %v9310
        %v9312 = vpop.f32.mrb[0].mxu0
        %v9313 = vadd.f32 %v7467, %v9312
        %v9314 = vpop.f32.mrb[0].mxu0
        %v9315 = vadd.f32 %v7468, %v9314
        %9316 = vmatprep.mubr.bf16.mxu0 %v8653
        %9317 = vmatmul.mubr.bf16.gmra.mrb[0].mxu0 %v8652
        %v9318 = vpop.f32.mrb[0].mxu0
        %v9319 = vadd.f32 %v7469, %v9318
        %v9320 = vpop.f32.mrb[0].mxu0
        %v9321 = vadd.f32 %v7470, %v9320
        %v9322 = vpop.f32.mrb[0].mxu0
        %v9323 = vadd.f32 %v7471, %v9322
        %v9324 = vpop.f32.mrb[0].mxu0
        %v9325 = vadd.f32 %v7472, %v9324
        %9326 = vmatprep.mubr.bf16.mxu0 %v8655
        %9327 = vmatmul.mubr.bf16.gmra.mrb[0].mxu0 %v8654
        %v9328 = vpop.f32.mrb[0].mxu0
        %v9329 = vadd.f32 %v7473, %v9328
        %v9330 = vpop.f32.mrb[0].mxu0
        %v9331 = vadd.f32 %v7474, %v9330
        %v9332 = vpop.f32.mrb[0].mxu0
        %v9333 = vadd.f32 %v7475, %v9332
        %v9334 = vpop.f32.mrb[0].mxu0
        %v9335 = vadd.f32 %v7476, %v9334
        %9336 = vmatprep.mubr.bf16.mxu0 %v8657
        %9337 = vmatmul.mubr.bf16.gmra.mrb[0].mxu0 %v8656
        %v9338 = vpop.f32.mrb[0].mxu0
        %v9339 = vadd.f32 %v7477, %v9338
        %v9340 = vpop.f32.mrb[0].mxu0
        %v9341 = vadd.f32 %v7478, %v9340
        %v9342 = vpop.f32.mrb[0].mxu0
        %v9343 = vadd.f32 %v7479, %v9342
        %v9344 = vpop.f32.mrb[0].mxu0
        %v9345 = vadd.f32 %v7480, %v9344
        %9346 = vmatprep.mubr.bf16.mxu0 %v8659
        %9347 = vmatmul.mubr.bf16.gmra.mrb[0].mxu0 %v8658
        %v9348 = vpop.f32.mrb[0].mxu0
        %v9349 = vadd.f32 %v7481, %v9348
        %v9350 = vpop.f32.mrb[0].mxu0
        %v9351 = vadd.f32 %v7482, %v9350
        %v9352 = vpop.f32.mrb[0].mxu0
        %v9353 = vadd.f32 %v7483, %v9352
        %v9354 = vpop.f32.mrb[0].mxu0
        %v9355 = vadd.f32 %v7484, %v9354
        %9356 = vmatprep.mubr.bf16.mxu0 %v8661
        %9357 = vmatmul.mubr.bf16.gmra.mrb[0].mxu0 %v8660
        %v9358 = vpop.f32.mrb[0].mxu0
        %v9359 = vadd.f32 %v7485, %v9358
        %v9360 = vpop.f32.mrb[0].mxu0
        %v9361 = vadd.f32 %v7486, %v9360
        %v9362 = vpop.f32.mrb[0].mxu0
        %v9363 = vadd.f32 %v7487, %v9362
        %v9364 = vpop.f32.mrb[0].mxu0
        %v9365 = vadd.f32 %v7488, %v9364
        %9366 = vmatprep.mubr.bf16.mxu0 %v8663
        %9367 = vmatmul.mubr.bf16.gmra.mrb[0].mxu0 %v8662
        %v9368 = vpop.f32.mrb[0].mxu0
        %v9369 = vadd.f32 %v7489, %v9368
        %v9370 = vpop.f32.mrb[0].mxu0
        %v9371 = vadd.f32 %v7490, %v9370
        %v9372 = vpop.f32.mrb[0].mxu0
        %v9373 = vadd.f32 %v7491, %v9372
        %v9374 = vpop.f32.mrb[0].mxu0
        %v9375 = vadd.f32 %v7492, %v9374
        %9376 = vmatprep.mubr.bf16.mxu0 %v8665
        %9377 = vmatmul.mubr.bf16.gmra.mrb[0].mxu0 %v8664
        %v9378 = vpop.f32.mrb[0].mxu0
        %v9379 = vadd.f32 %v7493, %v9378
        %v9380 = vpop.f32.mrb[0].mxu0
        %v9381 = vadd.f32 %v7494, %v9380
        %v9382 = vpop.f32.mrb[0].mxu0
        %v9383 = vadd.f32 %v7495, %v9382
        %v9384 = vpop.f32.mrb[0].mxu0
        %v9385 = vadd.f32 %v7496, %v9384
        %9386 = vmatprep.mubr.bf16.mxu0 %v8667
        %9387 = vmatmul.mubr.bf16.gmra.mrb[0].mxu0 %v8666
        %v9388 = vpop.f32.mrb[0].mxu0
        %v9389 = vadd.f32 %v7497, %v9388
        %v9390 = vpop.f32.mrb[0].mxu0
        %v9391 = vadd.f32 %v7498, %v9390
        %v9392 = vpop.f32.mrb[0].mxu0
        %v9393 = vadd.f32 %v7499, %v9392
        %v9394 = vpop.f32.mrb[0].mxu0
        %v9395 = vadd.f32 %v7500, %v9394
        %9396 = vmatprep.mubr.bf16.mxu0 %v8669
        %9397 = vmatmul.mubr.bf16.gmra.mrb[0].mxu0 %v8668
        %v9398 = vpop.f32.mrb[0].mxu0
        %v9399 = vadd.f32 %v7501, %v9398
        %v9400 = vpop.f32.mrb[0].mxu0
        %v9401 = vadd.f32 %v7502, %v9400
        %v9402 = vpop.f32.mrb[0].mxu0
        %v9403 = vadd.f32 %v7503, %v9402
        %v9404 = vpop.f32.mrb[0].mxu0
        %v9405 = vadd.f32 %v7504, %v9404
        %9406 = vmatprep.mubr.bf16.mxu0 %v8671
        %9407 = vmatmul.mubr.bf16.gmra.mrb[0].mxu0 %v8670
        %v9408 = vpop.f32.mrb[0].mxu0
        %v9409 = vadd.f32 %v7505, %v9408
        %v9410 = vpop.f32.mrb[0].mxu0
        %v9411 = vadd.f32 %v7506, %v9410
        %v9412 = vpop.f32.mrb[0].mxu0
        %v9413 = vadd.f32 %v7507, %v9412
        %v9414 = vpop.f32.mrb[0].mxu0
        %v9415 = vadd.f32 %v7508, %v9414
        %9416 = vmatprep.mubr.bf16.mxu0 %v8673
        %9417 = vmatmul.mubr.bf16.gmra.mrb[0].mxu0 %v8672
        %v9418 = vpop.f32.mrb[0].mxu0
        %v9419 = vadd.f32 %v7509, %v9418
        %v9420 = vpop.f32.mrb[0].mxu0
        %v9421 = vadd.f32 %v7510, %v9420
        %v9422 = vpop.f32.mrb[0].mxu0
        %v9423 = vadd.f32 %v7511, %v9422
        %v9424 = vpop.f32.mrb[0].mxu0
        %v9425 = vadd.f32 %v7512, %v9424
        %9426 = vmatprep.mubr.bf16.mxu0 %v8675
        %9427 = vmatmul.mubr.bf16.gmra.mrb[0].mxu0 %v8674
        %v9428 = vpop.f32.mrb[0].mxu0
        %v9429 = vadd.f32 %v7513, %v9428
        %v9430 = vpop.f32.mrb[0].mxu0
        %v9431 = vadd.f32 %v7514, %v9430
        %v9432 = vpop.f32.mrb[0].mxu0
        %v9433 = vadd.f32 %v7515, %v9432
        %v9434 = vpop.f32.mrb[0].mxu0
        %v9435 = vadd.f32 %v7516, %v9434
        %9436 = vmatprep.mubr.bf16.mxu0 %v8677
        %9437 = vmatmul.mubr.bf16.gmra.mrb[0].mxu0 %v8676
        %v9438 = vpop.f32.mrb[0].mxu0
        %v9439 = vadd.f32 %v7517, %v9438
        %v9440 = vpop.f32.mrb[0].mxu0
        %v9441 = vadd.f32 %v7518, %v9440
        %v9442 = vpop.f32.mrb[0].mxu0
        %v9443 = vadd.f32 %v7519, %v9442
        %v9444 = vpop.f32.mrb[0].mxu0
        %v9445 = vadd.f32 %v7520, %v9444
        %9446 = vmatprep.mubr.bf16.mxu0 %v8679
        %9447 = vmatmul.mubr.bf16.gmra.mrb[0].mxu0 %v8678
        %v9448 = vpop.f32.mrb[0].mxu0
        %v9449 = vadd.f32 %v7521, %v9448
        %v9450 = vpop.f32.mrb[0].mxu0
        %v9451 = vadd.f32 %v7522, %v9450
        %v9452 = vpop.f32.mrb[0].mxu0
        %v9453 = vadd.f32 %v7523, %v9452
        %v9454 = vpop.f32.mrb[0].mxu0
        %v9455 = vadd.f32 %v7524, %v9454
        %9456 = vmatprep.mubr.bf16.mxu0 %v8681
        %9457 = vmatmul.mubr.bf16.gmra.mrb[0].mxu0 %v8680
        %v9458 = vpop.f32.mrb[0].mxu0
        %v9459 = vadd.f32 %v7525, %v9458
        %v9460 = vpop.f32.mrb[0].mxu0
        %v9461 = vadd.f32 %v7526, %v9460
        %v9462 = vpop.f32.mrb[0].mxu0
        %v9463 = vadd.f32 %v7527, %v9462
        %v9464 = vpop.f32.mrb[0].mxu0
        %v9465 = vadd.f32 %v7528, %v9464
        %9466 = vmatprep.mubr.bf16.mxu0 %v8683
        %9467 = vmatmul.mubr.bf16.gmra.mrb[0].mxu0 %v8682
        %v9468 = vpop.f32.mrb[0].mxu0
        %v9469 = vadd.f32 %v7529, %v9468
        %v9470 = vpop.f32.mrb[0].mxu0
        %v9471 = vadd.f32 %v7530, %v9470
        %v9472 = vpop.f32.mrb[0].mxu0
        %v9473 = vadd.f32 %v7531, %v9472
        %v9474 = vpop.f32.mrb[0].mxu0
        %v9475 = vadd.f32 %v7532, %v9474
        %9476 = vmatprep.mubr.bf16.mxu0 %v8685
        %9477 = vmatmul.mubr.bf16.gmra.mrb[0].mxu0 %v8684
        %v9478 = vpop.f32.mrb[0].mxu0
        %v9479 = vadd.f32 %v7533, %v9478
        %v9480 = vpop.f32.mrb[0].mxu0
        %v9481 = vadd.f32 %v7534, %v9480
        %v9482 = vpop.f32.mrb[0].mxu0
        %v9483 = vadd.f32 %v7535, %v9482
        %v9484 = vpop.f32.mrb[0].mxu0
        %v9485 = vadd.f32 %v7536, %v9484
        %9486 = vdwg.mxu0
        %9487 = vst [vmem:[%s681] sm:$0xff] %v8849
        %9488 = vst [vmem:[%s681 + $0x8] sm:$0xff] %v8851
        %9489 = vst [vmem:[%s681 + $0x10] sm:$0xff] %v8853
        %9490 = vst [vmem:[%s681 + $0x18] sm:$0xff] %v8855
        %9491 = vst [vmem:[%s681 + $0x20] sm:$0xff] %v8859
        %9492 = vst [vmem:[%s681 + $0x28] sm:$0xff] %v8861
        %9493 = vst [vmem:[%s681 + $0x30] sm:$0xff] %v8863
        %9494 = vst [vmem:[%s681 + $0x38] sm:$0xff] %v8865
        %9495 = vst [vmem:[%s681 + $0x40] sm:$0xff] %v8869
        %9496 = vst [vmem:[%s681 + $0x48] sm:$0xff] %v8871
        %9497 = vst [vmem:[%s681 + $0x50] sm:$0xff] %v8873
        %9498 = vst [vmem:[%s681 + $0x58] sm:$0xff] %v8875
        %9499 = vst [vmem:[%s681 + $0x60] sm:$0xff] %v8879
        %9500 = vst [vmem:[%s681 + $0x68] sm:$0xff] %v8881
        %9501 = vst [vmem:[%s681 + $0x70] sm:$0xff] %v8883
        %9502 = vst [vmem:[%s681 + $0x78] sm:$0xff] %v8885
        %9503 = vst [vmem:[%s681 + $0x80] sm:$0xff] %v8889
        %9504 = vst [vmem:[%s681 + $0x88] sm:$0xff] %v8891
        %9505 = vst [vmem:[%s681 + $0x90] sm:$0xff] %v8893
        %9506 = vst [vmem:[%s681 + $0x98] sm:$0xff] %v8895
        %9507 = vst [vmem:[%s681 + $0xa0] sm:$0xff] %v8899
        %9508 = vst [vmem:[%s681 + $0xa8] sm:$0xff] %v8901
        %9509 = vst [vmem:[%s681 + $0xb0] sm:$0xff] %v8903
        %9510 = vst [vmem:[%s681 + $0xb8] sm:$0xff] %v8905
        %9511 = vst [vmem:[%s681 + $0xc0] sm:$0xff] %v8909
        %9512 = vst [vmem:[%s681 + $0xc8] sm:$0xff] %v8911
        %9513 = vst [vmem:[%s681 + $0xd0] sm:$0xff] %v8913
        %9514 = vst [vmem:[%s681 + $0xd8] sm:$0xff] %v8915
        %9515 = vst [vmem:[%s681 + $0xe0] sm:$0xff] %v8919
        %9516 = vst [vmem:[%s681 + $0xe8] sm:$0xff] %v8921
        %9517 = vst [vmem:[%s681 + $0xf0] sm:$0xff] %v8923
        %9518 = vst [vmem:[%s681 + $0xf8] sm:$0xff] %v8925
        %9519 = vst [vmem:[%s681 + $0x100] sm:$0xff] %v8929
        %9520 = vst [vmem:[%s681 + $0x108] sm:$0xff] %v8931
        %9521 = vst [vmem:[%s681 + $0x110] sm:$0xff] %v8933
        %9522 = vst [vmem:[%s681 + $0x118] sm:$0xff] %v8935
        %9523 = vst [vmem:[%s681 + $0x120] sm:$0xff] %v8939
        %9524 = vst [vmem:[%s681 + $0x128] sm:$0xff] %v8941
        %9525 = vst [vmem:[%s681 + $0x130] sm:$0xff] %v8943
        %9526 = vst [vmem:[%s681 + $0x138] sm:$0xff] %v8945
        %9527 = vst [vmem:[%s681 + $0x140] sm:$0xff] %v8949
        %9528 = vst [vmem:[%s681 + $0x148] sm:$0xff] %v8951
        %9529 = vst [vmem:[%s681 + $0x150] sm:$0xff] %v8953
        %9530 = vst [vmem:[%s681 + $0x158] sm:$0xff] %v8955
        %9531 = vst [vmem:[%s681 + $0x160] sm:$0xff] %v8959
        %9532 = vst [vmem:[%s681 + $0x168] sm:$0xff] %v8961
        %9533 = vst [vmem:[%s681 + $0x170] sm:$0xff] %v8963
        %9534 = vst [vmem:[%s681 + $0x178] sm:$0xff] %v8965
        %9535 = vst [vmem:[%s681 + $0x180] sm:$0xff] %v8969
        %9536 = vst [vmem:[%s681 + $0x188] sm:$0xff] %v8971
        %9537 = vst [vmem:[%s681 + $0x190] sm:$0xff] %v8973
        %9538 = vst [vmem:[%s681 + $0x198] sm:$0xff] %v8975
        %9539 = vst [vmem:[%s681 + $0x1a0] sm:$0xff] %v8979
        %9540 = vst [vmem:[%s681 + $0x1a8] sm:$0xff] %v8981
        %9541 = vst [vmem:[%s681 + $0x1b0] sm:$0xff] %v8983
        %9542 = vst [vmem:[%s681 + $0x1b8] sm:$0xff] %v8985
        %9543 = vst [vmem:[%s681 + $0x1c0] sm:$0xff] %v8989
        %9544 = vst [vmem:[%s681 + $0x1c8] sm:$0xff] %v8991
        %9545 = vst [vmem:[%s681 + $0x1d0] sm:$0xff] %v8993
        %9546 = vst [vmem:[%s681 + $0x1d8] sm:$0xff] %v8995
        %9547 = vst [vmem:[%s681 + $0x1e0] sm:$0xff] %v8999
        %9548 = vst [vmem:[%s681 + $0x1e8] sm:$0xff] %v9001
        %9549 = vst [vmem:[%s681 + $0x1f0] sm:$0xff] %v9003
        %9550 = vst [vmem:[%s681 + $0x1f8] sm:$0xff] %v9005
        %9551 = vst [vmem:[%s681 + $0x200] sm:$0xff] %v9009
        %9552 = vst [vmem:[%s681 + $0x208] sm:$0xff] %v9011
        %9553 = vst [vmem:[%s681 + $0x210] sm:$0xff] %v9013
        %9554 = vst [vmem:[%s681 + $0x218] sm:$0xff] %v9015
        %9555 = vst [vmem:[%s681 + $0x220] sm:$0xff] %v9019
        %9556 = vst [vmem:[%s681 + $0x228] sm:$0xff] %v9021
        %9557 = vst [vmem:[%s681 + $0x230] sm:$0xff] %v9023
        %9558 = vst [vmem:[%s681 + $0x238] sm:$0xff] %v9025
        %9559 = vst [vmem:[%s681 + $0x240] sm:$0xff] %v9029
        %9560 = vst [vmem:[%s681 + $0x248] sm:$0xff] %v9031
        %9561 = vst [vmem:[%s681 + $0x250] sm:$0xff] %v9033
        %9562 = vst [vmem:[%s681 + $0x258] sm:$0xff] %v9035
        %9563 = vst [vmem:[%s681 + $0x260] sm:$0xff] %v9039
        %9564 = vst [vmem:[%s681 + $0x268] sm:$0xff] %v9041
        %9565 = vst [vmem:[%s681 + $0x270] sm:$0xff] %v9043
        %9566 = vst [vmem:[%s681 + $0x278] sm:$0xff] %v9045
        %9567 = vst [vmem:[%s681 + $0x280] sm:$0xff] %v9049
        %9568 = vst [vmem:[%s681 + $0x288] sm:$0xff] %v9051
        %9569 = vst [vmem:[%s681 + $0x290] sm:$0xff] %v9053
        %9570 = vst [vmem:[%s681 + $0x298] sm:$0xff] %v9055
        %9571 = vst [vmem:[%s681 + $0x2a0] sm:$0xff] %v9059
        %9572 = vst [vmem:[%s681 + $0x2a8] sm:$0xff] %v9061
        %9573 = vst [vmem:[%s681 + $0x2b0] sm:$0xff] %v9063
        %9574 = vst [vmem:[%s681 + $0x2b8] sm:$0xff] %v9065
        %9575 = vst [vmem:[%s681 + $0x2c0] sm:$0xff] %v9069
        %9576 = vst [vmem:[%s681 + $0x2c8] sm:$0xff] %v9071
        %9577 = vst [vmem:[%s681 + $0x2d0] sm:$0xff] %v9073
        %9578 = vst [vmem:[%s681 + $0x2d8] sm:$0xff] %v9075
        %9579 = vst [vmem:[%s681 + $0x2e0] sm:$0xff] %v9079
        %9580 = vst [vmem:[%s681 + $0x2e8] sm:$0xff] %v9081
        %9581 = vst [vmem:[%s681 + $0x2f0] sm:$0xff] %v9083
        %9582 = vst [vmem:[%s681 + $0x2f8] sm:$0xff] %v9085
        %9583 = vst [vmem:[%s681 + $0x300] sm:$0xff] %v9089
        %9584 = vst [vmem:[%s681 + $0x308] sm:$0xff] %v9091
        %9585 = vst [vmem:[%s681 + $0x310] sm:$0xff] %v9093
        %9586 = vst [vmem:[%s681 + $0x318] sm:$0xff] %v9095
        %9587 = vst [vmem:[%s681 + $0x320] sm:$0xff] %v9099
        %9588 = vst [vmem:[%s681 + $0x328] sm:$0xff] %v9101
        %9589 = vst [vmem:[%s681 + $0x330] sm:$0xff] %v9103
        %9590 = vst [vmem:[%s681 + $0x338] sm:$0xff] %v9105
        %9591 = vst [vmem:[%s681 + $0x340] sm:$0xff] %v9109
        %9592 = vst [vmem:[%s681 + $0x348] sm:$0xff] %v9111
        %9593 = vst [vmem:[%s681 + $0x350] sm:$0xff] %v9113
        %9594 = vst [vmem:[%s681 + $0x358] sm:$0xff] %v9115
        %9595 = vst [vmem:[%s681 + $0x360] sm:$0xff] %v9119
        %9596 = vst [vmem:[%s681 + $0x368] sm:$0xff] %v9121
        %9597 = vst [vmem:[%s681 + $0x370] sm:$0xff] %v9123
        %9598 = vst [vmem:[%s681 + $0x378] sm:$0xff] %v9125
        %9599 = vst [vmem:[%s681 + $0x380] sm:$0xff] %v9129
        %9600 = vst [vmem:[%s681 + $0x388] sm:$0xff] %v9131
        %9601 = vst [vmem:[%s681 + $0x390] sm:$0xff] %v9133
        %9602 = vst [vmem:[%s681 + $0x398] sm:$0xff] %v9135
        %9603 = vst [vmem:[%s681 + $0x3a0] sm:$0xff] %v9139
        %9604 = vst [vmem:[%s681 + $0x3a8] sm:$0xff] %v9141
        %9605 = vst [vmem:[%s681 + $0x3b0] sm:$0xff] %v9143
        %9606 = vst [vmem:[%s681 + $0x3b8] sm:$0xff] %v9145
        %9607 = vst [vmem:[%s681 + $0x3c0] sm:$0xff] %v9149
        %9608 = vst [vmem:[%s681 + $0x3c8] sm:$0xff] %v9151
        %9609 = vst [vmem:[%s681 + $0x3d0] sm:$0xff] %v9153
        %9610 = vst [vmem:[%s681 + $0x3d8] sm:$0xff] %v9155
        %9611 = vst [vmem:[%s681 + $0x3e0] sm:$0xff] %v9159
        %9612 = vst [vmem:[%s681 + $0x3e8] sm:$0xff] %v9161
        %9613 = vst [vmem:[%s681 + $0x3f0] sm:$0xff] %v9163
        %9614 = vst [vmem:[%s681 + $0x3f8] sm:$0xff] %v9165
        %9615 = vst [vmem:[%s681 + $0x400] sm:$0xff] %v9169
        %9616 = vst [vmem:[%s681 + $0x408] sm:$0xff] %v9171
        %9617 = vst [vmem:[%s681 + $0x410] sm:$0xff] %v9173
        %9618 = vst [vmem:[%s681 + $0x418] sm:$0xff] %v9175
        %9619 = vst [vmem:[%s681 + $0x420] sm:$0xff] %v9179
        %9620 = vst [vmem:[%s681 + $0x428] sm:$0xff] %v9181
        %9621 = vst [vmem:[%s681 + $0x430] sm:$0xff] %v9183
        %9622 = vst [vmem:[%s681 + $0x438] sm:$0xff] %v9185
        %9623 = vst [vmem:[%s681 + $0x440] sm:$0xff] %v9189
        %9624 = vst [vmem:[%s681 + $0x448] sm:$0xff] %v9191
        %9625 = vst [vmem:[%s681 + $0x450] sm:$0xff] %v9193
        %9626 = vst [vmem:[%s681 + $0x458] sm:$0xff] %v9195
        %9627 = vst [vmem:[%s681 + $0x460] sm:$0xff] %v9199
        %9628 = vst [vmem:[%s681 + $0x468] sm:$0xff] %v9201
        %9629 = vst [vmem:[%s681 + $0x470] sm:$0xff] %v9203
        %9630 = vst [vmem:[%s681 + $0x478] sm:$0xff] %v9205
        %9631 = vst [vmem:[%s681 + $0x480] sm:$0xff] %v9209
        %9632 = vst [vmem:[%s681 + $0x488] sm:$0xff] %v9211
        %9633 = vst [vmem:[%s681 + $0x490] sm:$0xff] %v9213
        %9634 = vst [vmem:[%s681 + $0x498] sm:$0xff] %v9215
        %9635 = vst [vmem:[%s681 + $0x4a0] sm:$0xff] %v9219
        %9636 = vst [vmem:[%s681 + $0x4a8] sm:$0xff] %v9221
        %9637 = vst [vmem:[%s681 + $0x4b0] sm:$0xff] %v9223
        %9638 = vst [vmem:[%s681 + $0x4b8] sm:$0xff] %v9225
        %9639 = vst [vmem:[%s681 + $0x4c0] sm:$0xff] %v9229
        %9640 = vst [vmem:[%s681 + $0x4c8] sm:$0xff] %v9231
        %9641 = vst [vmem:[%s681 + $0x4d0] sm:$0xff] %v9233
        %9642 = vst [vmem:[%s681 + $0x4d8] sm:$0xff] %v9235
        %9643 = vst [vmem:[%s681 + $0x4e0] sm:$0xff] %v9239
        %9644 = vst [vmem:[%s681 + $0x4e8] sm:$0xff] %v9241
        %9645 = vst [vmem:[%s681 + $0x4f0] sm:$0xff] %v9243
        %9646 = vst [vmem:[%s681 + $0x4f8] sm:$0xff] %v9245
        %9647 = vst [vmem:[%s681 + $0x500] sm:$0xff] %v9249
        %9648 = vst [vmem:[%s681 + $0x508] sm:$0xff] %v9251
        %9649 = vst [vmem:[%s681 + $0x510] sm:$0xff] %v9253
        %9650 = vst [vmem:[%s681 + $0x518] sm:$0xff] %v9255
        %9651 = vst [vmem:[%s681 + $0x520] sm:$0xff] %v9259
        %9652 = vst [vmem:[%s681 + $0x528] sm:$0xff] %v9261
        %9653 = vst [vmem:[%s681 + $0x530] sm:$0xff] %v9263
        %9654 = vst [vmem:[%s681 + $0x538] sm:$0xff] %v9265
        %9655 = vst [vmem:[%s681 + $0x540] sm:$0xff] %v9269
        %9656 = vst [vmem:[%s681 + $0x548] sm:$0xff] %v9271
        %9657 = vst [vmem:[%s681 + $0x550] sm:$0xff] %v9273
        %9658 = vst [vmem:[%s681 + $0x558] sm:$0xff] %v9275
        %9659 = vst [vmem:[%s681 + $0x560] sm:$0xff] %v9279
        %9660 = vst [vmem:[%s681 + $0x568] sm:$0xff] %v9281
        %9661 = vst [vmem:[%s681 + $0x570] sm:$0xff] %v9283
        %9662 = vst [vmem:[%s681 + $0x578] sm:$0xff] %v9285
        %9663 = vst [vmem:[%s681 + $0x580] sm:$0xff] %v9289
        %9664 = vst [vmem:[%s681 + $0x588] sm:$0xff] %v9291
        %9665 = vst [vmem:[%s681 + $0x590] sm:$0xff] %v9293
        %9666 = vst [vmem:[%s681 + $0x598] sm:$0xff] %v9295
        %9667 = vst [vmem:[%s681 + $0x5a0] sm:$0xff] %v9299
        %9668 = vst [vmem:[%s681 + $0x5a8] sm:$0xff] %v9301
        %9669 = vst [vmem:[%s681 + $0x5b0] sm:$0xff] %v9303
        %9670 = vst [vmem:[%s681 + $0x5b8] sm:$0xff] %v9305
        %9671 = vst [vmem:[%s681 + $0x5c0] sm:$0xff] %v9309
        %9672 = vst [vmem:[%s681 + $0x5c8] sm:$0xff] %v9311
        %9673 = vst [vmem:[%s681 + $0x5d0] sm:$0xff] %v9313
        %9674 = vst [vmem:[%s681 + $0x5d8] sm:$0xff] %v9315
        %9675 = vst [vmem:[%s681 + $0x5e0] sm:$0xff] %v9319
        %9676 = vst [vmem:[%s681 + $0x5e8] sm:$0xff] %v9321
        %9677 = vst [vmem:[%s681 + $0x5f0] sm:$0xff] %v9323
        %9678 = vst [vmem:[%s681 + $0x5f8] sm:$0xff] %v9325
        %9679 = vst [vmem:[%s681 + $0x600] sm:$0xff] %v9329
        %9680 = vst [vmem:[%s681 + $0x608] sm:$0xff] %v9331
        %9681 = vst [vmem:[%s681 + $0x610] sm:$0xff] %v9333
        %9682 = vst [vmem:[%s681 + $0x618] sm:$0xff] %v9335
        %9683 = vst [vmem:[%s681 + $0x620] sm:$0xff] %v9339
        %9684 = vst [vmem:[%s681 + $0x628] sm:$0xff] %v9341
        %9685 = vst [vmem:[%s681 + $0x630] sm:$0xff] %v9343
        %9686 = vst [vmem:[%s681 + $0x638] sm:$0xff] %v9345
        %9687 = vst [vmem:[%s681 + $0x640] sm:$0xff] %v9349
        %9688 = vst [vmem:[%s681 + $0x648] sm:$0xff] %v9351
        %9689 = vst [vmem:[%s681 + $0x650] sm:$0xff] %v9353
        %9690 = vst [vmem:[%s681 + $0x658] sm:$0xff] %v9355
        %9691 = vst [vmem:[%s681 + $0x660] sm:$0xff] %v9359
        %9692 = vst [vmem:[%s681 + $0x668] sm:$0xff] %v9361
        %9693 = vst [vmem:[%s681 + $0x670] sm:$0xff] %v9363
        %9694 = vst [vmem:[%s681 + $0x678] sm:$0xff] %v9365
        %9695 = vst [vmem:[%s681 + $0x680] sm:$0xff] %v9369
        %9696 = vst [vmem:[%s681 + $0x688] sm:$0xff] %v9371
        %9697 = vst [vmem:[%s681 + $0x690] sm:$0xff] %v9373
        %9698 = vst [vmem:[%s681 + $0x698] sm:$0xff] %v9375
        %9699 = vst [vmem:[%s681 + $0x6a0] sm:$0xff] %v9379
        %9700 = vst [vmem:[%s681 + $0x6a8] sm:$0xff] %v9381
        %9701 = vst [vmem:[%s681 + $0x6b0] sm:$0xff] %v9383
        %9702 = vst [vmem:[%s681 + $0x6b8] sm:$0xff] %v9385
        %9703 = vst [vmem:[%s681 + $0x6c0] sm:$0xff] %v9389
        %9704 = vst [vmem:[%s681 + $0x6c8] sm:$0xff] %v9391
        %9705 = vst [vmem:[%s681 + $0x6d0] sm:$0xff] %v9393
        %9706 = vst [vmem:[%s681 + $0x6d8] sm:$0xff] %v9395
        %9707 = vst [vmem:[%s681 + $0x6e0] sm:$0xff] %v9399
        %9708 = vst [vmem:[%s681 + $0x6e8] sm:$0xff] %v9401
        %9709 = vst [vmem:[%s681 + $0x6f0] sm:$0xff] %v9403
        %9710 = vst [vmem:[%s681 + $0x6f8] sm:$0xff] %v9405
        %9711 = vst [vmem:[%s681 + $0x700] sm:$0xff] %v9409
        %9712 = vst [vmem:[%s681 + $0x708] sm:$0xff] %v9411
        %9713 = vst [vmem:[%s681 + $0x710] sm:$0xff] %v9413
        %9714 = vst [vmem:[%s681 + $0x718] sm:$0xff] %v9415
        %9715 = vst [vmem:[%s681 + $0x720] sm:$0xff] %v9419
        %9716 = vst [vmem:[%s681 + $0x728] sm:$0xff] %v9421
        %9717 = vst [vmem:[%s681 + $0x730] sm:$0xff] %v9423
        %9718 = vst [vmem:[%s681 + $0x738] sm:$0xff] %v9425
        %9719 = vst [vmem:[%s681 + $0x740] sm:$0xff] %v9429
        %9720 = vst [vmem:[%s681 + $0x748] sm:$0xff] %v9431
        %9721 = vst [vmem:[%s681 + $0x750] sm:$0xff] %v9433
        %9722 = vst [vmem:[%s681 + $0x758] sm:$0xff] %v9435
        %9723 = vst [vmem:[%s681 + $0x760] sm:$0xff] %v9439
        %9724 = vst [vmem:[%s681 + $0x768] sm:$0xff] %v9441
        %9725 = vst [vmem:[%s681 + $0x770] sm:$0xff] %v9443
        %9726 = vst [vmem:[%s681 + $0x778] sm:$0xff] %v9445
        %9727 = vst [vmem:[%s681 + $0x780] sm:$0xff] %v9449
        %9728 = vst [vmem:[%s681 + $0x788] sm:$0xff] %v9451
        %9729 = vst [vmem:[%s681 + $0x790] sm:$0xff] %v9453
        %9730 = vst [vmem:[%s681 + $0x798] sm:$0xff] %v9455
        %9731 = vst [vmem:[%s681 + $0x7a0] sm:$0xff] %v9459
        %9732 = vst [vmem:[%s681 + $0x7a8] sm:$0xff] %v9461
        %9733 = vst [vmem:[%s681 + $0x7b0] sm:$0xff] %v9463
        %9734 = vst [vmem:[%s681 + $0x7b8] sm:$0xff] %v9465
        %9735 = vst [vmem:[%s681 + $0x7c0] sm:$0xff] %v9469
        %9736 = vst [vmem:[%s681 + $0x7c8] sm:$0xff] %v9471
        %9737 = vst [vmem:[%s681 + $0x7d0] sm:$0xff] %v9473
        %9738 = vst [vmem:[%s681 + $0x7d8] sm:$0xff] %v9475
        %9739 = vst [vmem:[%s681 + $0x7e0] sm:$0xff] %v9479
        %9740 = vst [vmem:[%s681 + $0x7e8] sm:$0xff] %v9481
        %9741 = vst [vmem:[%s681 + $0x7f0] sm:$0xff] %v9483
        %9742 = vst [vmem:[%s681 + $0x7f8] sm:$0xff] %v9485
        %s9743 = sand.u32 %s345, 1
        %s9744 = scalar_lea.sflag [#allocation4], %s9743
        %s9745 = sand.u32 %s345, 1
        %s9746 = smul.addr %s9745, 2048
        %s9747 = scalar_lea.vmem [#allocation19], %s9746
        // Predicated region
        $region113: #{tpu_custom_call.1} parent=71 // pred_check
          %p9748 = pneg %p355
        $region114: #{tpu_custom_call.1} parent=71 // pred_check_branch
          %9750 = sbr.rel (%p9748) target = $region116
        $region115: #{tpu_custom_call.1} parent=71 // pred_region
          %s9752 = ssub.s32 32768, 32768
          %9753 = vsyncadd %s9744, %s9752
          %s9754 = smul.addr %s39, 256
          %s9755 = smul.addr %s9754, 128
          %s9756 = scalar_lea.hbm %s13, %s9755
          %s9757 = sshll.u32 %s9747, 4
          %s9758 = int_to_ptr.vmem [resolvable:$true] %s9757
          %9763 = dma.vmem_to_hbm [thread:$0]  %s9758, 32768, %s9756, %s9744, 256, 256, 16
        $region116: #{tpu_custom_call.1} parent=71 // pred_fallthru
          _
      $region72: #{tpu_custom_call.1} parent=5 // pred_fallthru
        _
      %p9764 = scmp.le.s32.totalorder 2, %s34
      // Predicated region
      $region117: #{tpu_custom_call.1} parent=5 // pred_check
        %p9765 = pneg %p9764
      $region118: #{tpu_custom_call.1} parent=5 // pred_check_branch
        %9767 = sbr.rel (%p9765) target = $region120
      $region119: #{tpu_custom_call.1} parent=5 // pred_region
        %s9768 = ssub.s32 %s34, 2
        // Predicated region
        $region121: #{tpu_custom_call.1} parent=119 // pred_check
          %p9769 = pneg %p361
        $region122: #{tpu_custom_call.1} parent=119 // pred_check_branch
          %9771 = sbr.rel (%p9769) target = $region124
        $region123: #{tpu_custom_call.1} parent=119 // pred_region
          %s9772 = sand.u32 %s346, 1
          %s9773 = scalar_lea.sflag [#allocation4], %s9772
          %s9774 = sand.u32 %s346, 1
          %s9775 = smul.addr %s9774, 2048
          %s9776 = scalar_lea.vmem [#allocation19], %s9775
          %9777 = dma.done %s9773, 32768
        $region124: #{tpu_custom_call.1} parent=119 // pred_fallthru
          _
      $region120: #{tpu_custom_call.1} parent=5 // pred_fallthru
        _
    $region6: #{tpu_custom_call.1} parent=1 // loop_footer
      %s38 = sadd.s32 1, %s34
    $region7: #{tpu_custom_call.1} parent=1 // loop_footer_branch
      %33 = sbr.rel target = $region3
    $region8: #{tpu_custom_call.1} parent=1 // loop_exit
      _
    %9778 = vsyncpa [#allocation3], 1
    %s9779 = scalar_lea.sflag [#allocation3], 1
    %9780 = vsyncpa %s9779, 1
    %9781 = vsyncpa [#allocation6], 1
    %s9782 = scalar_lea.sflag [#allocation6], 1
    %9783 = vsyncpa %s9782, 1
    %9784 = vsyncpa [#allocation9], 1
    %s9785 = scalar_lea.sflag [#allocation9], 1
    %9786 = vsyncpa %s9785, 1
    %9787 = vsyncpa [#allocation12], 1
    %9788 = vsyncpa [#allocation15], 1
    %9789 = vsyncpa [#allocation18], 1
    %9790 = vsyncpa [#allocation4], 1
    %s9791 = scalar_lea.sflag [#allocation4], 1
    %9792 = vsyncpa %s9791, 1

</llo_original>
